<compile_context>
chip_gen: v7x
topology: tpu7x:2x2x1
jax: 0.10.0
libtpu: 0.0.40
codegen_flags: <defaults>
</compile_context>

<pallas_src>
import functools

import jax
import jax.numpy as jnp
from jax.experimental import pallas as pl
from jax.experimental.pallas import tpu as pltpu

# Spatial geometry (16x16 input, all convs stride 1 "same").
H = W = 16
PAD = 3                       # zero border of the canvas (= conv1 padding)
WC = HC = H + 2 * PAD         # 22 x 22 canvas
CAN = HC * WC                 # 484 flattened canvas positions
OFF = 128                     # canvas start lane inside a per-image slab (>= 69, 128-aligned)
CANW = 768                    # per-image slab width (multiple of 128; 768-128-484 = 156 >= 69)

# conv1..conv3: (kernel, padding, Cin, Cout); conv4 is the 1x1 handled separately.
_CONVS = ((7, 3, 3, 8), (5, 2, 8, 8), (3, 1, 8, 8))


def _fused_cnn_kernel(bb, x_ref, mask_ref,
                      w1_ref, w2_ref, w3_ref, w4_ref, bconv_ref, wfc_ref, bfc_ref,
                      o_ref, can1, can2, can3, col1, col2, col3, a4_buf):
    mask = mask_ref[...] != 0.0                 # (1, 484): True on the 16x16 interior

    def build_col(src_ref, col_ref, cin, kk, pad):
        """K-stack the kk*kk shifted tap slices of one image into a col buffer."""
        for dh in range(kk):
            for dw in range(kk):
                k = dh * kk + dw
                shift = (dh - pad) * WC + (dw - pad)        # static, |shift| <= 69
                col_ref[k * cin:(k + 1) * cin, :] = (
                    src_ref[:, OFF + shift:OFF + shift + CAN])

    def conv(w_ref, col_ref, bias_col):
        """One MXU matmul over all taps*Cin, + bias + ReLU + NaN-safe border mask."""
        cout = w_ref.shape[0]
        y = jnp.dot(w_ref[...], col_ref[...], preferred_element_type=jnp.float32)
        y = jnp.maximum(y + bconv_ref[0:cout, bias_col:bias_col + 1], 0.0)
        # Border lanes -> exact 0 (this IS the zero padding the next conv sees).
        # where-select (not multiply) so garbage in never-written margin lanes can
        # never leak a NaN into a kept output.
        return jnp.where(mask, y, 0.0)

    @pl.loop(0, bb)
    def _per_image(b):
        # conv1: 3 -> 8, 7x7, pad 3
        can1[...] = x_ref[b]                                     # (3, 768) bf16 slab
        build_col(can1, col1, 3, 7, 3)
        can2[:, OFF:OFF + CAN] = conv(w1_ref, col1, 0).astype(can2.dtype)
        # conv2: 8 -> 8, 5x5, pad 2
        build_col(can2, col2, 8, 5, 2)
        can3[:, OFF:OFF + CAN] = conv(w2_ref, col2, 1).astype(can3.dtype)
        # conv3: 8 -> 8, 3x3, pad 1
        build_col(can3, col3, 8, 3, 1)
        y3 = conv(w3_ref, col3, 2).astype(jnp.bfloat16)          # (8, 484)
        # conv4: 1x1, 8 -> 64.  No mask needed: border lanes are relu(b4) and the
        # scattered fc weight is exactly zero there (see prepare_params).
        y4 = jnp.dot(w4_ref[...], y3, preferred_element_type=jnp.float32)
        a4_buf[...] = jnp.maximum(y4 + bconv_ref[:, 3:4], 0.0)   # (64, 484) f32
        # FC with PyTorch's NCHW view(B, -1) flatten folded into wfc (f32, loaded once).
        cols = []
        for n in range(4):
            prod = wfc_ref[n] * a4_buf[...]                      # (64, 484) f32
            col = jnp.sum(prod, axis=1, keepdims=True)           # lane reduce    -> (64, 1)
            cols.append(jnp.sum(col, axis=0, keepdims=True))     # sublane reduce -> (1, 1)
        o_ref[b] = jnp.concatenate(cols, axis=1) + bfc_ref[...]  # (1, 4)


def my_cnn_forward(prep, x_nchw, *, block_batch=None):
    """x_nchw: (B, 3, 16, 16) float32 -> (B, 4) float32 (eval-mode forward)."""
    B = x_nchw.shape[0]
    if block_batch is None:
        bb = max(1, min(8, -(-B // 2)))     # >= 2 grid steps whenever B >= 2 (v7x megacore)
    else:
        bb = block_batch
    g = -(-B // bb)
    b_pad = g * bb

    # Layout plumbing (tiny, XLA-side): one zero-bordered 22x22 canvas per image,
    # flattened onto the lane axis at offset 128 of a 768-lane slab, cast to bf16.
    xp = jnp.pad(x_nchw, ((0, b_pad - B), (0, 0), (PAD, PAD), (PAD, PAD)))
    x_in = jnp.pad(xp.reshape(b_pad, 3, CAN),
                   ((0, 0), (0, 0), (OFF, CANW - OFF - CAN))).astype(jnp.bfloat16)

    # Interior mask: 1.0 inside the 16x16 image, 0.0 on the 3-px canvas border.
    mask = jnp.pad(jnp.ones((H, W), jnp.float32),
                   ((PAD, PAD), (PAD, PAD))).reshape(1, CAN)

    def const(shape):
        nd = len(shape)
        return pl.BlockSpec(shape, lambda gg, _n=nd: (0,) * _n)

    out = pl.pallas_call(
        functools.partial(_fused_cnn_kernel, bb),
        out_shape=jax.ShapeDtypeStruct((b_pad, 1, 4), jnp.float32),
        grid=(g,),
        in_specs=[
            pl.BlockSpec((bb, 3, CANW), lambda gg: (gg, 0, 0)),  # input canvases
            const((1, CAN)),                                     # interior mask
            const((8, 147)),                                     # conv1 w (Cout, KH*KW*Cin)
            const((8, 200)),                                     # conv2 w
            const((8, 72)),                                      # conv3 w
            const((64, 8)),                                      # conv4 w (Cout, Cin)
            const((64, 4)),                                      # packed conv biases
            const((4, 64, CAN)),                                 # fc w (flatten folded, f32)
            const((1, 4)),                                       # fc bias
        ],
        out_specs=pl.BlockSpec((bb, 1, 4), lambda gg: (gg, 0, 0)),
        scratch_shapes=[
            pltpu.VMEM((3, CANW), jnp.bfloat16),     # can1: input canvas slab
            pltpu.VMEM((8, CANW), jnp.bfloat16),     # can2: conv1 output canvas
            pltpu.VMEM((8, CANW), jnp.bfloat16),     # can3: conv2 output canvas
            pltpu.VMEM((147, CAN), jnp.bfloat16),    # col1: 7x7x3 K-stack
            pltpu.VMEM((200, CAN), jnp.bfloat16),    # col2: 5x5x8 K-stack
            pltpu.VMEM((72, CAN), jnp.bfloat16),     # col3: 3x3x8 K-stack
            pltpu.VMEM((64, CAN), jnp.float32),      # a4:   conv4 output (FC input)
        ],
        compiler_params=pltpu.CompilerParams(
            dimension_semantics=("parallel",)),
    )(x_in, mask, prep["w1"], prep["w2"], prep["w3"], prep["w4"],
      prep["bconv"], prep["wfc"], prep["bfc"])
    return out.reshape(b_pad, 4)[:B]


def init_params(key, h, w):
    """Random params in PyTorch-like layouts (HWIO convs, (fan_in, 4) fc)."""
    specs = [("conv1", (7, 7, 3, 8)), ("conv2", (5, 5, 8, 8)),
             ("conv3", (3, 3, 8, 8)), ("conv4", (1, 1, 8, 64))]
    params = {}
    for name, shp in specs:
        key, k_w, k_b = jax.random.split(key, 3)
        fan_in = shp[0] * shp[1] * shp[2]
        bound = 1.0 / float(fan_in) ** 0.5
        params[name + "_w"] = jax.random.uniform(k_w, shp, jnp.float32, -bound, bound)
        params[name + "_b"] = jax.random.uniform(k_b, (shp[3],), jnp.float32, -bound, bound)
    # TODO(synk): the PyTorch module sizes fc from a 224x224 probe (fc_input_size =
    # 64*224*224); here the fc matches the demo's actual 16x16 spatial size.
    fc_in = 64 * h * w
    key, k_w, k_b = jax.random.split(key, 3)
    bound = 1.0 / float(fc_in) ** 0.5
    params["fc_w"] = jax.random.uniform(k_w, (fc_in, 4), jnp.float32, -bound, bound)
    params["fc_b"] = jax.random.uniform(k_b, (4,), jnp.float32, -bound, bound)
    return params


def prepare_params(params):
    """One-time repack of the weights into the kernel's layouts (free at init)."""
    prep = {}
    for i, (kk, _pad, cin, cout) in enumerate(_CONVS, start=1):
        wgt = params[f"conv{i}_w"]                      # (KH, KW, Cin, Cout) HWIO
        # (Cout, KH*KW*Cin), rows ordered tap-major / cin-minor (matches the col build)
        prep[f"w{i}"] = jnp.transpose(wgt, (3, 0, 1, 2)).reshape(
            cout, kk * kk * cin).astype(jnp.bfloat16)
    prep["w4"] = jnp.transpose(params["conv4_w"][0, 0], (1, 0)).astype(jnp.bfloat16)
    bcols = [jnp.pad(params[f"conv{i}_b"], (0, 64 - params[f"conv{i}_b"].shape[0]))
             for i in (1, 2, 3)] + [params["conv4_b"]]
    prep["bconv"] = jnp.stack(bcols, axis=1).astype(jnp.float32)        # (64, 4)
    # Fold PyTorch's NCHW view(B, -1) flatten + the canvas layout into the FC weight:
    # scatter fc_w rows into (out=4, channel=64, canvas=484); EXACT zeros outside the
    # 16x16 interior (conv4's unmasked border lanes rely on these zeros).
    wfc = params["fc_w"].reshape(64, H, W, 4)
    wfc = jnp.pad(wfc, ((0, 0), (PAD, PAD), (PAD, PAD), (0, 0)))
    prep["wfc"] = jnp.transpose(wfc.reshape(64, CAN, 4), (2, 0, 1)).astype(jnp.float32)
    prep["bfc"] = params["fc_b"].reshape(1, 4).astype(jnp.float32)
    return prep


def _reference_forward(params, x_nchw):
    """Pure-JAX float32 reference of the PyTorch module's eval-mode forward."""
    x = jnp.transpose(x_nchw, (0, 2, 3, 1))             # NCHW -> NHWC
    for i, pad in [(1, 3), (2, 2), (3, 1), (4, 0)]:
        wgt, b = params[f"conv{i}_w"], params[f"conv{i}_b"]
        kh, kw, cin, cout = wgt.shape
        _, hh, ww, _ = x.shape
        xp = jnp.pad(x, ((0, 0), (pad, pad), (pad, pad), (0, 0)))
        patches = [xp[:, a:a + hh, c:c + ww, :] for a in range(kh) for c in range(kw)]
        cols = jnp.concatenate(patches, axis=-1)
        y = jnp.einsum("bhwk,kc->bhwc", cols, wgt.reshape(kh * kw * cin, cout),
                       precision=jax.lax.Precision.HIGHEST) + b
        x = jnp.maximum(y, 0.0)
    bsz = x.shape[0]
    flat = jnp.transpose(x, (0, 3, 1, 2)).reshape(bsz, -1)           # NCHW flatten
    return jnp.dot(flat, params["fc_w"],
                   precision=jax.lax.Precision.HIGHEST) + params["fc_b"]


if __name__ == "__main__":
    B, C = 2, 3
    key = jax.random.PRNGKey(0)
    key, k_x = jax.random.split(key)
    x = jax.random.normal(k_x, (B, C, H, W), jnp.float32)
    params = init_params(key, H, W)
    prep = prepare_params(params)

    out = jax.jit(my_cnn_forward)(prep, x)
    jax.block_until_ready(out)
    assert out.shape == (B, 4) and out.dtype == jnp.float32

    ref = _reference_forward(params, x)
    max_diff = float(jnp.max(jnp.abs(out - ref)))
    # bf16 conv weights/activations (with f32 accumulation) vs. a pure-f32 reference.
    assert max_diff < 1e-2, f"mismatch vs reference: {max_diff}"

    print("KERNEL_OK")
</pallas_src>

<mosaic_0001>
module attributes {stable_mosaic.version = 11 : i64} {
  func.func @_fused_cnn_kernel(%arg0: i32, %arg1: memref<1x3x768xbf16, #tpu.memory_space<vmem>>, %arg2: memref<1x484xf32, #tpu.memory_space<vmem>>, %arg3: memref<8x147xbf16, #tpu.memory_space<vmem>>, %arg4: memref<8x200xbf16, #tpu.memory_space<vmem>>, %arg5: memref<8x72xbf16, #tpu.memory_space<vmem>>, %arg6: memref<64x8xbf16, #tpu.memory_space<vmem>>, %arg7: memref<64x4xf32, #tpu.memory_space<vmem>>, %arg8: memref<4x64x484xf32, #tpu.memory_space<vmem>>, %arg9: memref<1x4xf32, #tpu.memory_space<vmem>>, %arg10: memref<1x1x4xf32, #tpu.memory_space<vmem>>, %arg11: memref<3x768xbf16, #tpu.memory_space<vmem>>, %arg12: memref<8x768xbf16, #tpu.memory_space<vmem>>, %arg13: memref<8x768xbf16, #tpu.memory_space<vmem>>, %arg14: memref<147x484xbf16, #tpu.memory_space<vmem>>, %arg15: memref<200x484xbf16, #tpu.memory_space<vmem>>, %arg16: memref<72x484xbf16, #tpu.memory_space<vmem>>, %arg17: memref<64x484xf32, #tpu.memory_space<vmem>>) attributes {dimension_semantics = [#tpu.dimension_semantics<parallel>], iteration_bounds = array<i64: 2>, scalar_prefetch = 0 : i64, scratch_operands = 7 : i64, tpu.core_type = #tpu.core_type<tc>, window_params = [{transform_indices = @transform_0, window_bounds = array<i64: 1, 3, 768>}, {pipeline_mode = #tpu.pipeline_mode<synchronous>, transform_indices = @transform_1, window_bounds = array<i64: 1, 484>}, {pipeline_mode = #tpu.pipeline_mode<synchronous>, transform_indices = @transform_2, window_bounds = array<i64: 8, 147>}, {pipeline_mode = #tpu.pipeline_mode<synchronous>, transform_indices = @transform_3, window_bounds = array<i64: 8, 200>}, {pipeline_mode = #tpu.pipeline_mode<synchronous>, transform_indices = @transform_4, window_bounds = array<i64: 8, 72>}, {pipeline_mode = #tpu.pipeline_mode<synchronous>, transform_indices = @transform_5, window_bounds = array<i64: 64, 8>}, {pipeline_mode = #tpu.pipeline_mode<synchronous>, transform_indices = @transform_6, window_bounds = array<i64: 64, 4>}, {pipeline_mode = #tpu.pipeline_mode<synchronous>, transform_indices = @transform_7, window_bounds = array<i64: 4, 64, 484>}, {pipeline_mode = #tpu.pipeline_mode<synchronous>, transform_indices = @transform_8, window_bounds = array<i64: 1, 4>}, {transform_indices = @transform_9, window_bounds = array<i64: 1, 1, 4>}]} {
    %c0 = arith.constant 0 : index
    %c0_0 = arith.constant 0 : index
    %0 = vector.load %arg2[%c0, %c0_0] : memref<1x484xf32, #tpu.memory_space<vmem>>, vector<1x484xf32>
    %cst = arith.constant 0.000000e+00 : f32
    %1 = vector.broadcast %cst : f32 to vector<1x484xf32>
    %2 = arith.cmpf one, %0, %1 : vector<1x484xf32>
    %c0_i32 = arith.constant 0 : i32
    %c1_i32 = arith.constant 1 : i32
    %3 = arith.muli %c0_i32, %c1_i32 : i32
    %c0_i32_1 = arith.constant 0 : i32
    %4 = arith.addi %c0_i32_1, %3 : i32
    %5 = arith.index_cast %4 : i32 to index
    %c0_2 = arith.constant 0 : index
    %c0_3 = arith.constant 0 : index
    %6 = vector.load %arg1[%5, %c0_2, %c0_3] : memref<1x3x768xbf16, #tpu.memory_space<vmem>>, vector<1x3x768xbf16>
    %7 = vector.shape_cast %6 : vector<1x3x768xbf16> to vector<3x768xbf16>
    %c0_4 = arith.constant 0 : index
    %c0_5 = arith.constant 0 : index
    %8 = vector.load %arg11[%c0_4, %c0_5] : memref<3x768xbf16, #tpu.memory_space<vmem>>, vector<3x768xbf16>
    tpu.vector_store %arg11[%c0_4, %c0_5], %7 {strides = array<i32>} : memref<3x768xbf16, #tpu.memory_space<vmem>>, vector<3x768xbf16>,
    %c0_6 = arith.constant 0 : index
    %c59 = arith.constant 59 : index
    %9 = vector.load %arg11[%c0_6, %c59] : memref<3x768xbf16, #tpu.memory_space<vmem>>, vector<3x484xbf16>
    %c0_7 = arith.constant 0 : index
    %c0_8 = arith.constant 0 : index
    %10 = vector.load %arg14[%c0_7, %c0_8] : memref<147x484xbf16, #tpu.memory_space<vmem>>, vector<3x484xbf16>
    tpu.vector_store %arg14[%c0_7, %c0_8], %9 {strides = array<i32>} : memref<147x484xbf16, #tpu.memory_space<vmem>>, vector<3x484xbf16>,
    %c0_9 = arith.constant 0 : index
    %c60 = arith.constant 60 : index
    %11 = vector.load %arg11[%c0_9, %c60] : memref<3x768xbf16, #tpu.memory_space<vmem>>, vector<3x484xbf16>
    %c3 = arith.constant 3 : index
    %c0_10 = arith.constant 0 : index
    %12 = vector.load %arg14[%c3, %c0_10] : memref<147x484xbf16, #tpu.memory_space<vmem>>, vector<3x484xbf16>
    tpu.vector_store %arg14[%c3, %c0_10], %11 {strides = array<i32>} : memref<147x484xbf16, #tpu.memory_space<vmem>>, vector<3x484xbf16>,
    %c0_11 = arith.constant 0 : index
    %c61 = arith.constant 61 : index
    %13 = vector.load %arg11[%c0_11, %c61] : memref<3x768xbf16, #tpu.memory_space<vmem>>, vector<3x484xbf16>
    %c6 = arith.constant 6 : index
    %c0_12 = arith.constant 0 : index
    %14 = vector.load %arg14[%c6, %c0_12] : memref<147x484xbf16, #tpu.memory_space<vmem>>, vector<3x484xbf16>
    tpu.vector_store %arg14[%c6, %c0_12], %13 {strides = array<i32>} : memref<147x484xbf16, #tpu.memory_space<vmem>>, vector<3x484xbf16>,
    %c0_13 = arith.constant 0 : index
    %c62 = arith.constant 62 : index
    %15 = vector.load %arg11[%c0_13, %c62] : memref<3x768xbf16, #tpu.memory_space<vmem>>, vector<3x484xbf16>
    %c9 = arith.constant 9 : index
    %c0_14 = arith.constant 0 : index
    %16 = vector.load %arg14[%c9, %c0_14] : memref<147x484xbf16, #tpu.memory_space<vmem>>, vector<3x484xbf16>
    tpu.vector_store %arg14[%c9, %c0_14], %15 {strides = array<i32>} : memref<147x484xbf16, #tpu.memory_space<vmem>>, vector<3x484xbf16>,
    %c0_15 = arith.constant 0 : index
    %c63 = arith.constant 63 : index
    %17 = vector.load %arg11[%c0_15, %c63] : memref<3x768xbf16, #tpu.memory_space<vmem>>, vector<3x484xbf16>
    %c12 = arith.constant 12 : index
    %c0_16 = arith.constant 0 : index
    %18 = vector.load %arg14[%c12, %c0_16] : memref<147x484xbf16, #tpu.memory_space<vmem>>, vector<3x484xbf16>
    tpu.vector_store %arg14[%c12, %c0_16], %17 {strides = array<i32>} : memref<147x484xbf16, #tpu.memory_space<vmem>>, vector<3x484xbf16>,
    %c0_17 = arith.constant 0 : index
    %c64 = arith.constant 64 : index
    %19 = vector.load %arg11[%c0_17, %c64] : memref<3x768xbf16, #tpu.memory_space<vmem>>, vector<3x484xbf16>
    %c15 = arith.constant 15 : index
    %c0_18 = arith.constant 0 : index
    %20 = vector.load %arg14[%c15, %c0_18] : memref<147x484xbf16, #tpu.memory_space<vmem>>, vector<3x484xbf16>
    tpu.vector_store %arg14[%c15, %c0_18], %19 {strides = array<i32>} : memref<147x484xbf16, #tpu.memory_space<vmem>>, vector<3x484xbf16>,
    %c0_19 = arith.constant 0 : index
    %c65 = arith.constant 65 : index
    %21 = vector.load %arg11[%c0_19, %c65] : memref<3x768xbf16, #tpu.memory_space<vmem>>, vector<3x484xbf16>
    %c18 = arith.constant 18 : index
    %c0_20 = arith.constant 0 : index
    %22 = vector.load %arg14[%c18, %c0_20] : memref<147x484xbf16, #tpu.memory_space<vmem>>, vector<3x484xbf16>
    tpu.vector_store %arg14[%c18, %c0_20], %21 {strides = array<i32>} : memref<147x484xbf16, #tpu.memory_space<vmem>>, vector<3x484xbf16>,
    %c0_21 = arith.constant 0 : index
    %c81 = arith.constant 81 : index
    %23 = vector.load %arg11[%c0_21, %c81] : memref<3x768xbf16, #tpu.memory_space<vmem>>, vector<3x484xbf16>
    %c21 = arith.constant 21 : index
    %c0_22 = arith.constant 0 : index
    %24 = vector.load %arg14[%c21, %c0_22] : memref<147x484xbf16, #tpu.memory_space<vmem>>, vector<3x484xbf16>
    tpu.vector_store %arg14[%c21, %c0_22], %23 {strides = array<i32>} : memref<147x484xbf16, #tpu.memory_space<vmem>>, vector<3x484xbf16>,
    %c0_23 = arith.constant 0 : index
    %c82 = arith.constant 82 : index
    %25 = vector.load %arg11[%c0_23, %c82] : memref<3x768xbf16, #tpu.memory_space<vmem>>, vector<3x484xbf16>
    %c24 = arith.constant 24 : index
    %c0_24 = arith.constant 0 : index
    %26 = vector.load %arg14[%c24, %c0_24] : memref<147x484xbf16, #tpu.memory_space<vmem>>, vector<3x484xbf16>
    tpu.vector_store %arg14[%c24, %c0_24], %25 {strides = array<i32>} : memref<147x484xbf16, #tpu.memory_space<vmem>>, vector<3x484xbf16>,
    %c0_25 = arith.constant 0 : index
    %c83 = arith.constant 83 : index
    %27 = vector.load %arg11[%c0_25, %c83] : memref<3x768xbf16, #tpu.memory_space<vmem>>, vector<3x484xbf16>
    %c27 = arith.constant 27 : index
    %c0_26 = arith.constant 0 : index
    %28 = vector.load %arg14[%c27, %c0_26] : memref<147x484xbf16, #tpu.memory_space<vmem>>, vector<3x484xbf16>
    tpu.vector_store %arg14[%c27, %c0_26], %27 {strides = array<i32>} : memref<147x484xbf16, #tpu.memory_space<vmem>>, vector<3x484xbf16>,
    %c0_27 = arith.constant 0 : index
    %c84 = arith.constant 84 : index
    %29 = vector.load %arg11[%c0_27, %c84] : memref<3x768xbf16, #tpu.memory_space<vmem>>, vector<3x484xbf16>
    %c30 = arith.constant 30 : index
    %c0_28 = arith.constant 0 : index
    %30 = vector.load %arg14[%c30, %c0_28] : memref<147x484xbf16, #tpu.memory_space<vmem>>, vector<3x484xbf16>
    tpu.vector_store %arg14[%c30, %c0_28], %29 {strides = array<i32>} : memref<147x484xbf16, #tpu.memory_space<vmem>>, vector<3x484xbf16>,
    %c0_29 = arith.constant 0 : index
    %c85 = arith.constant 85 : index
    %31 = vector.load %arg11[%c0_29, %c85] : memref<3x768xbf16, #tpu.memory_space<vmem>>, vector<3x484xbf16>
    %c33 = arith.constant 33 : index
    %c0_30 = arith.constant 0 : index
    %32 = vector.load %arg14[%c33, %c0_30] : memref<147x484xbf16, #tpu.memory_space<vmem>>, vector<3x484xbf16>
    tpu.vector_store %arg14[%c33, %c0_30], %31 {strides = array<i32>} : memref<147x484xbf16, #tpu.memory_space<vmem>>, vector<3x484xbf16>,
    %c0_31 = arith.constant 0 : index
    %c86 = arith.constant 86 : index
    %33 = vector.load %arg11[%c0_31, %c86] : memref<3x768xbf16, #tpu.memory_space<vmem>>, vector<3x484xbf16>
    %c36 = arith.constant 36 : index
    %c0_32 = arith.constant 0 : index
    %34 = vector.load %arg14[%c36, %c0_32] : memref<147x484xbf16, #tpu.memory_space<vmem>>, vector<3x484xbf16>
    tpu.vector_store %arg14[%c36, %c0_32], %33 {strides = array<i32>} : memref<147x484xbf16, #tpu.memory_space<vmem>>, vector<3x484xbf16>,
    %c0_33 = arith.constant 0 : index
    %c87 = arith.constant 87 : index
    %35 = vector.load %arg11[%c0_33, %c87] : memref<3x768xbf16, #tpu.memory_space<vmem>>, vector<3x484xbf16>
    %c39 = arith.constant 39 : index
    %c0_34 = arith.constant 0 : index
    %36 = vector.load %arg14[%c39, %c0_34] : memref<147x484xbf16, #tpu.memory_space<vmem>>, vector<3x484xbf16>
    tpu.vector_store %arg14[%c39, %c0_34], %35 {strides = array<i32>} : memref<147x484xbf16, #tpu.memory_space<vmem>>, vector<3x484xbf16>,
    %c0_35 = arith.constant 0 : index
    %c103 = arith.constant 103 : index
    %37 = vector.load %arg11[%c0_35, %c103] : memref<3x768xbf16, #tpu.memory_space<vmem>>, vector<3x484xbf16>
    %c42 = arith.constant 42 : index
    %c0_36 = arith.constant 0 : index
    %38 = vector.load %arg14[%c42, %c0_36] : memref<147x484xbf16, #tpu.memory_space<vmem>>, vector<3x484xbf16>
    tpu.vector_store %arg14[%c42, %c0_36], %37 {strides = array<i32>} : memref<147x484xbf16, #tpu.memory_space<vmem>>, vector<3x484xbf16>,
    %c0_37 = arith.constant 0 : index
    %c104 = arith.constant 104 : index
    %39 = vector.load %arg11[%c0_37, %c104] : memref<3x768xbf16, #tpu.memory_space<vmem>>, vector<3x484xbf16>
    %c45 = arith.constant 45 : index
    %c0_38 = arith.constant 0 : index
    %40 = vector.load %arg14[%c45, %c0_38] : memref<147x484xbf16, #tpu.memory_space<vmem>>, vector<3x484xbf16>
    tpu.vector_store %arg14[%c45, %c0_38], %39 {strides = array<i32>} : memref<147x484xbf16, #tpu.memory_space<vmem>>, vector<3x484xbf16>,
    %c0_39 = arith.constant 0 : index
    %c105 = arith.constant 105 : index
    %41 = vector.load %arg11[%c0_39, %c105] : memref<3x768xbf16, #tpu.memory_space<vmem>>, vector<3x484xbf16>
    %c48 = arith.constant 48 : index
    %c0_40 = arith.constant 0 : index
    %42 = vector.load %arg14[%c48, %c0_40] : memref<147x484xbf16, #tpu.memory_space<vmem>>, vector<3x484xbf16>
    tpu.vector_store %arg14[%c48, %c0_40], %41 {strides = array<i32>} : memref<147x484xbf16, #tpu.memory_space<vmem>>, vector<3x484xbf16>,
    %c0_41 = arith.constant 0 : index
    %c106 = arith.constant 106 : index
    %43 = vector.load %arg11[%c0_41, %c106] : memref<3x768xbf16, #tpu.memory_space<vmem>>, vector<3x484xbf16>
    %c51 = arith.constant 51 : index
    %c0_42 = arith.constant 0 : index
    %44 = vector.load %arg14[%c51, %c0_42] : memref<147x484xbf16, #tpu.memory_space<vmem>>, vector<3x484xbf16>
    tpu.vector_store %arg14[%c51, %c0_42], %43 {strides = array<i32>} : memref<147x484xbf16, #tpu.memory_space<vmem>>, vector<3x484xbf16>,
    %c0_43 = arith.constant 0 : index
    %c107 = arith.constant 107 : index
    %45 = vector.load %arg11[%c0_43, %c107] : memref<3x768xbf16, #tpu.memory_space<vmem>>, vector<3x484xbf16>
    %c54 = arith.constant 54 : index
    %c0_44 = arith.constant 0 : index
    %46 = vector.load %arg14[%c54, %c0_44] : memref<147x484xbf16, #tpu.memory_space<vmem>>, vector<3x484xbf16>
    tpu.vector_store %arg14[%c54, %c0_44], %45 {strides = array<i32>} : memref<147x484xbf16, #tpu.memory_space<vmem>>, vector<3x484xbf16>,
    %c0_45 = arith.constant 0 : index
    %c108 = arith.constant 108 : index
    %47 = vector.load %arg11[%c0_45, %c108] : memref<3x768xbf16, #tpu.memory_space<vmem>>, vector<3x484xbf16>
    %c57 = arith.constant 57 : index
    %c0_46 = arith.constant 0 : index
    %48 = vector.load %arg14[%c57, %c0_46] : memref<147x484xbf16, #tpu.memory_space<vmem>>, vector<3x484xbf16>
    tpu.vector_store %arg14[%c57, %c0_46], %47 {strides = array<i32>} : memref<147x484xbf16, #tpu.memory_space<vmem>>, vector<3x484xbf16>,
    %c0_47 = arith.constant 0 : index
    %c109 = arith.constant 109 : index
    %49 = vector.load %arg11[%c0_47, %c109] : memref<3x768xbf16, #tpu.memory_space<vmem>>, vector<3x484xbf16>
    %c60_48 = arith.constant 60 : index
    %c0_49 = arith.constant 0 : index
    %50 = vector.load %arg14[%c60_48, %c0_49] : memref<147x484xbf16, #tpu.memory_space<vmem>>, vector<3x484xbf16>
    tpu.vector_store %arg14[%c60_48, %c0_49], %49 {strides = array<i32>} : memref<147x484xbf16, #tpu.memory_space<vmem>>, vector<3x484xbf16>,
    %c0_50 = arith.constant 0 : index
    %c125 = arith.constant 125 : index
    %51 = vector.load %arg11[%c0_50, %c125] : memref<3x768xbf16, #tpu.memory_space<vmem>>, vector<3x484xbf16>
    %c63_51 = arith.constant 63 : index
    %c0_52 = arith.constant 0 : index
    %52 = vector.load %arg14[%c63_51, %c0_52] : memref<147x484xbf16, #tpu.memory_space<vmem>>, vector<3x484xbf16>
    tpu.vector_store %arg14[%c63_51, %c0_52], %51 {strides = array<i32>} : memref<147x484xbf16, #tpu.memory_space<vmem>>, vector<3x484xbf16>,
    %c0_53 = arith.constant 0 : index
    %c126 = arith.constant 126 : index
    %53 = vector.load %arg11[%c0_53, %c126] : memref<3x768xbf16, #tpu.memory_space<vmem>>, vector<3x484xbf16>
    %c66 = arith.constant 66 : index
    %c0_54 = arith.constant 0 : index
    %54 = vector.load %arg14[%c66, %c0_54] : memref<147x484xbf16, #tpu.memory_space<vmem>>, vector<3x484xbf16>
    tpu.vector_store %arg14[%c66, %c0_54], %53 {strides = array<i32>} : memref<147x484xbf16, #tpu.memory_space<vmem>>, vector<3x484xbf16>,
    %c0_55 = arith.constant 0 : index
    %c127 = arith.constant 127 : index
    %55 = vector.load %arg11[%c0_55, %c127] : memref<3x768xbf16, #tpu.memory_space<vmem>>, vector<3x484xbf16>
    %c69 = arith.constant 69 : index
    %c0_56 = arith.constant 0 : index
    %56 = vector.load %arg14[%c69, %c0_56] : memref<147x484xbf16, #tpu.memory_space<vmem>>, vector<3x484xbf16>
    tpu.vector_store %arg14[%c69, %c0_56], %55 {strides = array<i32>} : memref<147x484xbf16, #tpu.memory_space<vmem>>, vector<3x484xbf16>,
    %c0_57 = arith.constant 0 : index
    %c128 = arith.constant 128 : index
    %57 = vector.load %arg11[%c0_57, %c128] : memref<3x768xbf16, #tpu.memory_space<vmem>>, vector<3x484xbf16>
    %c72 = arith.constant 72 : index
    %c0_58 = arith.constant 0 : index
    %58 = vector.load %arg14[%c72, %c0_58] : memref<147x484xbf16, #tpu.memory_space<vmem>>, vector<3x484xbf16>
    tpu.vector_store %arg14[%c72, %c0_58], %57 {strides = array<i32>} : memref<147x484xbf16, #tpu.memory_space<vmem>>, vector<3x484xbf16>,
    %c0_59 = arith.constant 0 : index
    %c129 = arith.constant 129 : index
    %59 = vector.load %arg11[%c0_59, %c129] : memref<3x768xbf16, #tpu.memory_space<vmem>>, vector<3x484xbf16>
    %c75 = arith.constant 75 : index
    %c0_60 = arith.constant 0 : index
    %60 = vector.load %arg14[%c75, %c0_60] : memref<147x484xbf16, #tpu.memory_space<vmem>>, vector<3x484xbf16>
    tpu.vector_store %arg14[%c75, %c0_60], %59 {strides = array<i32>} : memref<147x484xbf16, #tpu.memory_space<vmem>>, vector<3x484xbf16>,
    %c0_61 = arith.constant 0 : index
    %c130 = arith.constant 130 : index
    %61 = vector.load %arg11[%c0_61, %c130] : memref<3x768xbf16, #tpu.memory_space<vmem>>, vector<3x484xbf16>
    %c78 = arith.constant 78 : index
    %c0_62 = arith.constant 0 : index
    %62 = vector.load %arg14[%c78, %c0_62] : memref<147x484xbf16, #tpu.memory_space<vmem>>, vector<3x484xbf16>
    tpu.vector_store %arg14[%c78, %c0_62], %61 {strides = array<i32>} : memref<147x484xbf16, #tpu.memory_space<vmem>>, vector<3x484xbf16>,
    %c0_63 = arith.constant 0 : index
    %c131 = arith.constant 131 : index
    %63 = vector.load %arg11[%c0_63, %c131] : memref<3x768xbf16, #tpu.memory_space<vmem>>, vector<3x484xbf16>
    %c81_64 = arith.constant 81 : index
    %c0_65 = arith.constant 0 : index
    %64 = vector.load %arg14[%c81_64, %c0_65] : memref<147x484xbf16, #tpu.memory_space<vmem>>, vector<3x484xbf16>
    tpu.vector_store %arg14[%c81_64, %c0_65], %63 {strides = array<i32>} : memref<147x484xbf16, #tpu.memory_space<vmem>>, vector<3x484xbf16>,
    %c0_66 = arith.constant 0 : index
    %c147 = arith.constant 147 : index
    %65 = vector.load %arg11[%c0_66, %c147] : memref<3x768xbf16, #tpu.memory_space<vmem>>, vector<3x484xbf16>
    %c84_67 = arith.constant 84 : index
    %c0_68 = arith.constant 0 : index
    %66 = vector.load %arg14[%c84_67, %c0_68] : memref<147x484xbf16, #tpu.memory_space<vmem>>, vector<3x484xbf16>
    tpu.vector_store %arg14[%c84_67, %c0_68], %65 {strides = array<i32>} : memref<147x484xbf16, #tpu.memory_space<vmem>>, vector<3x484xbf16>,
    %c0_69 = arith.constant 0 : index
    %c148 = arith.constant 148 : index
    %67 = vector.load %arg11[%c0_69, %c148] : memref<3x768xbf16, #tpu.memory_space<vmem>>, vector<3x484xbf16>
    %c87_70 = arith.constant 87 : index
    %c0_71 = arith.constant 0 : index
    %68 = vector.load %arg14[%c87_70, %c0_71] : memref<147x484xbf16, #tpu.memory_space<vmem>>, vector<3x484xbf16>
    tpu.vector_store %arg14[%c87_70, %c0_71], %67 {strides = array<i32>} : memref<147x484xbf16, #tpu.memory_space<vmem>>, vector<3x484xbf16>,
    %c0_72 = arith.constant 0 : index
    %c149 = arith.constant 149 : index
    %69 = vector.load %arg11[%c0_72, %c149] : memref<3x768xbf16, #tpu.memory_space<vmem>>, vector<3x484xbf16>
    %c90 = arith.constant 90 : index
    %c0_73 = arith.constant 0 : index
    %70 = vector.load %arg14[%c90, %c0_73] : memref<147x484xbf16, #tpu.memory_space<vmem>>, vector<3x484xbf16>
    tpu.vector_store %arg14[%c90, %c0_73], %69 {strides = array<i32>} : memref<147x484xbf16, #tpu.memory_space<vmem>>, vector<3x484xbf16>,
    %c0_74 = arith.constant 0 : index
    %c150 = arith.constant 150 : index
    %71 = vector.load %arg11[%c0_74, %c150] : memref<3x768xbf16, #tpu.memory_space<vmem>>, vector<3x484xbf16>
    %c93 = arith.constant 93 : index
    %c0_75 = arith.constant 0 : index
    %72 = vector.load %arg14[%c93, %c0_75] : memref<147x484xbf16, #tpu.memory_space<vmem>>, vector<3x484xbf16>
    tpu.vector_store %arg14[%c93, %c0_75], %71 {strides = array<i32>} : memref<147x484xbf16, #tpu.memory_space<vmem>>, vector<3x484xbf16>,
    %c0_76 = arith.constant 0 : index
    %c151 = arith.constant 151 : index
    %73 = vector.load %arg11[%c0_76, %c151] : memref<3x768xbf16, #tpu.memory_space<vmem>>, vector<3x484xbf16>
    %c96 = arith.constant 96 : index
    %c0_77 = arith.constant 0 : index
    %74 = vector.load %arg14[%c96, %c0_77] : memref<147x484xbf16, #tpu.memory_space<vmem>>, vector<3x484xbf16>
    tpu.vector_store %arg14[%c96, %c0_77], %73 {strides = array<i32>} : memref<147x484xbf16, #tpu.memory_space<vmem>>, vector<3x484xbf16>,
    %c0_78 = arith.constant 0 : index
    %c152 = arith.constant 152 : index
    %75 = vector.load %arg11[%c0_78, %c152] : memref<3x768xbf16, #tpu.memory_space<vmem>>, vector<3x484xbf16>
    %c99 = arith.constant 99 : index
    %c0_79 = arith.constant 0 : index
    %76 = vector.load %arg14[%c99, %c0_79] : memref<147x484xbf16, #tpu.memory_space<vmem>>, vector<3x484xbf16>
    tpu.vector_store %arg14[%c99, %c0_79], %75 {strides = array<i32>} : memref<147x484xbf16, #tpu.memory_space<vmem>>, vector<3x484xbf16>,
    %c0_80 = arith.constant 0 : index
    %c153 = arith.constant 153 : index
    %77 = vector.load %arg11[%c0_80, %c153] : memref<3x768xbf16, #tpu.memory_space<vmem>>, vector<3x484xbf16>
    %c102 = arith.constant 102 : index
    %c0_81 = arith.constant 0 : index
    %78 = vector.load %arg14[%c102, %c0_81] : memref<147x484xbf16, #tpu.memory_space<vmem>>, vector<3x484xbf16>
    tpu.vector_store %arg14[%c102, %c0_81], %77 {strides = array<i32>} : memref<147x484xbf16, #tpu.memory_space<vmem>>, vector<3x484xbf16>,
    %c0_82 = arith.constant 0 : index
    %c169 = arith.constant 169 : index
    %79 = vector.load %arg11[%c0_82, %c169] : memref<3x768xbf16, #tpu.memory_space<vmem>>, vector<3x484xbf16>
    %c105_83 = arith.constant 105 : index
    %c0_84 = arith.constant 0 : index
    %80 = vector.load %arg14[%c105_83, %c0_84] : memref<147x484xbf16, #tpu.memory_space<vmem>>, vector<3x484xbf16>
    tpu.vector_store %arg14[%c105_83, %c0_84], %79 {strides = array<i32>} : memref<147x484xbf16, #tpu.memory_space<vmem>>, vector<3x484xbf16>,
    %c0_85 = arith.constant 0 : index
    %c170 = arith.constant 170 : index
    %81 = vector.load %arg11[%c0_85, %c170] : memref<3x768xbf16, #tpu.memory_space<vmem>>, vector<3x484xbf16>
    %c108_86 = arith.constant 108 : index
    %c0_87 = arith.constant 0 : index
    %82 = vector.load %arg14[%c108_86, %c0_87] : memref<147x484xbf16, #tpu.memory_space<vmem>>, vector<3x484xbf16>
    tpu.vector_store %arg14[%c108_86, %c0_87], %81 {strides = array<i32>} : memref<147x484xbf16, #tpu.memory_space<vmem>>, vector<3x484xbf16>,
    %c0_88 = arith.constant 0 : index
    %c171 = arith.constant 171 : index
    %83 = vector.load %arg11[%c0_88, %c171] : memref<3x768xbf16, #tpu.memory_space<vmem>>, vector<3x484xbf16>
    %c111 = arith.constant 111 : index
    %c0_89 = arith.constant 0 : index
    %84 = vector.load %arg14[%c111, %c0_89] : memref<147x484xbf16, #tpu.memory_space<vmem>>, vector<3x484xbf16>
    tpu.vector_store %arg14[%c111, %c0_89], %83 {strides = array<i32>} : memref<147x484xbf16, #tpu.memory_space<vmem>>, vector<3x484xbf16>,
    %c0_90 = arith.constant 0 : index
    %c172 = arith.constant 172 : index
    %85 = vector.load %arg11[%c0_90, %c172] : memref<3x768xbf16, #tpu.memory_space<vmem>>, vector<3x484xbf16>
    %c114 = arith.constant 114 : index
    %c0_91 = arith.constant 0 : index
    %86 = vector.load %arg14[%c114, %c0_91] : memref<147x484xbf16, #tpu.memory_space<vmem>>, vector<3x484xbf16>
    tpu.vector_store %arg14[%c114, %c0_91], %85 {strides = array<i32>} : memref<147x484xbf16, #tpu.memory_space<vmem>>, vector<3x484xbf16>,
    %c0_92 = arith.constant 0 : index
    %c173 = arith.constant 173 : index
    %87 = vector.load %arg11[%c0_92, %c173] : memref<3x768xbf16, #tpu.memory_space<vmem>>, vector<3x484xbf16>
    %c117 = arith.constant 117 : index
    %c0_93 = arith.constant 0 : index
    %88 = vector.load %arg14[%c117, %c0_93] : memref<147x484xbf16, #tpu.memory_space<vmem>>, vector<3x484xbf16>
    tpu.vector_store %arg14[%c117, %c0_93], %87 {strides = array<i32>} : memref<147x484xbf16, #tpu.memory_space<vmem>>, vector<3x484xbf16>,
    %c0_94 = arith.constant 0 : index
    %c174 = arith.constant 174 : index
    %89 = vector.load %arg11[%c0_94, %c174] : memref<3x768xbf16, #tpu.memory_space<vmem>>, vector<3x484xbf16>
    %c120 = arith.constant 120 : index
    %c0_95 = arith.constant 0 : index
    %90 = vector.load %arg14[%c120, %c0_95] : memref<147x484xbf16, #tpu.memory_space<vmem>>, vector<3x484xbf16>
    tpu.vector_store %arg14[%c120, %c0_95], %89 {strides = array<i32>} : memref<147x484xbf16, #tpu.memory_space<vmem>>, vector<3x484xbf16>,
    %c0_96 = arith.constant 0 : index
    %c175 = arith.constant 175 : index
    %91 = vector.load %arg11[%c0_96, %c175] : memref<3x768xbf16, #tpu.memory_space<vmem>>, vector<3x484xbf16>
    %c123 = arith.constant 123 : index
    %c0_97 = arith.constant 0 : index
    %92 = vector.load %arg14[%c123, %c0_97] : memref<147x484xbf16, #tpu.memory_space<vmem>>, vector<3x484xbf16>
    tpu.vector_store %arg14[%c123, %c0_97], %91 {strides = array<i32>} : memref<147x484xbf16, #tpu.memory_space<vmem>>, vector<3x484xbf16>,
    %c0_98 = arith.constant 0 : index
    %c191 = arith.constant 191 : index
    %93 = vector.load %arg11[%c0_98, %c191] : memref<3x768xbf16, #tpu.memory_space<vmem>>, vector<3x484xbf16>
    %c126_99 = arith.constant 126 : index
    %c0_100 = arith.constant 0 : index
    %94 = vector.load %arg14[%c126_99, %c0_100] : memref<147x484xbf16, #tpu.memory_space<vmem>>, vector<3x484xbf16>
    tpu.vector_store %arg14[%c126_99, %c0_100], %93 {strides = array<i32>} : memref<147x484xbf16, #tpu.memory_space<vmem>>, vector<3x484xbf16>,
    %c0_101 = arith.constant 0 : index
    %c192 = arith.constant 192 : index
    %95 = vector.load %arg11[%c0_101, %c192] : memref<3x768xbf16, #tpu.memory_space<vmem>>, vector<3x484xbf16>
    %c129_102 = arith.constant 129 : index
    %c0_103 = arith.constant 0 : index
    %96 = vector.load %arg14[%c129_102, %c0_103] : memref<147x484xbf16, #tpu.memory_space<vmem>>, vector<3x484xbf16>
    tpu.vector_store %arg14[%c129_102, %c0_103], %95 {strides = array<i32>} : memref<147x484xbf16, #tpu.memory_space<vmem>>, vector<3x484xbf16>,
    %c0_104 = arith.constant 0 : index
    %c193 = arith.constant 193 : index
    %97 = vector.load %arg11[%c0_104, %c193] : memref<3x768xbf16, #tpu.memory_space<vmem>>, vector<3x484xbf16>
    %c132 = arith.constant 132 : index
    %c0_105 = arith.constant 0 : index
    %98 = vector.load %arg14[%c132, %c0_105] : memref<147x484xbf16, #tpu.memory_space<vmem>>, vector<3x484xbf16>
    tpu.vector_store %arg14[%c132, %c0_105], %97 {strides = array<i32>} : memref<147x484xbf16, #tpu.memory_space<vmem>>, vector<3x484xbf16>,
    %c0_106 = arith.constant 0 : index
    %c194 = arith.constant 194 : index
    %99 = vector.load %arg11[%c0_106, %c194] : memref<3x768xbf16, #tpu.memory_space<vmem>>, vector<3x484xbf16>
    %c135 = arith.constant 135 : index
    %c0_107 = arith.constant 0 : index
    %100 = vector.load %arg14[%c135, %c0_107] : memref<147x484xbf16, #tpu.memory_space<vmem>>, vector<3x484xbf16>
    tpu.vector_store %arg14[%c135, %c0_107], %99 {strides = array<i32>} : memref<147x484xbf16, #tpu.memory_space<vmem>>, vector<3x484xbf16>,
    %c0_108 = arith.constant 0 : index
    %c195 = arith.constant 195 : index
    %101 = vector.load %arg11[%c0_108, %c195] : memref<3x768xbf16, #tpu.memory_space<vmem>>, vector<3x484xbf16>
    %c138 = arith.constant 138 : index
    %c0_109 = arith.constant 0 : index
    %102 = vector.load %arg14[%c138, %c0_109] : memref<147x484xbf16, #tpu.memory_space<vmem>>, vector<3x484xbf16>
    tpu.vector_store %arg14[%c138, %c0_109], %101 {strides = array<i32>} : memref<147x484xbf16, #tpu.memory_space<vmem>>, vector<3x484xbf16>,
    %c0_110 = arith.constant 0 : index
    %c196 = arith.constant 196 : index
    %103 = vector.load %arg11[%c0_110, %c196] : memref<3x768xbf16, #tpu.memory_space<vmem>>, vector<3x484xbf16>
    %c141 = arith.constant 141 : index
    %c0_111 = arith.constant 0 : index
    %104 = vector.load %arg14[%c141, %c0_111] : memref<147x484xbf16, #tpu.memory_space<vmem>>, vector<3x484xbf16>
    tpu.vector_store %arg14[%c141, %c0_111], %103 {strides = array<i32>} : memref<147x484xbf16, #tpu.memory_space<vmem>>, vector<3x484xbf16>,
    %c0_112 = arith.constant 0 : index
    %c197 = arith.constant 197 : index
    %105 = vector.load %arg11[%c0_112, %c197] : memref<3x768xbf16, #tpu.memory_space<vmem>>, vector<3x484xbf16>
    %c144 = arith.constant 144 : index
    %c0_113 = arith.constant 0 : index
    %106 = vector.load %arg14[%c144, %c0_113] : memref<147x484xbf16, #tpu.memory_space<vmem>>, vector<3x484xbf16>
    tpu.vector_store %arg14[%c144, %c0_113], %105 {strides = array<i32>} : memref<147x484xbf16, #tpu.memory_space<vmem>>, vector<3x484xbf16>,
    %c0_114 = arith.constant 0 : index
    %c0_115 = arith.constant 0 : index
    %107 = vector.load %arg3[%c0_114, %c0_115] : memref<8x147xbf16, #tpu.memory_space<vmem>>, vector<8x147xbf16>
    %c0_116 = arith.constant 0 : index
    %c0_117 = arith.constant 0 : index
    %108 = vector.load %arg14[%c0_116, %c0_117] : memref<147x484xbf16, #tpu.memory_space<vmem>>, vector<147x484xbf16>
    %cst_118 = arith.constant dense<0.000000e+00> : vector<8x484xf32>
    %109 = tpu.matmul %107, %108, %cst_118 {dimension_numbers = #tpu.dot_dimension_numbers<[1], [0], [0], [1], [0, 0, 1, 1], [], []>} : vector<8x147xbf16>, vector<147x484xbf16>, vector<8x484xf32> -> vector<8x484xf32>
    %c0_119 = arith.constant 0 : index
    %c0_120 = arith.constant 0 : index
    %110 = vector.load %arg7[%c0_119, %c0_120] : memref<64x4xf32, #tpu.memory_space<vmem>>, vector<8x1xf32>
    %111 = vector.broadcast %110 : vector<8x1xf32> to vector<8x484xf32>
    %112 = arith.addf %109, %111 : vector<8x484xf32>
    %cst_121 = arith.constant 0.000000e+00 : f32
    %113 = vector.broadcast %cst_121 : f32 to vector<8x484xf32>
    %114 = arith.maximumf %112, %113 : vector<8x484xf32>
    %cst_122 = arith.constant 0.000000e+00 : f32
    %115 = vector.shape_cast %2 : vector<1x484xi1> to vector<1x484xi1>
    %116 = vector.broadcast %115 : vector<1x484xi1> to vector<8x484xi1>
    %117 = vector.broadcast %cst_122 : f32 to vector<8x484xf32>
    %118 = arith.select %116, %114, %117 : vector<8x484xi1>, vector<8x484xf32>
    %119 = arith.truncf %118 : vector<8x484xf32> to vector<8x484xbf16>
    %c0_123 = arith.constant 0 : index
    %c128_124 = arith.constant 128 : index
    %120 = vector.load %arg12[%c0_123, %c128_124] : memref<8x768xbf16, #tpu.memory_space<vmem>>, vector<8x484xbf16>
    tpu.vector_store %arg12[%c0_123, %c128_124], %119 {strides = array<i32>} : memref<8x768xbf16, #tpu.memory_space<vmem>>, vector<8x484xbf16>,
    %c0_125 = arith.constant 0 : index
    %c82_126 = arith.constant 82 : index
    %121 = vector.load %arg12[%c0_125, %c82_126] : memref<8x768xbf16, #tpu.memory_space<vmem>>, vector<8x484xbf16>
    %c0_127 = arith.constant 0 : index
    %c0_128 = arith.constant 0 : index
    %122 = vector.load %arg15[%c0_127, %c0_128] : memref<200x484xbf16, #tpu.memory_space<vmem>>, vector<8x484xbf16>
    tpu.vector_store %arg15[%c0_127, %c0_128], %121 {strides = array<i32>} : memref<200x484xbf16, #tpu.memory_space<vmem>>, vector<8x484xbf16>,
    %c0_129 = arith.constant 0 : index
    %c83_130 = arith.constant 83 : index
    %123 = vector.load %arg12[%c0_129, %c83_130] : memref<8x768xbf16, #tpu.memory_space<vmem>>, vector<8x484xbf16>
    %c8 = arith.constant 8 : index
    %c0_131 = arith.constant 0 : index
    %124 = vector.load %arg15[%c8, %c0_131] : memref<200x484xbf16, #tpu.memory_space<vmem>>, vector<8x484xbf16>
    tpu.vector_store %arg15[%c8, %c0_131], %123 {strides = array<i32>} : memref<200x484xbf16, #tpu.memory_space<vmem>>, vector<8x484xbf16>,
    %c0_132 = arith.constant 0 : index
    %c84_133 = arith.constant 84 : index
    %125 = vector.load %arg12[%c0_132, %c84_133] : memref<8x768xbf16, #tpu.memory_space<vmem>>, vector<8x484xbf16>
    %c16 = arith.constant 16 : index
    %c0_134 = arith.constant 0 : index
    %126 = vector.load %arg15[%c16, %c0_134] : memref<200x484xbf16, #tpu.memory_space<vmem>>, vector<8x484xbf16>
    tpu.vector_store %arg15[%c16, %c0_134], %125 {strides = array<i32>} : memref<200x484xbf16, #tpu.memory_space<vmem>>, vector<8x484xbf16>,
    %c0_135 = arith.constant 0 : index
    %c85_136 = arith.constant 85 : index
    %127 = vector.load %arg12[%c0_135, %c85_136] : memref<8x768xbf16, #tpu.memory_space<vmem>>, vector<8x484xbf16>
    %c24_137 = arith.constant 24 : index
    %c0_138 = arith.constant 0 : index
    %128 = vector.load %arg15[%c24_137, %c0_138] : memref<200x484xbf16, #tpu.memory_space<vmem>>, vector<8x484xbf16>
    tpu.vector_store %arg15[%c24_137, %c0_138], %127 {strides = array<i32>} : memref<200x484xbf16, #tpu.memory_space<vmem>>, vector<8x484xbf16>,
    %c0_139 = arith.constant 0 : index
    %c86_140 = arith.constant 86 : index
    %129 = vector.load %arg12[%c0_139, %c86_140] : memref<8x768xbf16, #tpu.memory_space<vmem>>, vector<8x484xbf16>
    %c32 = arith.constant 32 : index
    %c0_141 = arith.constant 0 : index
    %130 = vector.load %arg15[%c32, %c0_141] : memref<200x484xbf16, #tpu.memory_space<vmem>>, vector<8x484xbf16>
    tpu.vector_store %arg15[%c32, %c0_141], %129 {strides = array<i32>} : memref<200x484xbf16, #tpu.memory_space<vmem>>, vector<8x484xbf16>,
    %c0_142 = arith.constant 0 : index
    %c104_143 = arith.constant 104 : index
    %131 = vector.load %arg12[%c0_142, %c104_143] : memref<8x768xbf16, #tpu.memory_space<vmem>>, vector<8x484xbf16>
    %c40 = arith.constant 40 : index
    %c0_144 = arith.constant 0 : index
    %132 = vector.load %arg15[%c40, %c0_144] : memref<200x484xbf16, #tpu.memory_space<vmem>>, vector<8x484xbf16>
    tpu.vector_store %arg15[%c40, %c0_144], %131 {strides = array<i32>} : memref<200x484xbf16, #tpu.memory_space<vmem>>, vector<8x484xbf16>,
    %c0_145 = arith.constant 0 : index
    %c105_146 = arith.constant 105 : index
    %133 = vector.load %arg12[%c0_145, %c105_146] : memref<8x768xbf16, #tpu.memory_space<vmem>>, vector<8x484xbf16>
    %c48_147 = arith.constant 48 : index
    %c0_148 = arith.constant 0 : index
    %134 = vector.load %arg15[%c48_147, %c0_148] : memref<200x484xbf16, #tpu.memory_space<vmem>>, vector<8x484xbf16>
    tpu.vector_store %arg15[%c48_147, %c0_148], %133 {strides = array<i32>} : memref<200x484xbf16, #tpu.memory_space<vmem>>, vector<8x484xbf16>,
    %c0_149 = arith.constant 0 : index
    %c106_150 = arith.constant 106 : index
    %135 = vector.load %arg12[%c0_149, %c106_150] : memref<8x768xbf16, #tpu.memory_space<vmem>>, vector<8x484xbf16>
    %c56 = arith.constant 56 : index
    %c0_151 = arith.constant 0 : index
    %136 = vector.load %arg15[%c56, %c0_151] : memref<200x484xbf16, #tpu.memory_space<vmem>>, vector<8x484xbf16>
    tpu.vector_store %arg15[%c56, %c0_151], %135 {strides = array<i32>} : memref<200x484xbf16, #tpu.memory_space<vmem>>, vector<8x484xbf16>,
    %c0_152 = arith.constant 0 : index
    %c107_153 = arith.constant 107 : index
    %137 = vector.load %arg12[%c0_152, %c107_153] : memref<8x768xbf16, #tpu.memory_space<vmem>>, vector<8x484xbf16>
    %c64_154 = arith.constant 64 : index
    %c0_155 = arith.constant 0 : index
    %138 = vector.load %arg15[%c64_154, %c0_155] : memref<200x484xbf16, #tpu.memory_space<vmem>>, vector<8x484xbf16>
    tpu.vector_store %arg15[%c64_154, %c0_155], %137 {strides = array<i32>} : memref<200x484xbf16, #tpu.memory_space<vmem>>, vector<8x484xbf16>,
    %c0_156 = arith.constant 0 : index
    %c108_157 = arith.constant 108 : index
    %139 = vector.load %arg12[%c0_156, %c108_157] : memref<8x768xbf16, #tpu.memory_space<vmem>>, vector<8x484xbf16>
    %c72_158 = arith.constant 72 : index
    %c0_159 = arith.constant 0 : index
    %140 = vector.load %arg15[%c72_158, %c0_159] : memref<200x484xbf16, #tpu.memory_space<vmem>>, vector<8x484xbf16>
    tpu.vector_store %arg15[%c72_158, %c0_159], %139 {strides = array<i32>} : memref<200x484xbf16, #tpu.memory_space<vmem>>, vector<8x484xbf16>,
    %c0_160 = arith.constant 0 : index
    %c126_161 = arith.constant 126 : index
    %141 = vector.load %arg12[%c0_160, %c126_161] : memref<8x768xbf16, #tpu.memory_space<vmem>>, vector<8x484xbf16>
    %c80 = arith.constant 80 : index
    %c0_162 = arith.constant 0 : index
    %142 = vector.load %arg15[%c80, %c0_162] : memref<200x484xbf16, #tpu.memory_space<vmem>>, vector<8x484xbf16>
    tpu.vector_store %arg15[%c80, %c0_162], %141 {strides = array<i32>} : memref<200x484xbf16, #tpu.memory_space<vmem>>, vector<8x484xbf16>,
    %c0_163 = arith.constant 0 : index
    %c127_164 = arith.constant 127 : index
    %143 = vector.load %arg12[%c0_163, %c127_164] : memref<8x768xbf16, #tpu.memory_space<vmem>>, vector<8x484xbf16>
    %c88 = arith.constant 88 : index
    %c0_165 = arith.constant 0 : index
    %144 = vector.load %arg15[%c88, %c0_165] : memref<200x484xbf16, #tpu.memory_space<vmem>>, vector<8x484xbf16>
    tpu.vector_store %arg15[%c88, %c0_165], %143 {strides = array<i32>} : memref<200x484xbf16, #tpu.memory_space<vmem>>, vector<8x484xbf16>,
    %c0_166 = arith.constant 0 : index
    %c128_167 = arith.constant 128 : index
    %145 = vector.load %arg12[%c0_166, %c128_167] : memref<8x768xbf16, #tpu.memory_space<vmem>>, vector<8x484xbf16>
    %c96_168 = arith.constant 96 : index
    %c0_169 = arith.constant 0 : index
    %146 = vector.load %arg15[%c96_168, %c0_169] : memref<200x484xbf16, #tpu.memory_space<vmem>>, vector<8x484xbf16>
    tpu.vector_store %arg15[%c96_168, %c0_169], %145 {strides = array<i32>} : memref<200x484xbf16, #tpu.memory_space<vmem>>, vector<8x484xbf16>,
    %c0_170 = arith.constant 0 : index
    %c129_171 = arith.constant 129 : index
    %147 = vector.load %arg12[%c0_170, %c129_171] : memref<8x768xbf16, #tpu.memory_space<vmem>>, vector<8x484xbf16>
    %c104_172 = arith.constant 104 : index
    %c0_173 = arith.constant 0 : index
    %148 = vector.load %arg15[%c104_172, %c0_173] : memref<200x484xbf16, #tpu.memory_space<vmem>>, vector<8x484xbf16>
    tpu.vector_store %arg15[%c104_172, %c0_173], %147 {strides = array<i32>} : memref<200x484xbf16, #tpu.memory_space<vmem>>, vector<8x484xbf16>,
    %c0_174 = arith.constant 0 : index
    %c130_175 = arith.constant 130 : index
    %149 = vector.load %arg12[%c0_174, %c130_175] : memref<8x768xbf16, #tpu.memory_space<vmem>>, vector<8x484xbf16>
    %c112 = arith.constant 112 : index
    %c0_176 = arith.constant 0 : index
    %150 = vector.load %arg15[%c112, %c0_176] : memref<200x484xbf16, #tpu.memory_space<vmem>>, vector<8x484xbf16>
    tpu.vector_store %arg15[%c112, %c0_176], %149 {strides = array<i32>} : memref<200x484xbf16, #tpu.memory_space<vmem>>, vector<8x484xbf16>,
    %c0_177 = arith.constant 0 : index
    %c148_178 = arith.constant 148 : index
    %151 = vector.load %arg12[%c0_177, %c148_178] : memref<8x768xbf16, #tpu.memory_space<vmem>>, vector<8x484xbf16>
    %c120_179 = arith.constant 120 : index
    %c0_180 = arith.constant 0 : index
    %152 = vector.load %arg15[%c120_179, %c0_180] : memref<200x484xbf16, #tpu.memory_space<vmem>>, vector<8x484xbf16>
    tpu.vector_store %arg15[%c120_179, %c0_180], %151 {strides = array<i32>} : memref<200x484xbf16, #tpu.memory_space<vmem>>, vector<8x484xbf16>,
    %c0_181 = arith.constant 0 : index
    %c149_182 = arith.constant 149 : index
    %153 = vector.load %arg12[%c0_181, %c149_182] : memref<8x768xbf16, #tpu.memory_space<vmem>>, vector<8x484xbf16>
    %c128_183 = arith.constant 128 : index
    %c0_184 = arith.constant 0 : index
    %154 = vector.load %arg15[%c128_183, %c0_184] : memref<200x484xbf16, #tpu.memory_space<vmem>>, vector<8x484xbf16>
    tpu.vector_store %arg15[%c128_183, %c0_184], %153 {strides = array<i32>} : memref<200x484xbf16, #tpu.memory_space<vmem>>, vector<8x484xbf16>,
    %c0_185 = arith.constant 0 : index
    %c150_186 = arith.constant 150 : index
    %155 = vector.load %arg12[%c0_185, %c150_186] : memref<8x768xbf16, #tpu.memory_space<vmem>>, vector<8x484xbf16>
    %c136 = arith.constant 136 : index
    %c0_187 = arith.constant 0 : index
    %156 = vector.load %arg15[%c136, %c0_187] : memref<200x484xbf16, #tpu.memory_space<vmem>>, vector<8x484xbf16>
    tpu.vector_store %arg15[%c136, %c0_187], %155 {strides = array<i32>} : memref<200x484xbf16, #tpu.memory_space<vmem>>, vector<8x484xbf16>,
    %c0_188 = arith.constant 0 : index
    %c151_189 = arith.constant 151 : index
    %157 = vector.load %arg12[%c0_188, %c151_189] : memref<8x768xbf16, #tpu.memory_space<vmem>>, vector<8x484xbf16>
    %c144_190 = arith.constant 144 : index
    %c0_191 = arith.constant 0 : index
    %158 = vector.load %arg15[%c144_190, %c0_191] : memref<200x484xbf16, #tpu.memory_space<vmem>>, vector<8x484xbf16>
    tpu.vector_store %arg15[%c144_190, %c0_191], %157 {strides = array<i32>} : memref<200x484xbf16, #tpu.memory_space<vmem>>, vector<8x484xbf16>,
    %c0_192 = arith.constant 0 : index
    %c152_193 = arith.constant 152 : index
    %159 = vector.load %arg12[%c0_192, %c152_193] : memref<8x768xbf16, #tpu.memory_space<vmem>>, vector<8x484xbf16>
    %c152_194 = arith.constant 152 : index
    %c0_195 = arith.constant 0 : index
    %160 = vector.load %arg15[%c152_194, %c0_195] : memref<200x484xbf16, #tpu.memory_space<vmem>>, vector<8x484xbf16>
    tpu.vector_store %arg15[%c152_194, %c0_195], %159 {strides = array<i32>} : memref<200x484xbf16, #tpu.memory_space<vmem>>, vector<8x484xbf16>,
    %c0_196 = arith.constant 0 : index
    %c170_197 = arith.constant 170 : index
    %161 = vector.load %arg12[%c0_196, %c170_197] : memref<8x768xbf16, #tpu.memory_space<vmem>>, vector<8x484xbf16>
    %c160 = arith.constant 160 : index
    %c0_198 = arith.constant 0 : index
    %162 = vector.load %arg15[%c160, %c0_198] : memref<200x484xbf16, #tpu.memory_space<vmem>>, vector<8x484xbf16>
    tpu.vector_store %arg15[%c160, %c0_198], %161 {strides = array<i32>} : memref<200x484xbf16, #tpu.memory_space<vmem>>, vector<8x484xbf16>,
    %c0_199 = arith.constant 0 : index
    %c171_200 = arith.constant 171 : index
    %163 = vector.load %arg12[%c0_199, %c171_200] : memref<8x768xbf16, #tpu.memory_space<vmem>>, vector<8x484xbf16>
    %c168 = arith.constant 168 : index
    %c0_201 = arith.constant 0 : index
    %164 = vector.load %arg15[%c168, %c0_201] : memref<200x484xbf16, #tpu.memory_space<vmem>>, vector<8x484xbf16>
    tpu.vector_store %arg15[%c168, %c0_201], %163 {strides = array<i32>} : memref<200x484xbf16, #tpu.memory_space<vmem>>, vector<8x484xbf16>,
    %c0_202 = arith.constant 0 : index
    %c172_203 = arith.constant 172 : index
    %165 = vector.load %arg12[%c0_202, %c172_203] : memref<8x768xbf16, #tpu.memory_space<vmem>>, vector<8x484xbf16>
    %c176 = arith.constant 176 : index
    %c0_204 = arith.constant 0 : index
    %166 = vector.load %arg15[%c176, %c0_204] : memref<200x484xbf16, #tpu.memory_space<vmem>>, vector<8x484xbf16>
    tpu.vector_store %arg15[%c176, %c0_204], %165 {strides = array<i32>} : memref<200x484xbf16, #tpu.memory_space<vmem>>, vector<8x484xbf16>,
    %c0_205 = arith.constant 0 : index
    %c173_206 = arith.constant 173 : index
    %167 = vector.load %arg12[%c0_205, %c173_206] : memref<8x768xbf16, #tpu.memory_space<vmem>>, vector<8x484xbf16>
    %c184 = arith.constant 184 : index
    %c0_207 = arith.constant 0 : index
    %168 = vector.load %arg15[%c184, %c0_207] : memref<200x484xbf16, #tpu.memory_space<vmem>>, vector<8x484xbf16>
    tpu.vector_store %arg15[%c184, %c0_207], %167 {strides = array<i32>} : memref<200x484xbf16, #tpu.memory_space<vmem>>, vector<8x484xbf16>,
    %c0_208 = arith.constant 0 : index
    %c174_209 = arith.constant 174 : index
    %169 = vector.load %arg12[%c0_208, %c174_209] : memref<8x768xbf16, #tpu.memory_space<vmem>>, vector<8x484xbf16>
    %c192_210 = arith.constant 192 : index
    %c0_211 = arith.constant 0 : index
    %170 = vector.load %arg15[%c192_210, %c0_211] : memref<200x484xbf16, #tpu.memory_space<vmem>>, vector<8x484xbf16>
    tpu.vector_store %arg15[%c192_210, %c0_211], %169 {strides = array<i32>} : memref<200x484xbf16, #tpu.memory_space<vmem>>, vector<8x484xbf16>,
    %c0_212 = arith.constant 0 : index
    %c0_213 = arith.constant 0 : index
    %171 = vector.load %arg4[%c0_212, %c0_213] : memref<8x200xbf16, #tpu.memory_space<vmem>>, vector<8x200xbf16>
    %c0_214 = arith.constant 0 : index
    %c0_215 = arith.constant 0 : index
    %172 = vector.load %arg15[%c0_214, %c0_215] : memref<200x484xbf16, #tpu.memory_space<vmem>>, vector<200x484xbf16>
    %cst_216 = arith.constant dense<0.000000e+00> : vector<8x484xf32>
    %173 = tpu.matmul %171, %172, %cst_216 {dimension_numbers = #tpu.dot_dimension_numbers<[1], [0], [0], [1], [0, 0, 1, 1], [], []>} : vector<8x200xbf16>, vector<200x484xbf16>, vector<8x484xf32> -> vector<8x484xf32>
    %c0_217 = arith.constant 0 : index
    %c1 = arith.constant 1 : index
    %174 = vector.load %arg7[%c0_217, %c1] : memref<64x4xf32, #tpu.memory_space<vmem>>, vector<8x1xf32>
    %175 = vector.broadcast %174 : vector<8x1xf32> to vector<8x484xf32>
    %176 = arith.addf %173, %175 : vector<8x484xf32>
    %cst_218 = arith.constant 0.000000e+00 : f32
    %177 = vector.broadcast %cst_218 : f32 to vector<8x484xf32>
    %178 = arith.maximumf %176, %177 : vector<8x484xf32>
    %cst_219 = arith.constant 0.000000e+00 : f32
    %179 = vector.shape_cast %2 : vector<1x484xi1> to vector<1x484xi1>
    %180 = vector.broadcast %179 : vector<1x484xi1> to vector<8x484xi1>
    %181 = vector.broadcast %cst_219 : f32 to vector<8x484xf32>
    %182 = arith.select %180, %178, %181 : vector<8x484xi1>, vector<8x484xf32>
    %183 = arith.truncf %182 : vector<8x484xf32> to vector<8x484xbf16>
    %c0_220 = arith.constant 0 : index
    %c128_221 = arith.constant 128 : index
    %184 = vector.load %arg13[%c0_220, %c128_221] : memref<8x768xbf16, #tpu.memory_space<vmem>>, vector<8x484xbf16>
    tpu.vector_store %arg13[%c0_220, %c128_221], %183 {strides = array<i32>} : memref<8x768xbf16, #tpu.memory_space<vmem>>, vector<8x484xbf16>,
    %c0_222 = arith.constant 0 : index
    %c105_223 = arith.constant 105 : index
    %185 = vector.load %arg13[%c0_222, %c105_223] : memref<8x768xbf16, #tpu.memory_space<vmem>>, vector<8x484xbf16>
    %c0_224 = arith.constant 0 : index
    %c0_225 = arith.constant 0 : index
    %186 = vector.load %arg16[%c0_224, %c0_225] : memref<72x484xbf16, #tpu.memory_space<vmem>>, vector<8x484xbf16>
    tpu.vector_store %arg16[%c0_224, %c0_225], %185 {strides = array<i32>} : memref<72x484xbf16, #tpu.memory_space<vmem>>, vector<8x484xbf16>,
    %c0_226 = arith.constant 0 : index
    %c106_227 = arith.constant 106 : index
    %187 = vector.load %arg13[%c0_226, %c106_227] : memref<8x768xbf16, #tpu.memory_space<vmem>>, vector<8x484xbf16>
    %c8_228 = arith.constant 8 : index
    %c0_229 = arith.constant 0 : index
    %188 = vector.load %arg16[%c8_228, %c0_229] : memref<72x484xbf16, #tpu.memory_space<vmem>>, vector<8x484xbf16>
    tpu.vector_store %arg16[%c8_228, %c0_229], %187 {strides = array<i32>} : memref<72x484xbf16, #tpu.memory_space<vmem>>, vector<8x484xbf16>,
    %c0_230 = arith.constant 0 : index
    %c107_231 = arith.constant 107 : index
    %189 = vector.load %arg13[%c0_230, %c107_231] : memref<8x768xbf16, #tpu.memory_space<vmem>>, vector<8x484xbf16>
    %c16_232 = arith.constant 16 : index
    %c0_233 = arith.constant 0 : index
    %190 = vector.load %arg16[%c16_232, %c0_233] : memref<72x484xbf16, #tpu.memory_space<vmem>>, vector<8x484xbf16>
    tpu.vector_store %arg16[%c16_232, %c0_233], %189 {strides = array<i32>} : memref<72x484xbf16, #tpu.memory_space<vmem>>, vector<8x484xbf16>,
    %c0_234 = arith.constant 0 : index
    %c127_235 = arith.constant 127 : index
    %191 = vector.load %arg13[%c0_234, %c127_235] : memref<8x768xbf16, #tpu.memory_space<vmem>>, vector<8x484xbf16>
    %c24_236 = arith.constant 24 : index
    %c0_237 = arith.constant 0 : index
    %192 = vector.load %arg16[%c24_236, %c0_237] : memref<72x484xbf16, #tpu.memory_space<vmem>>, vector<8x484xbf16>
    tpu.vector_store %arg16[%c24_236, %c0_237], %191 {strides = array<i32>} : memref<72x484xbf16, #tpu.memory_space<vmem>>, vector<8x484xbf16>,
    %c0_238 = arith.constant 0 : index
    %c128_239 = arith.constant 128 : index
    %193 = vector.load %arg13[%c0_238, %c128_239] : memref<8x768xbf16, #tpu.memory_space<vmem>>, vector<8x484xbf16>
    %c32_240 = arith.constant 32 : index
    %c0_241 = arith.constant 0 : index
    %194 = vector.load %arg16[%c32_240, %c0_241] : memref<72x484xbf16, #tpu.memory_space<vmem>>, vector<8x484xbf16>
    tpu.vector_store %arg16[%c32_240, %c0_241], %193 {strides = array<i32>} : memref<72x484xbf16, #tpu.memory_space<vmem>>, vector<8x484xbf16>,
    %c0_242 = arith.constant 0 : index
    %c129_243 = arith.constant 129 : index
    %195 = vector.load %arg13[%c0_242, %c129_243] : memref<8x768xbf16, #tpu.memory_space<vmem>>, vector<8x484xbf16>
    %c40_244 = arith.constant 40 : index
    %c0_245 = arith.constant 0 : index
    %196 = vector.load %arg16[%c40_244, %c0_245] : memref<72x484xbf16, #tpu.memory_space<vmem>>, vector<8x484xbf16>
    tpu.vector_store %arg16[%c40_244, %c0_245], %195 {strides = array<i32>} : memref<72x484xbf16, #tpu.memory_space<vmem>>, vector<8x484xbf16>,
    %c0_246 = arith.constant 0 : index
    %c149_247 = arith.constant 149 : index
    %197 = vector.load %arg13[%c0_246, %c149_247] : memref<8x768xbf16, #tpu.memory_space<vmem>>, vector<8x484xbf16>
    %c48_248 = arith.constant 48 : index
    %c0_249 = arith.constant 0 : index
    %198 = vector.load %arg16[%c48_248, %c0_249] : memref<72x484xbf16, #tpu.memory_space<vmem>>, vector<8x484xbf16>
    tpu.vector_store %arg16[%c48_248, %c0_249], %197 {strides = array<i32>} : memref<72x484xbf16, #tpu.memory_space<vmem>>, vector<8x484xbf16>,
    %c0_250 = arith.constant 0 : index
    %c150_251 = arith.constant 150 : index
    %199 = vector.load %arg13[%c0_250, %c150_251] : memref<8x768xbf16, #tpu.memory_space<vmem>>, vector<8x484xbf16>
    %c56_252 = arith.constant 56 : index
    %c0_253 = arith.constant 0 : index
    %200 = vector.load %arg16[%c56_252, %c0_253] : memref<72x484xbf16, #tpu.memory_space<vmem>>, vector<8x484xbf16>
    tpu.vector_store %arg16[%c56_252, %c0_253], %199 {strides = array<i32>} : memref<72x484xbf16, #tpu.memory_space<vmem>>, vector<8x484xbf16>,
    %c0_254 = arith.constant 0 : index
    %c151_255 = arith.constant 151 : index
    %201 = vector.load %arg13[%c0_254, %c151_255] : memref<8x768xbf16, #tpu.memory_space<vmem>>, vector<8x484xbf16>
    %c64_256 = arith.constant 64 : index
    %c0_257 = arith.constant 0 : index
    %202 = vector.load %arg16[%c64_256, %c0_257] : memref<72x484xbf16, #tpu.memory_space<vmem>>, vector<8x484xbf16>
    tpu.vector_store %arg16[%c64_256, %c0_257], %201 {strides = array<i32>} : memref<72x484xbf16, #tpu.memory_space<vmem>>, vector<8x484xbf16>,
    %c0_258 = arith.constant 0 : index
    %c0_259 = arith.constant 0 : index
    %203 = vector.load %arg5[%c0_258, %c0_259] : memref<8x72xbf16, #tpu.memory_space<vmem>>, vector<8x72xbf16>
    %c0_260 = arith.constant 0 : index
    %c0_261 = arith.constant 0 : index
    %204 = vector.load %arg16[%c0_260, %c0_261] : memref<72x484xbf16, #tpu.memory_space<vmem>>, vector<72x484xbf16>
    %cst_262 = arith.constant dense<0.000000e+00> : vector<8x484xf32>
    %205 = tpu.matmul %203, %204, %cst_262 {dimension_numbers = #tpu.dot_dimension_numbers<[1], [0], [0], [1], [0, 0, 1, 1], [], []>} : vector<8x72xbf16>, vector<72x484xbf16>, vector<8x484xf32> -> vector<8x484xf32>
    %c0_263 = arith.constant 0 : index
    %c2 = arith.constant 2 : index
    %206 = vector.load %arg7[%c0_263, %c2] : memref<64x4xf32, #tpu.memory_space<vmem>>, vector<8x1xf32>
    %207 = vector.broadcast %206 : vector<8x1xf32> to vector<8x484xf32>
    %208 = arith.addf %205, %207 : vector<8x484xf32>
    %cst_264 = arith.constant 0.000000e+00 : f32
    %209 = vector.broadcast %cst_264 : f32 to vector<8x484xf32>
    %210 = arith.maximumf %208, %209 : vector<8x484xf32>
    %cst_265 = arith.constant 0.000000e+00 : f32
    %211 = vector.shape_cast %2 : vector<1x484xi1> to vector<1x484xi1>
    %212 = vector.broadcast %211 : vector<1x484xi1> to vector<8x484xi1>
    %213 = vector.broadcast %cst_265 : f32 to vector<8x484xf32>
    %214 = arith.select %212, %210, %213 : vector<8x484xi1>, vector<8x484xf32>
    %215 = arith.truncf %214 : vector<8x484xf32> to vector<8x484xbf16>
    %c0_266 = arith.constant 0 : index
    %c0_267 = arith.constant 0 : index
    %216 = vector.load %arg6[%c0_266, %c0_267] : memref<64x8xbf16, #tpu.memory_space<vmem>>, vector<64x8xbf16>
    %cst_268 = arith.constant dense<0.000000e+00> : vector<64x484xf32>
    %217 = tpu.matmul %216, %215, %cst_268 {dimension_numbers = #tpu.dot_dimension_numbers<[1], [0], [0], [1], [0, 0, 1, 1], [], []>} : vector<64x8xbf16>, vector<8x484xbf16>, vector<64x484xf32> -> vector<64x484xf32>
    %c0_269 = arith.constant 0 : index
    %c3_270 = arith.constant 3 : index
    %218 = vector.load %arg7[%c0_269, %c3_270] : memref<64x4xf32, #tpu.memory_space<vmem>>, vector<64x1xf32>
    %219 = vector.broadcast %218 : vector<64x1xf32> to vector<64x484xf32>
    %220 = arith.addf %217, %219 : vector<64x484xf32>
    %cst_271 = arith.constant 0.000000e+00 : f32
    %221 = vector.broadcast %cst_271 : f32 to vector<64x484xf32>
    %222 = arith.maximumf %220, %221 : vector<64x484xf32>
    %c0_272 = arith.constant 0 : index
    %c0_273 = arith.constant 0 : index
    %223 = vector.load %arg17[%c0_272, %c0_273] : memref<64x484xf32, #tpu.memory_space<vmem>>, vector<64x484xf32>
    tpu.vector_store %arg17[%c0_272, %c0_273], %222 {strides = array<i32>} : memref<64x484xf32, #tpu.memory_space<vmem>>, vector<64x484xf32>,
    %c0_274 = arith.constant 0 : index
    %c0_275 = arith.constant 0 : index
    %c0_276 = arith.constant 0 : index
    %224 = vector.load %arg8[%c0_274, %c0_275, %c0_276] : memref<4x64x484xf32, #tpu.memory_space<vmem>>, vector<1x64x484xf32>
    %225 = vector.shape_cast %224 : vector<1x64x484xf32> to vector<64x484xf32>
    %c0_277 = arith.constant 0 : index
    %c0_278 = arith.constant 0 : index
    %226 = vector.load %arg17[%c0_277, %c0_278] : memref<64x484xf32, #tpu.memory_space<vmem>>, vector<64x484xf32>
    %227 = arith.mulf %225, %226 : vector<64x484xf32>
    %cst_279 = arith.constant dense<0.000000e+00> : vector<64xf32>
    %228 = vector.multi_reduction <add>, %227, %cst_279 [1] : vector<64x484xf32> to vector<64xf32>
    %229 = vector.shape_cast %228 : vector<64xf32> to vector<64x1xf32>
    %cst_280 = arith.constant dense<0.000000e+00> : vector<1xf32>
    %230 = vector.multi_reduction <add>, %229, %cst_280 [0] : vector<64x1xf32> to vector<1xf32>
    %231 = vector.shape_cast %230 : vector<1xf32> to vector<1x1xf32>
    %c1_281 = arith.constant 1 : index
    %c0_282 = arith.constant 0 : index
    %c0_283 = arith.constant 0 : index
    %232 = vector.load %arg8[%c1_281, %c0_282, %c0_283] : memref<4x64x484xf32, #tpu.memory_space<vmem>>, vector<1x64x484xf32>
    %233 = vector.shape_cast %232 : vector<1x64x484xf32> to vector<64x484xf32>
    %c0_284 = arith.constant 0 : index
    %c0_285 = arith.constant 0 : index
    %234 = vector.load %arg17[%c0_284, %c0_285] : memref<64x484xf32, #tpu.memory_space<vmem>>, vector<64x484xf32>
    %235 = arith.mulf %233, %234 : vector<64x484xf32>
    %cst_286 = arith.constant dense<0.000000e+00> : vector<64xf32>
    %236 = vector.multi_reduction <add>, %235, %cst_286 [1] : vector<64x484xf32> to vector<64xf32>
    %237 = vector.shape_cast %236 : vector<64xf32> to vector<64x1xf32>
    %cst_287 = arith.constant dense<0.000000e+00> : vector<1xf32>
    %238 = vector.multi_reduction <add>, %237, %cst_287 [0] : vector<64x1xf32> to vector<1xf32>
    %239 = vector.shape_cast %238 : vector<1xf32> to vector<1x1xf32>
    %c2_288 = arith.constant 2 : index
    %c0_289 = arith.constant 0 : index
    %c0_290 = arith.constant 0 : index
    %240 = vector.load %arg8[%c2_288, %c0_289, %c0_290] : memref<4x64x484xf32, #tpu.memory_space<vmem>>, vector<1x64x484xf32>
    %241 = vector.shape_cast %240 : vector<1x64x484xf32> to vector<64x484xf32>
    %c0_291 = arith.constant 0 : index
    %c0_292 = arith.constant 0 : index
    %242 = vector.load %arg17[%c0_291, %c0_292] : memref<64x484xf32, #tpu.memory_space<vmem>>, vector<64x484xf32>
    %243 = arith.mulf %241, %242 : vector<64x484xf32>
    %cst_293 = arith.constant dense<0.000000e+00> : vector<64xf32>
    %244 = vector.multi_reduction <add>, %243, %cst_293 [1] : vector<64x484xf32> to vector<64xf32>
    %245 = vector.shape_cast %244 : vector<64xf32> to vector<64x1xf32>
    %cst_294 = arith.constant dense<0.000000e+00> : vector<1xf32>
    %246 = vector.multi_reduction <add>, %245, %cst_294 [0] : vector<64x1xf32> to vector<1xf32>
    %247 = vector.shape_cast %246 : vector<1xf32> to vector<1x1xf32>
    %c3_295 = arith.constant 3 : index
    %c0_296 = arith.constant 0 : index
    %c0_297 = arith.constant 0 : index
    %248 = vector.load %arg8[%c3_295, %c0_296, %c0_297] : memref<4x64x484xf32, #tpu.memory_space<vmem>>, vector<1x64x484xf32>
    %249 = vector.shape_cast %248 : vector<1x64x484xf32> to vector<64x484xf32>
    %c0_298 = arith.constant 0 : index
    %c0_299 = arith.constant 0 : index
    %250 = vector.load %arg17[%c0_298, %c0_299] : memref<64x484xf32, #tpu.memory_space<vmem>>, vector<64x484xf32>
    %251 = arith.mulf %249, %250 : vector<64x484xf32>
    %cst_300 = arith.constant dense<0.000000e+00> : vector<64xf32>
    %252 = vector.multi_reduction <add>, %251, %cst_300 [1] : vector<64x484xf32> to vector<64xf32>
    %253 = vector.shape_cast %252 : vector<64xf32> to vector<64x1xf32>
    %cst_301 = arith.constant dense<0.000000e+00> : vector<1xf32>
    %254 = vector.multi_reduction <add>, %253, %cst_301 [0] : vector<64x1xf32> to vector<1xf32>
    %255 = vector.shape_cast %254 : vector<1xf32> to vector<1x1xf32>
    %256 = tpu.concatenate %231, %239, %247, %255 in 1 : vector<1x1xf32>, vector<1x1xf32>, vector<1x1xf32>, vector<1x1xf32> -> vector<1x4xf32>
    %c0_302 = arith.constant 0 : index
    %c0_303 = arith.constant 0 : index
    %257 = vector.load %arg9[%c0_302, %c0_303] : memref<1x4xf32, #tpu.memory_space<vmem>>, vector<1x4xf32>
    %258 = arith.addf %256, %257 : vector<1x4xf32>
    %259 = arith.index_cast %4 : i32 to index
    %c0_304 = arith.constant 0 : index
    %c0_305 = arith.constant 0 : index
    %260 = vector.load %arg10[%259, %c0_304, %c0_305] : memref<1x1x4xf32, #tpu.memory_space<vmem>>, vector<1x1x4xf32>
    %261 = vector.shape_cast %260 : vector<1x1x4xf32> to vector<1x4xf32>
    %262 = vector.shape_cast %258 : vector<1x4xf32> to vector<1x1x4xf32>
    tpu.vector_store %arg10[%259, %c0_304, %c0_305], %262 {strides = array<i32>} : memref<1x1x4xf32, #tpu.memory_space<vmem>>, vector<1x1x4xf32>,
    %c1_i32_306 = arith.constant 1 : i32
    return
  }
  func.func @transform_0(%arg0: i32) -> (i32, i32, i32) {
    %c0_i32 = arith.constant 0 : i32
    %c0_i32_0 = arith.constant 0 : i32
    %c0_i32_1 = arith.constant 0 : i32
    return %arg0, %c0_i32, %c0_i32_0 : i32, i32, i32
  }
  func.func @transform_1(%arg0: i32) -> (i32, i32) {
    %c0_i32 = arith.constant 0 : i32
    %c0_i32_0 = arith.constant 0 : i32
    %c0_i32_1 = arith.constant 0 : i32
    return %c0_i32, %c0_i32_0 : i32, i32
  }
  func.func @transform_2(%arg0: i32) -> (i32, i32) {
    %c0_i32 = arith.constant 0 : i32
    %c0_i32_0 = arith.constant 0 : i32
    %c0_i32_1 = arith.constant 0 : i32
    return %c0_i32, %c0_i32_0 : i32, i32
  }
  func.func @transform_3(%arg0: i32) -> (i32, i32) {
    %c0_i32 = arith.constant 0 : i32
    %c0_i32_0 = arith.constant 0 : i32
    %c0_i32_1 = arith.constant 0 : i32
    return %c0_i32, %c0_i32_0 : i32, i32
  }
  func.func @transform_4(%arg0: i32) -> (i32, i32) {
    %c0_i32 = arith.constant 0 : i32
    %c0_i32_0 = arith.constant 0 : i32
    %c0_i32_1 = arith.constant 0 : i32
    return %c0_i32, %c0_i32_0 : i32, i32
  }
  func.func @transform_5(%arg0: i32) -> (i32, i32) {
    %c0_i32 = arith.constant 0 : i32
    %c0_i32_0 = arith.constant 0 : i32
    %c0_i32_1 = arith.constant 0 : i32
    return %c0_i32, %c0_i32_0 : i32, i32
  }
  func.func @transform_6(%arg0: i32) -> (i32, i32) {
    %c0_i32 = arith.constant 0 : i32
    %c0_i32_0 = arith.constant 0 : i32
    %c0_i32_1 = arith.constant 0 : i32
    return %c0_i32, %c0_i32_0 : i32, i32
  }
  func.func @transform_7(%arg0: i32) -> (i32, i32, i32) {
    %c0_i32 = arith.constant 0 : i32
    %c0_i32_0 = arith.constant 0 : i32
    %c0_i32_1 = arith.constant 0 : i32
    %c0_i32_2 = arith.constant 0 : i32
    return %c0_i32, %c0_i32_0, %c0_i32_1 : i32, i32, i32
  }
  func.func @transform_8(%arg0: i32) -> (i32, i32) {
    %c0_i32 = arith.constant 0 : i32
    %c0_i32_0 = arith.constant 0 : i32
    %c0_i32_1 = arith.constant 0 : i32
    return %c0_i32, %c0_i32_0 : i32, i32
  }
  func.func @transform_9(%arg0: i32) -> (i32, i32, i32) {
    %c0_i32 = arith.constant 0 : i32
    %c0_i32_0 = arith.constant 0 : i32
    %c0_i32_1 = arith.constant 0 : i32
    return %arg0, %c0_i32, %c0_i32_0 : i32, i32, i32
  }
}

</mosaic_0001>

<llo_original>
// kernel: my_cnn_forward.1
$region0: #{my_cnn_forward.1}
  #allocation0 [shape = 'u32[]', space=smem, size = 0x4, offset = 0x4, fixed_abs, tag = 'smem constant byte address 0x4 - core index']
  #allocation1 [shape = 'u32[144,128]{1,0:T(1,128)}', space=vmem, size = 0x12000, scoped, tag = 'internal scratch']
  #allocation2 [shape = 'bf16[3,768]{1,0:T(4,128)(2,1)}', space=vmem, size = 0x1800, scoped, tag = 'scratch operand']
  #allocation3 [shape = 'bf16[8,768]{1,0:T(8,128)(2,1)}', space=vmem, size = 0x3000, scoped, tag = 'scratch operand']
  #allocation4 [shape = 'bf16[8,768]{1,0:T(8,128)(2,1)}', space=vmem, size = 0x3000, scoped, tag = 'scratch operand']
  #allocation5 [shape = 'bf16[147,484]{1,0:T(8,128)(2,1)}', space=vmem, size = 0x26000, scoped, tag = 'scratch operand']
  #allocation6 [shape = 'bf16[200,484]{1,0:T(8,128)(2,1)}', space=vmem, size = 0x32000, scoped, tag = 'scratch operand']
  #allocation7 [shape = 'bf16[72,484]{1,0:T(8,128)(2,1)}', space=vmem, size = 0x12000, scoped, tag = 'scratch operand']
  #allocation8 [shape = 'f32[64,484]{1,0:T(8,128)}', space=vmem, size = 0x20000, scoped, tag = 'scratch operand']
  %s0 = inlined_call_operand.vmem [shape: bf16[2,3,768], index: 0, kind: input, shape index: {}]
  %s1 = inlined_call_operand.vmem [shape: f32[1,484], index: 1, kind: input, shape index: {}]
  %s2 = inlined_call_operand.vmem [shape: bf16[8,147], index: 2, kind: input, shape index: {}]
  %s3 = inlined_call_operand.vmem [shape: bf16[8,200], index: 3, kind: input, shape index: {}]
  %s4 = inlined_call_operand.vmem [shape: bf16[8,72], index: 4, kind: input, shape index: {}]
  %s5 = inlined_call_operand.vmem [shape: bf16[64,8], index: 5, kind: input, shape index: {}]
  %s6 = inlined_call_operand.vmem [shape: f32[64,4], index: 6, kind: input, shape index: {}]
  %s7 = inlined_call_operand.hbm [shape: f32[4,64,484], index: 7, kind: input, shape index: {}]
  %s8 = inlined_call_operand.vmem [shape: f32[1,4], index: 8, kind: input, shape index: {}]
  %s9 = inlined_call_operand.hbm [shape: f32[2,1,4], index: 9, kind: output, shape index: {}]
  %s10 = sld [smem:[#allocation0]]
  $region73: #{my_cnn_forward.1} parent=0
    _
  %s12 = ssub.s32 1, %s10
  %s13 = scalar_select 0, %s12, %s10
  $region1: #{my_cnn_forward.1} parent=0
    #allocation9 [shape = 'u8[524288]{0}', space=vmem, size = 0x80000, scoped, tag = 'input window, operand 7, single buffered']
    #allocation10 [shape = 's32[2]{0}', space=sflag, size = 0x8, scoped, tag = 'scoped memory for my_cnn_forward.1']
    #allocation11 [shape = 's32[2]{0}', space=sflag, size = 0x8, scoped, tag = 'scoped memory for my_cnn_forward.1']
    #allocation12 [shape = 'u8[1024]{0}', space=vmem, size = 0x400, scoped, tag = 'output window, operand 0']
    %14 = vsyncpa [#allocation10], 0
    %15 = vsyncpa [#allocation11], 0
    %s16 = scalar_lea.sflag [#allocation11], 1
    %17 = vsyncpa %s16, 0
    loop: start=0, step=1, limit=4
    $region2: #{my_cnn_forward.1} parent=1 // loop_pre_header
      _
    $region3: #{my_cnn_forward.1} parent=1 // loop_header
      %s19 = sphi 0, %s23
      %p20 = scmp.ge.s32.totalorder %s19, 4
      %s29 = sphi 0, %s31
      %s32 = sphi 0, %s29
      %s33 = sphi 0, %s32
      %s49 = sphi 0, %s33
      %s53 = sphi 0, %s53
      %s55 = sphi 0, %s53
      %s56 = sphi 0, %s55
      %s70 = sphi 0, %s56
      %s74 = sphi 0, %s74
      %s76 = sphi 0, %s74
      %s77 = sphi 0, %s76
      %s91 = sphi 0, %s77
      %s95 = sphi 0, %s95
      %s97 = sphi 0, %s95
      %s98 = sphi 0, %s97
      %s112 = sphi 0, %s98
      %s116 = sphi 0, %s116
      %s118 = sphi 0, %s116
      %s119 = sphi 0, %s118
      %s133 = sphi 0, %s119
      %s137 = sphi 0, %s137
      %s139 = sphi 0, %s137
      %s140 = sphi 0, %s139
      %s154 = sphi 0, %s140
      %s158 = sphi 0, %s158
      %s160 = sphi 0, %s158
      %s161 = sphi 0, %s160
      %s175 = sphi 0, %s161
      %s179 = sphi 0, %s179
      %s181 = sphi 0, %s179
      %s182 = sphi 0, %s181
      %s196 = sphi 0, %s182
      %s200 = sphi 0, %s200
      %s202 = sphi 0, %s200
      %s203 = sphi 0, %s202
      %s217 = sphi 0, %s203
      %s223 = sphi 0, %s225
      %s226 = sphi 0, %s223
      %s227 = sphi 0, %s226
      %s243 = sphi 0, %s227
    $region4: #{my_cnn_forward.1} parent=1 // loop_header_branch
      %22 = sbr.rel (%p20) target = $region8
    $region5: #{my_cnn_forward.1} parent=1 // loop_body
      %s24 = ssub.s32 %s19, 1
      %s25 = ssub.s32 %s19, 2
      %s26 = sadd.s32 %s19, 1
      %s27 = ssub.s32 %s19, %s26
      %p28 = scmp.eq.s32.totalorder %s27, 0
      %s30 = sadd.s32 %s29, 1
      %s31 = scalar_select %p28, %s29, %s30
      %p34 = pneg %p28
      %p35 = scmp.eq.s32.totalorder %s19, 1
      %p36 = por %p34, %p35
      %p37 = scmp.ne.s32.totalorder %s29, %s32
      %p38 = scmp.eq.s32.totalorder %s19, 0
      %p39 = por %p37, %p38
      %p40 = scmp.ne.s32.totalorder %s29, %s32
      %p41 = scmp.eq.s32.totalorder %s24, 1
      %p42 = por %p40, %p41
      %p43 = scmp.ne.s32.totalorder %s32, %s33
      %p44 = scmp.eq.s32.totalorder %s24, 0
      %p45 = por %p43, %p44
      %p46 = scmp.ne.s32.totalorder %s32, %s33
      %p47 = scmp.eq.s32.totalorder %s25, 1
      %p48 = por %p46, %p47
      %p50 = scmp.ne.s32.totalorder %s33, %s49
      %p51 = scmp.eq.s32.totalorder %s25, 0
      %p52 = por %p50, %p51
      %s54 = sadd.s32 %s53, 1
      %p57 = scmp.eq.s32.totalorder %s19, 1
      %p58 = scmp.ne.s32.totalorder %s53, %s55
      %p59 = scmp.eq.s32.totalorder %s19, 0
      %p60 = por %p58, %p59
      %p61 = scmp.ne.s32.totalorder %s53, %s55
      %p62 = scmp.eq.s32.totalorder %s24, 1
      %p63 = por %p61, %p62
      %p64 = scmp.ne.s32.totalorder %s55, %s56
      %p65 = scmp.eq.s32.totalorder %s24, 0
      %p66 = por %p64, %p65
      %p67 = scmp.ne.s32.totalorder %s55, %s56
      %p68 = scmp.eq.s32.totalorder %s25, 1
      %p69 = por %p67, %p68
      %p71 = scmp.ne.s32.totalorder %s56, %s70
      %p72 = scmp.eq.s32.totalorder %s25, 0
      %p73 = por %p71, %p72
      %s75 = sadd.s32 %s74, 1
      %p78 = scmp.eq.s32.totalorder %s19, 1
      %p79 = scmp.ne.s32.totalorder %s74, %s76
      %p80 = scmp.eq.s32.totalorder %s19, 0
      %p81 = por %p79, %p80
      %p82 = scmp.ne.s32.totalorder %s74, %s76
      %p83 = scmp.eq.s32.totalorder %s24, 1
      %p84 = por %p82, %p83
      %p85 = scmp.ne.s32.totalorder %s76, %s77
      %p86 = scmp.eq.s32.totalorder %s24, 0
      %p87 = por %p85, %p86
      %p88 = scmp.ne.s32.totalorder %s76, %s77
      %p89 = scmp.eq.s32.totalorder %s25, 1
      %p90 = por %p88, %p89
      %p92 = scmp.ne.s32.totalorder %s77, %s91
      %p93 = scmp.eq.s32.totalorder %s25, 0
      %p94 = por %p92, %p93
      %s96 = sadd.s32 %s95, 1
      %p99 = scmp.eq.s32.totalorder %s19, 1
      %p100 = scmp.ne.s32.totalorder %s95, %s97
      %p101 = scmp.eq.s32.totalorder %s19, 0
      %p102 = por %p100, %p101
      %p103 = scmp.ne.s32.totalorder %s95, %s97
      %p104 = scmp.eq.s32.totalorder %s24, 1
      %p105 = por %p103, %p104
      %p106 = scmp.ne.s32.totalorder %s97, %s98
      %p107 = scmp.eq.s32.totalorder %s24, 0
      %p108 = por %p106, %p107
      %p109 = scmp.ne.s32.totalorder %s97, %s98
      %p110 = scmp.eq.s32.totalorder %s25, 1
      %p111 = por %p109, %p110
      %p113 = scmp.ne.s32.totalorder %s98, %s112
      %p114 = scmp.eq.s32.totalorder %s25, 0
      %p115 = por %p113, %p114
      %s117 = sadd.s32 %s116, 1
      %p120 = scmp.eq.s32.totalorder %s19, 1
      %p121 = scmp.ne.s32.totalorder %s116, %s118
      %p122 = scmp.eq.s32.totalorder %s19, 0
      %p123 = por %p121, %p122
      %p124 = scmp.ne.s32.totalorder %s116, %s118
      %p125 = scmp.eq.s32.totalorder %s24, 1
      %p126 = por %p124, %p125
      %p127 = scmp.ne.s32.totalorder %s118, %s119
      %p128 = scmp.eq.s32.totalorder %s24, 0
      %p129 = por %p127, %p128
      %p130 = scmp.ne.s32.totalorder %s118, %s119
      %p131 = scmp.eq.s32.totalorder %s25, 1
      %p132 = por %p130, %p131
      %p134 = scmp.ne.s32.totalorder %s119, %s133
      %p135 = scmp.eq.s32.totalorder %s25, 0
      %p136 = por %p134, %p135
      %s138 = sadd.s32 %s137, 1
      %p141 = scmp.eq.s32.totalorder %s19, 1
      %p142 = scmp.ne.s32.totalorder %s137, %s139
      %p143 = scmp.eq.s32.totalorder %s19, 0
      %p144 = por %p142, %p143
      %p145 = scmp.ne.s32.totalorder %s137, %s139
      %p146 = scmp.eq.s32.totalorder %s24, 1
      %p147 = por %p145, %p146
      %p148 = scmp.ne.s32.totalorder %s139, %s140
      %p149 = scmp.eq.s32.totalorder %s24, 0
      %p150 = por %p148, %p149
      %p151 = scmp.ne.s32.totalorder %s139, %s140
      %p152 = scmp.eq.s32.totalorder %s25, 1
      %p153 = por %p151, %p152
      %p155 = scmp.ne.s32.totalorder %s140, %s154
      %p156 = scmp.eq.s32.totalorder %s25, 0
      %p157 = por %p155, %p156
      %s159 = sadd.s32 %s158, 1
      %p162 = scmp.eq.s32.totalorder %s19, 1
      %p163 = scmp.ne.s32.totalorder %s158, %s160
      %p164 = scmp.eq.s32.totalorder %s19, 0
      %p165 = por %p163, %p164
      %p166 = scmp.ne.s32.totalorder %s158, %s160
      %p167 = scmp.eq.s32.totalorder %s24, 1
      %p168 = por %p166, %p167
      %p169 = scmp.ne.s32.totalorder %s160, %s161
      %p170 = scmp.eq.s32.totalorder %s24, 0
      %p171 = por %p169, %p170
      %p172 = scmp.ne.s32.totalorder %s160, %s161
      %p173 = scmp.eq.s32.totalorder %s25, 1
      %p174 = por %p172, %p173
      %p176 = scmp.ne.s32.totalorder %s161, %s175
      %p177 = scmp.eq.s32.totalorder %s25, 0
      %p178 = por %p176, %p177
      %s180 = sadd.s32 %s179, 1
      %p183 = scmp.eq.s32.totalorder %s19, 1
      %p184 = scmp.ne.s32.totalorder %s179, %s181
      %p185 = scmp.eq.s32.totalorder %s19, 0
      %p186 = por %p184, %p185
      %p187 = scmp.ne.s32.totalorder %s179, %s181
      %p188 = scmp.eq.s32.totalorder %s24, 1
      %p189 = por %p187, %p188
      %p190 = scmp.ne.s32.totalorder %s181, %s182
      %p191 = scmp.eq.s32.totalorder %s24, 0
      %p192 = por %p190, %p191
      %p193 = scmp.ne.s32.totalorder %s181, %s182
      %p194 = scmp.eq.s32.totalorder %s25, 1
      %p195 = por %p193, %p194
      %p197 = scmp.ne.s32.totalorder %s182, %s196
      %p198 = scmp.eq.s32.totalorder %s25, 0
      %p199 = por %p197, %p198
      %s201 = sadd.s32 %s200, 1
      %p204 = scmp.eq.s32.totalorder %s19, 1
      %p205 = scmp.ne.s32.totalorder %s200, %s202
      %p206 = scmp.eq.s32.totalorder %s19, 0
      %p207 = por %p205, %p206
      %p208 = scmp.ne.s32.totalorder %s200, %s202
      %p209 = scmp.eq.s32.totalorder %s24, 1
      %p210 = por %p208, %p209
      %p211 = scmp.ne.s32.totalorder %s202, %s203
      %p212 = scmp.eq.s32.totalorder %s24, 0
      %p213 = por %p211, %p212
      %p214 = scmp.ne.s32.totalorder %s202, %s203
      %p215 = scmp.eq.s32.totalorder %s25, 1
      %p216 = por %p214, %p215
      %p218 = scmp.ne.s32.totalorder %s203, %s217
      %p219 = scmp.eq.s32.totalorder %s25, 0
      %p220 = por %p218, %p219
      %s221 = ssub.s32 %s19, %s26
      %p222 = scmp.eq.s32.totalorder %s221, 0
      %s224 = sadd.s32 %s223, 1
      %s225 = scalar_select %p222, %s223, %s224
      %p228 = pneg %p222
      %p229 = scmp.eq.s32.totalorder %s19, 1
      %p230 = por %p228, %p229
      %p231 = scmp.ne.s32.totalorder %s223, %s226
      %p232 = scmp.eq.s32.totalorder %s19, 0
      %p233 = por %p231, %p232
      %p234 = scmp.ne.s32.totalorder %s223, %s226
      %p235 = scmp.eq.s32.totalorder %s24, 1
      %p236 = por %p234, %p235
      %p237 = scmp.ne.s32.totalorder %s226, %s227
      %p238 = scmp.eq.s32.totalorder %s24, 0
      %p239 = por %p237, %p238
      %p240 = scmp.ne.s32.totalorder %s226, %s227
      %p241 = scmp.eq.s32.totalorder %s25, 1
      %p242 = por %p240, %p241
      %p244 = scmp.ne.s32.totalorder %s227, %s243
      %p245 = scmp.eq.s32.totalorder %s25, 0
      %p246 = por %p244, %p245
      %p247 = scmp.le.s32.totalorder 1, %s19
      %p248 = scmp.lt.s32.totalorder %s19, 3
      %p249 = pnand %p247, %p248
      %p250 = pneg %p249
      // Predicated region
      $region9: #{my_cnn_forward.1} parent=5 // pred_check
        _
      $region10: #{my_cnn_forward.1} parent=5 // pred_check_branch
        %252 = sbr.rel (%p249) target = $region12
      $region11: #{my_cnn_forward.1} parent=5 // pred_region
        %s253 = ssub.s32 %s19, 1
        // Predicated region
        $region13: #{my_cnn_forward.1} parent=11 // pred_check
          %p254 = pneg %p66
        $region14: #{my_cnn_forward.1} parent=11 // pred_check_branch
          %256 = sbr.rel (%p254) target = $region16
        $region15: #{my_cnn_forward.1} parent=11 // pred_region
          _
        $region16: #{my_cnn_forward.1} parent=11 // pred_fallthru
          _
        // Predicated region
        $region17: #{my_cnn_forward.1} parent=11 // pred_check
          %p257 = pneg %p87
        $region18: #{my_cnn_forward.1} parent=11 // pred_check_branch
          %259 = sbr.rel (%p257) target = $region20
        $region19: #{my_cnn_forward.1} parent=11 // pred_region
          _
        $region20: #{my_cnn_forward.1} parent=11 // pred_fallthru
          _
        // Predicated region
        $region21: #{my_cnn_forward.1} parent=11 // pred_check
          %p260 = pneg %p108
        $region22: #{my_cnn_forward.1} parent=11 // pred_check_branch
          %262 = sbr.rel (%p260) target = $region24
        $region23: #{my_cnn_forward.1} parent=11 // pred_region
          _
        $region24: #{my_cnn_forward.1} parent=11 // pred_fallthru
          _
        // Predicated region
        $region25: #{my_cnn_forward.1} parent=11 // pred_check
          %p263 = pneg %p129
        $region26: #{my_cnn_forward.1} parent=11 // pred_check_branch
          %265 = sbr.rel (%p263) target = $region28
        $region27: #{my_cnn_forward.1} parent=11 // pred_region
          _
        $region28: #{my_cnn_forward.1} parent=11 // pred_fallthru
          _
        // Predicated region
        $region29: #{my_cnn_forward.1} parent=11 // pred_check
          %p266 = pneg %p150
        $region30: #{my_cnn_forward.1} parent=11 // pred_check_branch
          %268 = sbr.rel (%p266) target = $region32
        $region31: #{my_cnn_forward.1} parent=11 // pred_region
          _
        $region32: #{my_cnn_forward.1} parent=11 // pred_fallthru
          _
        // Predicated region
        $region33: #{my_cnn_forward.1} parent=11 // pred_check
          %p269 = pneg %p171
        $region34: #{my_cnn_forward.1} parent=11 // pred_check_branch
          %271 = sbr.rel (%p269) target = $region36
        $region35: #{my_cnn_forward.1} parent=11 // pred_region
          _
        $region36: #{my_cnn_forward.1} parent=11 // pred_fallthru
          _
        // Predicated region
        $region37: #{my_cnn_forward.1} parent=11 // pred_check
          %p272 = pneg %p192
        $region38: #{my_cnn_forward.1} parent=11 // pred_check_branch
          %274 = sbr.rel (%p272) target = $region40
        $region39: #{my_cnn_forward.1} parent=11 // pred_region
          %s276 = ssub.s32 16384, 16384
          %277 = vsyncadd [#allocation10], %s276
          %s278 = sshll.u32 [#allocation9], 4
          %s279 = int_to_ptr.vmem [resolvable:$true] %s278
          %284 = dma.hbm_to_vmem [thread:$0]  %s7, 16384, %s279, [#allocation10], 512, 512, 32
        $region40: #{my_cnn_forward.1} parent=11 // pred_fallthru
          _
        // Predicated region
        $region41: #{my_cnn_forward.1} parent=11 // pred_check
          %p285 = pneg %p213
        $region42: #{my_cnn_forward.1} parent=11 // pred_check_branch
          %287 = sbr.rel (%p285) target = $region44
        $region43: #{my_cnn_forward.1} parent=11 // pred_region
          _
        $region44: #{my_cnn_forward.1} parent=11 // pred_fallthru
          _
      $region12: #{my_cnn_forward.1} parent=5 // pred_fallthru
        _
      %p288 = scmp.lt.s32.totalorder %s19, 2
      // Predicated region
      $region45: #{my_cnn_forward.1} parent=5 // pred_check
        %p289 = pneg %p288
      $region46: #{my_cnn_forward.1} parent=5 // pred_check_branch
        %291 = sbr.rel (%p289) target = $region48
      $region47: #{my_cnn_forward.1} parent=5 // pred_region
        // Predicated region
        $region49: #{my_cnn_forward.1} parent=47 // pred_check
          %p292 = pneg %p39
        $region50: #{my_cnn_forward.1} parent=47 // pred_check_branch
          %294 = sbr.rel (%p292) target = $region52
        $region51: #{my_cnn_forward.1} parent=47 // pred_region
          %p295 = scmp.lt.s32.totalorder %s19, 1
          %s296 = scalar_select %p295, %s19, 1
          %s297 = smul.addr %s296, 6
          %s298 = smul.addr %s297, 2
          %s299 = scalar_lea.vmem %s0, %s298
        $region52: #{my_cnn_forward.1} parent=47 // pred_fallthru
          _
      $region48: #{my_cnn_forward.1} parent=5 // pred_fallthru
        _
      %p300 = scmp.le.s32.totalorder 1, %s19
      %p301 = scmp.lt.s32.totalorder %s19, 3
      %p302 = pnand %p300, %p301
      %p303 = pneg %p302
      // Predicated region
      $region53: #{my_cnn_forward.1} parent=5 // pred_check
        _
      $region54: #{my_cnn_forward.1} parent=5 // pred_check_branch
        %305 = sbr.rel (%p302) target = $region56
      $region55: #{my_cnn_forward.1} parent=5 // pred_region
        %s306 = ssub.s32 %s19, 1
        // Predicated region
        $region57: #{my_cnn_forward.1} parent=55 // pred_check
          %p307 = pneg %p192
        $region58: #{my_cnn_forward.1} parent=55 // pred_check_branch
          %309 = sbr.rel (%p307) target = $region60
        $region59: #{my_cnn_forward.1} parent=55 // pred_region
          %310 = dma.done [#allocation10], 16384
        $region60: #{my_cnn_forward.1} parent=55 // pred_fallthru
          _
        %p311 = scmp.lt.s32.totalorder %s24, 1
        %s312 = scalar_select %p311, %s24, 1
        %s313 = smul.addr %s312, 6
        %s314 = smul.addr %s313, 2
        %s315 = scalar_lea.vmem %s0, %s314
        %p316 = pneg %p45
        %p317 = pneg %p42
        %p318 = pneg %p66
        %p319 = pneg %p63
        %p320 = pneg %p87
        %p321 = pneg %p84
        %p322 = pneg %p108
        %p323 = pneg %p105
        %p324 = pneg %p129
        %p325 = pneg %p126
        %p326 = pneg %p150
        %p327 = pneg %p147
        %p328 = pneg %p171
        %p329 = pneg %p168
        %p330 = pneg %p192
        %p331 = pneg %p189
        %p332 = pneg %p213
        %p333 = pneg %p210
        %p334 = pneg %p239
        %p335 = pneg %p236
        %s336 = sand.u32 %s226, 1
        %s337 = scalar_lea.sflag [#allocation11], %s336
        %s338 = sand.u32 %s226, 1
        %s339 = scalar_lea.vmem [#allocation12], %s338
        %p340 = scmp.lt.s32.totalorder %s24, 1
        %s341 = scalar_select %p340, %s24, 1
        %s342 = smul.addr %s341, 6
        %s343 = smul.addr %s342, 2
        %s344 = scalar_lea.vmem %s0, %s343
        %v346 = vld [vmem:[%s1] sm:$0xf]
        %vm347 = vcmp.ne.f32.partialorder %v346, 0.0
        %v348 = vld [vmem:[%s344] sm:$0xff]
        %v349 = vld [vmem:[%s344 + $0x8] sm:$0xf]
        %vm350 = vcmask 1041408
        %vm351 = vsmask.f32 1280
        %vm352 = vmand %vm350, %vm351
        %vm353 = vcmask 1043458
        %vm354 = vsmask.f32 3328
        %vm355 = vmand %vm353, %vm354
        %vm356 = vmor %vm355, %vm352
        %vm357 = vcmask 1045508
        %vm358 = vsmask.f32 5376
        %vm359 = vmand %vm357, %vm358
        %vm360 = vmor %vm359, %vm356
        %vm361 = vcmask 1047558
        %vm362 = vsmask.f32 7424
        %vm363 = vmand %vm361, %vm362
        %vm364 = vmor %vm363, %vm360
        %v365 = vld [vmem:[#allocation2] sm:$0xff]
        %v366 = vsel %vm364, %v348, %v365
        %367 = vst [vmem:[#allocation2] sm:$0xff] %v366
        %v368 = vld [vmem:[#allocation2 + $0x8] sm:$0xf]
        %v369 = vsel %vm356, %v349, %v368
        %370 = vst [vmem:[#allocation2 + $0x8] sm:$0xf] %v369
        %v371 = vld [vmem:[#allocation2] sm:$0xff]
        %v372 = vld [vmem:[#allocation2 + $0x8] sm:$0x3]
        %v375 = vcombine.high %v371, %v371
        %v377 = vunpack.c.l.s4 1983009808
        %v378 = vunpack.c.0.s8 %v377
        %v379 = vlaneseq
        %v380 = vshrl.u32 %v379, 7
        %v381 = vsub.s32 %v378, %v380
        %v382 = vrot.slane %v371, %v381
        %v384 = vunpack.c.l.s4 1983009808
        %v385 = vunpack.c.0.s8 %v384
        %v386 = vlaneseq
        %v387 = vshrl.u32 %v386, 7
        %v388 = vsub.s32 %v385, %v387
        %v389 = vrot.slane %v375, %v388
        %v391 = vunpack.c.l.s4 1983009808
        %v392 = vunpack.c.0.s8 %v391
        %v393 = vlaneseq
        %v394 = vshrl.u32 %v393, 7
        %v395 = vsub.s32 %v392, %v394
        %v396 = vrot.slane %v372, %v395
        %397 = vrot.lane.b32.xlu0 %v382, 69
        %v398 = vpop.permute.xlu0 %397
        %399 = vrot.lane.b32.xlu0 %v389, 69
        %v400 = vpop.permute.xlu0 %399
        %401 = vrot.lane.b32.xlu0 %v396, 69
        %v402 = vpop.permute.xlu0 %401
        %v403 = vrot.slane %v398, 4
        %v404 = vrot.slane %v400, 4
        %v405 = vrot.slane %v402, 4
        %vm406 = vcmask 1043456
        %v407 = vsel %vm406, %v403, %v404
        %vm408 = vcmask 564224
        %v409 = vsel %vm408, %v398, %v407
        %v410 = vsel %vm406, %v404, %v405
        %v411 = vsel %vm408, %v400, %v410
        %vm414 = vmor %vm359, %vm352
        %v415 = vld [vmem:[#allocation5] sm:$0x33]
        %v416 = vsel %vm414, %v409, %v415
        %417 = vst [vmem:[#allocation5] sm:$0x33] %v416
        %vm418 = vcmask 816132
        %vm419 = vmand %vm418, %vm358
        %vm420 = vmor %vm419, %vm352
        %v421 = vld [vmem:[#allocation5 + $0x8] sm:$0x33]
        %v422 = vsel %vm420, %v411, %v421
        %423 = vst [vmem:[#allocation5 + $0x8] sm:$0x33] %v422
        %v424 = vld [vmem:[#allocation2] sm:$0xff]
        %v425 = vld [vmem:[#allocation2 + $0x8] sm:$0x3]
        %v428 = vcombine.high %v424, %v424
        %v430 = vunpack.c.l.s4 1983009808
        %v431 = vunpack.c.0.s8 %v430
        %v432 = vlaneseq
        %v433 = vshrl.u32 %v432, 7
        %v434 = vsub.s32 %v431, %v433
        %v435 = vrot.slane %v424, %v434
        %v437 = vunpack.c.l.s4 1983009808
        %v438 = vunpack.c.0.s8 %v437
        %v439 = vlaneseq
        %v440 = vshrl.u32 %v439, 7
        %v441 = vsub.s32 %v438, %v440
        %v442 = vrot.slane %v428, %v441
        %v444 = vunpack.c.l.s4 1983009808
        %v445 = vunpack.c.0.s8 %v444
        %v446 = vlaneseq
        %v447 = vshrl.u32 %v446, 7
        %v448 = vsub.s32 %v445, %v447
        %v449 = vrot.slane %v425, %v448
        %v451 = vshrl.u32 %v435, 16
        %v453 = vrot.slane %v451, 6
        %v454 = vshll.u32 %v435, 16
        %v456 = vrot.slane %v454, 7
        %v457 = vor.u32 %v453, %v456
        %v459 = vshrl.u32 %v442, 16
        %v461 = vrot.slane %v459, 6
        %v462 = vshll.u32 %v442, 16
        %v464 = vrot.slane %v462, 7
        %v465 = vor.u32 %v461, %v464
        %v467 = vshrl.u32 %v449, 16
        %v469 = vrot.slane %v467, 6
        %v470 = vshll.u32 %v449, 16
        %v472 = vrot.slane %v470, 7
        %v473 = vor.u32 %v469, %v472
        %474 = vrot.lane.b32.xlu0 %v457, 68
        %v475 = vpop.permute.xlu0 %474
        %476 = vrot.lane.b32.xlu0 %v465, 68
        %v477 = vpop.permute.xlu0 %476
        %478 = vrot.lane.b32.xlu0 %v473, 68
        %v479 = vpop.permute.xlu0 %478
        %v480 = vrot.slane %v475, 4
        %v481 = vrot.slane %v477, 4
        %v482 = vrot.slane %v479, 4
        %v483 = vsel %vm406, %v480, %v481
        %vm484 = vcmask 556032
        %v485 = vsel %vm484, %v475, %v483
        %v486 = vsel %vm406, %v481, %v482
        %v487 = vsel %vm484, %v477, %v486
        %vm490 = vcmask 1042433
        %vm491 = vsmask.f32 7942
        %vm492 = vmand %vm490, %vm491
        %vm493 = vcmask 1046533
        %vm494 = vsmask.f32 7958
        %vm495 = vmand %vm493, %vm494
        %vm496 = vmor %vm495, %vm492
        %v497 = vld [vmem:[#allocation5] sm:$0x66]
        %v498 = vsel %vm496, %v485, %v497
        %499 = vst [vmem:[#allocation5] sm:$0x66] %v498
        %vm500 = vcmask 817157
        %vm501 = vmand %vm500, %vm494
        %vm502 = vmor %vm501, %vm492
        %v503 = vld [vmem:[#allocation5 + $0x8] sm:$0x66]
        %v504 = vsel %vm502, %v487, %v503
        %505 = vst [vmem:[#allocation5 + $0x8] sm:$0x66] %v504
        %v506 = vld [vmem:[#allocation2] sm:$0xff]
        %v507 = vld [vmem:[#allocation2 + $0x8] sm:$0x3]
        %v510 = vcombine.high %v506, %v506
        %v512 = vunpack.c.l.s4 1983009808
        %v513 = vunpack.c.0.s8 %v512
        %v514 = vlaneseq
        %v515 = vshrl.u32 %v514, 7
        %v516 = vsub.s32 %v513, %v515
        %v517 = vrot.slane %v506, %v516
        %v519 = vunpack.c.l.s4 1983009808
        %v520 = vunpack.c.0.s8 %v519
        %v521 = vlaneseq
        %v522 = vshrl.u32 %v521, 7
        %v523 = vsub.s32 %v520, %v522
        %v524 = vrot.slane %v510, %v523
        %v526 = vunpack.c.l.s4 1983009808
        %v527 = vunpack.c.0.s8 %v526
        %v528 = vlaneseq
        %v529 = vshrl.u32 %v528, 7
        %v530 = vsub.s32 %v527, %v529
        %v531 = vrot.slane %v507, %v530
        %v532 = vrot.slane %v517, 5
        %v533 = vrot.slane %v524, 5
        %v534 = vrot.slane %v531, 5
        %v535 = vrot.slane %v532, 4
        %v536 = vrot.slane %v533, 4
        %v537 = vrot.slane %v534, 4
        %538 = vrot.lane.b32.xlu0 %v532, 67
        %v539 = vpop.permute.xlu0 %538
        %540 = vrot.lane.b32.xlu0 %v533, 67
        %v541 = vpop.permute.xlu0 %540
        %542 = vrot.lane.b32.xlu0 %v534, 67
        %v543 = vpop.permute.xlu0 %542
        %544 = vrot.lane.b32.xlu0 %v535, 67
        %v545 = vpop.permute.xlu0 %544
        %546 = vrot.lane.b32.xlu0 %v536, 67
        %v547 = vpop.permute.xlu0 %546
        %548 = vrot.lane.b32.xlu0 %v537, 67
        %v549 = vpop.permute.xlu0 %548
        %v550 = vrot.slane %v539, 4
        %v551 = vrot.slane %v541, 4
        %v552 = vrot.slane %v543, 4
        %v553 = vrot.slane %v545, 4
        %v554 = vrot.slane %v547, 4
        %v555 = vrot.slane %v549, 4
        %v556 = vsel %vm406, %v550, %v551
        %vm557 = vcmask 547840
        %v558 = vsel %vm557, %v539, %v556
        %v559 = vsel %vm406, %v551, %v552
        %v560 = vsel %vm557, %v541, %v559
        %v561 = vsel %vm406, %v553, %v554
        %v562 = vsel %vm557, %v545, %v561
        %v563 = vsel %vm406, %v554, %v555
        %v564 = vsel %vm557, %v547, %v563
        %569 = vst [vmem:[#allocation5] sm:$0x88] %v558
        %vm570 = vcmask 1043459
        %vm571 = vcmask 818183
        %vm572 = vmor %vm571, %vm570
        %573 = vst.msk [vmem:[#allocation5 + $0x8] sm:$0x88] %vm572, %v560
        %vm574 = vcmask 1040384
        %vm575 = vsmask.f32 256
        %vm576 = vmand %vm574, %vm575
        %vm577 = vcmask 1044484
        %vm578 = vsmask.f32 4352
        %vm579 = vmand %vm577, %vm578
        %vm580 = vmor %vm579, %vm576
        %v581 = vld [vmem:[#allocation5 + $0x10] sm:$0x11]
        %v582 = vsel %vm580, %v562, %v581
        %583 = vst [vmem:[#allocation5 + $0x10] sm:$0x11] %v582
        %vm584 = vcmask 815108
        %vm585 = vmand %vm584, %vm578
        %vm586 = vmor %vm585, %vm576
        %v587 = vld [vmem:[#allocation5 + $0x18] sm:$0x11]
        %v588 = vsel %vm586, %v564, %v587
        %589 = vst [vmem:[#allocation5 + $0x18] sm:$0x11] %v588
        %v590 = vld [vmem:[#allocation2] sm:$0xff]
        %v591 = vld [vmem:[#allocation2 + $0x8] sm:$0x3]
        %v594 = vcombine.high %v590, %v590
        %v596 = vunpack.c.l.s4 1983009808
        %v597 = vunpack.c.0.s8 %v596
        %v598 = vlaneseq
        %v599 = vshrl.u32 %v598, 7
        %v600 = vsub.s32 %v597, %v599
        %v601 = vrot.slane %v590, %v600
        %v603 = vunpack.c.l.s4 1983009808
        %v604 = vunpack.c.0.s8 %v603
        %v605 = vlaneseq
        %v606 = vshrl.u32 %v605, 7
        %v607 = vsub.s32 %v604, %v606
        %v608 = vrot.slane %v594, %v607
        %v610 = vunpack.c.l.s4 1983009808
        %v611 = vunpack.c.0.s8 %v610
        %v612 = vlaneseq
        %v613 = vshrl.u32 %v612, 7
        %v614 = vsub.s32 %v611, %v613
        %v615 = vrot.slane %v591, %v614
        %v617 = vshrl.u32 %v601, 16
        %v619 = vrot.slane %v617, 7
        %v620 = vshll.u32 %v601, 16
        %v622 = vor.u32 %v619, %v620
        %v624 = vshrl.u32 %v608, 16
        %v626 = vrot.slane %v624, 7
        %v627 = vshll.u32 %v608, 16
        %v629 = vor.u32 %v626, %v627
        %v631 = vshrl.u32 %v615, 16
        %v633 = vrot.slane %v631, 7
        %v634 = vshll.u32 %v615, 16
        %v636 = vor.u32 %v633, %v634
        %637 = vrot.lane.b32.xlu0 %v622, 66
        %v638 = vpop.permute.xlu0 %637
        %639 = vrot.lane.b32.xlu0 %v629, 66
        %v640 = vpop.permute.xlu0 %639
        %641 = vrot.lane.b32.xlu0 %v636, 66
        %v642 = vpop.permute.xlu0 %641
        %v643 = vrot.slane %v638, 4
        %v644 = vrot.slane %v640, 4
        %v645 = vrot.slane %v642, 4
        %v646 = vsel %vm406, %v643, %v644
        %vm647 = vcmask 539648
        %v648 = vsel %vm647, %v638, %v646
        %v649 = vsel %vm406, %v644, %v645
        %v650 = vsel %vm647, %v640, %v649
        %vm653 = vsmask.f32 7938
        %vm654 = vmand %vm350, %vm653
        %vm655 = vsmask.f32 7954
        %vm656 = vmand %vm357, %vm655
        %vm657 = vmor %vm656, %vm654
        %v658 = vld [vmem:[#allocation5 + $0x10] sm:$0x33]
        %v659 = vsel %vm657, %v648, %v658
        %660 = vst [vmem:[#allocation5 + $0x10] sm:$0x33] %v659
        %vm661 = vmand %vm418, %vm655
        %vm662 = vmor %vm661, %vm654
        %v663 = vld [vmem:[#allocation5 + $0x18] sm:$0x33]
        %v664 = vsel %vm662, %v650, %v663
        %665 = vst [vmem:[#allocation5 + $0x18] sm:$0x33] %v664
        %v666 = vld [vmem:[#allocation2] sm:$0xff]
        %v667 = vld [vmem:[#allocation2 + $0x8] sm:$0x3]
        %v670 = vcombine.low %v666, %v666
        %v672 = vunpack.c.l.s4 1983009808
        %v673 = vunpack.c.0.s8 %v672
        %v674 = vlaneseq
        %v675 = vshrl.u32 %v674, 7
        %v676 = vsub.s32 %v673, %v675
        %v677 = vrot.slane %v670, %v676
        %v679 = vunpack.c.l.s4 1983009808
        %v680 = vunpack.c.0.s8 %v679
        %v681 = vlaneseq
        %v682 = vshrl.u32 %v681, 7
        %v683 = vsub.s32 %v680, %v682
        %v684 = vrot.slane %v666, %v683
        %v685 = vcombine.low %v667, %v667
        %v687 = vunpack.c.l.s4 1983009808
        %v688 = vunpack.c.0.s8 %v687
        %v689 = vlaneseq
        %v690 = vshrl.u32 %v689, 7
        %v691 = vsub.s32 %v688, %v690
        %v692 = vrot.slane %v685, %v691
        %693 = vrot.lane.b32.xlu0 %v677, 65
        %v694 = vpop.permute.xlu0 %693
        %695 = vrot.lane.b32.xlu0 %v684, 65
        %v696 = vpop.permute.xlu0 %695
        %697 = vrot.lane.b32.xlu0 %v692, 65
        %v698 = vpop.permute.xlu0 %697
        %v699 = vrot.slane %v694, 4
        %v700 = vrot.slane %v696, 4
        %v701 = vrot.slane %v698, 4
        %v702 = vsel %vm406, %v699, %v700
        %vm703 = vcmask 531456
        %v704 = vsel %vm703, %v694, %v702
        %v705 = vsel %vm406, %v700, %v701
        %v706 = vsel %vm703, %v696, %v705
        %vm709 = vmor %vm363, %vm355
        %v710 = vld [vmem:[#allocation5 + $0x10] sm:$0xcc]
        %v711 = vsel %vm709, %v704, %v710
        %712 = vst [vmem:[#allocation5 + $0x10] sm:$0xcc] %v711
        %vm713 = vcmask 818182
        %vm714 = vmand %vm713, %vm362
        %vm715 = vmor %vm714, %vm355
        %v716 = vld [vmem:[#allocation5 + $0x18] sm:$0xcc]
        %v717 = vsel %vm715, %v706, %v716
        %718 = vst [vmem:[#allocation5 + $0x18] sm:$0xcc] %v717
        %v719 = vld [vmem:[#allocation2] sm:$0xff]
        %v720 = vld [vmem:[#allocation2 + $0x8] sm:$0x3]
        %v723 = vcombine.high %v719, %v719
        %v725 = vunpack.c.l.s4 1983009808
        %v726 = vunpack.c.0.s8 %v725
        %v727 = vlaneseq
        %v728 = vshrl.u32 %v727, 7
        %v729 = vsub.s32 %v726, %v728
        %v730 = vrot.slane %v719, %v729
        %v732 = vunpack.c.l.s4 1983009808
        %v733 = vunpack.c.0.s8 %v732
        %v734 = vlaneseq
        %v735 = vshrl.u32 %v734, 7
        %v736 = vsub.s32 %v733, %v735
        %v737 = vrot.slane %v723, %v736
        %v739 = vunpack.c.l.s4 1983009808
        %v740 = vunpack.c.0.s8 %v739
        %v741 = vlaneseq
        %v742 = vshrl.u32 %v741, 7
        %v743 = vsub.s32 %v740, %v742
        %v744 = vrot.slane %v720, %v743
        %v746 = vshll.u32 %v730, 16
        %v748 = vrot.slane %v746, 5
        %v750 = vshll.u32 %v737, 16
        %v752 = vrot.slane %v750, 5
        %v754 = vshll.u32 %v744, 16
        %v756 = vrot.slane %v754, 5
        %v757 = vshrl.u32 %v730, 16
        %v759 = vrot.slane %v757, 4
        %v760 = vor.u32 %v759, %v748
        %v761 = vrot.slane %v760, 4
        %v762 = vshrl.u32 %v737, 16
        %v764 = vrot.slane %v762, 4
        %v765 = vor.u32 %v764, %v752
        %v766 = vrot.slane %v765, 4
        %v767 = vshrl.u32 %v744, 16
        %v769 = vrot.slane %v767, 4
        %v770 = vor.u32 %v769, %v756
        %v771 = vrot.slane %v770, 4
        %772 = vrot.lane.b32.xlu0 %v748, 64
        %v773 = vpop.permute.xlu0 %772
        %774 = vrot.lane.b32.xlu0 %v752, 64
        %v775 = vpop.permute.xlu0 %774
        %776 = vrot.lane.b32.xlu0 %v756, 64
        %v777 = vpop.permute.xlu0 %776
        %778 = vrot.lane.b32.xlu0 %v761, 64
        %v779 = vpop.permute.xlu0 %778
        %780 = vrot.lane.b32.xlu0 %v766, 64
        %v781 = vpop.permute.xlu0 %780
        %782 = vrot.lane.b32.xlu0 %v771, 64
        %v783 = vpop.permute.xlu0 %782
        %v784 = vrot.slane %v773, 4
        %v785 = vrot.slane %v775, 4
        %v786 = vrot.slane %v777, 4
        %v787 = vrot.slane %v779, 4
        %v788 = vrot.slane %v781, 4
        %v789 = vrot.slane %v783, 4
        %v790 = vsel %vm406, %v784, %v785
        %vm791 = vcmask 523264
        %v792 = vsel %vm791, %v773, %v790
        %v793 = vsel %vm406, %v785, %v786
        %v794 = vsel %vm791, %v775, %v793
        %v795 = vsel %vm406, %v787, %v788
        %v796 = vsel %vm791, %v779, %v795
        %v797 = vsel %vm406, %v788, %v789
        %v798 = vsel %vm791, %v781, %v797
        %vm803 = vcmask 1043459
        %vm804 = vsmask.f32 7950
        %vm805 = vmand %vm803, %vm804
        %vm806 = vcmask 1047559
        %vm807 = vsmask.f32 7966
        %vm808 = vmand %vm806, %vm807
        %vm809 = vmor %vm808, %vm805
        %v810 = vld [vmem:[#allocation5 + $0x10] sm:$0x88]
        %v811 = vsel %vm809, %v792, %v810
        %812 = vst [vmem:[#allocation5 + $0x10] sm:$0x88] %v811
        %vm813 = vcmask 818183
        %vm814 = vmand %vm813, %vm807
        %vm815 = vmor %vm814, %vm805
        %v816 = vld [vmem:[#allocation5 + $0x18] sm:$0x88]
        %v817 = vsel %vm815, %v794, %v816
        %818 = vst [vmem:[#allocation5 + $0x18] sm:$0x88] %v817
        %819 = vst [vmem:[#allocation5 + $0x20] sm:$0x11] %v796
        %vm820 = vcmask 1040384
        %vm821 = vcmask 815108
        %vm822 = vmor %vm821, %vm820
        %823 = vst.msk [vmem:[#allocation5 + $0x28] sm:$0x11] %vm822, %v798
        %v824 = vld [vmem:[#allocation2] sm:$0xff]
        %v825 = vld [vmem:[#allocation2 + $0x8] sm:$0x3]
        %v828 = vcombine.high %v824, %v824
        %v830 = vunpack.c.l.s4 1983009808
        %v831 = vunpack.c.0.s8 %v830
        %v832 = vlaneseq
        %v833 = vshrl.u32 %v832, 7
        %v834 = vsub.s32 %v831, %v833
        %v835 = vrot.slane %v824, %v834
        %v837 = vunpack.c.l.s4 1983009808
        %v838 = vunpack.c.0.s8 %v837
        %v839 = vlaneseq
        %v840 = vshrl.u32 %v839, 7
        %v841 = vsub.s32 %v838, %v840
        %v842 = vrot.slane %v828, %v841
        %v844 = vunpack.c.l.s4 1983009808
        %v845 = vunpack.c.0.s8 %v844
        %v846 = vlaneseq
        %v847 = vshrl.u32 %v846, 7
        %v848 = vsub.s32 %v845, %v847
        %v849 = vrot.slane %v825, %v848
        %v850 = vrot.slane %v835, 7
        %v851 = vrot.slane %v842, 7
        %v852 = vrot.slane %v849, 7
        %853 = vrot.lane.b32.xlu0 %v850, 63
        %v854 = vpop.permute.xlu0 %853
        %855 = vrot.lane.b32.xlu0 %v851, 63
        %v856 = vpop.permute.xlu0 %855
        %857 = vrot.lane.b32.xlu0 %v852, 63
        %v858 = vpop.permute.xlu0 %857
        %v859 = vrot.slane %v854, 4
        %v860 = vrot.slane %v856, 4
        %v861 = vrot.slane %v858, 4
        %v862 = vsel %vm406, %v859, %v860
        %vm863 = vcmask 515072
        %v864 = vsel %vm863, %v854, %v862
        %v865 = vsel %vm406, %v860, %v861
        %v866 = vsel %vm863, %v856, %v865
        %vm869 = vsmask.f32 2304
        %vm870 = vmand %vm490, %vm869
        %vm871 = vsmask.f32 6400
        %vm872 = vmand %vm493, %vm871
        %vm873 = vmor %vm872, %vm870
        %v874 = vld [vmem:[#allocation5 + $0x20] sm:$0x66]
        %v875 = vsel %vm873, %v864, %v874
        %876 = vst [vmem:[#allocation5 + $0x20] sm:$0x66] %v875
        %vm877 = vmand %vm500, %vm871
        %vm878 = vmor %vm877, %vm870
        %v879 = vld [vmem:[#allocation5 + $0x28] sm:$0x66]
        %v880 = vsel %vm878, %v866, %v879
        %881 = vst [vmem:[#allocation5 + $0x28] sm:$0x66] %v880
        %v882 = vld [vmem:[#allocation2] sm:$0xff]
        %v883 = vld [vmem:[#allocation2 + $0x8] sm:$0x3]
        %v886 = vcombine.high %v882, %v882
        %v888 = vunpack.c.l.s4 1983009808
        %v889 = vunpack.c.0.s8 %v888
        %v890 = vlaneseq
        %v891 = vshrl.u32 %v890, 7
        %v892 = vsub.s32 %v889, %v891
        %v893 = vrot.slane %v882, %v892
        %v895 = vunpack.c.l.s4 1983009808
        %v896 = vunpack.c.0.s8 %v895
        %v897 = vlaneseq
        %v898 = vshrl.u32 %v897, 7
        %v899 = vsub.s32 %v896, %v898
        %v900 = vrot.slane %v886, %v899
        %v902 = vunpack.c.l.s4 1983009808
        %v903 = vunpack.c.0.s8 %v902
        %v904 = vlaneseq
        %v905 = vshrl.u32 %v904, 7
        %v906 = vsub.s32 %v903, %v905
        %v907 = vrot.slane %v883, %v906
        %v909 = vshrl.u32 %v893, 16
        %v911 = vrot.slane %v909, 5
        %v912 = vshll.u32 %v893, 16
        %v914 = vrot.slane %v912, 6
        %v915 = vor.u32 %v911, %v914
        %v917 = vshrl.u32 %v900, 16
        %v919 = vrot.slane %v917, 5
        %v920 = vshll.u32 %v900, 16
        %v922 = vrot.slane %v920, 6
        %v923 = vor.u32 %v919, %v922
        %v925 = vshrl.u32 %v907, 16
        %v927 = vrot.slane %v925, 5
        %v928 = vshll.u32 %v907, 16
        %v930 = vrot.slane %v928, 6
        %v931 = vor.u32 %v927, %v930
        %932 = vrot.lane.b32.xlu0 %v915, 47
        %v933 = vpop.permute.xlu0 %932
        %934 = vrot.lane.b32.xlu0 %v923, 47
        %v935 = vpop.permute.xlu0 %934
        %936 = vrot.lane.b32.xlu0 %v931, 47
        %v937 = vpop.permute.xlu0 %936
        %v938 = vrot.slane %v933, 4
        %v939 = vrot.slane %v935, 4
        %v940 = vrot.slane %v937, 4
        %v941 = vsel %vm406, %v938, %v939
        %vm942 = vcmask 384000
        %v943 = vsel %vm942, %v933, %v941
        %v944 = vsel %vm406, %v939, %v940
        %v945 = vsel %vm942, %v935, %v944
        %vm948 = vsmask.f32 7946
        %vm949 = vmand %vm353, %vm948
        %vm950 = vsmask.f32 7962
        %vm951 = vmand %vm361, %vm950
        %vm952 = vmor %vm951, %vm949
        %v953 = vld [vmem:[#allocation5 + $0x20] sm:$0xcc]
        %v954 = vsel %vm952, %v943, %v953
        %955 = vst [vmem:[#allocation5 + $0x20] sm:$0xcc] %v954
        %vm956 = vmand %vm713, %vm950
        %vm957 = vmor %vm956, %vm949
        %v958 = vld [vmem:[#allocation5 + $0x28] sm:$0xcc]
        %v959 = vsel %vm957, %v945, %v958
        %960 = vst [vmem:[#allocation5 + $0x28] sm:$0xcc] %v959
        %v961 = vld [vmem:[#allocation2] sm:$0xff]
        %v962 = vld [vmem:[#allocation2 + $0x8] sm:$0x3]
        %v965 = vcombine.high %v961, %v961
        %v967 = vunpack.c.l.s4 1983009808
        %v968 = vunpack.c.0.s8 %v967
        %v969 = vlaneseq
        %v970 = vshrl.u32 %v969, 7
        %v971 = vsub.s32 %v968, %v970
        %v972 = vrot.slane %v961, %v971
        %v974 = vunpack.c.l.s4 1983009808
        %v975 = vunpack.c.0.s8 %v974
        %v976 = vlaneseq
        %v977 = vshrl.u32 %v976, 7
        %v978 = vsub.s32 %v975, %v977
        %v979 = vrot.slane %v965, %v978
        %v981 = vunpack.c.l.s4 1983009808
        %v982 = vunpack.c.0.s8 %v981
        %v983 = vlaneseq
        %v984 = vshrl.u32 %v983, 7
        %v985 = vsub.s32 %v982, %v984
        %v986 = vrot.slane %v962, %v985
        %987 = vrot.lane.b32.xlu0 %v972, 46
        %v988 = vpop.permute.xlu0 %987
        %989 = vrot.lane.b32.xlu0 %v979, 46
        %v990 = vpop.permute.xlu0 %989
        %991 = vrot.lane.b32.xlu0 %v986, 46
        %v992 = vpop.permute.xlu0 %991
        %v993 = vrot.slane %v988, 4
        %v994 = vrot.slane %v990, 4
        %v995 = vrot.slane %v992, 4
        %v996 = vsel %vm406, %v993, %v994
        %vm997 = vcmask 375808
        %v998 = vsel %vm997, %v988, %v996
        %v999 = vsel %vm406, %v994, %v995
        %v1000 = vsel %vm997, %v990, %v999
        %v1003 = vld [vmem:[#allocation5 + $0x30] sm:$0x33]
        %v1004 = vsel %vm414, %v998, %v1003
        %1005 = vst [vmem:[#allocation5 + $0x30] sm:$0x33] %v1004
        %v1006 = vld [vmem:[#allocation5 + $0x38] sm:$0x33]
        %v1007 = vsel %vm420, %v1000, %v1006
        %1008 = vst [vmem:[#allocation5 + $0x38] sm:$0x33] %v1007
        %v1009 = vld [vmem:[#allocation2] sm:$0xff]
        %v1010 = vld [vmem:[#allocation2 + $0x8] sm:$0x3]
        %v1013 = vcombine.high %v1009, %v1009
        %v1015 = vunpack.c.l.s4 1983009808
        %v1016 = vunpack.c.0.s8 %v1015
        %v1017 = vlaneseq
        %v1018 = vshrl.u32 %v1017, 7
        %v1019 = vsub.s32 %v1016, %v1018
        %v1020 = vrot.slane %v1009, %v1019
        %v1022 = vunpack.c.l.s4 1983009808
        %v1023 = vunpack.c.0.s8 %v1022
        %v1024 = vlaneseq
        %v1025 = vshrl.u32 %v1024, 7
        %v1026 = vsub.s32 %v1023, %v1025
        %v1027 = vrot.slane %v1013, %v1026
        %v1029 = vunpack.c.l.s4 1983009808
        %v1030 = vunpack.c.0.s8 %v1029
        %v1031 = vlaneseq
        %v1032 = vshrl.u32 %v1031, 7
        %v1033 = vsub.s32 %v1030, %v1032
        %v1034 = vrot.slane %v1010, %v1033
        %v1036 = vshrl.u32 %v1020, 16
        %v1038 = vrot.slane %v1036, 6
        %v1039 = vshll.u32 %v1020, 16
        %v1041 = vrot.slane %v1039, 7
        %v1042 = vor.u32 %v1038, %v1041
        %v1044 = vshrl.u32 %v1027, 16
        %v1046 = vrot.slane %v1044, 6
        %v1047 = vshll.u32 %v1027, 16
        %v1049 = vrot.slane %v1047, 7
        %v1050 = vor.u32 %v1046, %v1049
        %v1052 = vshrl.u32 %v1034, 16
        %v1054 = vrot.slane %v1052, 6
        %v1055 = vshll.u32 %v1034, 16
        %v1057 = vrot.slane %v1055, 7
        %v1058 = vor.u32 %v1054, %v1057
        %1059 = vrot.lane.b32.xlu0 %v1042, 45
        %v1060 = vpop.permute.xlu0 %1059
        %1061 = vrot.lane.b32.xlu0 %v1050, 45
        %v1062 = vpop.permute.xlu0 %1061
        %1063 = vrot.lane.b32.xlu0 %v1058, 45
        %v1064 = vpop.permute.xlu0 %1063
        %v1065 = vrot.slane %v1060, 4
        %v1066 = vrot.slane %v1062, 4
        %v1067 = vrot.slane %v1064, 4
        %v1068 = vsel %vm406, %v1065, %v1066
        %vm1069 = vcmask 367616
        %v1070 = vsel %vm1069, %v1060, %v1068
        %v1071 = vsel %vm406, %v1066, %v1067
        %v1072 = vsel %vm1069, %v1062, %v1071
        %v1075 = vld [vmem:[#allocation5 + $0x30] sm:$0x66]
        %v1076 = vsel %vm496, %v1070, %v1075
        %1077 = vst [vmem:[#allocation5 + $0x30] sm:$0x66] %v1076
        %v1078 = vld [vmem:[#allocation5 + $0x38] sm:$0x66]
        %v1079 = vsel %vm502, %v1072, %v1078
        %1080 = vst [vmem:[#allocation5 + $0x38] sm:$0x66] %v1079
        %v1081 = vld [vmem:[#allocation2] sm:$0xff]
        %v1082 = vld [vmem:[#allocation2 + $0x8] sm:$0x3]
        %v1085 = vcombine.high %v1081, %v1081
        %v1087 = vunpack.c.l.s4 1983009808
        %v1088 = vunpack.c.0.s8 %v1087
        %v1089 = vlaneseq
        %v1090 = vshrl.u32 %v1089, 7
        %v1091 = vsub.s32 %v1088, %v1090
        %v1092 = vrot.slane %v1081, %v1091
        %v1094 = vunpack.c.l.s4 1983009808
        %v1095 = vunpack.c.0.s8 %v1094
        %v1096 = vlaneseq
        %v1097 = vshrl.u32 %v1096, 7
        %v1098 = vsub.s32 %v1095, %v1097
        %v1099 = vrot.slane %v1085, %v1098
        %v1101 = vunpack.c.l.s4 1983009808
        %v1102 = vunpack.c.0.s8 %v1101
        %v1103 = vlaneseq
        %v1104 = vshrl.u32 %v1103, 7
        %v1105 = vsub.s32 %v1102, %v1104
        %v1106 = vrot.slane %v1082, %v1105
        %v1107 = vrot.slane %v1092, 5
        %v1108 = vrot.slane %v1099, 5
        %v1109 = vrot.slane %v1106, 5
        %v1110 = vrot.slane %v1107, 4
        %v1111 = vrot.slane %v1108, 4
        %v1112 = vrot.slane %v1109, 4
        %1113 = vrot.lane.b32.xlu0 %v1107, 44
        %v1114 = vpop.permute.xlu0 %1113
        %1115 = vrot.lane.b32.xlu0 %v1108, 44
        %v1116 = vpop.permute.xlu0 %1115
        %1117 = vrot.lane.b32.xlu0 %v1109, 44
        %v1118 = vpop.permute.xlu0 %1117
        %1119 = vrot.lane.b32.xlu0 %v1110, 44
        %v1120 = vpop.permute.xlu0 %1119
        %1121 = vrot.lane.b32.xlu0 %v1111, 44
        %v1122 = vpop.permute.xlu0 %1121
        %1123 = vrot.lane.b32.xlu0 %v1112, 44
        %v1124 = vpop.permute.xlu0 %1123
        %v1125 = vrot.slane %v1114, 4
        %v1126 = vrot.slane %v1116, 4
        %v1127 = vrot.slane %v1118, 4
        %v1128 = vrot.slane %v1120, 4
        %v1129 = vrot.slane %v1122, 4
        %v1130 = vrot.slane %v1124, 4
        %v1131 = vsel %vm406, %v1125, %v1126
        %vm1132 = vcmask 359424
        %v1133 = vsel %vm1132, %v1114, %v1131
        %v1134 = vsel %vm406, %v1126, %v1127
        %v1135 = vsel %vm1132, %v1116, %v1134
        %v1136 = vsel %vm406, %v1128, %v1129
        %v1137 = vsel %vm1132, %v1120, %v1136
        %v1138 = vsel %vm406, %v1129, %v1130
        %v1139 = vsel %vm1132, %v1122, %v1138
        %1144 = vst [vmem:[#allocation5 + $0x30] sm:$0x88] %v1133
        %1145 = vst.msk [vmem:[#allocation5 + $0x38] sm:$0x88] %vm572, %v1135
        %v1146 = vld [vmem:[#allocation5 + $0x40] sm:$0x11]
        %v1147 = vsel %vm580, %v1137, %v1146
        %1148 = vst [vmem:[#allocation5 + $0x40] sm:$0x11] %v1147
        %v1149 = vld [vmem:[#allocation5 + $0x48] sm:$0x11]
        %v1150 = vsel %vm586, %v1139, %v1149
        %1151 = vst [vmem:[#allocation5 + $0x48] sm:$0x11] %v1150
        %v1152 = vld [vmem:[#allocation2] sm:$0xff]
        %v1153 = vld [vmem:[#allocation2 + $0x8] sm:$0x3]
        %v1156 = vcombine.high %v1152, %v1152
        %v1158 = vunpack.c.l.s4 1983009808
        %v1159 = vunpack.c.0.s8 %v1158
        %v1160 = vlaneseq
        %v1161 = vshrl.u32 %v1160, 7
        %v1162 = vsub.s32 %v1159, %v1161
        %v1163 = vrot.slane %v1152, %v1162
        %v1165 = vunpack.c.l.s4 1983009808
        %v1166 = vunpack.c.0.s8 %v1165
        %v1167 = vlaneseq
        %v1168 = vshrl.u32 %v1167, 7
        %v1169 = vsub.s32 %v1166, %v1168
        %v1170 = vrot.slane %v1156, %v1169
        %v1172 = vunpack.c.l.s4 1983009808
        %v1173 = vunpack.c.0.s8 %v1172
        %v1174 = vlaneseq
        %v1175 = vshrl.u32 %v1174, 7
        %v1176 = vsub.s32 %v1173, %v1175
        %v1177 = vrot.slane %v1153, %v1176
        %v1179 = vshrl.u32 %v1163, 16
        %v1181 = vrot.slane %v1179, 7
        %v1182 = vshll.u32 %v1163, 16
        %v1184 = vor.u32 %v1181, %v1182
        %v1186 = vshrl.u32 %v1170, 16
        %v1188 = vrot.slane %v1186, 7
        %v1189 = vshll.u32 %v1170, 16
        %v1191 = vor.u32 %v1188, %v1189
        %v1193 = vshrl.u32 %v1177, 16
        %v1195 = vrot.slane %v1193, 7
        %v1196 = vshll.u32 %v1177, 16
        %v1198 = vor.u32 %v1195, %v1196
        %1199 = vrot.lane.b32.xlu0 %v1184, 43
        %v1200 = vpop.permute.xlu0 %1199
        %1201 = vrot.lane.b32.xlu0 %v1191, 43
        %v1202 = vpop.permute.xlu0 %1201
        %1203 = vrot.lane.b32.xlu0 %v1198, 43
        %v1204 = vpop.permute.xlu0 %1203
        %v1205 = vrot.slane %v1200, 4
        %v1206 = vrot.slane %v1202, 4
        %v1207 = vrot.slane %v1204, 4
        %v1208 = vsel %vm406, %v1205, %v1206
        %vm1209 = vcmask 351232
        %v1210 = vsel %vm1209, %v1200, %v1208
        %v1211 = vsel %vm406, %v1206, %v1207
        %v1212 = vsel %vm1209, %v1202, %v1211
        %v1215 = vld [vmem:[#allocation5 + $0x40] sm:$0x33]
        %v1216 = vsel %vm657, %v1210, %v1215
        %1217 = vst [vmem:[#allocation5 + $0x40] sm:$0x33] %v1216
        %v1218 = vld [vmem:[#allocation5 + $0x48] sm:$0x33]
        %v1219 = vsel %vm662, %v1212, %v1218
        %1220 = vst [vmem:[#allocation5 + $0x48] sm:$0x33] %v1219
        %v1221 = vld [vmem:[#allocation2] sm:$0xff]
        %v1222 = vld [vmem:[#allocation2 + $0x8] sm:$0x3]
        %v1225 = vcombine.low %v1221, %v1221
        %v1227 = vunpack.c.l.s4 1983009808
        %v1228 = vunpack.c.0.s8 %v1227
        %v1229 = vlaneseq
        %v1230 = vshrl.u32 %v1229, 7
        %v1231 = vsub.s32 %v1228, %v1230
        %v1232 = vrot.slane %v1225, %v1231
        %v1234 = vunpack.c.l.s4 1983009808
        %v1235 = vunpack.c.0.s8 %v1234
        %v1236 = vlaneseq
        %v1237 = vshrl.u32 %v1236, 7
        %v1238 = vsub.s32 %v1235, %v1237
        %v1239 = vrot.slane %v1221, %v1238
        %v1240 = vcombine.low %v1222, %v1222
        %v1242 = vunpack.c.l.s4 1983009808
        %v1243 = vunpack.c.0.s8 %v1242
        %v1244 = vlaneseq
        %v1245 = vshrl.u32 %v1244, 7
        %v1246 = vsub.s32 %v1243, %v1245
        %v1247 = vrot.slane %v1240, %v1246
        %1248 = vrot.lane.b32.xlu0 %v1232, 42
        %v1249 = vpop.permute.xlu0 %1248
        %1250 = vrot.lane.b32.xlu0 %v1239, 42
        %v1251 = vpop.permute.xlu0 %1250
        %1252 = vrot.lane.b32.xlu0 %v1247, 42
        %v1253 = vpop.permute.xlu0 %1252
        %v1254 = vrot.slane %v1249, 4
        %v1255 = vrot.slane %v1251, 4
        %v1256 = vrot.slane %v1253, 4
        %v1257 = vsel %vm406, %v1254, %v1255
        %vm1258 = vcmask 343040
        %v1259 = vsel %vm1258, %v1249, %v1257
        %v1260 = vsel %vm406, %v1255, %v1256
        %v1261 = vsel %vm1258, %v1251, %v1260
        %v1264 = vld [vmem:[#allocation5 + $0x40] sm:$0xcc]
        %v1265 = vsel %vm709, %v1259, %v1264
        %1266 = vst [vmem:[#allocation5 + $0x40] sm:$0xcc] %v1265
        %v1267 = vld [vmem:[#allocation5 + $0x48] sm:$0xcc]
        %v1268 = vsel %vm715, %v1261, %v1267
        %1269 = vst [vmem:[#allocation5 + $0x48] sm:$0xcc] %v1268
        %v1270 = vld [vmem:[#allocation2] sm:$0xff]
        %v1271 = vld [vmem:[#allocation2 + $0x8] sm:$0x3]
        %v1274 = vcombine.high %v1270, %v1270
        %v1276 = vunpack.c.l.s4 1983009808
        %v1277 = vunpack.c.0.s8 %v1276
        %v1278 = vlaneseq
        %v1279 = vshrl.u32 %v1278, 7
        %v1280 = vsub.s32 %v1277, %v1279
        %v1281 = vrot.slane %v1270, %v1280
        %v1283 = vunpack.c.l.s4 1983009808
        %v1284 = vunpack.c.0.s8 %v1283
        %v1285 = vlaneseq
        %v1286 = vshrl.u32 %v1285, 7
        %v1287 = vsub.s32 %v1284, %v1286
        %v1288 = vrot.slane %v1274, %v1287
        %v1290 = vunpack.c.l.s4 1983009808
        %v1291 = vunpack.c.0.s8 %v1290
        %v1292 = vlaneseq
        %v1293 = vshrl.u32 %v1292, 7
        %v1294 = vsub.s32 %v1291, %v1293
        %v1295 = vrot.slane %v1271, %v1294
        %v1297 = vshll.u32 %v1281, 16
        %v1299 = vrot.slane %v1297, 5
        %v1301 = vshll.u32 %v1288, 16
        %v1303 = vrot.slane %v1301, 5
        %v1305 = vshll.u32 %v1295, 16
        %v1307 = vrot.slane %v1305, 5
        %v1308 = vshrl.u32 %v1281, 16
        %v1310 = vrot.slane %v1308, 4
        %v1311 = vor.u32 %v1310, %v1299
        %v1312 = vrot.slane %v1311, 4
        %v1313 = vshrl.u32 %v1288, 16
        %v1315 = vrot.slane %v1313, 4
        %v1316 = vor.u32 %v1315, %v1303
        %v1317 = vrot.slane %v1316, 4
        %v1318 = vshrl.u32 %v1295, 16
        %v1320 = vrot.slane %v1318, 4
        %v1321 = vor.u32 %v1320, %v1307
        %v1322 = vrot.slane %v1321, 4
        %1323 = vrot.lane.b32.xlu0 %v1299, 41
        %v1324 = vpop.permute.xlu0 %1323
        %1325 = vrot.lane.b32.xlu0 %v1303, 41
        %v1326 = vpop.permute.xlu0 %1325
        %1327 = vrot.lane.b32.xlu0 %v1307, 41
        %v1328 = vpop.permute.xlu0 %1327
        %1329 = vrot.lane.b32.xlu0 %v1312, 41
        %v1330 = vpop.permute.xlu0 %1329
        %1331 = vrot.lane.b32.xlu0 %v1317, 41
        %v1332 = vpop.permute.xlu0 %1331
        %1333 = vrot.lane.b32.xlu0 %v1322, 41
        %v1334 = vpop.permute.xlu0 %1333
        %v1335 = vrot.slane %v1324, 4
        %v1336 = vrot.slane %v1326, 4
        %v1337 = vrot.slane %v1328, 4
        %v1338 = vrot.slane %v1330, 4
        %v1339 = vrot.slane %v1332, 4
        %v1340 = vrot.slane %v1334, 4
        %v1341 = vsel %vm406, %v1335, %v1336
        %vm1342 = vcmask 334848
        %v1343 = vsel %vm1342, %v1324, %v1341
        %v1344 = vsel %vm406, %v1336, %v1337
        %v1345 = vsel %vm1342, %v1326, %v1344
        %v1346 = vsel %vm406, %v1338, %v1339
        %v1347 = vsel %vm1342, %v1330, %v1346
        %v1348 = vsel %vm406, %v1339, %v1340
        %v1349 = vsel %vm1342, %v1332, %v1348
        %v1354 = vld [vmem:[#allocation5 + $0x40] sm:$0x88]
        %v1355 = vsel %vm809, %v1343, %v1354
        %1356 = vst [vmem:[#allocation5 + $0x40] sm:$0x88] %v1355
        %v1357 = vld [vmem:[#allocation5 + $0x48] sm:$0x88]
        %v1358 = vsel %vm815, %v1345, %v1357
        %1359 = vst [vmem:[#allocation5 + $0x48] sm:$0x88] %v1358
        %1360 = vst [vmem:[#allocation5 + $0x50] sm:$0x11] %v1347
        %1361 = vst.msk [vmem:[#allocation5 + $0x58] sm:$0x11] %vm822, %v1349
        %v1362 = vld [vmem:[#allocation2] sm:$0xff]
        %v1363 = vld [vmem:[#allocation2 + $0x8] sm:$0x3]
        %v1366 = vcombine.high %v1362, %v1362
        %v1368 = vunpack.c.l.s4 1983009808
        %v1369 = vunpack.c.0.s8 %v1368
        %v1370 = vlaneseq
        %v1371 = vshrl.u32 %v1370, 7
        %v1372 = vsub.s32 %v1369, %v1371
        %v1373 = vrot.slane %v1362, %v1372
        %v1375 = vunpack.c.l.s4 1983009808
        %v1376 = vunpack.c.0.s8 %v1375
        %v1377 = vlaneseq
        %v1378 = vshrl.u32 %v1377, 7
        %v1379 = vsub.s32 %v1376, %v1378
        %v1380 = vrot.slane %v1366, %v1379
        %v1382 = vunpack.c.l.s4 1983009808
        %v1383 = vunpack.c.0.s8 %v1382
        %v1384 = vlaneseq
        %v1385 = vshrl.u32 %v1384, 7
        %v1386 = vsub.s32 %v1383, %v1385
        %v1387 = vrot.slane %v1363, %v1386
        %v1388 = vrot.slane %v1373, 7
        %v1389 = vrot.slane %v1380, 7
        %v1390 = vrot.slane %v1387, 7
        %1391 = vrot.lane.b32.xlu0 %v1388, 25
        %v1392 = vpop.permute.xlu0 %1391
        %1393 = vrot.lane.b32.xlu0 %v1389, 25
        %v1394 = vpop.permute.xlu0 %1393
        %1395 = vrot.lane.b32.xlu0 %v1390, 25
        %v1396 = vpop.permute.xlu0 %1395
        %v1397 = vrot.slane %v1392, 4
        %v1398 = vrot.slane %v1394, 4
        %v1399 = vrot.slane %v1396, 4
        %v1400 = vsel %vm406, %v1397, %v1398
        %vm1401 = vcmask 203776
        %v1402 = vsel %vm1401, %v1392, %v1400
        %v1403 = vsel %vm406, %v1398, %v1399
        %v1404 = vsel %vm1401, %v1394, %v1403
        %v1407 = vld [vmem:[#allocation5 + $0x50] sm:$0x66]
        %v1408 = vsel %vm873, %v1402, %v1407
        %1409 = vst [vmem:[#allocation5 + $0x50] sm:$0x66] %v1408
        %v1410 = vld [vmem:[#allocation5 + $0x58] sm:$0x66]
        %v1411 = vsel %vm878, %v1404, %v1410
        %1412 = vst [vmem:[#allocation5 + $0x58] sm:$0x66] %v1411
        %v1413 = vld [vmem:[#allocation2] sm:$0xff]
        %v1414 = vld [vmem:[#allocation2 + $0x8] sm:$0x3]
        %v1417 = vcombine.high %v1413, %v1413
        %v1419 = vunpack.c.l.s4 1983009808
        %v1420 = vunpack.c.0.s8 %v1419
        %v1421 = vlaneseq
        %v1422 = vshrl.u32 %v1421, 7
        %v1423 = vsub.s32 %v1420, %v1422
        %v1424 = vrot.slane %v1413, %v1423
        %v1426 = vunpack.c.l.s4 1983009808
        %v1427 = vunpack.c.0.s8 %v1426
        %v1428 = vlaneseq
        %v1429 = vshrl.u32 %v1428, 7
        %v1430 = vsub.s32 %v1427, %v1429
        %v1431 = vrot.slane %v1417, %v1430
        %v1433 = vunpack.c.l.s4 1983009808
        %v1434 = vunpack.c.0.s8 %v1433
        %v1435 = vlaneseq
        %v1436 = vshrl.u32 %v1435, 7
        %v1437 = vsub.s32 %v1434, %v1436
        %v1438 = vrot.slane %v1414, %v1437
        %v1440 = vshrl.u32 %v1424, 16
        %v1442 = vrot.slane %v1440, 5
        %v1443 = vshll.u32 %v1424, 16
        %v1445 = vrot.slane %v1443, 6
        %v1446 = vor.u32 %v1442, %v1445
        %v1448 = vshrl.u32 %v1431, 16
        %v1450 = vrot.slane %v1448, 5
        %v1451 = vshll.u32 %v1431, 16
        %v1453 = vrot.slane %v1451, 6
        %v1454 = vor.u32 %v1450, %v1453
        %v1456 = vshrl.u32 %v1438, 16
        %v1458 = vrot.slane %v1456, 5
        %v1459 = vshll.u32 %v1438, 16
        %v1461 = vrot.slane %v1459, 6
        %v1462 = vor.u32 %v1458, %v1461
        %1463 = vrot.lane.b32.xlu0 %v1446, 24
        %v1464 = vpop.permute.xlu0 %1463
        %1465 = vrot.lane.b32.xlu0 %v1454, 24
        %v1466 = vpop.permute.xlu0 %1465
        %1467 = vrot.lane.b32.xlu0 %v1462, 24
        %v1468 = vpop.permute.xlu0 %1467
        %v1469 = vrot.slane %v1464, 4
        %v1470 = vrot.slane %v1466, 4
        %v1471 = vrot.slane %v1468, 4
        %v1472 = vsel %vm406, %v1469, %v1470
        %vm1473 = vcmask 195584
        %v1474 = vsel %vm1473, %v1464, %v1472
        %v1475 = vsel %vm406, %v1470, %v1471
        %v1476 = vsel %vm1473, %v1466, %v1475
        %v1479 = vld [vmem:[#allocation5 + $0x50] sm:$0xcc]
        %v1480 = vsel %vm952, %v1474, %v1479
        %1481 = vst [vmem:[#allocation5 + $0x50] sm:$0xcc] %v1480
        %v1482 = vld [vmem:[#allocation5 + $0x58] sm:$0xcc]
        %v1483 = vsel %vm957, %v1476, %v1482
        %1484 = vst [vmem:[#allocation5 + $0x58] sm:$0xcc] %v1483
        %v1485 = vld [vmem:[#allocation2] sm:$0xff]
        %v1486 = vld [vmem:[#allocation2 + $0x8] sm:$0x3]
        %v1489 = vcombine.high %v1485, %v1485
        %v1491 = vunpack.c.l.s4 1983009808
        %v1492 = vunpack.c.0.s8 %v1491
        %v1493 = vlaneseq
        %v1494 = vshrl.u32 %v1493, 7
        %v1495 = vsub.s32 %v1492, %v1494
        %v1496 = vrot.slane %v1485, %v1495
        %v1498 = vunpack.c.l.s4 1983009808
        %v1499 = vunpack.c.0.s8 %v1498
        %v1500 = vlaneseq
        %v1501 = vshrl.u32 %v1500, 7
        %v1502 = vsub.s32 %v1499, %v1501
        %v1503 = vrot.slane %v1489, %v1502
        %v1505 = vunpack.c.l.s4 1983009808
        %v1506 = vunpack.c.0.s8 %v1505
        %v1507 = vlaneseq
        %v1508 = vshrl.u32 %v1507, 7
        %v1509 = vsub.s32 %v1506, %v1508
        %v1510 = vrot.slane %v1486, %v1509
        %1511 = vrot.lane.b32.xlu0 %v1496, 23
        %v1512 = vpop.permute.xlu0 %1511
        %1513 = vrot.lane.b32.xlu0 %v1503, 23
        %v1514 = vpop.permute.xlu0 %1513
        %1515 = vrot.lane.b32.xlu0 %v1510, 23
        %v1516 = vpop.permute.xlu0 %1515
        %v1517 = vrot.slane %v1512, 4
        %v1518 = vrot.slane %v1514, 4
        %v1519 = vrot.slane %v1516, 4
        %v1520 = vsel %vm406, %v1517, %v1518
        %vm1521 = vcmask 187392
        %v1522 = vsel %vm1521, %v1512, %v1520
        %v1523 = vsel %vm406, %v1518, %v1519
        %v1524 = vsel %vm1521, %v1514, %v1523
        %v1527 = vld [vmem:[#allocation5 + $0x60] sm:$0x33]
        %v1528 = vsel %vm414, %v1522, %v1527
        %1529 = vst [vmem:[#allocation5 + $0x60] sm:$0x33] %v1528
        %v1530 = vld [vmem:[#allocation5 + $0x68] sm:$0x33]
        %v1531 = vsel %vm420, %v1524, %v1530
        %1532 = vst [vmem:[#allocation5 + $0x68] sm:$0x33] %v1531
        %v1533 = vld [vmem:[#allocation2] sm:$0xff]
        %v1534 = vld [vmem:[#allocation2 + $0x8] sm:$0x3]
        %v1537 = vcombine.high %v1533, %v1533
        %v1539 = vunpack.c.l.s4 1983009808
        %v1540 = vunpack.c.0.s8 %v1539
        %v1541 = vlaneseq
        %v1542 = vshrl.u32 %v1541, 7
        %v1543 = vsub.s32 %v1540, %v1542
        %v1544 = vrot.slane %v1533, %v1543
        %v1546 = vunpack.c.l.s4 1983009808
        %v1547 = vunpack.c.0.s8 %v1546
        %v1548 = vlaneseq
        %v1549 = vshrl.u32 %v1548, 7
        %v1550 = vsub.s32 %v1547, %v1549
        %v1551 = vrot.slane %v1537, %v1550
        %v1553 = vunpack.c.l.s4 1983009808
        %v1554 = vunpack.c.0.s8 %v1553
        %v1555 = vlaneseq
        %v1556 = vshrl.u32 %v1555, 7
        %v1557 = vsub.s32 %v1554, %v1556
        %v1558 = vrot.slane %v1534, %v1557
        %v1560 = vshrl.u32 %v1544, 16
        %v1562 = vrot.slane %v1560, 6
        %v1563 = vshll.u32 %v1544, 16
        %v1565 = vrot.slane %v1563, 7
        %v1566 = vor.u32 %v1562, %v1565
        %v1568 = vshrl.u32 %v1551, 16
        %v1570 = vrot.slane %v1568, 6
        %v1571 = vshll.u32 %v1551, 16
        %v1573 = vrot.slane %v1571, 7
        %v1574 = vor.u32 %v1570, %v1573
        %v1576 = vshrl.u32 %v1558, 16
        %v1578 = vrot.slane %v1576, 6
        %v1579 = vshll.u32 %v1558, 16
        %v1581 = vrot.slane %v1579, 7
        %v1582 = vor.u32 %v1578, %v1581
        %1583 = vrot.lane.b32.xlu0 %v1566, 22
        %v1584 = vpop.permute.xlu0 %1583
        %1585 = vrot.lane.b32.xlu0 %v1574, 22
        %v1586 = vpop.permute.xlu0 %1585
        %1587 = vrot.lane.b32.xlu0 %v1582, 22
        %v1588 = vpop.permute.xlu0 %1587
        %v1589 = vrot.slane %v1584, 4
        %v1590 = vrot.slane %v1586, 4
        %v1591 = vrot.slane %v1588, 4
        %v1592 = vsel %vm406, %v1589, %v1590
        %vm1593 = vcmask 179200
        %v1594 = vsel %vm1593, %v1584, %v1592
        %v1595 = vsel %vm406, %v1590, %v1591
        %v1596 = vsel %vm1593, %v1586, %v1595
        %v1599 = vld [vmem:[#allocation5 + $0x60] sm:$0x66]
        %v1600 = vsel %vm496, %v1594, %v1599
        %1601 = vst [vmem:[#allocation5 + $0x60] sm:$0x66] %v1600
        %v1602 = vld [vmem:[#allocation5 + $0x68] sm:$0x66]
        %v1603 = vsel %vm502, %v1596, %v1602
        %1604 = vst [vmem:[#allocation5 + $0x68] sm:$0x66] %v1603
        %v1605 = vld [vmem:[#allocation2] sm:$0xff]
        %v1606 = vld [vmem:[#allocation2 + $0x8] sm:$0x3]
        %v1609 = vcombine.high %v1605, %v1605
        %v1611 = vunpack.c.l.s4 1983009808
        %v1612 = vunpack.c.0.s8 %v1611
        %v1613 = vlaneseq
        %v1614 = vshrl.u32 %v1613, 7
        %v1615 = vsub.s32 %v1612, %v1614
        %v1616 = vrot.slane %v1605, %v1615
        %v1618 = vunpack.c.l.s4 1983009808
        %v1619 = vunpack.c.0.s8 %v1618
        %v1620 = vlaneseq
        %v1621 = vshrl.u32 %v1620, 7
        %v1622 = vsub.s32 %v1619, %v1621
        %v1623 = vrot.slane %v1609, %v1622
        %v1625 = vunpack.c.l.s4 1983009808
        %v1626 = vunpack.c.0.s8 %v1625
        %v1627 = vlaneseq
        %v1628 = vshrl.u32 %v1627, 7
        %v1629 = vsub.s32 %v1626, %v1628
        %v1630 = vrot.slane %v1606, %v1629
        %v1631 = vrot.slane %v1616, 5
        %v1632 = vrot.slane %v1623, 5
        %v1633 = vrot.slane %v1630, 5
        %v1634 = vrot.slane %v1631, 4
        %v1635 = vrot.slane %v1632, 4
        %v1636 = vrot.slane %v1633, 4
        %1637 = vrot.lane.b32.xlu0 %v1631, 21
        %v1638 = vpop.permute.xlu0 %1637
        %1639 = vrot.lane.b32.xlu0 %v1632, 21
        %v1640 = vpop.permute.xlu0 %1639
        %1641 = vrot.lane.b32.xlu0 %v1633, 21
        %v1642 = vpop.permute.xlu0 %1641
        %1643 = vrot.lane.b32.xlu0 %v1634, 21
        %v1644 = vpop.permute.xlu0 %1643
        %1645 = vrot.lane.b32.xlu0 %v1635, 21
        %v1646 = vpop.permute.xlu0 %1645
        %1647 = vrot.lane.b32.xlu0 %v1636, 21
        %v1648 = vpop.permute.xlu0 %1647
        %v1649 = vrot.slane %v1638, 4
        %v1650 = vrot.slane %v1640, 4
        %v1651 = vrot.slane %v1642, 4
        %v1652 = vrot.slane %v1644, 4
        %v1653 = vrot.slane %v1646, 4
        %v1654 = vrot.slane %v1648, 4
        %v1655 = vsel %vm406, %v1649, %v1650
        %vm1656 = vcmask 171008
        %v1657 = vsel %vm1656, %v1638, %v1655
        %v1658 = vsel %vm406, %v1650, %v1651
        %v1659 = vsel %vm1656, %v1640, %v1658
        %v1660 = vsel %vm406, %v1652, %v1653
        %v1661 = vsel %vm1656, %v1644, %v1660
        %v1662 = vsel %vm406, %v1653, %v1654
        %v1663 = vsel %vm1656, %v1646, %v1662
        %1668 = vst [vmem:[#allocation5 + $0x60] sm:$0x88] %v1657
        %1669 = vst.msk [vmem:[#allocation5 + $0x68] sm:$0x88] %vm572, %v1659
        %v1670 = vld [vmem:[#allocation5 + $0x70] sm:$0x11]
        %v1671 = vsel %vm580, %v1661, %v1670
        %1672 = vst [vmem:[#allocation5 + $0x70] sm:$0x11] %v1671
        %v1673 = vld [vmem:[#allocation5 + $0x78] sm:$0x11]
        %v1674 = vsel %vm586, %v1663, %v1673
        %1675 = vst [vmem:[#allocation5 + $0x78] sm:$0x11] %v1674
        %v1676 = vld [vmem:[#allocation2] sm:$0xff]
        %v1677 = vld [vmem:[#allocation2 + $0x8] sm:$0x3]
        %v1680 = vcombine.high %v1676, %v1676
        %v1682 = vunpack.c.l.s4 1983009808
        %v1683 = vunpack.c.0.s8 %v1682
        %v1684 = vlaneseq
        %v1685 = vshrl.u32 %v1684, 7
        %v1686 = vsub.s32 %v1683, %v1685
        %v1687 = vrot.slane %v1676, %v1686
        %v1689 = vunpack.c.l.s4 1983009808
        %v1690 = vunpack.c.0.s8 %v1689
        %v1691 = vlaneseq
        %v1692 = vshrl.u32 %v1691, 7
        %v1693 = vsub.s32 %v1690, %v1692
        %v1694 = vrot.slane %v1680, %v1693
        %v1696 = vunpack.c.l.s4 1983009808
        %v1697 = vunpack.c.0.s8 %v1696
        %v1698 = vlaneseq
        %v1699 = vshrl.u32 %v1698, 7
        %v1700 = vsub.s32 %v1697, %v1699
        %v1701 = vrot.slane %v1677, %v1700
        %v1703 = vshrl.u32 %v1687, 16
        %v1705 = vrot.slane %v1703, 7
        %v1706 = vshll.u32 %v1687, 16
        %v1708 = vor.u32 %v1705, %v1706
        %v1710 = vshrl.u32 %v1694, 16
        %v1712 = vrot.slane %v1710, 7
        %v1713 = vshll.u32 %v1694, 16
        %v1715 = vor.u32 %v1712, %v1713
        %v1717 = vshrl.u32 %v1701, 16
        %v1719 = vrot.slane %v1717, 7
        %v1720 = vshll.u32 %v1701, 16
        %v1722 = vor.u32 %v1719, %v1720
        %1723 = vrot.lane.b32.xlu0 %v1708, 20
        %v1724 = vpop.permute.xlu0 %1723
        %1725 = vrot.lane.b32.xlu0 %v1715, 20
        %v1726 = vpop.permute.xlu0 %1725
        %1727 = vrot.lane.b32.xlu0 %v1722, 20
        %v1728 = vpop.permute.xlu0 %1727
        %v1729 = vrot.slane %v1724, 4
        %v1730 = vrot.slane %v1726, 4
        %v1731 = vrot.slane %v1728, 4
        %v1732 = vsel %vm406, %v1729, %v1730
        %vm1733 = vcmask 162816
        %v1734 = vsel %vm1733, %v1724, %v1732
        %v1735 = vsel %vm406, %v1730, %v1731
        %v1736 = vsel %vm1733, %v1726, %v1735
        %v1739 = vld [vmem:[#allocation5 + $0x70] sm:$0x33]
        %v1740 = vsel %vm657, %v1734, %v1739
        %1741 = vst [vmem:[#allocation5 + $0x70] sm:$0x33] %v1740
        %v1742 = vld [vmem:[#allocation5 + $0x78] sm:$0x33]
        %v1743 = vsel %vm662, %v1736, %v1742
        %1744 = vst [vmem:[#allocation5 + $0x78] sm:$0x33] %v1743
        %v1745 = vld [vmem:[#allocation2] sm:$0xff]
        %v1746 = vld [vmem:[#allocation2 + $0x8] sm:$0x3]
        %v1749 = vcombine.low %v1745, %v1745
        %v1751 = vunpack.c.l.s4 1983009808
        %v1752 = vunpack.c.0.s8 %v1751
        %v1753 = vlaneseq
        %v1754 = vshrl.u32 %v1753, 7
        %v1755 = vsub.s32 %v1752, %v1754
        %v1756 = vrot.slane %v1749, %v1755
        %v1758 = vunpack.c.l.s4 1983009808
        %v1759 = vunpack.c.0.s8 %v1758
        %v1760 = vlaneseq
        %v1761 = vshrl.u32 %v1760, 7
        %v1762 = vsub.s32 %v1759, %v1761
        %v1763 = vrot.slane %v1745, %v1762
        %v1764 = vcombine.low %v1746, %v1746
        %v1766 = vunpack.c.l.s4 1983009808
        %v1767 = vunpack.c.0.s8 %v1766
        %v1768 = vlaneseq
        %v1769 = vshrl.u32 %v1768, 7
        %v1770 = vsub.s32 %v1767, %v1769
        %v1771 = vrot.slane %v1764, %v1770
        %1772 = vrot.lane.b32.xlu0 %v1756, 19
        %v1773 = vpop.permute.xlu0 %1772
        %1774 = vrot.lane.b32.xlu0 %v1763, 19
        %v1775 = vpop.permute.xlu0 %1774
        %1776 = vrot.lane.b32.xlu0 %v1771, 19
        %v1777 = vpop.permute.xlu0 %1776
        %v1778 = vrot.slane %v1773, 4
        %v1779 = vrot.slane %v1775, 4
        %v1780 = vrot.slane %v1777, 4
        %v1781 = vsel %vm406, %v1778, %v1779
        %vm1782 = vcmask 154624
        %v1783 = vsel %vm1782, %v1773, %v1781
        %v1784 = vsel %vm406, %v1779, %v1780
        %v1785 = vsel %vm1782, %v1775, %v1784
        %v1788 = vld [vmem:[#allocation5 + $0x70] sm:$0xcc]
        %v1789 = vsel %vm709, %v1783, %v1788
        %1790 = vst [vmem:[#allocation5 + $0x70] sm:$0xcc] %v1789
        %v1791 = vld [vmem:[#allocation5 + $0x78] sm:$0xcc]
        %v1792 = vsel %vm715, %v1785, %v1791
        %1793 = vst [vmem:[#allocation5 + $0x78] sm:$0xcc] %v1792
        %v1794 = vld [vmem:[#allocation2] sm:$0xff]
        %v1795 = vld [vmem:[#allocation2 + $0x8] sm:$0x3]
        %v1798 = vcombine.high %v1794, %v1794
        %v1800 = vunpack.c.l.s4 1983009808
        %v1801 = vunpack.c.0.s8 %v1800
        %v1802 = vlaneseq
        %v1803 = vshrl.u32 %v1802, 7
        %v1804 = vsub.s32 %v1801, %v1803
        %v1805 = vrot.slane %v1794, %v1804
        %v1807 = vunpack.c.l.s4 1983009808
        %v1808 = vunpack.c.0.s8 %v1807
        %v1809 = vlaneseq
        %v1810 = vshrl.u32 %v1809, 7
        %v1811 = vsub.s32 %v1808, %v1810
        %v1812 = vrot.slane %v1798, %v1811
        %v1814 = vunpack.c.l.s4 1983009808
        %v1815 = vunpack.c.0.s8 %v1814
        %v1816 = vlaneseq
        %v1817 = vshrl.u32 %v1816, 7
        %v1818 = vsub.s32 %v1815, %v1817
        %v1819 = vrot.slane %v1795, %v1818
        %v1821 = vshll.u32 %v1805, 16
        %v1823 = vrot.slane %v1821, 5
        %v1825 = vshll.u32 %v1812, 16
        %v1827 = vrot.slane %v1825, 5
        %v1829 = vshll.u32 %v1819, 16
        %v1831 = vrot.slane %v1829, 5
        %v1832 = vshrl.u32 %v1805, 16
        %v1834 = vrot.slane %v1832, 4
        %v1835 = vor.u32 %v1834, %v1823
        %v1836 = vrot.slane %v1835, 4
        %v1837 = vshrl.u32 %v1812, 16
        %v1839 = vrot.slane %v1837, 4
        %v1840 = vor.u32 %v1839, %v1827
        %v1841 = vrot.slane %v1840, 4
        %v1842 = vshrl.u32 %v1819, 16
        %v1844 = vrot.slane %v1842, 4
        %v1845 = vor.u32 %v1844, %v1831
        %v1846 = vrot.slane %v1845, 4
        %1847 = vrot.lane.b32.xlu0 %v1823, 3
        %v1848 = vpop.permute.xlu0 %1847
        %1849 = vrot.lane.b32.xlu0 %v1827, 3
        %v1850 = vpop.permute.xlu0 %1849
        %1851 = vrot.lane.b32.xlu0 %v1831, 3
        %v1852 = vpop.permute.xlu0 %1851
        %1853 = vrot.lane.b32.xlu0 %v1836, 3
        %v1854 = vpop.permute.xlu0 %1853
        %1855 = vrot.lane.b32.xlu0 %v1841, 3
        %v1856 = vpop.permute.xlu0 %1855
        %1857 = vrot.lane.b32.xlu0 %v1846, 3
        %v1858 = vpop.permute.xlu0 %1857
        %v1859 = vrot.slane %v1848, 4
        %v1860 = vrot.slane %v1850, 4
        %v1861 = vrot.slane %v1852, 4
        %v1862 = vrot.slane %v1854, 4
        %v1863 = vrot.slane %v1856, 4
        %v1864 = vrot.slane %v1858, 4
        %v1865 = vsel %vm406, %v1859, %v1860
        %vm1866 = vcmask 23552
        %v1867 = vsel %vm1866, %v1848, %v1865
        %v1868 = vsel %vm406, %v1860, %v1861
        %v1869 = vsel %vm1866, %v1850, %v1868
        %v1870 = vsel %vm406, %v1862, %v1863
        %v1871 = vsel %vm1866, %v1854, %v1870
        %v1872 = vsel %vm406, %v1863, %v1864
        %v1873 = vsel %vm1866, %v1856, %v1872
        %v1878 = vld [vmem:[#allocation5 + $0x70] sm:$0x88]
        %v1879 = vsel %vm809, %v1867, %v1878
        %1880 = vst [vmem:[#allocation5 + $0x70] sm:$0x88] %v1879
        %v1881 = vld [vmem:[#allocation5 + $0x78] sm:$0x88]
        %v1882 = vsel %vm815, %v1869, %v1881
        %1883 = vst [vmem:[#allocation5 + $0x78] sm:$0x88] %v1882
        %1884 = vst [vmem:[#allocation5 + $0x80] sm:$0x11] %v1871
        %1885 = vst.msk [vmem:[#allocation5 + $0x88] sm:$0x11] %vm822, %v1873
        %v1886 = vld [vmem:[#allocation2] sm:$0xff]
        %v1887 = vld [vmem:[#allocation2 + $0x8] sm:$0x3]
        %v1890 = vcombine.high %v1886, %v1886
        %v1892 = vunpack.c.l.s4 1983009808
        %v1893 = vunpack.c.0.s8 %v1892
        %v1894 = vlaneseq
        %v1895 = vshrl.u32 %v1894, 7
        %v1896 = vsub.s32 %v1893, %v1895
        %v1897 = vrot.slane %v1886, %v1896
        %v1899 = vunpack.c.l.s4 1983009808
        %v1900 = vunpack.c.0.s8 %v1899
        %v1901 = vlaneseq
        %v1902 = vshrl.u32 %v1901, 7
        %v1903 = vsub.s32 %v1900, %v1902
        %v1904 = vrot.slane %v1890, %v1903
        %v1906 = vunpack.c.l.s4 1983009808
        %v1907 = vunpack.c.0.s8 %v1906
        %v1908 = vlaneseq
        %v1909 = vshrl.u32 %v1908, 7
        %v1910 = vsub.s32 %v1907, %v1909
        %v1911 = vrot.slane %v1887, %v1910
        %v1912 = vrot.slane %v1897, 7
        %v1913 = vrot.slane %v1904, 7
        %v1914 = vrot.slane %v1911, 7
        %1915 = vrot.lane.b32.xlu0 %v1912, 2
        %v1916 = vpop.permute.xlu0 %1915
        %1917 = vrot.lane.b32.xlu0 %v1913, 2
        %v1918 = vpop.permute.xlu0 %1917
        %1919 = vrot.lane.b32.xlu0 %v1914, 2
        %v1920 = vpop.permute.xlu0 %1919
        %v1921 = vrot.slane %v1916, 4
        %v1922 = vrot.slane %v1918, 4
        %v1923 = vrot.slane %v1920, 4
        %v1924 = vsel %vm406, %v1921, %v1922
        %vm1925 = vcmask 15360
        %v1926 = vsel %vm1925, %v1916, %v1924
        %v1927 = vsel %vm406, %v1922, %v1923
        %v1928 = vsel %vm1925, %v1918, %v1927
        %v1931 = vld [vmem:[#allocation5 + $0x80] sm:$0x66]
        %v1932 = vsel %vm873, %v1926, %v1931
        %1933 = vst [vmem:[#allocation5 + $0x80] sm:$0x66] %v1932
        %v1934 = vld [vmem:[#allocation5 + $0x88] sm:$0x66]
        %v1935 = vsel %vm878, %v1928, %v1934
        %1936 = vst [vmem:[#allocation5 + $0x88] sm:$0x66] %v1935
        %v1937 = vld [vmem:[#allocation2] sm:$0xff]
        %v1938 = vld [vmem:[#allocation2 + $0x8] sm:$0x3]
        %v1941 = vcombine.high %v1937, %v1937
        %v1943 = vunpack.c.l.s4 1983009808
        %v1944 = vunpack.c.0.s8 %v1943
        %v1945 = vlaneseq
        %v1946 = vshrl.u32 %v1945, 7
        %v1947 = vsub.s32 %v1944, %v1946
        %v1948 = vrot.slane %v1937, %v1947
        %v1950 = vunpack.c.l.s4 1983009808
        %v1951 = vunpack.c.0.s8 %v1950
        %v1952 = vlaneseq
        %v1953 = vshrl.u32 %v1952, 7
        %v1954 = vsub.s32 %v1951, %v1953
        %v1955 = vrot.slane %v1941, %v1954
        %v1957 = vunpack.c.l.s4 1983009808
        %v1958 = vunpack.c.0.s8 %v1957
        %v1959 = vlaneseq
        %v1960 = vshrl.u32 %v1959, 7
        %v1961 = vsub.s32 %v1958, %v1960
        %v1962 = vrot.slane %v1938, %v1961
        %v1964 = vshrl.u32 %v1948, 16
        %v1966 = vrot.slane %v1964, 5
        %v1967 = vshll.u32 %v1948, 16
        %v1969 = vrot.slane %v1967, 6
        %v1970 = vor.u32 %v1966, %v1969
        %v1972 = vshrl.u32 %v1955, 16
        %v1974 = vrot.slane %v1972, 5
        %v1975 = vshll.u32 %v1955, 16
        %v1977 = vrot.slane %v1975, 6
        %v1978 = vor.u32 %v1974, %v1977
        %v1980 = vshrl.u32 %v1962, 16
        %v1982 = vrot.slane %v1980, 5
        %v1983 = vshll.u32 %v1962, 16
        %v1985 = vrot.slane %v1983, 6
        %v1986 = vor.u32 %v1982, %v1985
        %1987 = vrot.lane.b32.xlu0 %v1970, 1
        %v1988 = vpop.permute.xlu0 %1987
        %1989 = vrot.lane.b32.xlu0 %v1978, 1
        %v1990 = vpop.permute.xlu0 %1989
        %1991 = vrot.lane.b32.xlu0 %v1986, 1
        %v1992 = vpop.permute.xlu0 %1991
        %v1993 = vrot.slane %v1988, 4
        %v1994 = vrot.slane %v1990, 4
        %v1995 = vrot.slane %v1992, 4
        %v1996 = vsel %vm406, %v1993, %v1994
        %vm1997 = vcmask 7168
        %v1998 = vsel %vm1997, %v1988, %v1996
        %v1999 = vsel %vm406, %v1994, %v1995
        %v2000 = vsel %vm1997, %v1990, %v1999
        %v2003 = vld [vmem:[#allocation5 + $0x80] sm:$0xcc]
        %v2004 = vsel %vm952, %v1998, %v2003
        %2005 = vst [vmem:[#allocation5 + $0x80] sm:$0xcc] %v2004
        %v2006 = vld [vmem:[#allocation5 + $0x88] sm:$0xcc]
        %v2007 = vsel %vm957, %v2000, %v2006
        %2008 = vst [vmem:[#allocation5 + $0x88] sm:$0xcc] %v2007
        %v2009 = vld [vmem:[#allocation2 + $0x2] sm:$0xff]
        %v2011 = vcombine.high %v2009, %v2009
        %v2013 = vunpack.c.l.s4 1983009808
        %v2014 = vunpack.c.0.s8 %v2013
        %v2015 = vlaneseq
        %v2016 = vshrl.u32 %v2015, 7
        %v2017 = vsub.s32 %v2014, %v2016
        %v2018 = vrot.slane %v2009, %v2017
        %v2020 = vunpack.c.l.s4 1983009808
        %v2021 = vunpack.c.0.s8 %v2020
        %v2022 = vlaneseq
        %v2023 = vshrl.u32 %v2022, 7
        %v2024 = vsub.s32 %v2021, %v2023
        %v2025 = vrot.slane %v2011, %v2024
        %v2028 = vld [vmem:[#allocation5 + $0x90] sm:$0x33]
        %v2029 = vsel %vm414, %v2018, %v2028
        %2030 = vst [vmem:[#allocation5 + $0x90] sm:$0x33] %v2029
        %v2031 = vld [vmem:[#allocation5 + $0x98] sm:$0x33]
        %v2032 = vsel %vm420, %v2025, %v2031
        %2033 = vst [vmem:[#allocation5 + $0x98] sm:$0x33] %v2032
        %v2034 = vld [vmem:[#allocation2 + $0x2] sm:$0xff]
        %v2036 = vcombine.high %v2034, %v2034
        %v2038 = vunpack.c.l.s4 1983009808
        %v2039 = vunpack.c.0.s8 %v2038
        %v2040 = vlaneseq
        %v2041 = vshrl.u32 %v2040, 7
        %v2042 = vsub.s32 %v2039, %v2041
        %v2043 = vrot.slane %v2034, %v2042
        %v2045 = vunpack.c.l.s4 1983009808
        %v2046 = vunpack.c.0.s8 %v2045
        %v2047 = vlaneseq
        %v2048 = vshrl.u32 %v2047, 7
        %v2049 = vsub.s32 %v2046, %v2048
        %v2050 = vrot.slane %v2036, %v2049
        %v2052 = vshrl.u32 %v2043, 16
        %v2054 = vrot.slane %v2052, 6
        %v2055 = vshll.u32 %v2043, 16
        %v2057 = vrot.slane %v2055, 7
        %v2058 = vor.u32 %v2054, %v2057
        %v2060 = vshrl.u32 %v2050, 16
        %v2062 = vrot.slane %v2060, 6
        %v2063 = vshll.u32 %v2050, 16
        %v2065 = vrot.slane %v2063, 7
        %v2066 = vor.u32 %v2062, %v2065
        %2067 = vrot.lane.b32.xlu0 %v2058, 127
        %v2068 = vpop.permute.xlu0 %2067
        %2069 = vrot.lane.b32.xlu0 %v2066, 127
        %v2070 = vpop.permute.xlu0 %2069
        %v2071 = vrot.slane %v2068, 4
        %v2072 = vrot.slane %v2070, 4
        %v2073 = vsel %vm406, %v2071, %v2072
        %vm2074 = vcmask 1039360
        %v2075 = vsel %vm2074, %v2068, %v2073
        %v2076 = vsel %vm2074, %v2070, %v2072
        %v2079 = vld [vmem:[#allocation5 + $0x90] sm:$0x66]
        %v2080 = vsel %vm496, %v2075, %v2079
        %2081 = vst [vmem:[#allocation5 + $0x90] sm:$0x66] %v2080
        %v2082 = vld [vmem:[#allocation5 + $0x98] sm:$0x66]
        %v2083 = vsel %vm502, %v2076, %v2082
        %2084 = vst [vmem:[#allocation5 + $0x98] sm:$0x66] %v2083
        %v2085 = vld [vmem:[#allocation2 + $0x2] sm:$0xff]
        %v2087 = vcombine.high %v2085, %v2085
        %v2089 = vunpack.c.l.s4 1983009808
        %v2090 = vunpack.c.0.s8 %v2089
        %v2091 = vlaneseq
        %v2092 = vshrl.u32 %v2091, 7
        %v2093 = vsub.s32 %v2090, %v2092
        %v2094 = vrot.slane %v2085, %v2093
        %v2096 = vunpack.c.l.s4 1983009808
        %v2097 = vunpack.c.0.s8 %v2096
        %v2098 = vlaneseq
        %v2099 = vshrl.u32 %v2098, 7
        %v2100 = vsub.s32 %v2097, %v2099
        %v2101 = vrot.slane %v2087, %v2100
        %v2102 = vrot.slane %v2094, 5
        %v2103 = vrot.slane %v2101, 5
        %v2104 = vrot.slane %v2102, 4
        %v2105 = vrot.slane %v2103, 4
        %2106 = vrot.lane.b32.xlu0 %v2102, 126
        %v2107 = vpop.permute.xlu0 %2106
        %2108 = vrot.lane.b32.xlu0 %v2103, 126
        %v2109 = vpop.permute.xlu0 %2108
        %2110 = vrot.lane.b32.xlu0 %v2104, 126
        %v2111 = vpop.permute.xlu0 %2110
        %2112 = vrot.lane.b32.xlu0 %v2105, 126
        %v2113 = vpop.permute.xlu0 %2112
        %v2114 = vrot.slane %v2107, 4
        %v2115 = vrot.slane %v2109, 4
        %v2116 = vrot.slane %v2111, 4
        %v2117 = vrot.slane %v2113, 4
        %v2118 = vsel %vm406, %v2114, %v2115
        %vm2119 = vcmask 1031168
        %v2120 = vsel %vm2119, %v2107, %v2118
        %v2121 = vsel %vm2119, %v2109, %v2115
        %v2122 = vsel %vm406, %v2116, %v2117
        %v2123 = vsel %vm2119, %v2111, %v2122
        %v2124 = vsel %vm2119, %v2113, %v2117
        %2129 = vst [vmem:[#allocation5 + $0x90] sm:$0x88] %v2120
        %2130 = vst.msk [vmem:[#allocation5 + $0x98] sm:$0x88] %vm572, %v2121
        %v2131 = vld [vmem:[#allocation5 + $0xa0] sm:$0x11]
        %v2132 = vsel %vm580, %v2123, %v2131
        %2133 = vst [vmem:[#allocation5 + $0xa0] sm:$0x11] %v2132
        %v2134 = vld [vmem:[#allocation5 + $0xa8] sm:$0x11]
        %v2135 = vsel %vm586, %v2124, %v2134
        %2136 = vst [vmem:[#allocation5 + $0xa8] sm:$0x11] %v2135
        %v2137 = vld [vmem:[#allocation2 + $0x2] sm:$0xff]
        %v2139 = vcombine.high %v2137, %v2137
        %v2141 = vunpack.c.l.s4 1983009808
        %v2142 = vunpack.c.0.s8 %v2141
        %v2143 = vlaneseq
        %v2144 = vshrl.u32 %v2143, 7
        %v2145 = vsub.s32 %v2142, %v2144
        %v2146 = vrot.slane %v2137, %v2145
        %v2148 = vunpack.c.l.s4 1983009808
        %v2149 = vunpack.c.0.s8 %v2148
        %v2150 = vlaneseq
        %v2151 = vshrl.u32 %v2150, 7
        %v2152 = vsub.s32 %v2149, %v2151
        %v2153 = vrot.slane %v2139, %v2152
        %v2155 = vshrl.u32 %v2146, 16
        %v2157 = vrot.slane %v2155, 7
        %v2158 = vshll.u32 %v2146, 16
        %v2160 = vor.u32 %v2157, %v2158
        %v2162 = vshrl.u32 %v2153, 16
        %v2164 = vrot.slane %v2162, 7
        %v2165 = vshll.u32 %v2153, 16
        %v2167 = vor.u32 %v2164, %v2165
        %2168 = vrot.lane.b32.xlu0 %v2160, 125
        %v2169 = vpop.permute.xlu0 %2168
        %2170 = vrot.lane.b32.xlu0 %v2167, 125
        %v2171 = vpop.permute.xlu0 %2170
        %v2172 = vrot.slane %v2169, 4
        %v2173 = vrot.slane %v2171, 4
        %v2174 = vsel %vm406, %v2172, %v2173
        %vm2175 = vcmask 1022976
        %v2176 = vsel %vm2175, %v2169, %v2174
        %v2177 = vsel %vm2175, %v2171, %v2173
        %v2180 = vld [vmem:[#allocation5 + $0xa0] sm:$0x33]
        %v2181 = vsel %vm657, %v2176, %v2180
        %2182 = vst [vmem:[#allocation5 + $0xa0] sm:$0x33] %v2181
        %v2183 = vld [vmem:[#allocation5 + $0xa8] sm:$0x33]
        %v2184 = vsel %vm662, %v2177, %v2183
        %2185 = vst [vmem:[#allocation5 + $0xa8] sm:$0x33] %v2184
        %v2186 = vld [vmem:[#allocation2 + $0x2] sm:$0xff]
        %v2188 = vcombine.low %v2186, %v2186
        %v2190 = vunpack.c.l.s4 1983009808
        %v2191 = vunpack.c.0.s8 %v2190
        %v2192 = vlaneseq
        %v2193 = vshrl.u32 %v2192, 7
        %v2194 = vsub.s32 %v2191, %v2193
        %v2195 = vrot.slane %v2188, %v2194
        %v2197 = vunpack.c.l.s4 1983009808
        %v2198 = vunpack.c.0.s8 %v2197
        %v2199 = vlaneseq
        %v2200 = vshrl.u32 %v2199, 7
        %v2201 = vsub.s32 %v2198, %v2200
        %v2202 = vrot.slane %v2186, %v2201
        %2203 = vrot.lane.b32.xlu0 %v2195, 109
        %v2204 = vpop.permute.xlu0 %2203
        %2205 = vrot.lane.b32.xlu0 %v2202, 109
        %v2206 = vpop.permute.xlu0 %2205
        %v2207 = vrot.slane %v2204, 4
        %v2208 = vrot.slane %v2206, 4
        %v2209 = vsel %vm406, %v2207, %v2208
        %vm2210 = vcmask 891904
        %v2211 = vsel %vm2210, %v2204, %v2209
        %v2212 = vsel %vm2210, %v2206, %v2208
        %v2215 = vld [vmem:[#allocation5 + $0xa0] sm:$0xcc]
        %v2216 = vsel %vm709, %v2211, %v2215
        %2217 = vst [vmem:[#allocation5 + $0xa0] sm:$0xcc] %v2216
        %v2218 = vld [vmem:[#allocation5 + $0xa8] sm:$0xcc]
        %v2219 = vsel %vm715, %v2212, %v2218
        %2220 = vst [vmem:[#allocation5 + $0xa8] sm:$0xcc] %v2219
        %v2221 = vld [vmem:[#allocation2 + $0x2] sm:$0xff]
        %v2223 = vcombine.high %v2221, %v2221
        %v2225 = vunpack.c.l.s4 1983009808
        %v2226 = vunpack.c.0.s8 %v2225
        %v2227 = vlaneseq
        %v2228 = vshrl.u32 %v2227, 7
        %v2229 = vsub.s32 %v2226, %v2228
        %v2230 = vrot.slane %v2221, %v2229
        %v2232 = vunpack.c.l.s4 1983009808
        %v2233 = vunpack.c.0.s8 %v2232
        %v2234 = vlaneseq
        %v2235 = vshrl.u32 %v2234, 7
        %v2236 = vsub.s32 %v2233, %v2235
        %v2237 = vrot.slane %v2223, %v2236
        %v2239 = vshll.u32 %v2230, 16
        %v2241 = vrot.slane %v2239, 5
        %v2243 = vshll.u32 %v2237, 16
        %v2245 = vrot.slane %v2243, 5
        %v2246 = vshrl.u32 %v2230, 16
        %v2248 = vrot.slane %v2246, 4
        %v2249 = vor.u32 %v2248, %v2241
        %v2250 = vrot.slane %v2249, 4
        %v2251 = vshrl.u32 %v2237, 16
        %v2253 = vrot.slane %v2251, 4
        %v2254 = vor.u32 %v2253, %v2245
        %v2255 = vrot.slane %v2254, 4
        %2256 = vrot.lane.b32.xlu0 %v2241, 108
        %v2257 = vpop.permute.xlu0 %2256
        %2258 = vrot.lane.b32.xlu0 %v2245, 108
        %v2259 = vpop.permute.xlu0 %2258
        %2260 = vrot.lane.b32.xlu0 %v2250, 108
        %v2261 = vpop.permute.xlu0 %2260
        %2262 = vrot.lane.b32.xlu0 %v2255, 108
        %v2263 = vpop.permute.xlu0 %2262
        %v2264 = vrot.slane %v2257, 4
        %v2265 = vrot.slane %v2259, 4
        %v2266 = vrot.slane %v2261, 4
        %v2267 = vrot.slane %v2263, 4
        %v2268 = vsel %vm406, %v2264, %v2265
        %vm2269 = vcmask 883712
        %v2270 = vsel %vm2269, %v2257, %v2268
        %v2271 = vsel %vm2269, %v2259, %v2265
        %v2272 = vsel %vm406, %v2266, %v2267
        %v2273 = vsel %vm2269, %v2261, %v2272
        %v2274 = vsel %vm2269, %v2263, %v2267
        %v2279 = vld [vmem:[#allocation5 + $0xa0] sm:$0x88]
        %v2280 = vsel %vm809, %v2270, %v2279
        %2281 = vst [vmem:[#allocation5 + $0xa0] sm:$0x88] %v2280
        %v2282 = vld [vmem:[#allocation5 + $0xa8] sm:$0x88]
        %v2283 = vsel %vm815, %v2271, %v2282
        %2284 = vst [vmem:[#allocation5 + $0xa8] sm:$0x88] %v2283
        %2285 = vst [vmem:[#allocation5 + $0xb0] sm:$0x11] %v2273
        %2286 = vst.msk [vmem:[#allocation5 + $0xb8] sm:$0x11] %vm822, %v2274
        %v2287 = vld [vmem:[#allocation2 + $0x2] sm:$0xff]
        %v2289 = vcombine.high %v2287, %v2287
        %v2291 = vunpack.c.l.s4 1983009808
        %v2292 = vunpack.c.0.s8 %v2291
        %v2293 = vlaneseq
        %v2294 = vshrl.u32 %v2293, 7
        %v2295 = vsub.s32 %v2292, %v2294
        %v2296 = vrot.slane %v2287, %v2295
        %v2298 = vunpack.c.l.s4 1983009808
        %v2299 = vunpack.c.0.s8 %v2298
        %v2300 = vlaneseq
        %v2301 = vshrl.u32 %v2300, 7
        %v2302 = vsub.s32 %v2299, %v2301
        %v2303 = vrot.slane %v2289, %v2302
        %v2304 = vrot.slane %v2296, 7
        %v2305 = vrot.slane %v2303, 7
        %2306 = vrot.lane.b32.xlu0 %v2304, 107
        %v2307 = vpop.permute.xlu0 %2306
        %2308 = vrot.lane.b32.xlu0 %v2305, 107
        %v2309 = vpop.permute.xlu0 %2308
        %v2310 = vrot.slane %v2307, 4
        %v2311 = vrot.slane %v2309, 4
        %v2312 = vsel %vm406, %v2310, %v2311
        %vm2313 = vcmask 875520
        %v2314 = vsel %vm2313, %v2307, %v2312
        %v2315 = vsel %vm2313, %v2309, %v2311
        %v2318 = vld [vmem:[#allocation5 + $0xb0] sm:$0x66]
        %v2319 = vsel %vm873, %v2314, %v2318
        %2320 = vst [vmem:[#allocation5 + $0xb0] sm:$0x66] %v2319
        %v2321 = vld [vmem:[#allocation5 + $0xb8] sm:$0x66]
        %v2322 = vsel %vm878, %v2315, %v2321
        %2323 = vst [vmem:[#allocation5 + $0xb8] sm:$0x66] %v2322
        %v2324 = vld [vmem:[#allocation2 + $0x2] sm:$0xff]
        %v2326 = vcombine.high %v2324, %v2324
        %v2328 = vunpack.c.l.s4 1983009808
        %v2329 = vunpack.c.0.s8 %v2328
        %v2330 = vlaneseq
        %v2331 = vshrl.u32 %v2330, 7
        %v2332 = vsub.s32 %v2329, %v2331
        %v2333 = vrot.slane %v2324, %v2332
        %v2335 = vunpack.c.l.s4 1983009808
        %v2336 = vunpack.c.0.s8 %v2335
        %v2337 = vlaneseq
        %v2338 = vshrl.u32 %v2337, 7
        %v2339 = vsub.s32 %v2336, %v2338
        %v2340 = vrot.slane %v2326, %v2339
        %v2342 = vshrl.u32 %v2333, 16
        %v2344 = vrot.slane %v2342, 5
        %v2345 = vshll.u32 %v2333, 16
        %v2347 = vrot.slane %v2345, 6
        %v2348 = vor.u32 %v2344, %v2347
        %v2350 = vshrl.u32 %v2340, 16
        %v2352 = vrot.slane %v2350, 5
        %v2353 = vshll.u32 %v2340, 16
        %v2355 = vrot.slane %v2353, 6
        %v2356 = vor.u32 %v2352, %v2355
        %2357 = vrot.lane.b32.xlu0 %v2348, 106
        %v2358 = vpop.permute.xlu0 %2357
        %2359 = vrot.lane.b32.xlu0 %v2356, 106
        %v2360 = vpop.permute.xlu0 %2359
        %v2361 = vrot.slane %v2358, 4
        %v2362 = vrot.slane %v2360, 4
        %v2363 = vsel %vm406, %v2361, %v2362
        %vm2364 = vcmask 867328
        %v2365 = vsel %vm2364, %v2358, %v2363
        %v2366 = vsel %vm2364, %v2360, %v2362
        %v2369 = vld [vmem:[#allocation5 + $0xb0] sm:$0xcc]
        %v2370 = vsel %vm952, %v2365, %v2369
        %2371 = vst [vmem:[#allocation5 + $0xb0] sm:$0xcc] %v2370
        %v2372 = vld [vmem:[#allocation5 + $0xb8] sm:$0xcc]
        %v2373 = vsel %vm957, %v2366, %v2372
        %2374 = vst [vmem:[#allocation5 + $0xb8] sm:$0xcc] %v2373
        %v2375 = vld [vmem:[#allocation2 + $0x2] sm:$0xff]
        %v2377 = vcombine.high %v2375, %v2375
        %v2379 = vunpack.c.l.s4 1983009808
        %v2380 = vunpack.c.0.s8 %v2379
        %v2381 = vlaneseq
        %v2382 = vshrl.u32 %v2381, 7
        %v2383 = vsub.s32 %v2380, %v2382
        %v2384 = vrot.slane %v2375, %v2383
        %v2386 = vunpack.c.l.s4 1983009808
        %v2387 = vunpack.c.0.s8 %v2386
        %v2388 = vlaneseq
        %v2389 = vshrl.u32 %v2388, 7
        %v2390 = vsub.s32 %v2387, %v2389
        %v2391 = vrot.slane %v2377, %v2390
        %2392 = vrot.lane.b32.xlu0 %v2384, 105
        %v2393 = vpop.permute.xlu0 %2392
        %2394 = vrot.lane.b32.xlu0 %v2391, 105
        %v2395 = vpop.permute.xlu0 %2394
        %v2396 = vrot.slane %v2393, 4
        %v2397 = vrot.slane %v2395, 4
        %v2398 = vsel %vm406, %v2396, %v2397
        %vm2399 = vcmask 859136
        %v2400 = vsel %vm2399, %v2393, %v2398
        %v2401 = vsel %vm2399, %v2395, %v2397
        %v2404 = vld [vmem:[#allocation5 + $0xc0] sm:$0x33]
        %v2405 = vsel %vm414, %v2400, %v2404
        %2406 = vst [vmem:[#allocation5 + $0xc0] sm:$0x33] %v2405
        %v2407 = vld [vmem:[#allocation5 + $0xc8] sm:$0x33]
        %v2408 = vsel %vm420, %v2401, %v2407
        %2409 = vst [vmem:[#allocation5 + $0xc8] sm:$0x33] %v2408
        %v2410 = vld [vmem:[#allocation2 + $0x2] sm:$0xff]
        %v2412 = vcombine.high %v2410, %v2410
        %v2414 = vunpack.c.l.s4 1983009808
        %v2415 = vunpack.c.0.s8 %v2414
        %v2416 = vlaneseq
        %v2417 = vshrl.u32 %v2416, 7
        %v2418 = vsub.s32 %v2415, %v2417
        %v2419 = vrot.slane %v2410, %v2418
        %v2421 = vunpack.c.l.s4 1983009808
        %v2422 = vunpack.c.0.s8 %v2421
        %v2423 = vlaneseq
        %v2424 = vshrl.u32 %v2423, 7
        %v2425 = vsub.s32 %v2422, %v2424
        %v2426 = vrot.slane %v2412, %v2425
        %v2428 = vshrl.u32 %v2419, 16
        %v2430 = vrot.slane %v2428, 6
        %v2431 = vshll.u32 %v2419, 16
        %v2433 = vrot.slane %v2431, 7
        %v2434 = vor.u32 %v2430, %v2433
        %v2436 = vshrl.u32 %v2426, 16
        %v2438 = vrot.slane %v2436, 6
        %v2439 = vshll.u32 %v2426, 16
        %v2441 = vrot.slane %v2439, 7
        %v2442 = vor.u32 %v2438, %v2441
        %2443 = vrot.lane.b32.xlu0 %v2434, 104
        %v2444 = vpop.permute.xlu0 %2443
        %2445 = vrot.lane.b32.xlu0 %v2442, 104
        %v2446 = vpop.permute.xlu0 %2445
        %v2447 = vrot.slane %v2444, 4
        %v2448 = vrot.slane %v2446, 4
        %v2449 = vsel %vm406, %v2447, %v2448
        %vm2450 = vcmask 850944
        %v2451 = vsel %vm2450, %v2444, %v2449
        %v2452 = vsel %vm2450, %v2446, %v2448
        %v2455 = vld [vmem:[#allocation5 + $0xc0] sm:$0x66]
        %v2456 = vsel %vm496, %v2451, %v2455
        %2457 = vst [vmem:[#allocation5 + $0xc0] sm:$0x66] %v2456
        %v2458 = vld [vmem:[#allocation5 + $0xc8] sm:$0x66]
        %v2459 = vsel %vm502, %v2452, %v2458
        %2460 = vst [vmem:[#allocation5 + $0xc8] sm:$0x66] %v2459
        %v2461 = vld [vmem:[#allocation2 + $0x2] sm:$0xff]
        %v2463 = vcombine.high %v2461, %v2461
        %v2465 = vunpack.c.l.s4 1983009808
        %v2466 = vunpack.c.0.s8 %v2465
        %v2467 = vlaneseq
        %v2468 = vshrl.u32 %v2467, 7
        %v2469 = vsub.s32 %v2466, %v2468
        %v2470 = vrot.slane %v2461, %v2469
        %v2472 = vunpack.c.l.s4 1983009808
        %v2473 = vunpack.c.0.s8 %v2472
        %v2474 = vlaneseq
        %v2475 = vshrl.u32 %v2474, 7
        %v2476 = vsub.s32 %v2473, %v2475
        %v2477 = vrot.slane %v2463, %v2476
        %v2478 = vrot.slane %v2470, 5
        %v2479 = vrot.slane %v2477, 5
        %v2480 = vrot.slane %v2478, 4
        %v2481 = vrot.slane %v2479, 4
        %2482 = vrot.lane.b32.xlu0 %v2478, 103
        %v2483 = vpop.permute.xlu0 %2482
        %2484 = vrot.lane.b32.xlu0 %v2479, 103
        %v2485 = vpop.permute.xlu0 %2484
        %2486 = vrot.lane.b32.xlu0 %v2480, 103
        %v2487 = vpop.permute.xlu0 %2486
        %2488 = vrot.lane.b32.xlu0 %v2481, 103
        %v2489 = vpop.permute.xlu0 %2488
        %v2490 = vrot.slane %v2483, 4
        %v2491 = vrot.slane %v2485, 4
        %v2492 = vrot.slane %v2487, 4
        %v2493 = vrot.slane %v2489, 4
        %v2494 = vsel %vm406, %v2490, %v2491
        %vm2495 = vcmask 842752
        %v2496 = vsel %vm2495, %v2483, %v2494
        %v2497 = vsel %vm2495, %v2485, %v2491
        %v2498 = vsel %vm406, %v2492, %v2493
        %v2499 = vsel %vm2495, %v2487, %v2498
        %v2500 = vsel %vm2495, %v2489, %v2493
        %2505 = vst [vmem:[#allocation5 + $0xc0] sm:$0x88] %v2496
        %2506 = vst.msk [vmem:[#allocation5 + $0xc8] sm:$0x88] %vm572, %v2497
        %v2507 = vld [vmem:[#allocation5 + $0xd0] sm:$0x11]
        %v2508 = vsel %vm580, %v2499, %v2507
        %2509 = vst [vmem:[#allocation5 + $0xd0] sm:$0x11] %v2508
        %v2510 = vld [vmem:[#allocation5 + $0xd8] sm:$0x11]
        %v2511 = vsel %vm586, %v2500, %v2510
        %2512 = vst [vmem:[#allocation5 + $0xd8] sm:$0x11] %v2511
        %v2513 = vld [vmem:[#allocation2 + $0x2] sm:$0xff]
        %v2514 = vld [vmem:[#allocation2 + $0xa] sm:$0x3]
        %v2517 = vcombine.high %v2513, %v2513
        %v2519 = vunpack.c.l.s4 1983009808
        %v2520 = vunpack.c.0.s8 %v2519
        %v2521 = vlaneseq
        %v2522 = vshrl.u32 %v2521, 7
        %v2523 = vsub.s32 %v2520, %v2522
        %v2524 = vrot.slane %v2513, %v2523
        %v2526 = vunpack.c.l.s4 1983009808
        %v2527 = vunpack.c.0.s8 %v2526
        %v2528 = vlaneseq
        %v2529 = vshrl.u32 %v2528, 7
        %v2530 = vsub.s32 %v2527, %v2529
        %v2531 = vrot.slane %v2517, %v2530
        %v2533 = vunpack.c.l.s4 1983009808
        %v2534 = vunpack.c.0.s8 %v2533
        %v2535 = vlaneseq
        %v2536 = vshrl.u32 %v2535, 7
        %v2537 = vsub.s32 %v2534, %v2536
        %v2538 = vrot.slane %v2514, %v2537
        %v2540 = vshrl.u32 %v2524, 16
        %v2542 = vrot.slane %v2540, 7
        %v2543 = vshll.u32 %v2524, 16
        %v2545 = vor.u32 %v2542, %v2543
        %v2547 = vshrl.u32 %v2531, 16
        %v2549 = vrot.slane %v2547, 7
        %v2550 = vshll.u32 %v2531, 16
        %v2552 = vor.u32 %v2549, %v2550
        %v2554 = vshrl.u32 %v2538, 16
        %v2556 = vrot.slane %v2554, 7
        %v2557 = vshll.u32 %v2538, 16
        %v2559 = vor.u32 %v2556, %v2557
        %2560 = vrot.lane.b32.xlu0 %v2545, 87
        %v2561 = vpop.permute.xlu0 %2560
        %2562 = vrot.lane.b32.xlu0 %v2552, 87
        %v2563 = vpop.permute.xlu0 %2562
        %2564 = vrot.lane.b32.xlu0 %v2559, 87
        %v2565 = vpop.permute.xlu0 %2564
        %v2566 = vrot.slane %v2561, 4
        %v2567 = vrot.slane %v2563, 4
        %v2568 = vrot.slane %v2565, 4
        %v2569 = vsel %vm406, %v2566, %v2567
        %vm2570 = vcmask 711680
        %v2571 = vsel %vm2570, %v2561, %v2569
        %v2572 = vsel %vm406, %v2567, %v2568
        %v2573 = vsel %vm2570, %v2563, %v2572
        %v2576 = vld [vmem:[#allocation5 + $0xd0] sm:$0x33]
        %v2577 = vsel %vm657, %v2571, %v2576
        %2578 = vst [vmem:[#allocation5 + $0xd0] sm:$0x33] %v2577
        %v2579 = vld [vmem:[#allocation5 + $0xd8] sm:$0x33]
        %v2580 = vsel %vm662, %v2573, %v2579
        %2581 = vst [vmem:[#allocation5 + $0xd8] sm:$0x33] %v2580
        %v2582 = vld [vmem:[#allocation2 + $0x2] sm:$0xff]
        %v2583 = vld [vmem:[#allocation2 + $0xa] sm:$0x3]
        %v2586 = vcombine.low %v2582, %v2582
        %v2588 = vunpack.c.l.s4 1983009808
        %v2589 = vunpack.c.0.s8 %v2588
        %v2590 = vlaneseq
        %v2591 = vshrl.u32 %v2590, 7
        %v2592 = vsub.s32 %v2589, %v2591
        %v2593 = vrot.slane %v2586, %v2592
        %v2595 = vunpack.c.l.s4 1983009808
        %v2596 = vunpack.c.0.s8 %v2595
        %v2597 = vlaneseq
        %v2598 = vshrl.u32 %v2597, 7
        %v2599 = vsub.s32 %v2596, %v2598
        %v2600 = vrot.slane %v2582, %v2599
        %v2601 = vcombine.low %v2583, %v2583
        %v2603 = vunpack.c.l.s4 1983009808
        %v2604 = vunpack.c.0.s8 %v2603
        %v2605 = vlaneseq
        %v2606 = vshrl.u32 %v2605, 7
        %v2607 = vsub.s32 %v2604, %v2606
        %v2608 = vrot.slane %v2601, %v2607
        %2609 = vrot.lane.b32.xlu0 %v2593, 86
        %v2610 = vpop.permute.xlu0 %2609
        %2611 = vrot.lane.b32.xlu0 %v2600, 86
        %v2612 = vpop.permute.xlu0 %2611
        %2613 = vrot.lane.b32.xlu0 %v2608, 86
        %v2614 = vpop.permute.xlu0 %2613
        %v2615 = vrot.slane %v2610, 4
        %v2616 = vrot.slane %v2612, 4
        %v2617 = vrot.slane %v2614, 4
        %v2618 = vsel %vm406, %v2615, %v2616
        %vm2619 = vcmask 703488
        %v2620 = vsel %vm2619, %v2610, %v2618
        %v2621 = vsel %vm406, %v2616, %v2617
        %v2622 = vsel %vm2619, %v2612, %v2621
        %v2625 = vld [vmem:[#allocation5 + $0xd0] sm:$0xcc]
        %v2626 = vsel %vm709, %v2620, %v2625
        %2627 = vst [vmem:[#allocation5 + $0xd0] sm:$0xcc] %v2626
        %v2628 = vld [vmem:[#allocation5 + $0xd8] sm:$0xcc]
        %v2629 = vsel %vm715, %v2622, %v2628
        %2630 = vst [vmem:[#allocation5 + $0xd8] sm:$0xcc] %v2629
        %v2631 = vld [vmem:[#allocation2 + $0x2] sm:$0xff]
        %v2632 = vld [vmem:[#allocation2 + $0xa] sm:$0x3]
        %v2635 = vcombine.high %v2631, %v2631
        %v2637 = vunpack.c.l.s4 1983009808
        %v2638 = vunpack.c.0.s8 %v2637
        %v2639 = vlaneseq
        %v2640 = vshrl.u32 %v2639, 7
        %v2641 = vsub.s32 %v2638, %v2640
        %v2642 = vrot.slane %v2631, %v2641
        %v2644 = vunpack.c.l.s4 1983009808
        %v2645 = vunpack.c.0.s8 %v2644
        %v2646 = vlaneseq
        %v2647 = vshrl.u32 %v2646, 7
        %v2648 = vsub.s32 %v2645, %v2647
        %v2649 = vrot.slane %v2635, %v2648
        %v2651 = vunpack.c.l.s4 1983009808
        %v2652 = vunpack.c.0.s8 %v2651
        %v2653 = vlaneseq
        %v2654 = vshrl.u32 %v2653, 7
        %v2655 = vsub.s32 %v2652, %v2654
        %v2656 = vrot.slane %v2632, %v2655
        %v2658 = vshll.u32 %v2642, 16
        %v2660 = vrot.slane %v2658, 5
        %v2662 = vshll.u32 %v2649, 16
        %v2664 = vrot.slane %v2662, 5
        %v2666 = vshll.u32 %v2656, 16
        %v2668 = vrot.slane %v2666, 5
        %v2669 = vshrl.u32 %v2642, 16
        %v2671 = vrot.slane %v2669, 4
        %v2672 = vor.u32 %v2671, %v2660
        %v2673 = vrot.slane %v2672, 4
        %v2674 = vshrl.u32 %v2649, 16
        %v2676 = vrot.slane %v2674, 4
        %v2677 = vor.u32 %v2676, %v2664
        %v2678 = vrot.slane %v2677, 4
        %v2679 = vshrl.u32 %v2656, 16
        %v2681 = vrot.slane %v2679, 4
        %v2682 = vor.u32 %v2681, %v2668
        %v2683 = vrot.slane %v2682, 4
        %2684 = vrot.lane.b32.xlu0 %v2660, 85
        %v2685 = vpop.permute.xlu0 %2684
        %2686 = vrot.lane.b32.xlu0 %v2664, 85
        %v2687 = vpop.permute.xlu0 %2686
        %2688 = vrot.lane.b32.xlu0 %v2668, 85
        %v2689 = vpop.permute.xlu0 %2688
        %2690 = vrot.lane.b32.xlu0 %v2673, 85
        %v2691 = vpop.permute.xlu0 %2690
        %2692 = vrot.lane.b32.xlu0 %v2678, 85
        %v2693 = vpop.permute.xlu0 %2692
        %2694 = vrot.lane.b32.xlu0 %v2683, 85
        %v2695 = vpop.permute.xlu0 %2694
        %v2696 = vrot.slane %v2685, 4
        %v2697 = vrot.slane %v2687, 4
        %v2698 = vrot.slane %v2689, 4
        %v2699 = vrot.slane %v2691, 4
        %v2700 = vrot.slane %v2693, 4
        %v2701 = vrot.slane %v2695, 4
        %v2702 = vsel %vm406, %v2696, %v2697
        %vm2703 = vcmask 695296
        %v2704 = vsel %vm2703, %v2685, %v2702
        %v2705 = vsel %vm406, %v2697, %v2698
        %v2706 = vsel %vm2703, %v2687, %v2705
        %v2707 = vsel %vm406, %v2699, %v2700
        %v2708 = vsel %vm2703, %v2691, %v2707
        %v2709 = vsel %vm406, %v2700, %v2701
        %v2710 = vsel %vm2703, %v2693, %v2709
        %v2715 = vld [vmem:[#allocation5 + $0xd0] sm:$0x88]
        %v2716 = vsel %vm809, %v2704, %v2715
        %2717 = vst [vmem:[#allocation5 + $0xd0] sm:$0x88] %v2716
        %v2718 = vld [vmem:[#allocation5 + $0xd8] sm:$0x88]
        %v2719 = vsel %vm815, %v2706, %v2718
        %2720 = vst [vmem:[#allocation5 + $0xd8] sm:$0x88] %v2719
        %2721 = vst [vmem:[#allocation5 + $0xe0] sm:$0x11] %v2708
        %2722 = vst.msk [vmem:[#allocation5 + $0xe8] sm:$0x11] %vm822, %v2710
        %v2723 = vld [vmem:[#allocation2 + $0x2] sm:$0xff]
        %v2724 = vld [vmem:[#allocation2 + $0xa] sm:$0x3]
        %v2727 = vcombine.high %v2723, %v2723
        %v2729 = vunpack.c.l.s4 1983009808
        %v2730 = vunpack.c.0.s8 %v2729
        %v2731 = vlaneseq
        %v2732 = vshrl.u32 %v2731, 7
        %v2733 = vsub.s32 %v2730, %v2732
        %v2734 = vrot.slane %v2723, %v2733
        %v2736 = vunpack.c.l.s4 1983009808
        %v2737 = vunpack.c.0.s8 %v2736
        %v2738 = vlaneseq
        %v2739 = vshrl.u32 %v2738, 7
        %v2740 = vsub.s32 %v2737, %v2739
        %v2741 = vrot.slane %v2727, %v2740
        %v2743 = vunpack.c.l.s4 1983009808
        %v2744 = vunpack.c.0.s8 %v2743
        %v2745 = vlaneseq
        %v2746 = vshrl.u32 %v2745, 7
        %v2747 = vsub.s32 %v2744, %v2746
        %v2748 = vrot.slane %v2724, %v2747
        %v2749 = vrot.slane %v2734, 7
        %v2750 = vrot.slane %v2741, 7
        %v2751 = vrot.slane %v2748, 7
        %2752 = vrot.lane.b32.xlu0 %v2749, 84
        %v2753 = vpop.permute.xlu0 %2752
        %2754 = vrot.lane.b32.xlu0 %v2750, 84
        %v2755 = vpop.permute.xlu0 %2754
        %2756 = vrot.lane.b32.xlu0 %v2751, 84
        %v2757 = vpop.permute.xlu0 %2756
        %v2758 = vrot.slane %v2753, 4
        %v2759 = vrot.slane %v2755, 4
        %v2760 = vrot.slane %v2757, 4
        %v2761 = vsel %vm406, %v2758, %v2759
        %vm2762 = vcmask 687104
        %v2763 = vsel %vm2762, %v2753, %v2761
        %v2764 = vsel %vm406, %v2759, %v2760
        %v2765 = vsel %vm2762, %v2755, %v2764
        %v2768 = vld [vmem:[#allocation5 + $0xe0] sm:$0x66]
        %v2769 = vsel %vm873, %v2763, %v2768
        %2770 = vst [vmem:[#allocation5 + $0xe0] sm:$0x66] %v2769
        %v2771 = vld [vmem:[#allocation5 + $0xe8] sm:$0x66]
        %v2772 = vsel %vm878, %v2765, %v2771
        %2773 = vst [vmem:[#allocation5 + $0xe8] sm:$0x66] %v2772
        %v2774 = vld [vmem:[#allocation2 + $0x2] sm:$0xff]
        %v2775 = vld [vmem:[#allocation2 + $0xa] sm:$0x3]
        %v2778 = vcombine.high %v2774, %v2774
        %v2780 = vunpack.c.l.s4 1983009808
        %v2781 = vunpack.c.0.s8 %v2780
        %v2782 = vlaneseq
        %v2783 = vshrl.u32 %v2782, 7
        %v2784 = vsub.s32 %v2781, %v2783
        %v2785 = vrot.slane %v2774, %v2784
        %v2787 = vunpack.c.l.s4 1983009808
        %v2788 = vunpack.c.0.s8 %v2787
        %v2789 = vlaneseq
        %v2790 = vshrl.u32 %v2789, 7
        %v2791 = vsub.s32 %v2788, %v2790
        %v2792 = vrot.slane %v2778, %v2791
        %v2794 = vunpack.c.l.s4 1983009808
        %v2795 = vunpack.c.0.s8 %v2794
        %v2796 = vlaneseq
        %v2797 = vshrl.u32 %v2796, 7
        %v2798 = vsub.s32 %v2795, %v2797
        %v2799 = vrot.slane %v2775, %v2798
        %v2801 = vshrl.u32 %v2785, 16
        %v2803 = vrot.slane %v2801, 5
        %v2804 = vshll.u32 %v2785, 16
        %v2806 = vrot.slane %v2804, 6
        %v2807 = vor.u32 %v2803, %v2806
        %v2809 = vshrl.u32 %v2792, 16
        %v2811 = vrot.slane %v2809, 5
        %v2812 = vshll.u32 %v2792, 16
        %v2814 = vrot.slane %v2812, 6
        %v2815 = vor.u32 %v2811, %v2814
        %v2817 = vshrl.u32 %v2799, 16
        %v2819 = vrot.slane %v2817, 5
        %v2820 = vshll.u32 %v2799, 16
        %v2822 = vrot.slane %v2820, 6
        %v2823 = vor.u32 %v2819, %v2822
        %2824 = vrot.lane.b32.xlu0 %v2807, 83
        %v2825 = vpop.permute.xlu0 %2824
        %2826 = vrot.lane.b32.xlu0 %v2815, 83
        %v2827 = vpop.permute.xlu0 %2826
        %2828 = vrot.lane.b32.xlu0 %v2823, 83
        %v2829 = vpop.permute.xlu0 %2828
        %v2830 = vrot.slane %v2825, 4
        %v2831 = vrot.slane %v2827, 4
        %v2832 = vrot.slane %v2829, 4
        %v2833 = vsel %vm406, %v2830, %v2831
        %vm2834 = vcmask 678912
        %v2835 = vsel %vm2834, %v2825, %v2833
        %v2836 = vsel %vm406, %v2831, %v2832
        %v2837 = vsel %vm2834, %v2827, %v2836
        %v2840 = vld [vmem:[#allocation5 + $0xe0] sm:$0xcc]
        %v2841 = vsel %vm952, %v2835, %v2840
        %2842 = vst [vmem:[#allocation5 + $0xe0] sm:$0xcc] %v2841
        %v2843 = vld [vmem:[#allocation5 + $0xe8] sm:$0xcc]
        %v2844 = vsel %vm957, %v2837, %v2843
        %2845 = vst [vmem:[#allocation5 + $0xe8] sm:$0xcc] %v2844
        %v2846 = vld [vmem:[#allocation2 + $0x2] sm:$0xff]
        %v2847 = vld [vmem:[#allocation2 + $0xa] sm:$0x3]
        %v2850 = vcombine.high %v2846, %v2846
        %v2852 = vunpack.c.l.s4 1983009808
        %v2853 = vunpack.c.0.s8 %v2852
        %v2854 = vlaneseq
        %v2855 = vshrl.u32 %v2854, 7
        %v2856 = vsub.s32 %v2853, %v2855
        %v2857 = vrot.slane %v2846, %v2856
        %v2859 = vunpack.c.l.s4 1983009808
        %v2860 = vunpack.c.0.s8 %v2859
        %v2861 = vlaneseq
        %v2862 = vshrl.u32 %v2861, 7
        %v2863 = vsub.s32 %v2860, %v2862
        %v2864 = vrot.slane %v2850, %v2863
        %v2866 = vunpack.c.l.s4 1983009808
        %v2867 = vunpack.c.0.s8 %v2866
        %v2868 = vlaneseq
        %v2869 = vshrl.u32 %v2868, 7
        %v2870 = vsub.s32 %v2867, %v2869
        %v2871 = vrot.slane %v2847, %v2870
        %2872 = vrot.lane.b32.xlu0 %v2857, 82
        %v2873 = vpop.permute.xlu0 %2872
        %2874 = vrot.lane.b32.xlu0 %v2864, 82
        %v2875 = vpop.permute.xlu0 %2874
        %2876 = vrot.lane.b32.xlu0 %v2871, 82
        %v2877 = vpop.permute.xlu0 %2876
        %v2878 = vrot.slane %v2873, 4
        %v2879 = vrot.slane %v2875, 4
        %v2880 = vrot.slane %v2877, 4
        %v2881 = vsel %vm406, %v2878, %v2879
        %vm2882 = vcmask 670720
        %v2883 = vsel %vm2882, %v2873, %v2881
        %v2884 = vsel %vm406, %v2879, %v2880
        %v2885 = vsel %vm2882, %v2875, %v2884
        %v2888 = vld [vmem:[#allocation5 + $0xf0] sm:$0x33]
        %v2889 = vsel %vm414, %v2883, %v2888
        %2890 = vst [vmem:[#allocation5 + $0xf0] sm:$0x33] %v2889
        %v2891 = vld [vmem:[#allocation5 + $0xf8] sm:$0x33]
        %v2892 = vsel %vm420, %v2885, %v2891
        %2893 = vst [vmem:[#allocation5 + $0xf8] sm:$0x33] %v2892
        %v2894 = vld [vmem:[#allocation2 + $0x2] sm:$0xff]
        %v2895 = vld [vmem:[#allocation2 + $0xa] sm:$0x3]
        %v2898 = vcombine.high %v2894, %v2894
        %v2900 = vunpack.c.l.s4 1983009808
        %v2901 = vunpack.c.0.s8 %v2900
        %v2902 = vlaneseq
        %v2903 = vshrl.u32 %v2902, 7
        %v2904 = vsub.s32 %v2901, %v2903
        %v2905 = vrot.slane %v2894, %v2904
        %v2907 = vunpack.c.l.s4 1983009808
        %v2908 = vunpack.c.0.s8 %v2907
        %v2909 = vlaneseq
        %v2910 = vshrl.u32 %v2909, 7
        %v2911 = vsub.s32 %v2908, %v2910
        %v2912 = vrot.slane %v2898, %v2911
        %v2914 = vunpack.c.l.s4 1983009808
        %v2915 = vunpack.c.0.s8 %v2914
        %v2916 = vlaneseq
        %v2917 = vshrl.u32 %v2916, 7
        %v2918 = vsub.s32 %v2915, %v2917
        %v2919 = vrot.slane %v2895, %v2918
        %v2921 = vshrl.u32 %v2905, 16
        %v2923 = vrot.slane %v2921, 6
        %v2924 = vshll.u32 %v2905, 16
        %v2926 = vrot.slane %v2924, 7
        %v2927 = vor.u32 %v2923, %v2926
        %v2929 = vshrl.u32 %v2912, 16
        %v2931 = vrot.slane %v2929, 6
        %v2932 = vshll.u32 %v2912, 16
        %v2934 = vrot.slane %v2932, 7
        %v2935 = vor.u32 %v2931, %v2934
        %v2937 = vshrl.u32 %v2919, 16
        %v2939 = vrot.slane %v2937, 6
        %v2940 = vshll.u32 %v2919, 16
        %v2942 = vrot.slane %v2940, 7
        %v2943 = vor.u32 %v2939, %v2942
        %2944 = vrot.lane.b32.xlu0 %v2927, 81
        %v2945 = vpop.permute.xlu0 %2944
        %2946 = vrot.lane.b32.xlu0 %v2935, 81
        %v2947 = vpop.permute.xlu0 %2946
        %2948 = vrot.lane.b32.xlu0 %v2943, 81
        %v2949 = vpop.permute.xlu0 %2948
        %v2950 = vrot.slane %v2945, 4
        %v2951 = vrot.slane %v2947, 4
        %v2952 = vrot.slane %v2949, 4
        %v2953 = vsel %vm406, %v2950, %v2951
        %vm2954 = vcmask 662528
        %v2955 = vsel %vm2954, %v2945, %v2953
        %v2956 = vsel %vm406, %v2951, %v2952
        %v2957 = vsel %vm2954, %v2947, %v2956
        %v2960 = vld [vmem:[#allocation5 + $0xf0] sm:$0x66]
        %v2961 = vsel %vm496, %v2955, %v2960
        %2962 = vst [vmem:[#allocation5 + $0xf0] sm:$0x66] %v2961
        %v2963 = vld [vmem:[#allocation5 + $0xf8] sm:$0x66]
        %v2964 = vsel %vm502, %v2957, %v2963
        %2965 = vst [vmem:[#allocation5 + $0xf8] sm:$0x66] %v2964
        %v2966 = vld [vmem:[#allocation2 + $0x2] sm:$0xff]
        %v2967 = vld [vmem:[#allocation2 + $0xa] sm:$0x3]
        %v2970 = vcombine.high %v2966, %v2966
        %v2972 = vunpack.c.l.s4 1983009808
        %v2973 = vunpack.c.0.s8 %v2972
        %v2974 = vlaneseq
        %v2975 = vshrl.u32 %v2974, 7
        %v2976 = vsub.s32 %v2973, %v2975
        %v2977 = vrot.slane %v2966, %v2976
        %v2979 = vunpack.c.l.s4 1983009808
        %v2980 = vunpack.c.0.s8 %v2979
        %v2981 = vlaneseq
        %v2982 = vshrl.u32 %v2981, 7
        %v2983 = vsub.s32 %v2980, %v2982
        %v2984 = vrot.slane %v2970, %v2983
        %v2986 = vunpack.c.l.s4 1983009808
        %v2987 = vunpack.c.0.s8 %v2986
        %v2988 = vlaneseq
        %v2989 = vshrl.u32 %v2988, 7
        %v2990 = vsub.s32 %v2987, %v2989
        %v2991 = vrot.slane %v2967, %v2990
        %v2992 = vrot.slane %v2977, 5
        %v2993 = vrot.slane %v2984, 5
        %v2994 = vrot.slane %v2991, 5
        %v2995 = vrot.slane %v2992, 4
        %v2996 = vrot.slane %v2993, 4
        %v2997 = vrot.slane %v2994, 4
        %2998 = vrot.lane.b32.xlu0 %v2992, 65
        %v2999 = vpop.permute.xlu0 %2998
        %3000 = vrot.lane.b32.xlu0 %v2993, 65
        %v3001 = vpop.permute.xlu0 %3000
        %3002 = vrot.lane.b32.xlu0 %v2994, 65
        %v3003 = vpop.permute.xlu0 %3002
        %3004 = vrot.lane.b32.xlu0 %v2995, 65
        %v3005 = vpop.permute.xlu0 %3004
        %3006 = vrot.lane.b32.xlu0 %v2996, 65
        %v3007 = vpop.permute.xlu0 %3006
        %3008 = vrot.lane.b32.xlu0 %v2997, 65
        %v3009 = vpop.permute.xlu0 %3008
        %v3010 = vrot.slane %v2999, 4
        %v3011 = vrot.slane %v3001, 4
        %v3012 = vrot.slane %v3003, 4
        %v3013 = vrot.slane %v3005, 4
        %v3014 = vrot.slane %v3007, 4
        %v3015 = vrot.slane %v3009, 4
        %v3016 = vsel %vm406, %v3010, %v3011
        %v3017 = vsel %vm703, %v2999, %v3016
        %v3018 = vsel %vm406, %v3011, %v3012
        %v3019 = vsel %vm703, %v3001, %v3018
        %v3020 = vsel %vm406, %v3013, %v3014
        %v3021 = vsel %vm703, %v3005, %v3020
        %v3022 = vsel %vm406, %v3014, %v3015
        %v3023 = vsel %vm703, %v3007, %v3022
        %3028 = vst [vmem:[#allocation5 + $0xf0] sm:$0x88] %v3017
        %3029 = vst.msk [vmem:[#allocation5 + $0xf8] sm:$0x88] %vm572, %v3019
        %v3030 = vld [vmem:[#allocation5 + $0x100] sm:$0x11]
        %v3031 = vsel %vm580, %v3021, %v3030
        %3032 = vst [vmem:[#allocation5 + $0x100] sm:$0x11] %v3031
        %v3033 = vld [vmem:[#allocation5 + $0x108] sm:$0x11]
        %v3034 = vsel %vm586, %v3023, %v3033
        %3035 = vst [vmem:[#allocation5 + $0x108] sm:$0x11] %v3034
        %v3036 = vld [vmem:[#allocation2 + $0x2] sm:$0xff]
        %v3037 = vld [vmem:[#allocation2 + $0xa] sm:$0x3]
        %v3040 = vcombine.high %v3036, %v3036
        %v3042 = vunpack.c.l.s4 1983009808
        %v3043 = vunpack.c.0.s8 %v3042
        %v3044 = vlaneseq
        %v3045 = vshrl.u32 %v3044, 7
        %v3046 = vsub.s32 %v3043, %v3045
        %v3047 = vrot.slane %v3036, %v3046
        %v3049 = vunpack.c.l.s4 1983009808
        %v3050 = vunpack.c.0.s8 %v3049
        %v3051 = vlaneseq
        %v3052 = vshrl.u32 %v3051, 7
        %v3053 = vsub.s32 %v3050, %v3052
        %v3054 = vrot.slane %v3040, %v3053
        %v3056 = vunpack.c.l.s4 1983009808
        %v3057 = vunpack.c.0.s8 %v3056
        %v3058 = vlaneseq
        %v3059 = vshrl.u32 %v3058, 7
        %v3060 = vsub.s32 %v3057, %v3059
        %v3061 = vrot.slane %v3037, %v3060
        %v3063 = vshrl.u32 %v3047, 16
        %v3065 = vrot.slane %v3063, 7
        %v3066 = vshll.u32 %v3047, 16
        %v3068 = vor.u32 %v3065, %v3066
        %v3070 = vshrl.u32 %v3054, 16
        %v3072 = vrot.slane %v3070, 7
        %v3073 = vshll.u32 %v3054, 16
        %v3075 = vor.u32 %v3072, %v3073
        %v3077 = vshrl.u32 %v3061, 16
        %v3079 = vrot.slane %v3077, 7
        %v3080 = vshll.u32 %v3061, 16
        %v3082 = vor.u32 %v3079, %v3080
        %3083 = vrot.lane.b32.xlu0 %v3068, 64
        %v3084 = vpop.permute.xlu0 %3083
        %3085 = vrot.lane.b32.xlu0 %v3075, 64
        %v3086 = vpop.permute.xlu0 %3085
        %3087 = vrot.lane.b32.xlu0 %v3082, 64
        %v3088 = vpop.permute.xlu0 %3087
        %v3089 = vrot.slane %v3084, 4
        %v3090 = vrot.slane %v3086, 4
        %v3091 = vrot.slane %v3088, 4
        %v3092 = vsel %vm406, %v3089, %v3090
        %v3093 = vsel %vm791, %v3084, %v3092
        %v3094 = vsel %vm406, %v3090, %v3091
        %v3095 = vsel %vm791, %v3086, %v3094
        %v3098 = vld [vmem:[#allocation5 + $0x100] sm:$0x33]
        %v3099 = vsel %vm657, %v3093, %v3098
        %3100 = vst [vmem:[#allocation5 + $0x100] sm:$0x33] %v3099
        %v3101 = vld [vmem:[#allocation5 + $0x108] sm:$0x33]
        %v3102 = vsel %vm662, %v3095, %v3101
        %3103 = vst [vmem:[#allocation5 + $0x108] sm:$0x33] %v3102
        %v3104 = vld [vmem:[#allocation2 + $0x2] sm:$0xff]
        %v3105 = vld [vmem:[#allocation2 + $0xa] sm:$0x3]
        %v3108 = vcombine.low %v3104, %v3104
        %v3110 = vunpack.c.l.s4 1983009808
        %v3111 = vunpack.c.0.s8 %v3110
        %v3112 = vlaneseq
        %v3113 = vshrl.u32 %v3112, 7
        %v3114 = vsub.s32 %v3111, %v3113
        %v3115 = vrot.slane %v3108, %v3114
        %v3117 = vunpack.c.l.s4 1983009808
        %v3118 = vunpack.c.0.s8 %v3117
        %v3119 = vlaneseq
        %v3120 = vshrl.u32 %v3119, 7
        %v3121 = vsub.s32 %v3118, %v3120
        %v3122 = vrot.slane %v3104, %v3121
        %v3123 = vcombine.low %v3105, %v3105
        %v3125 = vunpack.c.l.s4 1983009808
        %v3126 = vunpack.c.0.s8 %v3125
        %v3127 = vlaneseq
        %v3128 = vshrl.u32 %v3127, 7
        %v3129 = vsub.s32 %v3126, %v3128
        %v3130 = vrot.slane %v3123, %v3129
        %3131 = vrot.lane.b32.xlu0 %v3115, 63
        %v3132 = vpop.permute.xlu0 %3131
        %3133 = vrot.lane.b32.xlu0 %v3122, 63
        %v3134 = vpop.permute.xlu0 %3133
        %3135 = vrot.lane.b32.xlu0 %v3130, 63
        %v3136 = vpop.permute.xlu0 %3135
        %v3137 = vrot.slane %v3132, 4
        %v3138 = vrot.slane %v3134, 4
        %v3139 = vrot.slane %v3136, 4
        %v3140 = vsel %vm406, %v3137, %v3138
        %v3141 = vsel %vm863, %v3132, %v3140
        %v3142 = vsel %vm406, %v3138, %v3139
        %v3143 = vsel %vm863, %v3134, %v3142
        %v3146 = vld [vmem:[#allocation5 + $0x100] sm:$0xcc]
        %v3147 = vsel %vm709, %v3141, %v3146
        %3148 = vst [vmem:[#allocation5 + $0x100] sm:$0xcc] %v3147
        %v3149 = vld [vmem:[#allocation5 + $0x108] sm:$0xcc]
        %v3150 = vsel %vm715, %v3143, %v3149
        %3151 = vst [vmem:[#allocation5 + $0x108] sm:$0xcc] %v3150
        %v3152 = vld [vmem:[#allocation2 + $0x2] sm:$0xff]
        %v3153 = vld [vmem:[#allocation2 + $0xa] sm:$0x3]
        %v3156 = vcombine.high %v3152, %v3152
        %v3158 = vunpack.c.l.s4 1983009808
        %v3159 = vunpack.c.0.s8 %v3158
        %v3160 = vlaneseq
        %v3161 = vshrl.u32 %v3160, 7
        %v3162 = vsub.s32 %v3159, %v3161
        %v3163 = vrot.slane %v3152, %v3162
        %v3165 = vunpack.c.l.s4 1983009808
        %v3166 = vunpack.c.0.s8 %v3165
        %v3167 = vlaneseq
        %v3168 = vshrl.u32 %v3167, 7
        %v3169 = vsub.s32 %v3166, %v3168
        %v3170 = vrot.slane %v3156, %v3169
        %v3172 = vunpack.c.l.s4 1983009808
        %v3173 = vunpack.c.0.s8 %v3172
        %v3174 = vlaneseq
        %v3175 = vshrl.u32 %v3174, 7
        %v3176 = vsub.s32 %v3173, %v3175
        %v3177 = vrot.slane %v3153, %v3176
        %v3179 = vshll.u32 %v3163, 16
        %v3181 = vrot.slane %v3179, 5
        %v3183 = vshll.u32 %v3170, 16
        %v3185 = vrot.slane %v3183, 5
        %v3187 = vshll.u32 %v3177, 16
        %v3189 = vrot.slane %v3187, 5
        %v3190 = vshrl.u32 %v3163, 16
        %v3192 = vrot.slane %v3190, 4
        %v3193 = vor.u32 %v3192, %v3181
        %v3194 = vrot.slane %v3193, 4
        %v3195 = vshrl.u32 %v3170, 16
        %v3197 = vrot.slane %v3195, 4
        %v3198 = vor.u32 %v3197, %v3185
        %v3199 = vrot.slane %v3198, 4
        %v3200 = vshrl.u32 %v3177, 16
        %v3202 = vrot.slane %v3200, 4
        %v3203 = vor.u32 %v3202, %v3189
        %v3204 = vrot.slane %v3203, 4
        %3205 = vrot.lane.b32.xlu0 %v3181, 62
        %v3206 = vpop.permute.xlu0 %3205
        %3207 = vrot.lane.b32.xlu0 %v3185, 62
        %v3208 = vpop.permute.xlu0 %3207
        %3209 = vrot.lane.b32.xlu0 %v3189, 62
        %v3210 = vpop.permute.xlu0 %3209
        %3211 = vrot.lane.b32.xlu0 %v3194, 62
        %v3212 = vpop.permute.xlu0 %3211
        %3213 = vrot.lane.b32.xlu0 %v3199, 62
        %v3214 = vpop.permute.xlu0 %3213
        %3215 = vrot.lane.b32.xlu0 %v3204, 62
        %v3216 = vpop.permute.xlu0 %3215
        %v3217 = vrot.slane %v3206, 4
        %v3218 = vrot.slane %v3208, 4
        %v3219 = vrot.slane %v3210, 4
        %v3220 = vrot.slane %v3212, 4
        %v3221 = vrot.slane %v3214, 4
        %v3222 = vrot.slane %v3216, 4
        %v3223 = vsel %vm406, %v3217, %v3218
        %vm3224 = vcmask 506880
        %v3225 = vsel %vm3224, %v3206, %v3223
        %v3226 = vsel %vm406, %v3218, %v3219
        %v3227 = vsel %vm3224, %v3208, %v3226
        %v3228 = vsel %vm406, %v3220, %v3221
        %v3229 = vsel %vm3224, %v3212, %v3228
        %v3230 = vsel %vm406, %v3221, %v3222
        %v3231 = vsel %vm3224, %v3214, %v3230
        %v3236 = vld [vmem:[#allocation5 + $0x100] sm:$0x88]
        %v3237 = vsel %vm809, %v3225, %v3236
        %3238 = vst [vmem:[#allocation5 + $0x100] sm:$0x88] %v3237
        %v3239 = vld [vmem:[#allocation5 + $0x108] sm:$0x88]
        %v3240 = vsel %vm815, %v3227, %v3239
        %3241 = vst [vmem:[#allocation5 + $0x108] sm:$0x88] %v3240
        %3242 = vst [vmem:[#allocation5 + $0x110] sm:$0x11] %v3229
        %3243 = vst.msk [vmem:[#allocation5 + $0x118] sm:$0x11] %vm822, %v3231
        %v3244 = vld [vmem:[#allocation2 + $0x2] sm:$0xff]
        %v3245 = vld [vmem:[#allocation2 + $0xa] sm:$0x3]
        %v3248 = vcombine.high %v3244, %v3244
        %v3250 = vunpack.c.l.s4 1983009808
        %v3251 = vunpack.c.0.s8 %v3250
        %v3252 = vlaneseq
        %v3253 = vshrl.u32 %v3252, 7
        %v3254 = vsub.s32 %v3251, %v3253
        %v3255 = vrot.slane %v3244, %v3254
        %v3257 = vunpack.c.l.s4 1983009808
        %v3258 = vunpack.c.0.s8 %v3257
        %v3259 = vlaneseq
        %v3260 = vshrl.u32 %v3259, 7
        %v3261 = vsub.s32 %v3258, %v3260
        %v3262 = vrot.slane %v3248, %v3261
        %v3264 = vunpack.c.l.s4 1983009808
        %v3265 = vunpack.c.0.s8 %v3264
        %v3266 = vlaneseq
        %v3267 = vshrl.u32 %v3266, 7
        %v3268 = vsub.s32 %v3265, %v3267
        %v3269 = vrot.slane %v3245, %v3268
        %v3270 = vrot.slane %v3255, 7
        %v3271 = vrot.slane %v3262, 7
        %v3272 = vrot.slane %v3269, 7
        %3273 = vrot.lane.b32.xlu0 %v3270, 61
        %v3274 = vpop.permute.xlu0 %3273
        %3275 = vrot.lane.b32.xlu0 %v3271, 61
        %v3276 = vpop.permute.xlu0 %3275
        %3277 = vrot.lane.b32.xlu0 %v3272, 61
        %v3278 = vpop.permute.xlu0 %3277
        %v3279 = vrot.slane %v3274, 4
        %v3280 = vrot.slane %v3276, 4
        %v3281 = vrot.slane %v3278, 4
        %v3282 = vsel %vm406, %v3279, %v3280
        %vm3283 = vcmask 498688
        %v3284 = vsel %vm3283, %v3274, %v3282
        %v3285 = vsel %vm406, %v3280, %v3281
        %v3286 = vsel %vm3283, %v3276, %v3285
        %v3289 = vld [vmem:[#allocation5 + $0x110] sm:$0x66]
        %v3290 = vsel %vm873, %v3284, %v3289
        %3291 = vst [vmem:[#allocation5 + $0x110] sm:$0x66] %v3290
        %v3292 = vld [vmem:[#allocation5 + $0x118] sm:$0x66]
        %v3293 = vsel %vm878, %v3286, %v3292
        %3294 = vst [vmem:[#allocation5 + $0x118] sm:$0x66] %v3293
        %v3295 = vld [vmem:[#allocation2 + $0x2] sm:$0xff]
        %v3296 = vld [vmem:[#allocation2 + $0xa] sm:$0x3]
        %v3299 = vcombine.high %v3295, %v3295
        %v3301 = vunpack.c.l.s4 1983009808
        %v3302 = vunpack.c.0.s8 %v3301
        %v3303 = vlaneseq
        %v3304 = vshrl.u32 %v3303, 7
        %v3305 = vsub.s32 %v3302, %v3304
        %v3306 = vrot.slane %v3295, %v3305
        %v3308 = vunpack.c.l.s4 1983009808
        %v3309 = vunpack.c.0.s8 %v3308
        %v3310 = vlaneseq
        %v3311 = vshrl.u32 %v3310, 7
        %v3312 = vsub.s32 %v3309, %v3311
        %v3313 = vrot.slane %v3299, %v3312
        %v3315 = vunpack.c.l.s4 1983009808
        %v3316 = vunpack.c.0.s8 %v3315
        %v3317 = vlaneseq
        %v3318 = vshrl.u32 %v3317, 7
        %v3319 = vsub.s32 %v3316, %v3318
        %v3320 = vrot.slane %v3296, %v3319
        %v3322 = vshrl.u32 %v3306, 16
        %v3324 = vrot.slane %v3322, 5
        %v3325 = vshll.u32 %v3306, 16
        %v3327 = vrot.slane %v3325, 6
        %v3328 = vor.u32 %v3324, %v3327
        %v3330 = vshrl.u32 %v3313, 16
        %v3332 = vrot.slane %v3330, 5
        %v3333 = vshll.u32 %v3313, 16
        %v3335 = vrot.slane %v3333, 6
        %v3336 = vor.u32 %v3332, %v3335
        %v3338 = vshrl.u32 %v3320, 16
        %v3340 = vrot.slane %v3338, 5
        %v3341 = vshll.u32 %v3320, 16
        %v3343 = vrot.slane %v3341, 6
        %v3344 = vor.u32 %v3340, %v3343
        %3345 = vrot.lane.b32.xlu0 %v3328, 60
        %v3346 = vpop.permute.xlu0 %3345
        %3347 = vrot.lane.b32.xlu0 %v3336, 60
        %v3348 = vpop.permute.xlu0 %3347
        %3349 = vrot.lane.b32.xlu0 %v3344, 60
        %v3350 = vpop.permute.xlu0 %3349
        %v3351 = vrot.slane %v3346, 4
        %v3352 = vrot.slane %v3348, 4
        %v3353 = vrot.slane %v3350, 4
        %v3354 = vsel %vm406, %v3351, %v3352
        %vm3355 = vcmask 490496
        %v3356 = vsel %vm3355, %v3346, %v3354
        %v3357 = vsel %vm406, %v3352, %v3353
        %v3358 = vsel %vm3355, %v3348, %v3357
        %v3361 = vld [vmem:[#allocation5 + $0x110] sm:$0xcc]
        %v3362 = vsel %vm952, %v3356, %v3361
        %3363 = vst [vmem:[#allocation5 + $0x110] sm:$0xcc] %v3362
        %v3364 = vld [vmem:[#allocation5 + $0x118] sm:$0xcc]
        %v3365 = vsel %vm957, %v3358, %v3364
        %3366 = vst [vmem:[#allocation5 + $0x118] sm:$0xcc] %v3365
        %v3367 = vld [vmem:[#allocation2 + $0x2] sm:$0xff]
        %v3368 = vld [vmem:[#allocation2 + $0xa] sm:$0x3]
        %v3371 = vcombine.high %v3367, %v3367
        %v3373 = vunpack.c.l.s4 1983009808
        %v3374 = vunpack.c.0.s8 %v3373
        %v3375 = vlaneseq
        %v3376 = vshrl.u32 %v3375, 7
        %v3377 = vsub.s32 %v3374, %v3376
        %v3378 = vrot.slane %v3367, %v3377
        %v3380 = vunpack.c.l.s4 1983009808
        %v3381 = vunpack.c.0.s8 %v3380
        %v3382 = vlaneseq
        %v3383 = vshrl.u32 %v3382, 7
        %v3384 = vsub.s32 %v3381, %v3383
        %v3385 = vrot.slane %v3371, %v3384
        %v3387 = vunpack.c.l.s4 1983009808
        %v3388 = vunpack.c.0.s8 %v3387
        %v3389 = vlaneseq
        %v3390 = vshrl.u32 %v3389, 7
        %v3391 = vsub.s32 %v3388, %v3390
        %v3392 = vrot.slane %v3368, %v3391
        %3393 = vrot.lane.b32.xlu0 %v3378, 59
        %v3394 = vpop.permute.xlu0 %3393
        %3395 = vrot.lane.b32.xlu0 %v3385, 59
        %v3396 = vpop.permute.xlu0 %3395
        %3397 = vrot.lane.b32.xlu0 %v3392, 59
        %v3398 = vpop.permute.xlu0 %3397
        %v3399 = vrot.slane %v3394, 4
        %v3400 = vrot.slane %v3396, 4
        %v3401 = vrot.slane %v3398, 4
        %v3402 = vsel %vm406, %v3399, %v3400
        %vm3403 = vcmask 482304
        %v3404 = vsel %vm3403, %v3394, %v3402
        %v3405 = vsel %vm406, %v3400, %v3401
        %v3406 = vsel %vm3403, %v3396, %v3405
        %v3409 = vld [vmem:[#allocation5 + $0x120] sm:$0x33]
        %v3410 = vsel %vm414, %v3404, %v3409
        %3411 = vst [vmem:[#allocation5 + $0x120] sm:$0x33] %v3410
        %v3412 = vld [vmem:[#allocation5 + $0x128] sm:$0x33]
        %v3413 = vsel %vm420, %v3406, %v3412
        %3414 = vst [vmem:[#allocation5 + $0x128] sm:$0x33] %v3413
        %v3415 = vld [vmem:[%s2] sm:$0xff]
        %v3416 = vld [vmem:[#allocation5] sm:$0xff]
        %v3417 = vld [vmem:[#allocation5 + $0x8] sm:$0xff]
        %v3418 = vld [vmem:[#allocation5 + $0x10] sm:$0xff]
        %v3419 = vld [vmem:[#allocation5 + $0x18] sm:$0xff]
        %v3420 = vld [vmem:[#allocation5 + $0x20] sm:$0xff]
        %v3421 = vld [vmem:[#allocation5 + $0x28] sm:$0xff]
        %v3422 = vld [vmem:[#allocation5 + $0x30] sm:$0xff]
        %v3423 = vld [vmem:[#allocation5 + $0x38] sm:$0xff]
        %v3424 = vld [vmem:[#allocation5 + $0x40] sm:$0xff]
        %v3425 = vld [vmem:[#allocation5 + $0x48] sm:$0xff]
        %v3426 = vld [vmem:[#allocation5 + $0x50] sm:$0xff]
        %v3427 = vld [vmem:[#allocation5 + $0x58] sm:$0xff]
        %v3428 = vld [vmem:[#allocation5 + $0x60] sm:$0xff]
        %v3429 = vld [vmem:[#allocation5 + $0x68] sm:$0xff]
        %v3430 = vld [vmem:[#allocation5 + $0x70] sm:$0xff]
        %v3431 = vld [vmem:[#allocation5 + $0x78] sm:$0xff]
        %v3432 = vld [vmem:[#allocation5 + $0x80] sm:$0xff]
        %v3433 = vld [vmem:[#allocation5 + $0x88] sm:$0xff]
        %v3434 = vld [vmem:[#allocation5 + $0x90] sm:$0xff]
        %v3435 = vld [vmem:[#allocation5 + $0x98] sm:$0xff]
        %v3436 = vld [vmem:[#allocation5 + $0xa0] sm:$0xff]
        %v3437 = vld [vmem:[#allocation5 + $0xa8] sm:$0xff]
        %v3438 = vld [vmem:[#allocation5 + $0xb0] sm:$0xff]
        %v3439 = vld [vmem:[#allocation5 + $0xb8] sm:$0xff]
        %v3440 = vld [vmem:[#allocation5 + $0xc0] sm:$0xff]
        %v3441 = vld [vmem:[#allocation5 + $0xc8] sm:$0xff]
        %v3442 = vld [vmem:[#allocation5 + $0xd0] sm:$0xff]
        %v3443 = vld [vmem:[#allocation5 + $0xd8] sm:$0xff]
        %v3444 = vld [vmem:[#allocation5 + $0xe0] sm:$0xff]
        %v3445 = vld [vmem:[#allocation5 + $0xe8] sm:$0xff]
        %v3446 = vld [vmem:[#allocation5 + $0xf0] sm:$0xff]
        %v3447 = vld [vmem:[#allocation5 + $0xf8] sm:$0xff]
        %v3448 = vld [vmem:[#allocation5 + $0x100] sm:$0xff]
        %v3449 = vld [vmem:[#allocation5 + $0x108] sm:$0xff]
        %v3450 = vld [vmem:[#allocation5 + $0x110] sm:$0xff]
        %v3451 = vld [vmem:[#allocation5 + $0x118] sm:$0xff]
        %v3452 = vld [vmem:[#allocation5 + $0x120] sm:$0x33]
        %v3453 = vld [vmem:[#allocation5 + $0x128] sm:$0x33]
        %v3454 = vld [vmem:[%s6] sm:$0xff]
        %3456 = vset.pattern.permute.xlu0 0
        %3457 = vperm.xlu0 %3456, %v3454
        %v3458 = vpop.permute.xlu0 %3457
        %v3461 = vunpack.c.l.b16 %v3415
        %v3462 = vunpack.c.h.b16 %v3415
        %v3463 = vpack.c.b16 %v3461, %v3461
        %v3464 = vpack.c.b16 %v3462, %v3462
        %v3504 = vunpack.c.l.b16 %v3416
        %v3505 = vunpack.c.h.b16 %v3416
        %v3506 = vunpack.c.l.b16 %v3417
        %v3507 = vunpack.c.h.b16 %v3417
        %v3508 = vunpack.c.l.b16 %v3418
        %v3509 = vunpack.c.h.b16 %v3418
        %v3510 = vunpack.c.l.b16 %v3419
        %v3511 = vunpack.c.h.b16 %v3419
        %v3512 = vunpack.c.l.b16 %v3420
        %v3513 = vunpack.c.h.b16 %v3420
        %v3514 = vunpack.c.l.b16 %v3421
        %v3515 = vunpack.c.h.b16 %v3421
        %v3516 = vunpack.c.l.b16 %v3422
        %v3517 = vunpack.c.h.b16 %v3422
        %v3518 = vunpack.c.l.b16 %v3423
        %v3519 = vunpack.c.h.b16 %v3423
        %v3520 = vunpack.c.l.b16 %v3424
        %v3521 = vunpack.c.h.b16 %v3424
        %v3522 = vunpack.c.l.b16 %v3425
        %v3523 = vunpack.c.h.b16 %v3425
        %v3524 = vunpack.c.l.b16 %v3426
        %v3525 = vunpack.c.h.b16 %v3426
        %v3526 = vunpack.c.l.b16 %v3427
        %v3527 = vunpack.c.h.b16 %v3427
        %v3528 = vunpack.c.l.b16 %v3428
        %v3529 = vunpack.c.h.b16 %v3428
        %v3530 = vunpack.c.l.b16 %v3429
        %v3531 = vunpack.c.h.b16 %v3429
        %v3532 = vunpack.c.l.b16 %v3430
        %v3533 = vunpack.c.h.b16 %v3430
        %v3534 = vunpack.c.l.b16 %v3431
        %v3535 = vunpack.c.h.b16 %v3431
        %v3536 = vunpack.c.l.b16 %v3432
        %v3537 = vunpack.c.h.b16 %v3432
        %v3538 = vunpack.c.l.b16 %v3433
        %v3539 = vunpack.c.h.b16 %v3433
        %v3540 = vunpack.c.l.b16 %v3434
        %v3541 = vunpack.c.h.b16 %v3434
        %v3542 = vunpack.c.l.b16 %v3435
        %v3543 = vunpack.c.h.b16 %v3435
        %v3544 = vunpack.c.l.b16 %v3436
        %v3545 = vunpack.c.h.b16 %v3436
        %v3546 = vunpack.c.l.b16 %v3437
        %v3547 = vunpack.c.h.b16 %v3437
        %v3548 = vunpack.c.l.b16 %v3438
        %v3549 = vunpack.c.h.b16 %v3438
        %v3550 = vunpack.c.l.b16 %v3439
        %v3551 = vunpack.c.h.b16 %v3439
        %v3552 = vunpack.c.l.b16 %v3440
        %v3553 = vunpack.c.h.b16 %v3440
        %v3554 = vunpack.c.l.b16 %v3441
        %v3555 = vunpack.c.h.b16 %v3441
        %v3556 = vunpack.c.l.b16 %v3442
        %v3557 = vunpack.c.h.b16 %v3442
        %v3558 = vunpack.c.l.b16 %v3443
        %v3559 = vunpack.c.h.b16 %v3443
        %v3560 = vunpack.c.l.b16 %v3444
        %v3561 = vunpack.c.h.b16 %v3444
        %v3562 = vunpack.c.l.b16 %v3445
        %v3563 = vunpack.c.h.b16 %v3445
        %v3564 = vunpack.c.l.b16 %v3446
        %v3565 = vunpack.c.h.b16 %v3446
        %v3566 = vunpack.c.l.b16 %v3447
        %v3567 = vunpack.c.h.b16 %v3447
        %v3568 = vunpack.c.l.b16 %v3448
        %v3569 = vunpack.c.h.b16 %v3448
        %v3570 = vunpack.c.l.b16 %v3449
        %v3571 = vunpack.c.h.b16 %v3449
        %v3572 = vunpack.c.l.b16 %v3450
        %v3573 = vunpack.c.h.b16 %v3450
        %v3574 = vunpack.c.l.b16 %v3451
        %v3575 = vunpack.c.h.b16 %v3451
        %v3576 = vunpack.c.l.b16 %v3452
        %v3577 = vunpack.c.h.b16 %v3452
        %v3578 = vunpack.c.l.b16 %v3453
        %v3579 = vunpack.c.h.b16 %v3453
        %v3580 = vpack.c.b16 %v3508, %v3504
        %v3581 = vpack.c.b16 %v3509, %v3505
        %v3582 = vpack.c.b16 %v3510, %v3506
        %v3583 = vpack.c.b16 %v3511, %v3507
        %v3584 = vpack.c.b16 %v3516, %v3512
        %v3585 = vpack.c.b16 %v3517, %v3513
        %v3586 = vpack.c.b16 %v3518, %v3514
        %v3587 = vpack.c.b16 %v3519, %v3515
        %v3588 = vpack.c.b16 %v3524, %v3520
        %v3589 = vpack.c.b16 %v3525, %v3521
        %v3590 = vpack.c.b16 %v3526, %v3522
        %v3591 = vpack.c.b16 %v3527, %v3523
        %v3592 = vpack.c.b16 %v3532, %v3528
        %v3593 = vpack.c.b16 %v3533, %v3529
        %v3594 = vpack.c.b16 %v3534, %v3530
        %v3595 = vpack.c.b16 %v3535, %v3531
        %v3596 = vpack.c.b16 %v3540, %v3536
        %v3597 = vpack.c.b16 %v3541, %v3537
        %v3598 = vpack.c.b16 %v3542, %v3538
        %v3599 = vpack.c.b16 %v3543, %v3539
        %v3600 = vpack.c.b16 %v3548, %v3544
        %v3601 = vpack.c.b16 %v3549, %v3545
        %v3602 = vpack.c.b16 %v3550, %v3546
        %v3603 = vpack.c.b16 %v3551, %v3547
        %v3604 = vpack.c.b16 %v3556, %v3552
        %v3605 = vpack.c.b16 %v3557, %v3553
        %v3606 = vpack.c.b16 %v3558, %v3554
        %v3607 = vpack.c.b16 %v3559, %v3555
        %v3608 = vpack.c.b16 %v3564, %v3560
        %v3609 = vpack.c.b16 %v3565, %v3561
        %v3610 = vpack.c.b16 %v3566, %v3562
        %v3611 = vpack.c.b16 %v3567, %v3563
        %v3612 = vpack.c.b16 %v3572, %v3568
        %v3613 = vpack.c.b16 %v3573, %v3569
        %v3614 = vpack.c.b16 %v3574, %v3570
        %v3615 = vpack.c.b16 %v3575, %v3571
        %v3616 = vpack.c.b16 %v3576, %v3576
        %v3617 = vpack.c.b16 %v3577, %v3577
        %v3618 = vpack.c.b16 %v3578, %v3578
        %v3619 = vpack.c.b16 %v3579, %v3579
        %vm3656 = vcmask 154624
        %v3658 = vsel %vm3656, %v3464, 0
        %vm3660 = vcmask 1041408
        %v3661 = vsel %vm820, 4294967295, 65535
        %v3662 = vsel %vm3660, %v3661, 0
        %v3664 = vand.u32 %v3616, %v3662
        %v3667 = vand.u32 %v3617, %v3662
        %v3670 = vand.u32 %v3618, %v3662
        %v3673 = vand.u32 %v3619, %v3662
        %3675 = vmatprep.subr.bf16.mxu0 %v3581
        %3676 = vmatpush1.bf16.msra.mxu0 %v3580
        %3677 = vmatprep.subr.bf16.mxu0 %v3585
        %3678 = vmatpush1.bf16.msra.mxu0 %v3584
        %3679 = vmatprep.subr.bf16.mxu0 %v3589
        %3680 = vmatpush1.bf16.msra.mxu0 %v3588
        %3681 = vmatprep.subr.bf16.mxu0 %v3593
        %3682 = vmatpush1.bf16.msra.mxu0 %v3592
        %3683 = vmatprep.subr.bf16.mxu0 %v3597
        %3684 = vmatpush1.bf16.msra.mxu0 %v3596
        %3685 = vmatprep.subr.bf16.mxu0 %v3601
        %3686 = vmatpush1.bf16.msra.mxu0 %v3600
        %3687 = vmatprep.subr.bf16.mxu0 %v3605
        %3688 = vmatpush1.bf16.msra.mxu0 %v3604
        %3689 = vmatprep.subr.bf16.mxu0 %v3609
        %3690 = vmatpush1.bf16.msra.mxu0 %v3608
        %3691 = vmatprep.subr.bf16.mxu0 %v3613
        %3692 = vmatpush1.bf16.msra.mxu0 %v3612
        %3693 = vmatprep.subr.bf16.mxu0 %v3667
        %3694 = vmatpush1.bf16.msra.mxu0 %v3664
        %3695 = vmatprep.subr.bf16.mxu0 0
        %3696 = vmatpush1.bf16.msra.mxu0 0
        %3697 = vmatprep.subr.bf16.mxu0 0
        %3698 = vmatpush1.bf16.msra.mxu0 0
        %3699 = vmatprep.subr.bf16.mxu0 0
        %3700 = vmatpush1.bf16.msra.mxu0 0
        %3701 = vmatprep.subr.bf16.mxu0 0
        %3702 = vmatpush1.bf16.msra.mxu0 0
        %3703 = vmatprep.subr.bf16.mxu0 0
        %3704 = vmatpush1.bf16.msra.mxu0 0
        %3705 = vmatprep.subr.bf16.mxu0 0
        %3706 = vmatpush1.bf16.msra.mxu0 0
        %3707 = vmatprep.mubr.bf16.mxu0 %v3658
        %3708 = vmatmul.mubr.bf16.gmra.mrb[0].mxu0 %v3463
        %v3709 = vpop.f32.mrb[0].mxu0
        %v3710 = vadd.f32 %v3458, %v3709
        %v3711 = vpop.f32.mrb[0].mxu0
        %v3712 = vadd.f32 %v3458, %v3711
        %v3713 = vpop.f32.mrb[0].mxu0
        %v3714 = vpop.f32.mrb[0].mxu0
        %3715 = vdwg.mxu0
        %3716 = vmatprep.subr.bf16.mxu0 %v3583
        %3717 = vmatpush1.bf16.msra.mxu0 %v3582
        %3718 = vmatprep.subr.bf16.mxu0 %v3587
        %3719 = vmatpush1.bf16.msra.mxu0 %v3586
        %3720 = vmatprep.subr.bf16.mxu0 %v3591
        %3721 = vmatpush1.bf16.msra.mxu0 %v3590
        %3722 = vmatprep.subr.bf16.mxu0 %v3595
        %3723 = vmatpush1.bf16.msra.mxu0 %v3594
        %3724 = vmatprep.subr.bf16.mxu0 %v3599
        %3725 = vmatpush1.bf16.msra.mxu0 %v3598
        %3726 = vmatprep.subr.bf16.mxu0 %v3603
        %3727 = vmatpush1.bf16.msra.mxu0 %v3602
        %3728 = vmatprep.subr.bf16.mxu0 %v3607
        %3729 = vmatpush1.bf16.msra.mxu0 %v3606
        %3730 = vmatprep.subr.bf16.mxu0 %v3611
        %3731 = vmatpush1.bf16.msra.mxu0 %v3610
        %3732 = vmatprep.subr.bf16.mxu0 %v3615
        %3733 = vmatpush1.bf16.msra.mxu0 %v3614
        %3734 = vmatprep.subr.bf16.mxu0 %v3673
        %3735 = vmatpush1.bf16.msra.mxu0 %v3670
        %3736 = vmatprep.subr.bf16.mxu0 0
        %3737 = vmatpush1.bf16.msra.mxu0 0
        %3738 = vmatprep.subr.bf16.mxu0 0
        %3739 = vmatpush1.bf16.msra.mxu0 0
        %3740 = vmatprep.subr.bf16.mxu0 0
        %3741 = vmatpush1.bf16.msra.mxu0 0
        %3742 = vmatprep.subr.bf16.mxu0 0
        %3743 = vmatpush1.bf16.msra.mxu0 0
        %3744 = vmatprep.subr.bf16.mxu0 0
        %3745 = vmatpush1.bf16.msra.mxu0 0
        %3746 = vmatprep.subr.bf16.mxu0 0
        %3747 = vmatpush1.bf16.msra.mxu0 0
        %3748 = vmatprep.mubr.bf16.mxu0 %v3658
        %3749 = vmatmul.mubr.bf16.gmra.mrb[0].mxu0 %v3463
        %v3750 = vpop.f32.mrb[0].mxu0
        %v3751 = vadd.f32 %v3458, %v3750
        %v3752 = vpop.f32.mrb[0].mxu0
        %v3753 = vadd.f32 %v3458, %v3752
        %v3754 = vpop.f32.mrb[0].mxu0
        %v3755 = vpop.f32.mrb[0].mxu0
        %3756 = vdwg.mxu0
        %v3757 = vmax.f32 %v3710, 0.0
        %v3758 = vmax.f32 %v3712, 0.0
        %v3759 = vmax.f32 %v3751, 0.0
        %v3760 = vmax.f32 %v3753, 0.0
        %v3761 = vsel %vm347, 1, 0
        %v3762 = vlaneseq
        %v3763 = vshrl.u32 %v3762, 7
        %v3764 = vsub.s32 0, %v3763
        %v3765 = vrot.slane %v3761, %v3764
        %v3766 = vlaneseq
        %v3767 = vshrl.u32 %v3766, 7
        %v3768 = vsub.s32 1, %v3767
        %v3769 = vrot.slane %v3761, %v3768
        %v3770 = vlaneseq
        %v3771 = vshrl.u32 %v3770, 7
        %v3772 = vsub.s32 2, %v3771
        %v3773 = vrot.slane %v3761, %v3772
        %v3774 = vlaneseq
        %v3775 = vshrl.u32 %v3774, 7
        %v3776 = vsub.s32 3, %v3775
        %v3777 = vrot.slane %v3761, %v3776
        %vm3778 = vcmp.eq.s32.totalorder %v3765, 1
        %vm3779 = vcmp.eq.s32.totalorder %v3769, 1
        %vm3780 = vcmp.eq.s32.totalorder %v3773, 1
        %vm3781 = vcmp.eq.s32.totalorder %v3777, 1
        %v3782 = vsel %vm3778, %v3757, 0.0
        %v3783 = vsel %vm3779, %v3758, 0.0
        %v3784 = vsel %vm3780, %v3759, 0.0
        %v3785 = vsel %vm3781, %v3760, 0.0
        %v3786 = vpack.c.bf16 %v3782, %v3782
        %v3787 = vpack.c.bf16 %v3783, %v3783
        %v3788 = vpack.c.bf16 %v3784, %v3784
        %v3789 = vpack.c.bf16 %v3785, %v3785
        %v3794 = vunpack.c.l.b16 %v3786
        %v3795 = vunpack.c.l.b16 %v3787
        %v3796 = vunpack.c.l.b16 %v3788
        %v3797 = vunpack.c.l.b16 %v3789
        %v3798 = vpack.c.b16 %v3795, %v3794
        %v3799 = vpack.c.b16 %v3797, %v3796
        %3802 = vst [vmem:[#allocation3 + $0x4] sm:$0xff] %v3798
        %vm3803 = vcmask 1043456
        %vm3804 = vcmask 818180
        %vm3805 = vmor %vm3804, %vm3803
        %3806 = vst.msk [vmem:[#allocation3 + $0xc] sm:$0xff] %vm3805, %v3799
        %v3807 = vld [vmem:[#allocation3] sm:$0xff]
        %v3808 = vld [vmem:[#allocation3 + $0x8] sm:$0xff]
        %v3809 = vld [vmem:[#allocation3 + $0x10] sm:$0xf]
        %3813 = vrot.lane.b32.xlu0 %v3807, 46
        %v3814 = vpop.permute.xlu0 %3813
        %3815 = vrot.lane.b32.xlu0 %v3808, 46
        %v3816 = vpop.permute.xlu0 %3815
        %3817 = vrot.lane.b32.xlu0 %v3809, 46
        %v3818 = vpop.permute.xlu0 %3817
        %v3819 = vrot.slane %v3814, 4
        %v3820 = vrot.slane %v3816, 4
        %v3821 = vrot.slane %v3818, 4
        %v3822 = vsel %vm406, %v3819, %v3820
        %v3823 = vsel %vm997, %v3814, %v3822
        %v3824 = vsel %vm406, %v3820, %v3821
        %v3825 = vsel %vm997, %v3816, %v3824
        %3828 = vst [vmem:[#allocation6] sm:$0xff] %v3823
        %3829 = vst.msk [vmem:[#allocation6 + $0x8] sm:$0xff] %vm3805, %v3825
        %v3830 = vld [vmem:[#allocation3] sm:$0xff]
        %v3831 = vld [vmem:[#allocation3 + $0x8] sm:$0xff]
        %v3832 = vld [vmem:[#allocation3 + $0x10] sm:$0xf]
        %3836 = vrot.lane.b32.xlu0 %v3830, 45
        %v3837 = vpop.permute.xlu0 %3836
        %3838 = vrot.lane.b32.xlu0 %v3831, 45
        %v3839 = vpop.permute.xlu0 %3838
        %3840 = vrot.lane.b32.xlu0 %v3832, 45
        %v3841 = vpop.permute.xlu0 %3840
        %v3842 = vrot.slane %v3837, 4
        %v3843 = vrot.slane %v3839, 4
        %v3844 = vrot.slane %v3841, 4
        %v3845 = vsel %vm406, %v3842, %v3843
        %v3846 = vsel %vm1069, %v3837, %v3845
        %v3847 = vsel %vm406, %v3843, %v3844
        %v3848 = vsel %vm1069, %v3839, %v3847
        %3851 = vst [vmem:[#allocation6 + $0x10] sm:$0xff] %v3846
        %3852 = vst.msk [vmem:[#allocation6 + $0x18] sm:$0xff] %vm3805, %v3848
        %v3853 = vld [vmem:[#allocation3] sm:$0xff]
        %v3854 = vld [vmem:[#allocation3 + $0x8] sm:$0xff]
        %v3855 = vld [vmem:[#allocation3 + $0x10] sm:$0xf]
        %3859 = vrot.lane.b32.xlu0 %v3853, 44
        %v3860 = vpop.permute.xlu0 %3859
        %3861 = vrot.lane.b32.xlu0 %v3854, 44
        %v3862 = vpop.permute.xlu0 %3861
        %3863 = vrot.lane.b32.xlu0 %v3855, 44
        %v3864 = vpop.permute.xlu0 %3863
        %v3865 = vrot.slane %v3860, 4
        %v3866 = vrot.slane %v3862, 4
        %v3867 = vrot.slane %v3864, 4
        %v3868 = vsel %vm406, %v3865, %v3866
        %v3869 = vsel %vm1132, %v3860, %v3868
        %v3870 = vsel %vm406, %v3866, %v3867
        %v3871 = vsel %vm1132, %v3862, %v3870
        %3874 = vst [vmem:[#allocation6 + $0x20] sm:$0xff] %v3869
        %3875 = vst.msk [vmem:[#allocation6 + $0x28] sm:$0xff] %vm3805, %v3871
        %v3876 = vld [vmem:[#allocation3] sm:$0xff]
        %v3877 = vld [vmem:[#allocation3 + $0x8] sm:$0xff]
        %v3878 = vld [vmem:[#allocation3 + $0x10] sm:$0xf]
        %3882 = vrot.lane.b32.xlu0 %v3876, 43
        %v3883 = vpop.permute.xlu0 %3882
        %3884 = vrot.lane.b32.xlu0 %v3877, 43
        %v3885 = vpop.permute.xlu0 %3884
        %3886 = vrot.lane.b32.xlu0 %v3878, 43
        %v3887 = vpop.permute.xlu0 %3886
        %v3888 = vrot.slane %v3883, 4
        %v3889 = vrot.slane %v3885, 4
        %v3890 = vrot.slane %v3887, 4
        %v3891 = vsel %vm406, %v3888, %v3889
        %v3892 = vsel %vm1209, %v3883, %v3891
        %v3893 = vsel %vm406, %v3889, %v3890
        %v3894 = vsel %vm1209, %v3885, %v3893
        %3897 = vst [vmem:[#allocation6 + $0x30] sm:$0xff] %v3892
        %3898 = vst.msk [vmem:[#allocation6 + $0x38] sm:$0xff] %vm3805, %v3894
        %v3899 = vld [vmem:[#allocation3] sm:$0xff]
        %v3900 = vld [vmem:[#allocation3 + $0x8] sm:$0xff]
        %v3901 = vld [vmem:[#allocation3 + $0x10] sm:$0xf]
        %3905 = vrot.lane.b32.xlu0 %v3899, 42
        %v3906 = vpop.permute.xlu0 %3905
        %3907 = vrot.lane.b32.xlu0 %v3900, 42
        %v3908 = vpop.permute.xlu0 %3907
        %3909 = vrot.lane.b32.xlu0 %v3901, 42
        %v3910 = vpop.permute.xlu0 %3909
        %v3911 = vrot.slane %v3906, 4
        %v3912 = vrot.slane %v3908, 4
        %v3913 = vrot.slane %v3910, 4
        %v3914 = vsel %vm406, %v3911, %v3912
        %v3915 = vsel %vm1258, %v3906, %v3914
        %v3916 = vsel %vm406, %v3912, %v3913
        %v3917 = vsel %vm1258, %v3908, %v3916
        %3920 = vst [vmem:[#allocation6 + $0x40] sm:$0xff] %v3915
        %3921 = vst.msk [vmem:[#allocation6 + $0x48] sm:$0xff] %vm3805, %v3917
        %v3922 = vld [vmem:[#allocation3] sm:$0xff]
        %v3923 = vld [vmem:[#allocation3 + $0x8] sm:$0xff]
        %v3924 = vld [vmem:[#allocation3 + $0x10] sm:$0xf]
        %3928 = vrot.lane.b32.xlu0 %v3922, 24
        %v3929 = vpop.permute.xlu0 %3928
        %3930 = vrot.lane.b32.xlu0 %v3923, 24
        %v3931 = vpop.permute.xlu0 %3930
        %3932 = vrot.lane.b32.xlu0 %v3924, 24
        %v3933 = vpop.permute.xlu0 %3932
        %v3934 = vrot.slane %v3929, 4
        %v3935 = vrot.slane %v3931, 4
        %v3936 = vrot.slane %v3933, 4
        %v3937 = vsel %vm406, %v3934, %v3935
        %v3938 = vsel %vm1473, %v3929, %v3937
        %v3939 = vsel %vm406, %v3935, %v3936
        %v3940 = vsel %vm1473, %v3931, %v3939
        %3943 = vst [vmem:[#allocation6 + $0x50] sm:$0xff] %v3938
        %3944 = vst.msk [vmem:[#allocation6 + $0x58] sm:$0xff] %vm3805, %v3940
        %v3945 = vld [vmem:[#allocation3] sm:$0xff]
        %v3946 = vld [vmem:[#allocation3 + $0x8] sm:$0xff]
        %v3947 = vld [vmem:[#allocation3 + $0x10] sm:$0xf]
        %3951 = vrot.lane.b32.xlu0 %v3945, 23
        %v3952 = vpop.permute.xlu0 %3951
        %3953 = vrot.lane.b32.xlu0 %v3946, 23
        %v3954 = vpop.permute.xlu0 %3953
        %3955 = vrot.lane.b32.xlu0 %v3947, 23
        %v3956 = vpop.permute.xlu0 %3955
        %v3957 = vrot.slane %v3952, 4
        %v3958 = vrot.slane %v3954, 4
        %v3959 = vrot.slane %v3956, 4
        %v3960 = vsel %vm406, %v3957, %v3958
        %v3961 = vsel %vm1521, %v3952, %v3960
        %v3962 = vsel %vm406, %v3958, %v3959
        %v3963 = vsel %vm1521, %v3954, %v3962
        %3966 = vst [vmem:[#allocation6 + $0x60] sm:$0xff] %v3961
        %3967 = vst.msk [vmem:[#allocation6 + $0x68] sm:$0xff] %vm3805, %v3963
        %v3968 = vld [vmem:[#allocation3] sm:$0xff]
        %v3969 = vld [vmem:[#allocation3 + $0x8] sm:$0xff]
        %v3970 = vld [vmem:[#allocation3 + $0x10] sm:$0xf]
        %3974 = vrot.lane.b32.xlu0 %v3968, 22
        %v3975 = vpop.permute.xlu0 %3974
        %3976 = vrot.lane.b32.xlu0 %v3969, 22
        %v3977 = vpop.permute.xlu0 %3976
        %3978 = vrot.lane.b32.xlu0 %v3970, 22
        %v3979 = vpop.permute.xlu0 %3978
        %v3980 = vrot.slane %v3975, 4
        %v3981 = vrot.slane %v3977, 4
        %v3982 = vrot.slane %v3979, 4
        %v3983 = vsel %vm406, %v3980, %v3981
        %v3984 = vsel %vm1593, %v3975, %v3983
        %v3985 = vsel %vm406, %v3981, %v3982
        %v3986 = vsel %vm1593, %v3977, %v3985
        %3989 = vst [vmem:[#allocation6 + $0x70] sm:$0xff] %v3984
        %3990 = vst.msk [vmem:[#allocation6 + $0x78] sm:$0xff] %vm3805, %v3986
        %v3991 = vld [vmem:[#allocation3] sm:$0xff]
        %v3992 = vld [vmem:[#allocation3 + $0x8] sm:$0xff]
        %v3993 = vld [vmem:[#allocation3 + $0x10] sm:$0xf]
        %3997 = vrot.lane.b32.xlu0 %v3991, 21
        %v3998 = vpop.permute.xlu0 %3997
        %3999 = vrot.lane.b32.xlu0 %v3992, 21
        %v4000 = vpop.permute.xlu0 %3999
        %4001 = vrot.lane.b32.xlu0 %v3993, 21
        %v4002 = vpop.permute.xlu0 %4001
        %v4003 = vrot.slane %v3998, 4
        %v4004 = vrot.slane %v4000, 4
        %v4005 = vrot.slane %v4002, 4
        %v4006 = vsel %vm406, %v4003, %v4004
        %v4007 = vsel %vm1656, %v3998, %v4006
        %v4008 = vsel %vm406, %v4004, %v4005
        %v4009 = vsel %vm1656, %v4000, %v4008
        %4012 = vst [vmem:[#allocation6 + $0x80] sm:$0xff] %v4007
        %4013 = vst.msk [vmem:[#allocation6 + $0x88] sm:$0xff] %vm3805, %v4009
        %v4014 = vld [vmem:[#allocation3] sm:$0xff]
        %v4015 = vld [vmem:[#allocation3 + $0x8] sm:$0xff]
        %v4016 = vld [vmem:[#allocation3 + $0x10] sm:$0xf]
        %4020 = vrot.lane.b32.xlu0 %v4014, 20
        %v4021 = vpop.permute.xlu0 %4020
        %4022 = vrot.lane.b32.xlu0 %v4015, 20
        %v4023 = vpop.permute.xlu0 %4022
        %4024 = vrot.lane.b32.xlu0 %v4016, 20
        %v4025 = vpop.permute.xlu0 %4024
        %v4026 = vrot.slane %v4021, 4
        %v4027 = vrot.slane %v4023, 4
        %v4028 = vrot.slane %v4025, 4
        %v4029 = vsel %vm406, %v4026, %v4027
        %v4030 = vsel %vm1733, %v4021, %v4029
        %v4031 = vsel %vm406, %v4027, %v4028
        %v4032 = vsel %vm1733, %v4023, %v4031
        %4035 = vst [vmem:[#allocation6 + $0x90] sm:$0xff] %v4030
        %4036 = vst.msk [vmem:[#allocation6 + $0x98] sm:$0xff] %vm3805, %v4032
        %v4037 = vld [vmem:[#allocation3] sm:$0xff]
        %v4038 = vld [vmem:[#allocation3 + $0x8] sm:$0xff]
        %v4039 = vld [vmem:[#allocation3 + $0x10] sm:$0xf]
        %4043 = vrot.lane.b32.xlu0 %v4037, 2
        %v4044 = vpop.permute.xlu0 %4043
        %4045 = vrot.lane.b32.xlu0 %v4038, 2
        %v4046 = vpop.permute.xlu0 %4045
        %4047 = vrot.lane.b32.xlu0 %v4039, 2
        %v4048 = vpop.permute.xlu0 %4047
        %v4049 = vrot.slane %v4044, 4
        %v4050 = vrot.slane %v4046, 4
        %v4051 = vrot.slane %v4048, 4
        %v4052 = vsel %vm406, %v4049, %v4050
        %v4053 = vsel %vm1925, %v4044, %v4052
        %v4054 = vsel %vm406, %v4050, %v4051
        %v4055 = vsel %vm1925, %v4046, %v4054
        %4058 = vst [vmem:[#allocation6 + $0xa0] sm:$0xff] %v4053
        %4059 = vst.msk [vmem:[#allocation6 + $0xa8] sm:$0xff] %vm3805, %v4055
        %v4060 = vld [vmem:[#allocation3] sm:$0xff]
        %v4061 = vld [vmem:[#allocation3 + $0x8] sm:$0xff]
        %v4062 = vld [vmem:[#allocation3 + $0x10] sm:$0xf]
        %4066 = vrot.lane.b32.xlu0 %v4060, 1
        %v4067 = vpop.permute.xlu0 %4066
        %4068 = vrot.lane.b32.xlu0 %v4061, 1
        %v4069 = vpop.permute.xlu0 %4068
        %4070 = vrot.lane.b32.xlu0 %v4062, 1
        %v4071 = vpop.permute.xlu0 %4070
        %v4072 = vrot.slane %v4067, 4
        %v4073 = vrot.slane %v4069, 4
        %v4074 = vrot.slane %v4071, 4
        %v4075 = vsel %vm406, %v4072, %v4073
        %v4076 = vsel %vm1997, %v4067, %v4075
        %v4077 = vsel %vm406, %v4073, %v4074
        %v4078 = vsel %vm1997, %v4069, %v4077
        %4081 = vst [vmem:[#allocation6 + $0xb0] sm:$0xff] %v4076
        %4082 = vst.msk [vmem:[#allocation6 + $0xb8] sm:$0xff] %vm3805, %v4078
        %v4083 = vld [vmem:[#allocation3 + $0x4] sm:$0xff]
        %v4084 = vld [vmem:[#allocation3 + $0xc] sm:$0xff]
        %4085 = vst [vmem:[#allocation6 + $0xc0] sm:$0xff] %v4083
        %4086 = vst.msk [vmem:[#allocation6 + $0xc8] sm:$0xff] %vm3805, %v4084
        %v4087 = vld [vmem:[#allocation3 + $0x4] sm:$0xff]
        %v4088 = vld [vmem:[#allocation3 + $0xc] sm:$0xff]
        %4091 = vrot.lane.b32.xlu0 %v4087, 127
        %v4092 = vpop.permute.xlu0 %4091
        %4093 = vrot.lane.b32.xlu0 %v4088, 127
        %v4094 = vpop.permute.xlu0 %4093
        %v4095 = vrot.slane %v4092, 4
        %v4096 = vrot.slane %v4094, 4
        %v4097 = vsel %vm406, %v4095, %v4096
        %v4098 = vsel %vm2074, %v4092, %v4097
        %v4099 = vsel %vm2074, %v4094, %v4096
        %4102 = vst [vmem:[#allocation6 + $0xd0] sm:$0xff] %v4098
        %4103 = vst.msk [vmem:[#allocation6 + $0xd8] sm:$0xff] %vm3805, %v4099
        %v4104 = vld [vmem:[#allocation3 + $0x4] sm:$0xff]
        %v4105 = vld [vmem:[#allocation3 + $0xc] sm:$0xff]
        %4108 = vrot.lane.b32.xlu0 %v4104, 126
        %v4109 = vpop.permute.xlu0 %4108
        %4110 = vrot.lane.b32.xlu0 %v4105, 126
        %v4111 = vpop.permute.xlu0 %4110
        %v4112 = vrot.slane %v4109, 4
        %v4113 = vrot.slane %v4111, 4
        %v4114 = vsel %vm406, %v4112, %v4113
        %v4115 = vsel %vm2119, %v4109, %v4114
        %v4116 = vsel %vm2119, %v4111, %v4113
        %4119 = vst [vmem:[#allocation6 + $0xe0] sm:$0xff] %v4115
        %4120 = vst.msk [vmem:[#allocation6 + $0xe8] sm:$0xff] %vm3805, %v4116
        %v4121 = vld [vmem:[#allocation3 + $0x4] sm:$0xff]
        %v4122 = vld [vmem:[#allocation3 + $0xc] sm:$0xff]
        %4125 = vrot.lane.b32.xlu0 %v4121, 108
        %v4126 = vpop.permute.xlu0 %4125
        %4127 = vrot.lane.b32.xlu0 %v4122, 108
        %v4128 = vpop.permute.xlu0 %4127
        %v4129 = vrot.slane %v4126, 4
        %v4130 = vrot.slane %v4128, 4
        %v4131 = vsel %vm406, %v4129, %v4130
        %v4132 = vsel %vm2269, %v4126, %v4131
        %v4133 = vsel %vm2269, %v4128, %v4130
        %4136 = vst [vmem:[#allocation6 + $0xf0] sm:$0xff] %v4132
        %4137 = vst.msk [vmem:[#allocation6 + $0xf8] sm:$0xff] %vm3805, %v4133
        %v4138 = vld [vmem:[#allocation3 + $0x4] sm:$0xff]
        %v4139 = vld [vmem:[#allocation3 + $0xc] sm:$0xff]
        %4142 = vrot.lane.b32.xlu0 %v4138, 107
        %v4143 = vpop.permute.xlu0 %4142
        %4144 = vrot.lane.b32.xlu0 %v4139, 107
        %v4145 = vpop.permute.xlu0 %4144
        %v4146 = vrot.slane %v4143, 4
        %v4147 = vrot.slane %v4145, 4
        %v4148 = vsel %vm406, %v4146, %v4147
        %v4149 = vsel %vm2313, %v4143, %v4148
        %v4150 = vsel %vm2313, %v4145, %v4147
        %4153 = vst [vmem:[#allocation6 + $0x100] sm:$0xff] %v4149
        %4154 = vst.msk [vmem:[#allocation6 + $0x108] sm:$0xff] %vm3805, %v4150
        %v4155 = vld [vmem:[#allocation3 + $0x4] sm:$0xff]
        %v4156 = vld [vmem:[#allocation3 + $0xc] sm:$0xff]
        %4159 = vrot.lane.b32.xlu0 %v4155, 106
        %v4160 = vpop.permute.xlu0 %4159
        %4161 = vrot.lane.b32.xlu0 %v4156, 106
        %v4162 = vpop.permute.xlu0 %4161
        %v4163 = vrot.slane %v4160, 4
        %v4164 = vrot.slane %v4162, 4
        %v4165 = vsel %vm406, %v4163, %v4164
        %v4166 = vsel %vm2364, %v4160, %v4165
        %v4167 = vsel %vm2364, %v4162, %v4164
        %4170 = vst [vmem:[#allocation6 + $0x110] sm:$0xff] %v4166
        %4171 = vst.msk [vmem:[#allocation6 + $0x118] sm:$0xff] %vm3805, %v4167
        %v4172 = vld [vmem:[#allocation3 + $0x4] sm:$0xff]
        %v4173 = vld [vmem:[#allocation3 + $0xc] sm:$0xff]
        %4176 = vrot.lane.b32.xlu0 %v4172, 105
        %v4177 = vpop.permute.xlu0 %4176
        %4178 = vrot.lane.b32.xlu0 %v4173, 105
        %v4179 = vpop.permute.xlu0 %4178
        %v4180 = vrot.slane %v4177, 4
        %v4181 = vrot.slane %v4179, 4
        %v4182 = vsel %vm406, %v4180, %v4181
        %v4183 = vsel %vm2399, %v4177, %v4182
        %v4184 = vsel %vm2399, %v4179, %v4181
        %4187 = vst [vmem:[#allocation6 + $0x120] sm:$0xff] %v4183
        %4188 = vst.msk [vmem:[#allocation6 + $0x128] sm:$0xff] %vm3805, %v4184
        %v4189 = vld [vmem:[#allocation3 + $0x4] sm:$0xff]
        %v4190 = vld [vmem:[#allocation3 + $0xc] sm:$0xff]
        %4193 = vrot.lane.b32.xlu0 %v4189, 104
        %v4194 = vpop.permute.xlu0 %4193
        %4195 = vrot.lane.b32.xlu0 %v4190, 104
        %v4196 = vpop.permute.xlu0 %4195
        %v4197 = vrot.slane %v4194, 4
        %v4198 = vrot.slane %v4196, 4
        %v4199 = vsel %vm406, %v4197, %v4198
        %v4200 = vsel %vm2450, %v4194, %v4199
        %v4201 = vsel %vm2450, %v4196, %v4198
        %4204 = vst [vmem:[#allocation6 + $0x130] sm:$0xff] %v4200
        %4205 = vst.msk [vmem:[#allocation6 + $0x138] sm:$0xff] %vm3805, %v4201
        %v4206 = vld [vmem:[#allocation3 + $0x4] sm:$0xff]
        %v4207 = vld [vmem:[#allocation3 + $0xc] sm:$0xff]
        %v4208 = vld [vmem:[#allocation3 + $0x14] sm:$0xf]
        %4212 = vrot.lane.b32.xlu0 %v4206, 86
        %v4213 = vpop.permute.xlu0 %4212
        %4214 = vrot.lane.b32.xlu0 %v4207, 86
        %v4215 = vpop.permute.xlu0 %4214
        %4216 = vrot.lane.b32.xlu0 %v4208, 86
        %v4217 = vpop.permute.xlu0 %4216
        %v4218 = vrot.slane %v4213, 4
        %v4219 = vrot.slane %v4215, 4
        %v4220 = vrot.slane %v4217, 4
        %v4221 = vsel %vm406, %v4218, %v4219
        %v4222 = vsel %vm2619, %v4213, %v4221
        %v4223 = vsel %vm406, %v4219, %v4220
        %v4224 = vsel %vm2619, %v4215, %v4223
        %4227 = vst [vmem:[#allocation6 + $0x140] sm:$0xff] %v4222
        %4228 = vst.msk [vmem:[#allocation6 + $0x148] sm:$0xff] %vm3805, %v4224
        %v4229 = vld [vmem:[#allocation3 + $0x4] sm:$0xff]
        %v4230 = vld [vmem:[#allocation3 + $0xc] sm:$0xff]
        %v4231 = vld [vmem:[#allocation3 + $0x14] sm:$0xf]
        %4235 = vrot.lane.b32.xlu0 %v4229, 85
        %v4236 = vpop.permute.xlu0 %4235
        %4237 = vrot.lane.b32.xlu0 %v4230, 85
        %v4238 = vpop.permute.xlu0 %4237
        %4239 = vrot.lane.b32.xlu0 %v4231, 85
        %v4240 = vpop.permute.xlu0 %4239
        %v4241 = vrot.slane %v4236, 4
        %v4242 = vrot.slane %v4238, 4
        %v4243 = vrot.slane %v4240, 4
        %v4244 = vsel %vm406, %v4241, %v4242
        %v4245 = vsel %vm2703, %v4236, %v4244
        %v4246 = vsel %vm406, %v4242, %v4243
        %v4247 = vsel %vm2703, %v4238, %v4246
        %4250 = vst [vmem:[#allocation6 + $0x150] sm:$0xff] %v4245
        %4251 = vst.msk [vmem:[#allocation6 + $0x158] sm:$0xff] %vm3805, %v4247
        %v4252 = vld [vmem:[#allocation3 + $0x4] sm:$0xff]
        %v4253 = vld [vmem:[#allocation3 + $0xc] sm:$0xff]
        %v4254 = vld [vmem:[#allocation3 + $0x14] sm:$0xf]
        %4258 = vrot.lane.b32.xlu0 %v4252, 84
        %v4259 = vpop.permute.xlu0 %4258
        %4260 = vrot.lane.b32.xlu0 %v4253, 84
        %v4261 = vpop.permute.xlu0 %4260
        %4262 = vrot.lane.b32.xlu0 %v4254, 84
        %v4263 = vpop.permute.xlu0 %4262
        %v4264 = vrot.slane %v4259, 4
        %v4265 = vrot.slane %v4261, 4
        %v4266 = vrot.slane %v4263, 4
        %v4267 = vsel %vm406, %v4264, %v4265
        %v4268 = vsel %vm2762, %v4259, %v4267
        %v4269 = vsel %vm406, %v4265, %v4266
        %v4270 = vsel %vm2762, %v4261, %v4269
        %4273 = vst [vmem:[#allocation6 + $0x160] sm:$0xff] %v4268
        %4274 = vst.msk [vmem:[#allocation6 + $0x168] sm:$0xff] %vm3805, %v4270
        %v4275 = vld [vmem:[#allocation3 + $0x4] sm:$0xff]
        %v4276 = vld [vmem:[#allocation3 + $0xc] sm:$0xff]
        %v4277 = vld [vmem:[#allocation3 + $0x14] sm:$0xf]
        %4281 = vrot.lane.b32.xlu0 %v4275, 83
        %v4282 = vpop.permute.xlu0 %4281
        %4283 = vrot.lane.b32.xlu0 %v4276, 83
        %v4284 = vpop.permute.xlu0 %4283
        %4285 = vrot.lane.b32.xlu0 %v4277, 83
        %v4286 = vpop.permute.xlu0 %4285
        %v4287 = vrot.slane %v4282, 4
        %v4288 = vrot.slane %v4284, 4
        %v4289 = vrot.slane %v4286, 4
        %v4290 = vsel %vm406, %v4287, %v4288
        %v4291 = vsel %vm2834, %v4282, %v4290
        %v4292 = vsel %vm406, %v4288, %v4289
        %v4293 = vsel %vm2834, %v4284, %v4292
        %4296 = vst [vmem:[#allocation6 + $0x170] sm:$0xff] %v4291
        %4297 = vst.msk [vmem:[#allocation6 + $0x178] sm:$0xff] %vm3805, %v4293
        %v4298 = vld [vmem:[#allocation3 + $0x4] sm:$0xff]
        %v4299 = vld [vmem:[#allocation3 + $0xc] sm:$0xff]
        %v4300 = vld [vmem:[#allocation3 + $0x14] sm:$0xf]
        %4304 = vrot.lane.b32.xlu0 %v4298, 82
        %v4305 = vpop.permute.xlu0 %4304
        %4306 = vrot.lane.b32.xlu0 %v4299, 82
        %v4307 = vpop.permute.xlu0 %4306
        %4308 = vrot.lane.b32.xlu0 %v4300, 82
        %v4309 = vpop.permute.xlu0 %4308
        %v4310 = vrot.slane %v4305, 4
        %v4311 = vrot.slane %v4307, 4
        %v4312 = vrot.slane %v4309, 4
        %v4313 = vsel %vm406, %v4310, %v4311
        %v4314 = vsel %vm2882, %v4305, %v4313
        %v4315 = vsel %vm406, %v4311, %v4312
        %v4316 = vsel %vm2882, %v4307, %v4315
        %4319 = vst [vmem:[#allocation6 + $0x180] sm:$0xff] %v4314
        %4320 = vst.msk [vmem:[#allocation6 + $0x188] sm:$0xff] %vm3805, %v4316
        %v4321 = vld [vmem:[%s3] sm:$0xff]
        %v4322 = vld [vmem:[#allocation6] sm:$0xff]
        %v4323 = vld [vmem:[#allocation6 + $0x8] sm:$0xff]
        %v4324 = vld [vmem:[#allocation6 + $0x10] sm:$0xff]
        %v4325 = vld [vmem:[#allocation6 + $0x18] sm:$0xff]
        %v4326 = vld [vmem:[#allocation6 + $0x20] sm:$0xff]
        %v4327 = vld [vmem:[#allocation6 + $0x28] sm:$0xff]
        %v4328 = vld [vmem:[#allocation6 + $0x30] sm:$0xff]
        %v4329 = vld [vmem:[#allocation6 + $0x38] sm:$0xff]
        %v4330 = vld [vmem:[#allocation6 + $0x40] sm:$0xff]
        %v4331 = vld [vmem:[#allocation6 + $0x48] sm:$0xff]
        %v4332 = vld [vmem:[#allocation6 + $0x50] sm:$0xff]
        %v4333 = vld [vmem:[#allocation6 + $0x58] sm:$0xff]
        %v4334 = vld [vmem:[#allocation6 + $0x60] sm:$0xff]
        %v4335 = vld [vmem:[#allocation6 + $0x68] sm:$0xff]
        %v4336 = vld [vmem:[#allocation6 + $0x70] sm:$0xff]
        %v4337 = vld [vmem:[#allocation6 + $0x78] sm:$0xff]
        %v4338 = vld [vmem:[#allocation6 + $0x80] sm:$0xff]
        %v4339 = vld [vmem:[#allocation6 + $0x88] sm:$0xff]
        %v4340 = vld [vmem:[#allocation6 + $0x90] sm:$0xff]
        %v4341 = vld [vmem:[#allocation6 + $0x98] sm:$0xff]
        %v4342 = vld [vmem:[#allocation6 + $0xa0] sm:$0xff]
        %v4343 = vld [vmem:[#allocation6 + $0xa8] sm:$0xff]
        %v4344 = vld [vmem:[#allocation6 + $0xb0] sm:$0xff]
        %v4345 = vld [vmem:[#allocation6 + $0xb8] sm:$0xff]
        %v4346 = vld [vmem:[#allocation6 + $0xc0] sm:$0xff]
        %v4347 = vld [vmem:[#allocation6 + $0xc8] sm:$0xff]
        %v4348 = vld [vmem:[#allocation6 + $0xd0] sm:$0xff]
        %v4349 = vld [vmem:[#allocation6 + $0xd8] sm:$0xff]
        %v4350 = vld [vmem:[#allocation6 + $0xe0] sm:$0xff]
        %v4351 = vld [vmem:[#allocation6 + $0xe8] sm:$0xff]
        %v4352 = vld [vmem:[#allocation6 + $0xf0] sm:$0xff]
        %v4353 = vld [vmem:[#allocation6 + $0xf8] sm:$0xff]
        %v4354 = vld [vmem:[#allocation6 + $0x100] sm:$0xff]
        %v4355 = vld [vmem:[#allocation6 + $0x108] sm:$0xff]
        %v4356 = vld [vmem:[#allocation6 + $0x110] sm:$0xff]
        %v4357 = vld [vmem:[#allocation6 + $0x118] sm:$0xff]
        %v4358 = vld [vmem:[#allocation6 + $0x120] sm:$0xff]
        %v4359 = vld [vmem:[#allocation6 + $0x128] sm:$0xff]
        %v4360 = vld [vmem:[#allocation6 + $0x130] sm:$0xff]
        %v4361 = vld [vmem:[#allocation6 + $0x138] sm:$0xff]
        %v4362 = vld [vmem:[#allocation6 + $0x140] sm:$0xff]
        %v4363 = vld [vmem:[#allocation6 + $0x148] sm:$0xff]
        %v4364 = vld [vmem:[#allocation6 + $0x150] sm:$0xff]
        %v4365 = vld [vmem:[#allocation6 + $0x158] sm:$0xff]
        %v4366 = vld [vmem:[#allocation6 + $0x160] sm:$0xff]
        %v4367 = vld [vmem:[#allocation6 + $0x168] sm:$0xff]
        %v4368 = vld [vmem:[#allocation6 + $0x170] sm:$0xff]
        %v4369 = vld [vmem:[#allocation6 + $0x178] sm:$0xff]
        %v4370 = vld [vmem:[#allocation6 + $0x180] sm:$0xff]
        %v4371 = vld [vmem:[#allocation6 + $0x188] sm:$0xff]
        %v4372 = vld [vmem:[%s6] sm:$0xff]
        %4374 = vset.pattern.permute.xlu0 1
        %4375 = vperm.xlu0 %4374, %v4372
        %v4376 = vpop.permute.xlu0 %4375
        %v4379 = vunpack.c.l.b16 %v4321
        %v4380 = vunpack.c.h.b16 %v4321
        %v4381 = vpack.c.b16 %v4379, %v4379
        %v4382 = vpack.c.b16 %v4380, %v4380
        %v4434 = vunpack.c.l.b16 %v4322
        %v4435 = vunpack.c.h.b16 %v4322
        %v4436 = vunpack.c.l.b16 %v4323
        %v4437 = vunpack.c.h.b16 %v4323
        %v4438 = vunpack.c.l.b16 %v4324
        %v4439 = vunpack.c.h.b16 %v4324
        %v4440 = vunpack.c.l.b16 %v4325
        %v4441 = vunpack.c.h.b16 %v4325
        %v4442 = vunpack.c.l.b16 %v4326
        %v4443 = vunpack.c.h.b16 %v4326
        %v4444 = vunpack.c.l.b16 %v4327
        %v4445 = vunpack.c.h.b16 %v4327
        %v4446 = vunpack.c.l.b16 %v4328
        %v4447 = vunpack.c.h.b16 %v4328
        %v4448 = vunpack.c.l.b16 %v4329
        %v4449 = vunpack.c.h.b16 %v4329
        %v4450 = vunpack.c.l.b16 %v4330
        %v4451 = vunpack.c.h.b16 %v4330
        %v4452 = vunpack.c.l.b16 %v4331
        %v4453 = vunpack.c.h.b16 %v4331
        %v4454 = vunpack.c.l.b16 %v4332
        %v4455 = vunpack.c.h.b16 %v4332
        %v4456 = vunpack.c.l.b16 %v4333
        %v4457 = vunpack.c.h.b16 %v4333
        %v4458 = vunpack.c.l.b16 %v4334
        %v4459 = vunpack.c.h.b16 %v4334
        %v4460 = vunpack.c.l.b16 %v4335
        %v4461 = vunpack.c.h.b16 %v4335
        %v4462 = vunpack.c.l.b16 %v4336
        %v4463 = vunpack.c.h.b16 %v4336
        %v4464 = vunpack.c.l.b16 %v4337
        %v4465 = vunpack.c.h.b16 %v4337
        %v4466 = vunpack.c.l.b16 %v4338
        %v4467 = vunpack.c.h.b16 %v4338
        %v4468 = vunpack.c.l.b16 %v4339
        %v4469 = vunpack.c.h.b16 %v4339
        %v4470 = vunpack.c.l.b16 %v4340
        %v4471 = vunpack.c.h.b16 %v4340
        %v4472 = vunpack.c.l.b16 %v4341
        %v4473 = vunpack.c.h.b16 %v4341
        %v4474 = vunpack.c.l.b16 %v4342
        %v4475 = vunpack.c.h.b16 %v4342
        %v4476 = vunpack.c.l.b16 %v4343
        %v4477 = vunpack.c.h.b16 %v4343
        %v4478 = vunpack.c.l.b16 %v4344
        %v4479 = vunpack.c.h.b16 %v4344
        %v4480 = vunpack.c.l.b16 %v4345
        %v4481 = vunpack.c.h.b16 %v4345
        %v4482 = vunpack.c.l.b16 %v4346
        %v4483 = vunpack.c.h.b16 %v4346
        %v4484 = vunpack.c.l.b16 %v4347
        %v4485 = vunpack.c.h.b16 %v4347
        %v4486 = vunpack.c.l.b16 %v4348
        %v4487 = vunpack.c.h.b16 %v4348
        %v4488 = vunpack.c.l.b16 %v4349
        %v4489 = vunpack.c.h.b16 %v4349
        %v4490 = vunpack.c.l.b16 %v4350
        %v4491 = vunpack.c.h.b16 %v4350
        %v4492 = vunpack.c.l.b16 %v4351
        %v4493 = vunpack.c.h.b16 %v4351
        %v4494 = vunpack.c.l.b16 %v4352
        %v4495 = vunpack.c.h.b16 %v4352
        %v4496 = vunpack.c.l.b16 %v4353
        %v4497 = vunpack.c.h.b16 %v4353
        %v4498 = vunpack.c.l.b16 %v4354
        %v4499 = vunpack.c.h.b16 %v4354
        %v4500 = vunpack.c.l.b16 %v4355
        %v4501 = vunpack.c.h.b16 %v4355
        %v4502 = vunpack.c.l.b16 %v4356
        %v4503 = vunpack.c.h.b16 %v4356
        %v4504 = vunpack.c.l.b16 %v4357
        %v4505 = vunpack.c.h.b16 %v4357
        %v4506 = vunpack.c.l.b16 %v4358
        %v4507 = vunpack.c.h.b16 %v4358
        %v4508 = vunpack.c.l.b16 %v4359
        %v4509 = vunpack.c.h.b16 %v4359
        %v4510 = vunpack.c.l.b16 %v4360
        %v4511 = vunpack.c.h.b16 %v4360
        %v4512 = vunpack.c.l.b16 %v4361
        %v4513 = vunpack.c.h.b16 %v4361
        %v4514 = vunpack.c.l.b16 %v4362
        %v4515 = vunpack.c.h.b16 %v4362
        %v4516 = vunpack.c.l.b16 %v4363
        %v4517 = vunpack.c.h.b16 %v4363
        %v4518 = vunpack.c.l.b16 %v4364
        %v4519 = vunpack.c.h.b16 %v4364
        %v4520 = vunpack.c.l.b16 %v4365
        %v4521 = vunpack.c.h.b16 %v4365
        %v4522 = vunpack.c.l.b16 %v4366
        %v4523 = vunpack.c.h.b16 %v4366
        %v4524 = vunpack.c.l.b16 %v4367
        %v4525 = vunpack.c.h.b16 %v4367
        %v4526 = vunpack.c.l.b16 %v4368
        %v4527 = vunpack.c.h.b16 %v4368
        %v4528 = vunpack.c.l.b16 %v4369
        %v4529 = vunpack.c.h.b16 %v4369
        %v4530 = vunpack.c.l.b16 %v4370
        %v4531 = vunpack.c.h.b16 %v4370
        %v4532 = vunpack.c.l.b16 %v4371
        %v4533 = vunpack.c.h.b16 %v4371
        %v4534 = vpack.c.b16 %v4438, %v4434
        %v4535 = vpack.c.b16 %v4439, %v4435
        %v4536 = vpack.c.b16 %v4440, %v4436
        %v4537 = vpack.c.b16 %v4441, %v4437
        %v4538 = vpack.c.b16 %v4446, %v4442
        %v4539 = vpack.c.b16 %v4447, %v4443
        %v4540 = vpack.c.b16 %v4448, %v4444
        %v4541 = vpack.c.b16 %v4449, %v4445
        %v4542 = vpack.c.b16 %v4454, %v4450
        %v4543 = vpack.c.b16 %v4455, %v4451
        %v4544 = vpack.c.b16 %v4456, %v4452
        %v4545 = vpack.c.b16 %v4457, %v4453
        %v4546 = vpack.c.b16 %v4462, %v4458
        %v4547 = vpack.c.b16 %v4463, %v4459
        %v4548 = vpack.c.b16 %v4464, %v4460
        %v4549 = vpack.c.b16 %v4465, %v4461
        %v4550 = vpack.c.b16 %v4470, %v4466
        %v4551 = vpack.c.b16 %v4471, %v4467
        %v4552 = vpack.c.b16 %v4472, %v4468
        %v4553 = vpack.c.b16 %v4473, %v4469
        %v4554 = vpack.c.b16 %v4478, %v4474
        %v4555 = vpack.c.b16 %v4479, %v4475
        %v4556 = vpack.c.b16 %v4480, %v4476
        %v4557 = vpack.c.b16 %v4481, %v4477
        %v4558 = vpack.c.b16 %v4486, %v4482
        %v4559 = vpack.c.b16 %v4487, %v4483
        %v4560 = vpack.c.b16 %v4488, %v4484
        %v4561 = vpack.c.b16 %v4489, %v4485
        %v4562 = vpack.c.b16 %v4494, %v4490
        %v4563 = vpack.c.b16 %v4495, %v4491
        %v4564 = vpack.c.b16 %v4496, %v4492
        %v4565 = vpack.c.b16 %v4497, %v4493
        %v4566 = vpack.c.b16 %v4502, %v4498
        %v4567 = vpack.c.b16 %v4503, %v4499
        %v4568 = vpack.c.b16 %v4504, %v4500
        %v4569 = vpack.c.b16 %v4505, %v4501
        %v4570 = vpack.c.b16 %v4510, %v4506
        %v4571 = vpack.c.b16 %v4511, %v4507
        %v4572 = vpack.c.b16 %v4512, %v4508
        %v4573 = vpack.c.b16 %v4513, %v4509
        %v4574 = vpack.c.b16 %v4518, %v4514
        %v4575 = vpack.c.b16 %v4519, %v4515
        %v4576 = vpack.c.b16 %v4520, %v4516
        %v4577 = vpack.c.b16 %v4521, %v4517
        %v4578 = vpack.c.b16 %v4526, %v4522
        %v4579 = vpack.c.b16 %v4527, %v4523
        %v4580 = vpack.c.b16 %v4528, %v4524
        %v4581 = vpack.c.b16 %v4529, %v4525
        %v4582 = vpack.c.b16 %v4530, %v4530
        %v4583 = vpack.c.b16 %v4531, %v4531
        %v4584 = vpack.c.b16 %v4532, %v4532
        %v4585 = vpack.c.b16 %v4533, %v4533
        %vm4634 = vcmask 588800
        %v4636 = vsel %vm4634, %v4382, 0
        %v4639 = vsel %vm3803, %v4582, 0
        %v4642 = vsel %vm3803, %v4583, 0
        %v4645 = vsel %vm3803, %v4584, 0
        %v4648 = vsel %vm3803, %v4585, 0
        %4650 = vmatprep.subr.bf16.mxu0 %v4535
        %4651 = vmatpush1.bf16.msra.mxu0 %v4534
        %4652 = vmatprep.subr.bf16.mxu0 %v4539
        %4653 = vmatpush1.bf16.msra.mxu0 %v4538
        %4654 = vmatprep.subr.bf16.mxu0 %v4543
        %4655 = vmatpush1.bf16.msra.mxu0 %v4542
        %4656 = vmatprep.subr.bf16.mxu0 %v4547
        %4657 = vmatpush1.bf16.msra.mxu0 %v4546
        %4658 = vmatprep.subr.bf16.mxu0 %v4551
        %4659 = vmatpush1.bf16.msra.mxu0 %v4550
        %4660 = vmatprep.subr.bf16.mxu0 %v4555
        %4661 = vmatpush1.bf16.msra.mxu0 %v4554
        %4662 = vmatprep.subr.bf16.mxu0 %v4559
        %4663 = vmatpush1.bf16.msra.mxu0 %v4558
        %4664 = vmatprep.subr.bf16.mxu0 %v4563
        %4665 = vmatpush1.bf16.msra.mxu0 %v4562
        %4666 = vmatprep.subr.bf16.mxu0 %v4567
        %4667 = vmatpush1.bf16.msra.mxu0 %v4566
        %4668 = vmatprep.subr.bf16.mxu0 %v4571
        %4669 = vmatpush1.bf16.msra.mxu0 %v4570
        %4670 = vmatprep.subr.bf16.mxu0 %v4575
        %4671 = vmatpush1.bf16.msra.mxu0 %v4574
        %4672 = vmatprep.subr.bf16.mxu0 %v4579
        %4673 = vmatpush1.bf16.msra.mxu0 %v4578
        %4674 = vmatprep.subr.bf16.mxu0 %v4642
        %4675 = vmatpush1.bf16.msra.mxu0 %v4639
        %4676 = vmatprep.subr.bf16.mxu0 0
        %4677 = vmatpush1.bf16.msra.mxu0 0
        %4678 = vmatprep.subr.bf16.mxu0 0
        %4679 = vmatpush1.bf16.msra.mxu0 0
        %4680 = vmatprep.subr.bf16.mxu0 0
        %4681 = vmatpush1.bf16.msra.mxu0 0
        %4682 = vmatprep.mubr.bf16.mxu0 %v4636
        %4683 = vmatmul.mubr.bf16.gmra.mrb[0].mxu0 %v4381
        %v4684 = vpop.f32.mrb[0].mxu0
        %v4685 = vadd.f32 %v4376, %v4684
        %v4686 = vpop.f32.mrb[0].mxu0
        %v4687 = vadd.f32 %v4376, %v4686
        %v4688 = vpop.f32.mrb[0].mxu0
        %v4689 = vpop.f32.mrb[0].mxu0
        %4690 = vdwg.mxu0
        %4691 = vmatprep.subr.bf16.mxu0 %v4537
        %4692 = vmatpush1.bf16.msra.mxu0 %v4536
        %4693 = vmatprep.subr.bf16.mxu0 %v4541
        %4694 = vmatpush1.bf16.msra.mxu0 %v4540
        %4695 = vmatprep.subr.bf16.mxu0 %v4545
        %4696 = vmatpush1.bf16.msra.mxu0 %v4544
        %4697 = vmatprep.subr.bf16.mxu0 %v4549
        %4698 = vmatpush1.bf16.msra.mxu0 %v4548
        %4699 = vmatprep.subr.bf16.mxu0 %v4553
        %4700 = vmatpush1.bf16.msra.mxu0 %v4552
        %4701 = vmatprep.subr.bf16.mxu0 %v4557
        %4702 = vmatpush1.bf16.msra.mxu0 %v4556
        %4703 = vmatprep.subr.bf16.mxu0 %v4561
        %4704 = vmatpush1.bf16.msra.mxu0 %v4560
        %4705 = vmatprep.subr.bf16.mxu0 %v4565
        %4706 = vmatpush1.bf16.msra.mxu0 %v4564
        %4707 = vmatprep.subr.bf16.mxu0 %v4569
        %4708 = vmatpush1.bf16.msra.mxu0 %v4568
        %4709 = vmatprep.subr.bf16.mxu0 %v4573
        %4710 = vmatpush1.bf16.msra.mxu0 %v4572
        %4711 = vmatprep.subr.bf16.mxu0 %v4577
        %4712 = vmatpush1.bf16.msra.mxu0 %v4576
        %4713 = vmatprep.subr.bf16.mxu0 %v4581
        %4714 = vmatpush1.bf16.msra.mxu0 %v4580
        %4715 = vmatprep.subr.bf16.mxu0 %v4648
        %4716 = vmatpush1.bf16.msra.mxu0 %v4645
        %4717 = vmatprep.subr.bf16.mxu0 0
        %4718 = vmatpush1.bf16.msra.mxu0 0
        %4719 = vmatprep.subr.bf16.mxu0 0
        %4720 = vmatpush1.bf16.msra.mxu0 0
        %4721 = vmatprep.subr.bf16.mxu0 0
        %4722 = vmatpush1.bf16.msra.mxu0 0
        %4723 = vmatprep.mubr.bf16.mxu0 %v4636
        %4724 = vmatmul.mubr.bf16.gmra.mrb[0].mxu0 %v4381
        %v4725 = vpop.f32.mrb[0].mxu0
        %v4726 = vadd.f32 %v4376, %v4725
        %v4727 = vpop.f32.mrb[0].mxu0
        %v4728 = vadd.f32 %v4376, %v4727
        %v4729 = vpop.f32.mrb[0].mxu0
        %v4730 = vpop.f32.mrb[0].mxu0
        %4731 = vdwg.mxu0
        %v4732 = vmax.f32 %v4685, 0.0
        %v4733 = vmax.f32 %v4687, 0.0
        %v4734 = vmax.f32 %v4726, 0.0
        %v4735 = vmax.f32 %v4728, 0.0
        %v4736 = vsel %vm3778, %v4732, 0.0
        %v4737 = vsel %vm3779, %v4733, 0.0
        %v4738 = vsel %vm3780, %v4734, 0.0
        %v4739 = vsel %vm3781, %v4735, 0.0
        %v4740 = vpack.c.bf16 %v4736, %v4736
        %v4741 = vpack.c.bf16 %v4737, %v4737
        %v4742 = vpack.c.bf16 %v4738, %v4738
        %v4743 = vpack.c.bf16 %v4739, %v4739
        %v4748 = vunpack.c.l.b16 %v4740
        %v4749 = vunpack.c.l.b16 %v4741
        %v4750 = vunpack.c.l.b16 %v4742
        %v4751 = vunpack.c.l.b16 %v4743
        %v4752 = vpack.c.b16 %v4749, %v4748
        %v4753 = vpack.c.b16 %v4751, %v4750
        %4756 = vst [vmem:[#allocation4 + $0x4] sm:$0xff] %v4752
        %4757 = vst.msk [vmem:[#allocation4 + $0xc] sm:$0xff] %vm3805, %v4753
        %v4758 = vld [vmem:[#allocation4] sm:$0xff]
        %v4759 = vld [vmem:[#allocation4 + $0x8] sm:$0xff]
        %v4760 = vld [vmem:[#allocation4 + $0x10] sm:$0xf]
        %4764 = vrot.lane.b32.xlu0 %v4758, 23
        %v4765 = vpop.permute.xlu0 %4764
        %4766 = vrot.lane.b32.xlu0 %v4759, 23
        %v4767 = vpop.permute.xlu0 %4766
        %4768 = vrot.lane.b32.xlu0 %v4760, 23
        %v4769 = vpop.permute.xlu0 %4768
        %v4770 = vrot.slane %v4765, 4
        %v4771 = vrot.slane %v4767, 4
        %v4772 = vrot.slane %v4769, 4
        %v4773 = vsel %vm406, %v4770, %v4771
        %v4774 = vsel %vm1521, %v4765, %v4773
        %v4775 = vsel %vm406, %v4771, %v4772
        %v4776 = vsel %vm1521, %v4767, %v4775
        %4779 = vst [vmem:[#allocation7] sm:$0xff] %v4774
        %4780 = vst.msk [vmem:[#allocation7 + $0x8] sm:$0xff] %vm3805, %v4776
        %v4781 = vld [vmem:[#allocation4] sm:$0xff]
        %v4782 = vld [vmem:[#allocation4 + $0x8] sm:$0xff]
        %v4783 = vld [vmem:[#allocation4 + $0x10] sm:$0xf]
        %4787 = vrot.lane.b32.xlu0 %v4781, 22
        %v4788 = vpop.permute.xlu0 %4787
        %4789 = vrot.lane.b32.xlu0 %v4782, 22
        %v4790 = vpop.permute.xlu0 %4789
        %4791 = vrot.lane.b32.xlu0 %v4783, 22
        %v4792 = vpop.permute.xlu0 %4791
        %v4793 = vrot.slane %v4788, 4
        %v4794 = vrot.slane %v4790, 4
        %v4795 = vrot.slane %v4792, 4
        %v4796 = vsel %vm406, %v4793, %v4794
        %v4797 = vsel %vm1593, %v4788, %v4796
        %v4798 = vsel %vm406, %v4794, %v4795
        %v4799 = vsel %vm1593, %v4790, %v4798
        %4802 = vst [vmem:[#allocation7 + $0x10] sm:$0xff] %v4797
        %4803 = vst.msk [vmem:[#allocation7 + $0x18] sm:$0xff] %vm3805, %v4799
        %v4804 = vld [vmem:[#allocation4] sm:$0xff]
        %v4805 = vld [vmem:[#allocation4 + $0x8] sm:$0xff]
        %v4806 = vld [vmem:[#allocation4 + $0x10] sm:$0xf]
        %4810 = vrot.lane.b32.xlu0 %v4804, 21
        %v4811 = vpop.permute.xlu0 %4810
        %4812 = vrot.lane.b32.xlu0 %v4805, 21
        %v4813 = vpop.permute.xlu0 %4812
        %4814 = vrot.lane.b32.xlu0 %v4806, 21
        %v4815 = vpop.permute.xlu0 %4814
        %v4816 = vrot.slane %v4811, 4
        %v4817 = vrot.slane %v4813, 4
        %v4818 = vrot.slane %v4815, 4
        %v4819 = vsel %vm406, %v4816, %v4817
        %v4820 = vsel %vm1656, %v4811, %v4819
        %v4821 = vsel %vm406, %v4817, %v4818
        %v4822 = vsel %vm1656, %v4813, %v4821
        %4825 = vst [vmem:[#allocation7 + $0x20] sm:$0xff] %v4820
        %4826 = vst.msk [vmem:[#allocation7 + $0x28] sm:$0xff] %vm3805, %v4822
        %v4827 = vld [vmem:[#allocation4] sm:$0xff]
        %v4828 = vld [vmem:[#allocation4 + $0x8] sm:$0xff]
        %v4829 = vld [vmem:[#allocation4 + $0x10] sm:$0xf]
        %4833 = vrot.lane.b32.xlu0 %v4827, 1
        %v4834 = vpop.permute.xlu0 %4833
        %4835 = vrot.lane.b32.xlu0 %v4828, 1
        %v4836 = vpop.permute.xlu0 %4835
        %4837 = vrot.lane.b32.xlu0 %v4829, 1
        %v4838 = vpop.permute.xlu0 %4837
        %v4839 = vrot.slane %v4834, 4
        %v4840 = vrot.slane %v4836, 4
        %v4841 = vrot.slane %v4838, 4
        %v4842 = vsel %vm406, %v4839, %v4840
        %v4843 = vsel %vm1997, %v4834, %v4842
        %v4844 = vsel %vm406, %v4840, %v4841
        %v4845 = vsel %vm1997, %v4836, %v4844
        %4848 = vst [vmem:[#allocation7 + $0x30] sm:$0xff] %v4843
        %4849 = vst.msk [vmem:[#allocation7 + $0x38] sm:$0xff] %vm3805, %v4845
        %v4850 = vld [vmem:[#allocation4 + $0x4] sm:$0xff]
        %v4851 = vld [vmem:[#allocation4 + $0xc] sm:$0xff]
        %4852 = vst [vmem:[#allocation7 + $0x40] sm:$0xff] %v4850
        %4853 = vst.msk [vmem:[#allocation7 + $0x48] sm:$0xff] %vm3805, %v4851
        %v4854 = vld [vmem:[#allocation4 + $0x4] sm:$0xff]
        %v4855 = vld [vmem:[#allocation4 + $0xc] sm:$0xff]
        %4858 = vrot.lane.b32.xlu0 %v4854, 127
        %v4859 = vpop.permute.xlu0 %4858
        %4860 = vrot.lane.b32.xlu0 %v4855, 127
        %v4861 = vpop.permute.xlu0 %4860
        %v4862 = vrot.slane %v4859, 4
        %v4863 = vrot.slane %v4861, 4
        %v4864 = vsel %vm406, %v4862, %v4863
        %v4865 = vsel %vm2074, %v4859, %v4864
        %v4866 = vsel %vm2074, %v4861, %v4863
        %4869 = vst [vmem:[#allocation7 + $0x50] sm:$0xff] %v4865
        %4870 = vst.msk [vmem:[#allocation7 + $0x58] sm:$0xff] %vm3805, %v4866
        %v4871 = vld [vmem:[#allocation4 + $0x4] sm:$0xff]
        %v4872 = vld [vmem:[#allocation4 + $0xc] sm:$0xff]
        %4875 = vrot.lane.b32.xlu0 %v4871, 107
        %v4876 = vpop.permute.xlu0 %4875
        %4877 = vrot.lane.b32.xlu0 %v4872, 107
        %v4878 = vpop.permute.xlu0 %4877
        %v4879 = vrot.slane %v4876, 4
        %v4880 = vrot.slane %v4878, 4
        %v4881 = vsel %vm406, %v4879, %v4880
        %v4882 = vsel %vm2313, %v4876, %v4881
        %v4883 = vsel %vm2313, %v4878, %v4880
        %4886 = vst [vmem:[#allocation7 + $0x60] sm:$0xff] %v4882
        %4887 = vst.msk [vmem:[#allocation7 + $0x68] sm:$0xff] %vm3805, %v4883
        %v4888 = vld [vmem:[#allocation4 + $0x4] sm:$0xff]
        %v4889 = vld [vmem:[#allocation4 + $0xc] sm:$0xff]
        %4892 = vrot.lane.b32.xlu0 %v4888, 106
        %v4893 = vpop.permute.xlu0 %4892
        %4894 = vrot.lane.b32.xlu0 %v4889, 106
        %v4895 = vpop.permute.xlu0 %4894
        %v4896 = vrot.slane %v4893, 4
        %v4897 = vrot.slane %v4895, 4
        %v4898 = vsel %vm406, %v4896, %v4897
        %v4899 = vsel %vm2364, %v4893, %v4898
        %v4900 = vsel %vm2364, %v4895, %v4897
        %4903 = vst [vmem:[#allocation7 + $0x70] sm:$0xff] %v4899
        %4904 = vst.msk [vmem:[#allocation7 + $0x78] sm:$0xff] %vm3805, %v4900
        %v4905 = vld [vmem:[#allocation4 + $0x4] sm:$0xff]
        %v4906 = vld [vmem:[#allocation4 + $0xc] sm:$0xff]
        %4909 = vrot.lane.b32.xlu0 %v4905, 105
        %v4910 = vpop.permute.xlu0 %4909
        %4911 = vrot.lane.b32.xlu0 %v4906, 105
        %v4912 = vpop.permute.xlu0 %4911
        %v4913 = vrot.slane %v4910, 4
        %v4914 = vrot.slane %v4912, 4
        %v4915 = vsel %vm406, %v4913, %v4914
        %v4916 = vsel %vm2399, %v4910, %v4915
        %v4917 = vsel %vm2399, %v4912, %v4914
        %4920 = vst [vmem:[#allocation7 + $0x80] sm:$0xff] %v4916
        %4921 = vst.msk [vmem:[#allocation7 + $0x88] sm:$0xff] %vm3805, %v4917
        %v4922 = vld [vmem:[%s4] sm:$0xf]
        %v4923 = vld [vmem:[#allocation7] sm:$0xff]
        %v4924 = vld [vmem:[#allocation7 + $0x8] sm:$0xff]
        %v4925 = vld [vmem:[#allocation7 + $0x10] sm:$0xff]
        %v4926 = vld [vmem:[#allocation7 + $0x18] sm:$0xff]
        %v4927 = vld [vmem:[#allocation7 + $0x20] sm:$0xff]
        %v4928 = vld [vmem:[#allocation7 + $0x28] sm:$0xff]
        %v4929 = vld [vmem:[#allocation7 + $0x30] sm:$0xff]
        %v4930 = vld [vmem:[#allocation7 + $0x38] sm:$0xff]
        %v4931 = vld [vmem:[#allocation7 + $0x40] sm:$0xff]
        %v4932 = vld [vmem:[#allocation7 + $0x48] sm:$0xff]
        %v4933 = vld [vmem:[#allocation7 + $0x50] sm:$0xff]
        %v4934 = vld [vmem:[#allocation7 + $0x58] sm:$0xff]
        %v4935 = vld [vmem:[#allocation7 + $0x60] sm:$0xff]
        %v4936 = vld [vmem:[#allocation7 + $0x68] sm:$0xff]
        %v4937 = vld [vmem:[#allocation7 + $0x70] sm:$0xff]
        %v4938 = vld [vmem:[#allocation7 + $0x78] sm:$0xff]
        %v4939 = vld [vmem:[#allocation7 + $0x80] sm:$0xff]
        %v4940 = vld [vmem:[#allocation7 + $0x88] sm:$0xff]
        %v4941 = vld [vmem:[%s6] sm:$0xff]
        %4943 = vset.pattern.permute.xlu0 2
        %4944 = vperm.xlu0 %4943, %v4941
        %v4945 = vpop.permute.xlu0 %4944
        %v4965 = vunpack.c.l.b16 %v4923
        %v4966 = vunpack.c.h.b16 %v4923
        %v4967 = vunpack.c.l.b16 %v4924
        %v4968 = vunpack.c.h.b16 %v4924
        %v4969 = vunpack.c.l.b16 %v4925
        %v4970 = vunpack.c.h.b16 %v4925
        %v4971 = vunpack.c.l.b16 %v4926
        %v4972 = vunpack.c.h.b16 %v4926
        %v4973 = vunpack.c.l.b16 %v4927
        %v4974 = vunpack.c.h.b16 %v4927
        %v4975 = vunpack.c.l.b16 %v4928
        %v4976 = vunpack.c.h.b16 %v4928
        %v4977 = vunpack.c.l.b16 %v4929
        %v4978 = vunpack.c.h.b16 %v4929
        %v4979 = vunpack.c.l.b16 %v4930
        %v4980 = vunpack.c.h.b16 %v4930
        %v4981 = vunpack.c.l.b16 %v4931
        %v4982 = vunpack.c.h.b16 %v4931
        %v4983 = vunpack.c.l.b16 %v4932
        %v4984 = vunpack.c.h.b16 %v4932
        %v4985 = vunpack.c.l.b16 %v4933
        %v4986 = vunpack.c.h.b16 %v4933
        %v4987 = vunpack.c.l.b16 %v4934
        %v4988 = vunpack.c.h.b16 %v4934
        %v4989 = vunpack.c.l.b16 %v4935
        %v4990 = vunpack.c.h.b16 %v4935
        %v4991 = vunpack.c.l.b16 %v4936
        %v4992 = vunpack.c.h.b16 %v4936
        %v4993 = vunpack.c.l.b16 %v4937
        %v4994 = vunpack.c.h.b16 %v4937
        %v4995 = vunpack.c.l.b16 %v4938
        %v4996 = vunpack.c.h.b16 %v4938
        %v4997 = vunpack.c.l.b16 %v4939
        %v4998 = vunpack.c.h.b16 %v4939
        %v4999 = vunpack.c.l.b16 %v4940
        %v5000 = vunpack.c.h.b16 %v4940
        %v5001 = vpack.c.b16 %v4969, %v4965
        %v5002 = vpack.c.b16 %v4970, %v4966
        %v5003 = vpack.c.b16 %v4971, %v4967
        %v5004 = vpack.c.b16 %v4972, %v4968
        %v5005 = vpack.c.b16 %v4977, %v4973
        %v5006 = vpack.c.b16 %v4978, %v4974
        %v5007 = vpack.c.b16 %v4979, %v4975
        %v5008 = vpack.c.b16 %v4980, %v4976
        %v5009 = vpack.c.b16 %v4985, %v4981
        %v5010 = vpack.c.b16 %v4986, %v4982
        %v5011 = vpack.c.b16 %v4987, %v4983
        %v5012 = vpack.c.b16 %v4988, %v4984
        %v5013 = vpack.c.b16 %v4993, %v4989
        %v5014 = vpack.c.b16 %v4994, %v4990
        %v5015 = vpack.c.b16 %v4995, %v4991
        %v5016 = vpack.c.b16 %v4996, %v4992
        %v5017 = vpack.c.b16 %v4997, %v4997
        %v5018 = vpack.c.b16 %v4998, %v4998
        %v5019 = vpack.c.b16 %v4999, %v4999
        %v5020 = vpack.c.b16 %v5000, %v5000
        %v5038 = vsel %vm4634, %v4922, 0
        %v5041 = vsel %vm3803, %v5017, 0
        %v5044 = vsel %vm3803, %v5018, 0
        %v5047 = vsel %vm3803, %v5019, 0
        %v5050 = vsel %vm3803, %v5020, 0
        %5052 = vmatprep.subr.bf16.mxu0 %v5002
        %5053 = vmatpush1.bf16.msra.mxu0 %v5001
        %5054 = vmatprep.subr.bf16.mxu0 %v5006
        %5055 = vmatpush1.bf16.msra.mxu0 %v5005
        %5056 = vmatprep.subr.bf16.mxu0 %v5010
        %5057 = vmatpush1.bf16.msra.mxu0 %v5009
        %5058 = vmatprep.subr.bf16.mxu0 %v5014
        %5059 = vmatpush1.bf16.msra.mxu0 %v5013
        %5060 = vmatprep.subr.bf16.mxu0 %v5044
        %5061 = vmatpush1.bf16.msra.mxu0 %v5041
        %5062 = vmatprep.subr.bf16.mxu0 0
        %5063 = vmatpush1.bf16.msra.mxu0 0
        %5064 = vmatprep.subr.bf16.mxu0 0
        %5065 = vmatpush1.bf16.msra.mxu0 0
        %5066 = vmatprep.subr.bf16.mxu0 0
        %5067 = vmatpush1.bf16.msra.mxu0 0
        %5068 = vmatprep.subr.bf16.mxu0 0
        %5069 = vmatpush1.bf16.msra.mxu0 0
        %5070 = vmatprep.subr.bf16.mxu0 0
        %5071 = vmatpush1.bf16.msra.mxu0 0
        %5072 = vmatprep.subr.bf16.mxu0 0
        %5073 = vmatpush1.bf16.msra.mxu0 0
        %5074 = vmatprep.subr.bf16.mxu0 0
        %5075 = vmatpush1.bf16.msra.mxu0 0
        %5076 = vmatprep.subr.bf16.mxu0 0
        %5077 = vmatpush1.bf16.msra.mxu0 0
        %5078 = vmatprep.subr.bf16.mxu0 0
        %5079 = vmatpush1.bf16.msra.mxu0 0
        %5080 = vmatprep.subr.bf16.mxu0 0
        %5081 = vmatpush1.bf16.msra.mxu0 0
        %5082 = vmatprep.subr.bf16.mxu0 0
        %5083 = vmatpush1.bf16.msra.mxu0 0
        %5084 = vmatprep.mubr.bf16.mxu0 0
        %5085 = vmatmul.mubr.bf16.gmra.mrb[0].mxu0 %v5038
        %v5086 = vpop.f32.mrb[0].mxu0
        %v5087 = vadd.f32 %v4945, %v5086
        %v5088 = vpop.f32.mrb[0].mxu0
        %v5089 = vadd.f32 %v4945, %v5088
        %v5090 = vpop.f32.mrb[0].mxu0
        %v5091 = vpop.f32.mrb[0].mxu0
        %5092 = vdwg.mxu0
        %5093 = vmatprep.subr.bf16.mxu0 %v5004
        %5094 = vmatpush1.bf16.msra.mxu0 %v5003
        %5095 = vmatprep.subr.bf16.mxu0 %v5008
        %5096 = vmatpush1.bf16.msra.mxu0 %v5007
        %5097 = vmatprep.subr.bf16.mxu0 %v5012
        %5098 = vmatpush1.bf16.msra.mxu0 %v5011
        %5099 = vmatprep.subr.bf16.mxu0 %v5016
        %5100 = vmatpush1.bf16.msra.mxu0 %v5015
        %5101 = vmatprep.subr.bf16.mxu0 %v5050
        %5102 = vmatpush1.bf16.msra.mxu0 %v5047
        %5103 = vmatprep.subr.bf16.mxu0 0
        %5104 = vmatpush1.bf16.msra.mxu0 0
        %5105 = vmatprep.subr.bf16.mxu0 0
        %5106 = vmatpush1.bf16.msra.mxu0 0
        %5107 = vmatprep.subr.bf16.mxu0 0
        %5108 = vmatpush1.bf16.msra.mxu0 0
        %5109 = vmatprep.subr.bf16.mxu0 0
        %5110 = vmatpush1.bf16.msra.mxu0 0
        %5111 = vmatprep.subr.bf16.mxu0 0
        %5112 = vmatpush1.bf16.msra.mxu0 0
        %5113 = vmatprep.subr.bf16.mxu0 0
        %5114 = vmatpush1.bf16.msra.mxu0 0
        %5115 = vmatprep.subr.bf16.mxu0 0
        %5116 = vmatpush1.bf16.msra.mxu0 0
        %5117 = vmatprep.subr.bf16.mxu0 0
        %5118 = vmatpush1.bf16.msra.mxu0 0
        %5119 = vmatprep.subr.bf16.mxu0 0
        %5120 = vmatpush1.bf16.msra.mxu0 0
        %5121 = vmatprep.subr.bf16.mxu0 0
        %5122 = vmatpush1.bf16.msra.mxu0 0
        %5123 = vmatprep.subr.bf16.mxu0 0
        %5124 = vmatpush1.bf16.msra.mxu0 0
        %5125 = vmatprep.mubr.bf16.mxu0 0
        %5126 = vmatmul.mubr.bf16.gmra.mrb[0].mxu0 %v5038
        %v5127 = vpop.f32.mrb[0].mxu0
        %v5128 = vadd.f32 %v4945, %v5127
        %v5129 = vpop.f32.mrb[0].mxu0
        %v5130 = vadd.f32 %v4945, %v5129
        %v5131 = vpop.f32.mrb[0].mxu0
        %v5132 = vpop.f32.mrb[0].mxu0
        %5133 = vdwg.mxu0
        %v5134 = vmax.f32 %v5087, 0.0
        %v5135 = vmax.f32 %v5089, 0.0
        %v5136 = vmax.f32 %v5128, 0.0
        %v5137 = vmax.f32 %v5130, 0.0
        %v5138 = vsel %vm3778, %v5134, 0.0
        %v5139 = vsel %vm3779, %v5135, 0.0
        %v5140 = vsel %vm3780, %v5136, 0.0
        %v5141 = vsel %vm3781, %v5137, 0.0
        %v5142 = vpack.c.bf16 %v5138, %v5138
        %v5143 = vpack.c.bf16 %v5139, %v5139
        %v5144 = vpack.c.bf16 %v5140, %v5140
        %v5145 = vpack.c.bf16 %v5141, %v5141
        %v5146 = vld [vmem:[%s5] sm:$0xf]
        %v5147 = vld [vmem:[%s5 + $0x4] sm:$0xf]
        %v5148 = vld [vmem:[%s5 + $0x8] sm:$0xf]
        %v5149 = vld [vmem:[%s5 + $0xc] sm:$0xf]
        %v5150 = vld [vmem:[%s5 + $0x10] sm:$0xf]
        %v5151 = vld [vmem:[%s5 + $0x14] sm:$0xf]
        %v5152 = vld [vmem:[%s5 + $0x18] sm:$0xf]
        %v5153 = vld [vmem:[%s5 + $0x1c] sm:$0xf]
        %v5154 = vld [vmem:[%s6] sm:$0xff]
        %v5155 = vld [vmem:[%s6 + $0x8] sm:$0xff]
        %v5156 = vld [vmem:[%s6 + $0x10] sm:$0xff]
        %v5157 = vld [vmem:[%s6 + $0x18] sm:$0xff]
        %v5158 = vld [vmem:[%s6 + $0x20] sm:$0xff]
        %v5159 = vld [vmem:[%s6 + $0x28] sm:$0xff]
        %v5160 = vld [vmem:[%s6 + $0x30] sm:$0xff]
        %v5161 = vld [vmem:[%s6 + $0x38] sm:$0xff]
        %5163 = vset.pattern.permute.xlu0 3
        %5164 = vperm.xlu0 %5163, %v5154
        %v5165 = vpop.permute.xlu0 %5164
        %5168 = vset.pattern.permute.xlu0 3
        %5169 = vperm.xlu0 %5168, %v5155
        %v5170 = vpop.permute.xlu0 %5169
        %5173 = vset.pattern.permute.xlu0 3
        %5174 = vperm.xlu0 %5173, %v5156
        %v5175 = vpop.permute.xlu0 %5174
        %5178 = vset.pattern.permute.xlu0 3
        %5179 = vperm.xlu0 %5178, %v5157
        %v5180 = vpop.permute.xlu0 %5179
        %5183 = vset.pattern.permute.xlu0 3
        %5184 = vperm.xlu0 %5183, %v5158
        %v5185 = vpop.permute.xlu0 %5184
        %5188 = vset.pattern.permute.xlu0 3
        %5189 = vperm.xlu0 %5188, %v5159
        %v5190 = vpop.permute.xlu0 %5189
        %5193 = vset.pattern.permute.xlu0 3
        %5194 = vperm.xlu0 %5193, %v5160
        %v5195 = vpop.permute.xlu0 %5194
        %5198 = vset.pattern.permute.xlu0 3
        %5199 = vperm.xlu0 %5198, %v5161
        %v5200 = vpop.permute.xlu0 %5199
        %v5210 = vunpack.c.l.b16 %v5146
        %v5211 = vunpack.c.l.b16 %v5147
        %v5212 = vunpack.c.l.b16 %v5148
        %v5213 = vunpack.c.l.b16 %v5149
        %v5214 = vunpack.c.l.b16 %v5150
        %v5215 = vunpack.c.l.b16 %v5151
        %v5216 = vunpack.c.l.b16 %v5152
        %v5217 = vunpack.c.l.b16 %v5153
        %v5218 = vpack.c.b16 %v5211, %v5210
        %v5219 = vpack.c.b16 %v5213, %v5212
        %v5220 = vpack.c.b16 %v5215, %v5214
        %v5221 = vpack.c.b16 %v5217, %v5216
        %vm5222 = vcmask 64512
        %v5224 = vsel %vm5222, %v5218, 0
        %v5227 = vsel %vm5222, %v5219, 0
        %v5230 = vsel %vm5222, %v5220, 0
        %v5233 = vsel %vm5222, %v5221, 0
        %v5236 = vsel %vm3803, %v5142, 0
        %v5239 = vsel %vm3803, %v5143, 0
        %v5242 = vsel %vm3803, %v5144, 0
        %v5245 = vsel %vm3803, %v5145, 0
        %5247 = vmatprep.subr.bf16.mxu0 %v5239
        %5248 = vmatpush1.bf16.msra.mxu0 %v5236
        %5249 = vmatprep.subr.bf16.mxu0 0
        %5250 = vmatpush1.bf16.msra.mxu0 0
        %5251 = vmatprep.subr.bf16.mxu0 0
        %5252 = vmatpush1.bf16.msra.mxu0 0
        %5253 = vmatprep.subr.bf16.mxu0 0
        %5254 = vmatpush1.bf16.msra.mxu0 0
        %5255 = vmatprep.subr.bf16.mxu0 0
        %5256 = vmatpush1.bf16.msra.mxu0 0
        %5257 = vmatprep.subr.bf16.mxu0 0
        %5258 = vmatpush1.bf16.msra.mxu0 0
        %5259 = vmatprep.subr.bf16.mxu0 0
        %5260 = vmatpush1.bf16.msra.mxu0 0
        %5261 = vmatprep.subr.bf16.mxu0 0
        %5262 = vmatpush1.bf16.msra.mxu0 0
        %5263 = vmatprep.subr.bf16.mxu0 0
        %5264 = vmatpush1.bf16.msra.mxu0 0
        %5265 = vmatprep.subr.bf16.mxu0 0
        %5266 = vmatpush1.bf16.msra.mxu0 0
        %5267 = vmatprep.subr.bf16.mxu0 0
        %5268 = vmatpush1.bf16.msra.mxu0 0
        %5269 = vmatprep.subr.bf16.mxu0 0
        %5270 = vmatpush1.bf16.msra.mxu0 0
        %5271 = vmatprep.subr.bf16.mxu0 0
        %5272 = vmatpush1.bf16.msra.mxu0 0
        %5273 = vmatprep.subr.bf16.mxu0 0
        %5274 = vmatpush1.bf16.msra.mxu0 0
        %5275 = vmatprep.subr.bf16.mxu0 0
        %5276 = vmatpush1.bf16.msra.mxu0 0
        %5277 = vmatprep.subr.bf16.mxu0 0
        %5278 = vmatpush1.bf16.msra.mxu0 0
        %5279 = vmatprep.mubr.bf16.mxu0 0
        %5280 = vmatmul.mubr.bf16.gmra.mrb[0].mxu0 %v5224
        %v5281 = vpop.f32.mrb[0].mxu0
        %v5282 = vadd.f32 %v5165, %v5281
        %v5283 = vpop.f32.mrb[0].mxu0
        %v5284 = vadd.f32 %v5165, %v5283
        %v5285 = vpop.f32.mrb[0].mxu0
        %v5286 = vadd.f32 %v5170, %v5285
        %v5287 = vpop.f32.mrb[0].mxu0
        %v5288 = vadd.f32 %v5170, %v5287
        %5289 = vmatprep.mubr.bf16.mxu0 0
        %5290 = vmatmul.mubr.bf16.gmra.mrb[0].mxu0 %v5227
        %v5291 = vpop.f32.mrb[0].mxu0
        %v5292 = vadd.f32 %v5175, %v5291
        %v5293 = vpop.f32.mrb[0].mxu0
        %v5294 = vadd.f32 %v5175, %v5293
        %v5295 = vpop.f32.mrb[0].mxu0
        %v5296 = vadd.f32 %v5180, %v5295
        %v5297 = vpop.f32.mrb[0].mxu0
        %v5298 = vadd.f32 %v5180, %v5297
        %5299 = vmatprep.mubr.bf16.mxu0 0
        %5300 = vmatmul.mubr.bf16.gmra.mrb[0].mxu0 %v5230
        %v5301 = vpop.f32.mrb[0].mxu0
        %v5302 = vadd.f32 %v5185, %v5301
        %v5303 = vpop.f32.mrb[0].mxu0
        %v5304 = vadd.f32 %v5185, %v5303
        %v5305 = vpop.f32.mrb[0].mxu0
        %v5306 = vadd.f32 %v5190, %v5305
        %v5307 = vpop.f32.mrb[0].mxu0
        %v5308 = vadd.f32 %v5190, %v5307
        %5309 = vmatprep.mubr.bf16.mxu0 0
        %5310 = vmatmul.mubr.bf16.gmra.mrb[0].mxu0 %v5233
        %v5311 = vpop.f32.mrb[0].mxu0
        %v5312 = vadd.f32 %v5195, %v5311
        %v5313 = vpop.f32.mrb[0].mxu0
        %v5314 = vadd.f32 %v5195, %v5313
        %v5315 = vpop.f32.mrb[0].mxu0
        %v5316 = vadd.f32 %v5200, %v5315
        %v5317 = vpop.f32.mrb[0].mxu0
        %v5318 = vadd.f32 %v5200, %v5317
        %5319 = vdwg.mxu0
        %5320 = vmatprep.subr.bf16.mxu0 %v5245
        %5321 = vmatpush1.bf16.msra.mxu0 %v5242
        %5322 = vmatprep.subr.bf16.mxu0 0
        %5323 = vmatpush1.bf16.msra.mxu0 0
        %5324 = vmatprep.subr.bf16.mxu0 0
        %5325 = vmatpush1.bf16.msra.mxu0 0
        %5326 = vmatprep.subr.bf16.mxu0 0
        %5327 = vmatpush1.bf16.msra.mxu0 0
        %5328 = vmatprep.subr.bf16.mxu0 0
        %5329 = vmatpush1.bf16.msra.mxu0 0
        %5330 = vmatprep.subr.bf16.mxu0 0
        %5331 = vmatpush1.bf16.msra.mxu0 0
        %5332 = vmatprep.subr.bf16.mxu0 0
        %5333 = vmatpush1.bf16.msra.mxu0 0
        %5334 = vmatprep.subr.bf16.mxu0 0
        %5335 = vmatpush1.bf16.msra.mxu0 0
        %5336 = vmatprep.subr.bf16.mxu0 0
        %5337 = vmatpush1.bf16.msra.mxu0 0
        %5338 = vmatprep.subr.bf16.mxu0 0
        %5339 = vmatpush1.bf16.msra.mxu0 0
        %5340 = vmatprep.subr.bf16.mxu0 0
        %5341 = vmatpush1.bf16.msra.mxu0 0
        %5342 = vmatprep.subr.bf16.mxu0 0
        %5343 = vmatpush1.bf16.msra.mxu0 0
        %5344 = vmatprep.subr.bf16.mxu0 0
        %5345 = vmatpush1.bf16.msra.mxu0 0
        %5346 = vmatprep.subr.bf16.mxu0 0
        %5347 = vmatpush1.bf16.msra.mxu0 0
        %5348 = vmatprep.subr.bf16.mxu0 0
        %5349 = vmatpush1.bf16.msra.mxu0 0
        %5350 = vmatprep.subr.bf16.mxu0 0
        %5351 = vmatpush1.bf16.msra.mxu0 0
        %5352 = vmatprep.mubr.bf16.mxu0 0
        %5353 = vmatmul.mubr.bf16.gmra.mrb[0].mxu0 %v5224
        %v5354 = vpop.f32.mrb[0].mxu0
        %v5355 = vadd.f32 %v5165, %v5354
        %v5356 = vpop.f32.mrb[0].mxu0
        %v5357 = vadd.f32 %v5165, %v5356
        %v5358 = vpop.f32.mrb[0].mxu0
        %v5359 = vadd.f32 %v5170, %v5358
        %v5360 = vpop.f32.mrb[0].mxu0
        %v5361 = vadd.f32 %v5170, %v5360
        %5362 = vmatprep.mubr.bf16.mxu0 0
        %5363 = vmatmul.mubr.bf16.gmra.mrb[0].mxu0 %v5227
        %v5364 = vpop.f32.mrb[0].mxu0
        %v5365 = vadd.f32 %v5175, %v5364
        %v5366 = vpop.f32.mrb[0].mxu0
        %v5367 = vadd.f32 %v5175, %v5366
        %v5368 = vpop.f32.mrb[0].mxu0
        %v5369 = vadd.f32 %v5180, %v5368
        %v5370 = vpop.f32.mrb[0].mxu0
        %v5371 = vadd.f32 %v5180, %v5370
        %5372 = vmatprep.mubr.bf16.mxu0 0
        %5373 = vmatmul.mubr.bf16.gmra.mrb[0].mxu0 %v5230
        %v5374 = vpop.f32.mrb[0].mxu0
        %v5375 = vadd.f32 %v5185, %v5374
        %v5376 = vpop.f32.mrb[0].mxu0
        %v5377 = vadd.f32 %v5185, %v5376
        %v5378 = vpop.f32.mrb[0].mxu0
        %v5379 = vadd.f32 %v5190, %v5378
        %v5380 = vpop.f32.mrb[0].mxu0
        %v5381 = vadd.f32 %v5190, %v5380
        %5382 = vmatprep.mubr.bf16.mxu0 0
        %5383 = vmatmul.mubr.bf16.gmra.mrb[0].mxu0 %v5233
        %v5384 = vpop.f32.mrb[0].mxu0
        %v5385 = vadd.f32 %v5195, %v5384
        %v5386 = vpop.f32.mrb[0].mxu0
        %v5387 = vadd.f32 %v5195, %v5386
        %v5388 = vpop.f32.mrb[0].mxu0
        %v5389 = vadd.f32 %v5200, %v5388
        %v5390 = vpop.f32.mrb[0].mxu0
        %v5391 = vadd.f32 %v5200, %v5390
        %5392 = vdwg.mxu0
        %v5393 = vmax.f32 %v5282, 0.0
        %v5394 = vmax.f32 %v5284, 0.0
        %v5395 = vmax.f32 %v5355, 0.0
        %v5396 = vmax.f32 %v5357, 0.0
        %v5397 = vmax.f32 %v5286, 0.0
        %v5398 = vmax.f32 %v5288, 0.0
        %v5399 = vmax.f32 %v5359, 0.0
        %v5400 = vmax.f32 %v5361, 0.0
        %v5401 = vmax.f32 %v5292, 0.0
        %v5402 = vmax.f32 %v5294, 0.0
        %v5403 = vmax.f32 %v5365, 0.0
        %v5404 = vmax.f32 %v5367, 0.0
        %v5405 = vmax.f32 %v5296, 0.0
        %v5406 = vmax.f32 %v5298, 0.0
        %v5407 = vmax.f32 %v5369, 0.0
        %v5408 = vmax.f32 %v5371, 0.0
        %v5409 = vmax.f32 %v5302, 0.0
        %v5410 = vmax.f32 %v5304, 0.0
        %v5411 = vmax.f32 %v5375, 0.0
        %v5412 = vmax.f32 %v5377, 0.0
        %v5413 = vmax.f32 %v5306, 0.0
        %v5414 = vmax.f32 %v5308, 0.0
        %v5415 = vmax.f32 %v5379, 0.0
        %v5416 = vmax.f32 %v5381, 0.0
        %v5417 = vmax.f32 %v5312, 0.0
        %v5418 = vmax.f32 %v5314, 0.0
        %v5419 = vmax.f32 %v5385, 0.0
        %v5420 = vmax.f32 %v5387, 0.0
        %v5421 = vmax.f32 %v5316, 0.0
        %v5422 = vmax.f32 %v5318, 0.0
        %v5423 = vmax.f32 %v5389, 0.0
        %v5424 = vmax.f32 %v5391, 0.0
        %5425 = vst [vmem:[#allocation8] sm:$0xff] %v5393
        %5426 = vst [vmem:[#allocation8 + $0x8] sm:$0xff] %v5394
        %5427 = vst [vmem:[#allocation8 + $0x10] sm:$0xff] %v5395
        %vm5428 = vcmask 818176
        %5429 = vst.msk [vmem:[#allocation8 + $0x18] sm:$0xff] %vm5428, %v5396
        %5430 = vst [vmem:[#allocation8 + $0x20] sm:$0xff] %v5397
        %5431 = vst [vmem:[#allocation8 + $0x28] sm:$0xff] %v5398
        %5432 = vst [vmem:[#allocation8 + $0x30] sm:$0xff] %v5399
        %5433 = vst.msk [vmem:[#allocation8 + $0x38] sm:$0xff] %vm5428, %v5400
        %5434 = vst [vmem:[#allocation8 + $0x40] sm:$0xff] %v5401
        %5435 = vst [vmem:[#allocation8 + $0x48] sm:$0xff] %v5402
        %5436 = vst [vmem:[#allocation8 + $0x50] sm:$0xff] %v5403
        %5437 = vst.msk [vmem:[#allocation8 + $0x58] sm:$0xff] %vm5428, %v5404
        %5438 = vst [vmem:[#allocation8 + $0x60] sm:$0xff] %v5405
        %5439 = vst [vmem:[#allocation8 + $0x68] sm:$0xff] %v5406
        %5440 = vst [vmem:[#allocation8 + $0x70] sm:$0xff] %v5407
        %5441 = vst.msk [vmem:[#allocation8 + $0x78] sm:$0xff] %vm5428, %v5408
        %5442 = vst [vmem:[#allocation8 + $0x80] sm:$0xff] %v5409
        %5443 = vst [vmem:[#allocation8 + $0x88] sm:$0xff] %v5410
        %5444 = vst [vmem:[#allocation8 + $0x90] sm:$0xff] %v5411
        %5445 = vst.msk [vmem:[#allocation8 + $0x98] sm:$0xff] %vm5428, %v5412
        %5446 = vst [vmem:[#allocation8 + $0xa0] sm:$0xff] %v5413
        %5447 = vst [vmem:[#allocation8 + $0xa8] sm:$0xff] %v5414
        %5448 = vst [vmem:[#allocation8 + $0xb0] sm:$0xff] %v5415
        %5449 = vst.msk [vmem:[#allocation8 + $0xb8] sm:$0xff] %vm5428, %v5416
        %5450 = vst [vmem:[#allocation8 + $0xc0] sm:$0xff] %v5417
        %5451 = vst [vmem:[#allocation8 + $0xc8] sm:$0xff] %v5418
        %5452 = vst [vmem:[#allocation8 + $0xd0] sm:$0xff] %v5419
        %5453 = vst.msk [vmem:[#allocation8 + $0xd8] sm:$0xff] %vm5428, %v5420
        %5454 = vst [vmem:[#allocation8 + $0xe0] sm:$0xff] %v5421
        %5455 = vst [vmem:[#allocation8 + $0xe8] sm:$0xff] %v5422
        %5456 = vst [vmem:[#allocation8 + $0xf0] sm:$0xff] %v5423
        %5457 = vst.msk [vmem:[#allocation8 + $0xf8] sm:$0xff] %vm5428, %v5424
        %v5458 = vld [vmem:[#allocation9] sm:$0xff]
        %v5459 = vld [vmem:[#allocation9 + $0x8] sm:$0xff]
        %v5460 = vld [vmem:[#allocation9 + $0x10] sm:$0xff]
        %v5461 = vld [vmem:[#allocation9 + $0x18] sm:$0xff]
        %v5462 = vld [vmem:[#allocation9 + $0x20] sm:$0xff]
        %v5463 = vld [vmem:[#allocation9 + $0x28] sm:$0xff]
        %v5464 = vld [vmem:[#allocation9 + $0x30] sm:$0xff]
        %v5465 = vld [vmem:[#allocation9 + $0x38] sm:$0xff]
        %v5466 = vld [vmem:[#allocation9 + $0x40] sm:$0xff]
        %v5467 = vld [vmem:[#allocation9 + $0x48] sm:$0xff]
        %v5468 = vld [vmem:[#allocation9 + $0x50] sm:$0xff]
        %v5469 = vld [vmem:[#allocation9 + $0x58] sm:$0xff]
        %v5470 = vld [vmem:[#allocation9 + $0x60] sm:$0xff]
        %v5471 = vld [vmem:[#allocation9 + $0x68] sm:$0xff]
        %v5472 = vld [vmem:[#allocation9 + $0x70] sm:$0xff]
        %v5473 = vld [vmem:[#allocation9 + $0x78] sm:$0xff]
        %v5474 = vld [vmem:[#allocation9 + $0x80] sm:$0xff]
        %v5475 = vld [vmem:[#allocation9 + $0x88] sm:$0xff]
        %v5476 = vld [vmem:[#allocation9 + $0x90] sm:$0xff]
        %v5477 = vld [vmem:[#allocation9 + $0x98] sm:$0xff]
        %v5478 = vld [vmem:[#allocation9 + $0xa0] sm:$0xff]
        %v5479 = vld [vmem:[#allocation9 + $0xa8] sm:$0xff]
        %v5480 = vld [vmem:[#allocation9 + $0xb0] sm:$0xff]
        %v5481 = vld [vmem:[#allocation9 + $0xb8] sm:$0xff]
        %v5482 = vld [vmem:[#allocation9 + $0xc0] sm:$0xff]
        %v5483 = vld [vmem:[#allocation9 + $0xc8] sm:$0xff]
        %v5484 = vld [vmem:[#allocation9 + $0xd0] sm:$0xff]
        %v5485 = vld [vmem:[#allocation9 + $0xd8] sm:$0xff]
        %v5486 = vld [vmem:[#allocation9 + $0xe0] sm:$0xff]
        %v5487 = vld [vmem:[#allocation9 + $0xe8] sm:$0xff]
        %v5488 = vld [vmem:[#allocation9 + $0xf0] sm:$0xff]
        %v5489 = vld [vmem:[#allocation9 + $0xf8] sm:$0xff]
        %v5490 = vld [vmem:[#allocation8] sm:$0xff]
        %v5491 = vld [vmem:[#allocation8 + $0x8] sm:$0xff]
        %v5492 = vld [vmem:[#allocation8 + $0x10] sm:$0xff]
        %v5493 = vld [vmem:[#allocation8 + $0x18] sm:$0xff]
        %v5494 = vld [vmem:[#allocation8 + $0x20] sm:$0xff]
        %v5495 = vld [vmem:[#allocation8 + $0x28] sm:$0xff]
        %v5496 = vld [vmem:[#allocation8 + $0x30] sm:$0xff]
        %v5497 = vld [vmem:[#allocation8 + $0x38] sm:$0xff]
        %v5498 = vld [vmem:[#allocation8 + $0x40] sm:$0xff]
        %v5499 = vld [vmem:[#allocation8 + $0x48] sm:$0xff]
        %v5500 = vld [vmem:[#allocation8 + $0x50] sm:$0xff]
        %v5501 = vld [vmem:[#allocation8 + $0x58] sm:$0xff]
        %v5502 = vld [vmem:[#allocation8 + $0x60] sm:$0xff]
        %v5503 = vld [vmem:[#allocation8 + $0x68] sm:$0xff]
        %v5504 = vld [vmem:[#allocation8 + $0x70] sm:$0xff]
        %v5505 = vld [vmem:[#allocation8 + $0x78] sm:$0xff]
        %v5506 = vld [vmem:[#allocation8 + $0x80] sm:$0xff]
        %v5507 = vld [vmem:[#allocation8 + $0x88] sm:$0xff]
        %v5508 = vld [vmem:[#allocation8 + $0x90] sm:$0xff]
        %v5509 = vld [vmem:[#allocation8 + $0x98] sm:$0xff]
        %v5510 = vld [vmem:[#allocation8 + $0xa0] sm:$0xff]
        %v5511 = vld [vmem:[#allocation8 + $0xa8] sm:$0xff]
        %v5512 = vld [vmem:[#allocation8 + $0xb0] sm:$0xff]
        %v5513 = vld [vmem:[#allocation8 + $0xb8] sm:$0xff]
        %v5514 = vld [vmem:[#allocation8 + $0xc0] sm:$0xff]
        %v5515 = vld [vmem:[#allocation8 + $0xc8] sm:$0xff]
        %v5516 = vld [vmem:[#allocation8 + $0xd0] sm:$0xff]
        %v5517 = vld [vmem:[#allocation8 + $0xd8] sm:$0xff]
        %v5518 = vld [vmem:[#allocation8 + $0xe0] sm:$0xff]
        %v5519 = vld [vmem:[#allocation8 + $0xe8] sm:$0xff]
        %v5520 = vld [vmem:[#allocation8 + $0xf0] sm:$0xff]
        %v5521 = vld [vmem:[#allocation8 + $0xf8] sm:$0xff]
        %v5522 = vmul.f32 %v5458, %v5490
        %v5523 = vmul.f32 %v5459, %v5491
        %v5524 = vmul.f32 %v5460, %v5492
        %v5525 = vmul.f32 %v5461, %v5493
        %v5526 = vmul.f32 %v5462, %v5494
        %v5527 = vmul.f32 %v5463, %v5495
        %v5528 = vmul.f32 %v5464, %v5496
        %v5529 = vmul.f32 %v5465, %v5497
        %v5530 = vmul.f32 %v5466, %v5498
        %v5531 = vmul.f32 %v5467, %v5499
        %v5532 = vmul.f32 %v5468, %v5500
        %v5533 = vmul.f32 %v5469, %v5501
        %v5534 = vmul.f32 %v5470, %v5502
        %v5535 = vmul.f32 %v5471, %v5503
        %v5536 = vmul.f32 %v5472, %v5504
        %v5537 = vmul.f32 %v5473, %v5505
        %v5538 = vmul.f32 %v5474, %v5506
        %v5539 = vmul.f32 %v5475, %v5507
        %v5540 = vmul.f32 %v5476, %v5508
        %v5541 = vmul.f32 %v5477, %v5509
        %v5542 = vmul.f32 %v5478, %v5510
        %v5543 = vmul.f32 %v5479, %v5511
        %v5544 = vmul.f32 %v5480, %v5512
        %v5545 = vmul.f32 %v5481, %v5513
        %v5546 = vmul.f32 %v5482, %v5514
        %v5547 = vmul.f32 %v5483, %v5515
        %v5548 = vmul.f32 %v5484, %v5516
        %v5549 = vmul.f32 %v5485, %v5517
        %v5550 = vmul.f32 %v5486, %v5518
        %v5551 = vmul.f32 %v5487, %v5519
        %v5552 = vmul.f32 %v5488, %v5520
        %v5553 = vmul.f32 %v5489, %v5521
        %v5554 = vadd.f32 %v5522, %v5523
        %v5555 = vadd.f32 %v5554, %v5524
        %v5556 = vsel %vm5428, %v5525, 0.0
        %v5557 = vadd.f32 %v5555, %v5556
        %5558 = vadd.xlane.f32.xlu0 %v5557
        %v5559 = vpop.xlane.xlu0 %5558
        %v5560 = vadd.f32 %v5526, %v5527
        %v5561 = vadd.f32 %v5560, %v5528
        %v5562 = vsel %vm5428, %v5529, 0.0
        %v5563 = vadd.f32 %v5561, %v5562
        %5564 = vadd.xlane.f32.xlu0 %v5563
        %v5565 = vpop.xlane.xlu0 %5564
        %v5566 = vadd.f32 %v5530, %v5531
        %v5567 = vadd.f32 %v5566, %v5532
        %v5568 = vsel %vm5428, %v5533, 0.0
        %v5569 = vadd.f32 %v5567, %v5568
        %5570 = vadd.xlane.f32.xlu0 %v5569
        %v5571 = vpop.xlane.xlu0 %5570
        %v5572 = vadd.f32 %v5534, %v5535
        %v5573 = vadd.f32 %v5572, %v5536
        %v5574 = vsel %vm5428, %v5537, 0.0
        %v5575 = vadd.f32 %v5573, %v5574
        %5576 = vadd.xlane.f32.xlu0 %v5575
        %v5577 = vpop.xlane.xlu0 %5576
        %v5578 = vadd.f32 %v5538, %v5539
        %v5579 = vadd.f32 %v5578, %v5540
        %v5580 = vsel %vm5428, %v5541, 0.0
        %v5581 = vadd.f32 %v5579, %v5580
        %5582 = vadd.xlane.f32.xlu0 %v5581
        %v5583 = vpop.xlane.xlu0 %5582
        %v5584 = vadd.f32 %v5542, %v5543
        %v5585 = vadd.f32 %v5584, %v5544
        %v5586 = vsel %vm5428, %v5545, 0.0
        %v5587 = vadd.f32 %v5585, %v5586
        %5588 = vadd.xlane.f32.xlu0 %v5587
        %v5589 = vpop.xlane.xlu0 %5588
        %v5590 = vadd.f32 %v5546, %v5547
        %v5591 = vadd.f32 %v5590, %v5548
        %v5592 = vsel %vm5428, %v5549, 0.0
        %v5593 = vadd.f32 %v5591, %v5592
        %5594 = vadd.xlane.f32.xlu0 %v5593
        %v5595 = vpop.xlane.xlu0 %5594
        %v5596 = vadd.f32 %v5550, %v5551
        %v5597 = vadd.f32 %v5596, %v5552
        %v5598 = vsel %vm5428, %v5553, 0.0
        %v5599 = vadd.f32 %v5597, %v5598
        %5600 = vadd.xlane.f32.xlu0 %v5599
        %v5601 = vpop.xlane.xlu0 %5600
        %v5602 = vadd.f32 %v5559, %v5565
        %v5603 = vadd.f32 %v5602, %v5571
        %v5604 = vadd.f32 %v5603, %v5577
        %v5605 = vadd.f32 %v5604, %v5583
        %v5606 = vadd.f32 %v5605, %v5589
        %v5607 = vadd.f32 %v5606, %v5595
        %v5608 = vadd.f32 %v5607, %v5601
        %v5609 = vrot.slane %v5608, 4
        %v5610 = vadd.f32 %v5608, %v5609
        %v5611 = vrot.slane %v5610, 2
        %v5612 = vadd.f32 %v5610, %v5611
        %v5613 = vrot.slane %v5612, 1
        %v5614 = vadd.f32 %v5612, %v5613
        %s5615 = scalar_lea.vmem [#allocation9], 256
        %v5616 = vld [vmem:[%s5615] sm:$0xff]
        %v5617 = vld [vmem:[%s5615 + $0x8] sm:$0xff]
        %v5618 = vld [vmem:[%s5615 + $0x10] sm:$0xff]
        %v5619 = vld [vmem:[%s5615 + $0x18] sm:$0xff]
        %v5620 = vld [vmem:[%s5615 + $0x20] sm:$0xff]
        %v5621 = vld [vmem:[%s5615 + $0x28] sm:$0xff]
        %v5622 = vld [vmem:[%s5615 + $0x30] sm:$0xff]
        %v5623 = vld [vmem:[%s5615 + $0x38] sm:$0xff]
        %v5624 = vld [vmem:[%s5615 + $0x40] sm:$0xff]
        %v5625 = vld [vmem:[%s5615 + $0x48] sm:$0xff]
        %v5626 = vld [vmem:[%s5615 + $0x50] sm:$0xff]
        %v5627 = vld [vmem:[%s5615 + $0x58] sm:$0xff]
        %v5628 = vld [vmem:[%s5615 + $0x60] sm:$0xff]
        %v5629 = vld [vmem:[%s5615 + $0x68] sm:$0xff]
        %v5630 = vld [vmem:[%s5615 + $0x70] sm:$0xff]
        %v5631 = vld [vmem:[%s5615 + $0x78] sm:$0xff]
        %v5632 = vld [vmem:[%s5615 + $0x80] sm:$0xff]
        %v5633 = vld [vmem:[%s5615 + $0x88] sm:$0xff]
        %v5634 = vld [vmem:[%s5615 + $0x90] sm:$0xff]
        %v5635 = vld [vmem:[%s5615 + $0x98] sm:$0xff]
        %v5636 = vld [vmem:[%s5615 + $0xa0] sm:$0xff]
        %v5637 = vld [vmem:[%s5615 + $0xa8] sm:$0xff]
        %v5638 = vld [vmem:[%s5615 + $0xb0] sm:$0xff]
        %v5639 = vld [vmem:[%s5615 + $0xb8] sm:$0xff]
        %v5640 = vld [vmem:[%s5615 + $0xc0] sm:$0xff]
        %v5641 = vld [vmem:[%s5615 + $0xc8] sm:$0xff]
        %v5642 = vld [vmem:[%s5615 + $0xd0] sm:$0xff]
        %v5643 = vld [vmem:[%s5615 + $0xd8] sm:$0xff]
        %v5644 = vld [vmem:[%s5615 + $0xe0] sm:$0xff]
        %v5645 = vld [vmem:[%s5615 + $0xe8] sm:$0xff]
        %v5646 = vld [vmem:[%s5615 + $0xf0] sm:$0xff]
        %v5647 = vld [vmem:[%s5615 + $0xf8] sm:$0xff]
        %v5648 = vmul.f32 %v5616, %v5490
        %v5649 = vmul.f32 %v5617, %v5491
        %v5650 = vmul.f32 %v5618, %v5492
        %v5651 = vmul.f32 %v5619, %v5493
        %v5652 = vmul.f32 %v5620, %v5494
        %v5653 = vmul.f32 %v5621, %v5495
        %v5654 = vmul.f32 %v5622, %v5496
        %v5655 = vmul.f32 %v5623, %v5497
        %v5656 = vmul.f32 %v5624, %v5498
        %v5657 = vmul.f32 %v5625, %v5499
        %v5658 = vmul.f32 %v5626, %v5500
        %v5659 = vmul.f32 %v5627, %v5501
        %v5660 = vmul.f32 %v5628, %v5502
        %v5661 = vmul.f32 %v5629, %v5503
        %v5662 = vmul.f32 %v5630, %v5504
        %v5663 = vmul.f32 %v5631, %v5505
        %v5664 = vmul.f32 %v5632, %v5506
        %v5665 = vmul.f32 %v5633, %v5507
        %v5666 = vmul.f32 %v5634, %v5508
        %v5667 = vmul.f32 %v5635, %v5509
        %v5668 = vmul.f32 %v5636, %v5510
        %v5669 = vmul.f32 %v5637, %v5511
        %v5670 = vmul.f32 %v5638, %v5512
        %v5671 = vmul.f32 %v5639, %v5513
        %v5672 = vmul.f32 %v5640, %v5514
        %v5673 = vmul.f32 %v5641, %v5515
        %v5674 = vmul.f32 %v5642, %v5516
        %v5675 = vmul.f32 %v5643, %v5517
        %v5676 = vmul.f32 %v5644, %v5518
        %v5677 = vmul.f32 %v5645, %v5519
        %v5678 = vmul.f32 %v5646, %v5520
        %v5679 = vmul.f32 %v5647, %v5521
        %v5680 = vadd.f32 %v5648, %v5649
        %v5681 = vadd.f32 %v5680, %v5650
        %v5682 = vsel %vm5428, %v5651, 0.0
        %v5683 = vadd.f32 %v5681, %v5682
        %5684 = vadd.xlane.f32.xlu0 %v5683
        %v5685 = vpop.xlane.xlu0 %5684
        %v5686 = vadd.f32 %v5652, %v5653
        %v5687 = vadd.f32 %v5686, %v5654
        %v5688 = vsel %vm5428, %v5655, 0.0
        %v5689 = vadd.f32 %v5687, %v5688
        %5690 = vadd.xlane.f32.xlu0 %v5689
        %v5691 = vpop.xlane.xlu0 %5690
        %v5692 = vadd.f32 %v5656, %v5657
        %v5693 = vadd.f32 %v5692, %v5658
        %v5694 = vsel %vm5428, %v5659, 0.0
        %v5695 = vadd.f32 %v5693, %v5694
        %5696 = vadd.xlane.f32.xlu0 %v5695
        %v5697 = vpop.xlane.xlu0 %5696
        %v5698 = vadd.f32 %v5660, %v5661
        %v5699 = vadd.f32 %v5698, %v5662
        %v5700 = vsel %vm5428, %v5663, 0.0
        %v5701 = vadd.f32 %v5699, %v5700
        %5702 = vadd.xlane.f32.xlu0 %v5701
        %v5703 = vpop.xlane.xlu0 %5702
        %v5704 = vadd.f32 %v5664, %v5665
        %v5705 = vadd.f32 %v5704, %v5666
        %v5706 = vsel %vm5428, %v5667, 0.0
        %v5707 = vadd.f32 %v5705, %v5706
        %5708 = vadd.xlane.f32.xlu0 %v5707
        %v5709 = vpop.xlane.xlu0 %5708
        %v5710 = vadd.f32 %v5668, %v5669
        %v5711 = vadd.f32 %v5710, %v5670
        %v5712 = vsel %vm5428, %v5671, 0.0
        %v5713 = vadd.f32 %v5711, %v5712
        %5714 = vadd.xlane.f32.xlu0 %v5713
        %v5715 = vpop.xlane.xlu0 %5714
        %v5716 = vadd.f32 %v5672, %v5673
        %v5717 = vadd.f32 %v5716, %v5674
        %v5718 = vsel %vm5428, %v5675, 0.0
        %v5719 = vadd.f32 %v5717, %v5718
        %5720 = vadd.xlane.f32.xlu0 %v5719
        %v5721 = vpop.xlane.xlu0 %5720
        %v5722 = vadd.f32 %v5676, %v5677
        %v5723 = vadd.f32 %v5722, %v5678
        %v5724 = vsel %vm5428, %v5679, 0.0
        %v5725 = vadd.f32 %v5723, %v5724
        %5726 = vadd.xlane.f32.xlu0 %v5725
        %v5727 = vpop.xlane.xlu0 %5726
        %v5728 = vadd.f32 %v5685, %v5691
        %v5729 = vadd.f32 %v5728, %v5697
        %v5730 = vadd.f32 %v5729, %v5703
        %v5731 = vadd.f32 %v5730, %v5709
        %v5732 = vadd.f32 %v5731, %v5715
        %v5733 = vadd.f32 %v5732, %v5721
        %v5734 = vadd.f32 %v5733, %v5727
        %v5735 = vrot.slane %v5734, 4
        %v5736 = vadd.f32 %v5734, %v5735
        %v5737 = vrot.slane %v5736, 2
        %v5738 = vadd.f32 %v5736, %v5737
        %v5739 = vrot.slane %v5738, 1
        %v5740 = vadd.f32 %v5738, %v5739
        %s5741 = scalar_lea.vmem [#allocation9], 512
        %v5742 = vld [vmem:[%s5741] sm:$0xff]
        %v5743 = vld [vmem:[%s5741 + $0x8] sm:$0xff]
        %v5744 = vld [vmem:[%s5741 + $0x10] sm:$0xff]
        %v5745 = vld [vmem:[%s5741 + $0x18] sm:$0xff]
        %v5746 = vld [vmem:[%s5741 + $0x20] sm:$0xff]
        %v5747 = vld [vmem:[%s5741 + $0x28] sm:$0xff]
        %v5748 = vld [vmem:[%s5741 + $0x30] sm:$0xff]
        %v5749 = vld [vmem:[%s5741 + $0x38] sm:$0xff]
        %v5750 = vld [vmem:[%s5741 + $0x40] sm:$0xff]
        %v5751 = vld [vmem:[%s5741 + $0x48] sm:$0xff]
        %v5752 = vld [vmem:[%s5741 + $0x50] sm:$0xff]
        %v5753 = vld [vmem:[%s5741 + $0x58] sm:$0xff]
        %v5754 = vld [vmem:[%s5741 + $0x60] sm:$0xff]
        %v5755 = vld [vmem:[%s5741 + $0x68] sm:$0xff]
        %v5756 = vld [vmem:[%s5741 + $0x70] sm:$0xff]
        %v5757 = vld [vmem:[%s5741 + $0x78] sm:$0xff]
        %v5758 = vld [vmem:[%s5741 + $0x80] sm:$0xff]
        %v5759 = vld [vmem:[%s5741 + $0x88] sm:$0xff]
        %v5760 = vld [vmem:[%s5741 + $0x90] sm:$0xff]
        %v5761 = vld [vmem:[%s5741 + $0x98] sm:$0xff]
        %v5762 = vld [vmem:[%s5741 + $0xa0] sm:$0xff]
        %v5763 = vld [vmem:[%s5741 + $0xa8] sm:$0xff]
        %v5764 = vld [vmem:[%s5741 + $0xb0] sm:$0xff]
        %v5765 = vld [vmem:[%s5741 + $0xb8] sm:$0xff]
        %v5766 = vld [vmem:[%s5741 + $0xc0] sm:$0xff]
        %v5767 = vld [vmem:[%s5741 + $0xc8] sm:$0xff]
        %v5768 = vld [vmem:[%s5741 + $0xd0] sm:$0xff]
        %v5769 = vld [vmem:[%s5741 + $0xd8] sm:$0xff]
        %v5770 = vld [vmem:[%s5741 + $0xe0] sm:$0xff]
        %v5771 = vld [vmem:[%s5741 + $0xe8] sm:$0xff]
        %v5772 = vld [vmem:[%s5741 + $0xf0] sm:$0xff]
        %v5773 = vld [vmem:[%s5741 + $0xf8] sm:$0xff]
        %v5774 = vmul.f32 %v5742, %v5490
        %v5775 = vmul.f32 %v5743, %v5491
        %v5776 = vmul.f32 %v5744, %v5492
        %v5777 = vmul.f32 %v5745, %v5493
        %v5778 = vmul.f32 %v5746, %v5494
        %v5779 = vmul.f32 %v5747, %v5495
        %v5780 = vmul.f32 %v5748, %v5496
        %v5781 = vmul.f32 %v5749, %v5497
        %v5782 = vmul.f32 %v5750, %v5498
        %v5783 = vmul.f32 %v5751, %v5499
        %v5784 = vmul.f32 %v5752, %v5500
        %v5785 = vmul.f32 %v5753, %v5501
        %v5786 = vmul.f32 %v5754, %v5502
        %v5787 = vmul.f32 %v5755, %v5503
        %v5788 = vmul.f32 %v5756, %v5504
        %v5789 = vmul.f32 %v5757, %v5505
        %v5790 = vmul.f32 %v5758, %v5506
        %v5791 = vmul.f32 %v5759, %v5507
        %v5792 = vmul.f32 %v5760, %v5508
        %v5793 = vmul.f32 %v5761, %v5509
        %v5794 = vmul.f32 %v5762, %v5510
        %v5795 = vmul.f32 %v5763, %v5511
        %v5796 = vmul.f32 %v5764, %v5512
        %v5797 = vmul.f32 %v5765, %v5513
        %v5798 = vmul.f32 %v5766, %v5514
        %v5799 = vmul.f32 %v5767, %v5515
        %v5800 = vmul.f32 %v5768, %v5516
        %v5801 = vmul.f32 %v5769, %v5517
        %v5802 = vmul.f32 %v5770, %v5518
        %v5803 = vmul.f32 %v5771, %v5519
        %v5804 = vmul.f32 %v5772, %v5520
        %v5805 = vmul.f32 %v5773, %v5521
        %v5806 = vadd.f32 %v5774, %v5775
        %v5807 = vadd.f32 %v5806, %v5776
        %v5808 = vsel %vm5428, %v5777, 0.0
        %v5809 = vadd.f32 %v5807, %v5808
        %5810 = vadd.xlane.f32.xlu0 %v5809
        %v5811 = vpop.xlane.xlu0 %5810
        %v5812 = vadd.f32 %v5778, %v5779
        %v5813 = vadd.f32 %v5812, %v5780
        %v5814 = vsel %vm5428, %v5781, 0.0
        %v5815 = vadd.f32 %v5813, %v5814
        %5816 = vadd.xlane.f32.xlu0 %v5815
        %v5817 = vpop.xlane.xlu0 %5816
        %v5818 = vadd.f32 %v5782, %v5783
        %v5819 = vadd.f32 %v5818, %v5784
        %v5820 = vsel %vm5428, %v5785, 0.0
        %v5821 = vadd.f32 %v5819, %v5820
        %5822 = vadd.xlane.f32.xlu0 %v5821
        %v5823 = vpop.xlane.xlu0 %5822
        %v5824 = vadd.f32 %v5786, %v5787
        %v5825 = vadd.f32 %v5824, %v5788
        %v5826 = vsel %vm5428, %v5789, 0.0
        %v5827 = vadd.f32 %v5825, %v5826
        %5828 = vadd.xlane.f32.xlu0 %v5827
        %v5829 = vpop.xlane.xlu0 %5828
        %v5830 = vadd.f32 %v5790, %v5791
        %v5831 = vadd.f32 %v5830, %v5792
        %v5832 = vsel %vm5428, %v5793, 0.0
        %v5833 = vadd.f32 %v5831, %v5832
        %5834 = vadd.xlane.f32.xlu0 %v5833
        %v5835 = vpop.xlane.xlu0 %5834
        %v5836 = vadd.f32 %v5794, %v5795
        %v5837 = vadd.f32 %v5836, %v5796
        %v5838 = vsel %vm5428, %v5797, 0.0
        %v5839 = vadd.f32 %v5837, %v5838
        %5840 = vadd.xlane.f32.xlu0 %v5839
        %v5841 = vpop.xlane.xlu0 %5840
        %v5842 = vadd.f32 %v5798, %v5799
        %v5843 = vadd.f32 %v5842, %v5800
        %v5844 = vsel %vm5428, %v5801, 0.0
        %v5845 = vadd.f32 %v5843, %v5844
        %5846 = vadd.xlane.f32.xlu0 %v5845
        %v5847 = vpop.xlane.xlu0 %5846
        %v5848 = vadd.f32 %v5802, %v5803
        %v5849 = vadd.f32 %v5848, %v5804
        %v5850 = vsel %vm5428, %v5805, 0.0
        %v5851 = vadd.f32 %v5849, %v5850
        %5852 = vadd.xlane.f32.xlu0 %v5851
        %v5853 = vpop.xlane.xlu0 %5852
        %v5854 = vadd.f32 %v5811, %v5817
        %v5855 = vadd.f32 %v5854, %v5823
        %v5856 = vadd.f32 %v5855, %v5829
        %v5857 = vadd.f32 %v5856, %v5835
        %v5858 = vadd.f32 %v5857, %v5841
        %v5859 = vadd.f32 %v5858, %v5847
        %v5860 = vadd.f32 %v5859, %v5853
        %v5861 = vrot.slane %v5860, 4
        %v5862 = vadd.f32 %v5860, %v5861
        %v5863 = vrot.slane %v5862, 2
        %v5864 = vadd.f32 %v5862, %v5863
        %v5865 = vrot.slane %v5864, 1
        %v5866 = vadd.f32 %v5864, %v5865
        %s5867 = scalar_lea.vmem [#allocation9], 768
        %v5868 = vld [vmem:[%s5867] sm:$0xff]
        %v5869 = vld [vmem:[%s5867 + $0x8] sm:$0xff]
        %v5870 = vld [vmem:[%s5867 + $0x10] sm:$0xff]
        %v5871 = vld [vmem:[%s5867 + $0x18] sm:$0xff]
        %v5872 = vld [vmem:[%s5867 + $0x20] sm:$0xff]
        %v5873 = vld [vmem:[%s5867 + $0x28] sm:$0xff]
        %v5874 = vld [vmem:[%s5867 + $0x30] sm:$0xff]
        %v5875 = vld [vmem:[%s5867 + $0x38] sm:$0xff]
        %v5876 = vld [vmem:[%s5867 + $0x40] sm:$0xff]
        %v5877 = vld [vmem:[%s5867 + $0x48] sm:$0xff]
        %v5878 = vld [vmem:[%s5867 + $0x50] sm:$0xff]
        %v5879 = vld [vmem:[%s5867 + $0x58] sm:$0xff]
        %v5880 = vld [vmem:[%s5867 + $0x60] sm:$0xff]
        %v5881 = vld [vmem:[%s5867 + $0x68] sm:$0xff]
        %v5882 = vld [vmem:[%s5867 + $0x70] sm:$0xff]
        %v5883 = vld [vmem:[%s5867 + $0x78] sm:$0xff]
        %v5884 = vld [vmem:[%s5867 + $0x80] sm:$0xff]
        %v5885 = vld [vmem:[%s5867 + $0x88] sm:$0xff]
        %v5886 = vld [vmem:[%s5867 + $0x90] sm:$0xff]
        %v5887 = vld [vmem:[%s5867 + $0x98] sm:$0xff]
        %v5888 = vld [vmem:[%s5867 + $0xa0] sm:$0xff]
        %v5889 = vld [vmem:[%s5867 + $0xa8] sm:$0xff]
        %v5890 = vld [vmem:[%s5867 + $0xb0] sm:$0xff]
        %v5891 = vld [vmem:[%s5867 + $0xb8] sm:$0xff]
        %v5892 = vld [vmem:[%s5867 + $0xc0] sm:$0xff]
        %v5893 = vld [vmem:[%s5867 + $0xc8] sm:$0xff]
        %v5894 = vld [vmem:[%s5867 + $0xd0] sm:$0xff]
        %v5895 = vld [vmem:[%s5867 + $0xd8] sm:$0xff]
        %v5896 = vld [vmem:[%s5867 + $0xe0] sm:$0xff]
        %v5897 = vld [vmem:[%s5867 + $0xe8] sm:$0xff]
        %v5898 = vld [vmem:[%s5867 + $0xf0] sm:$0xff]
        %v5899 = vld [vmem:[%s5867 + $0xf8] sm:$0xff]
        %v5900 = vmul.f32 %v5868, %v5490
        %v5901 = vmul.f32 %v5869, %v5491
        %v5902 = vmul.f32 %v5870, %v5492
        %v5903 = vmul.f32 %v5871, %v5493
        %v5904 = vmul.f32 %v5872, %v5494
        %v5905 = vmul.f32 %v5873, %v5495
        %v5906 = vmul.f32 %v5874, %v5496
        %v5907 = vmul.f32 %v5875, %v5497
        %v5908 = vmul.f32 %v5876, %v5498
        %v5909 = vmul.f32 %v5877, %v5499
        %v5910 = vmul.f32 %v5878, %v5500
        %v5911 = vmul.f32 %v5879, %v5501
        %v5912 = vmul.f32 %v5880, %v5502
        %v5913 = vmul.f32 %v5881, %v5503
        %v5914 = vmul.f32 %v5882, %v5504
        %v5915 = vmul.f32 %v5883, %v5505
        %v5916 = vmul.f32 %v5884, %v5506
        %v5917 = vmul.f32 %v5885, %v5507
        %v5918 = vmul.f32 %v5886, %v5508
        %v5919 = vmul.f32 %v5887, %v5509
        %v5920 = vmul.f32 %v5888, %v5510
        %v5921 = vmul.f32 %v5889, %v5511
        %v5922 = vmul.f32 %v5890, %v5512
        %v5923 = vmul.f32 %v5891, %v5513
        %v5924 = vmul.f32 %v5892, %v5514
        %v5925 = vmul.f32 %v5893, %v5515
        %v5926 = vmul.f32 %v5894, %v5516
        %v5927 = vmul.f32 %v5895, %v5517
        %v5928 = vmul.f32 %v5896, %v5518
        %v5929 = vmul.f32 %v5897, %v5519
        %v5930 = vmul.f32 %v5898, %v5520
        %v5931 = vmul.f32 %v5899, %v5521
        %v5932 = vadd.f32 %v5900, %v5901
        %v5933 = vadd.f32 %v5932, %v5902
        %v5934 = vsel %vm5428, %v5903, 0.0
        %v5935 = vadd.f32 %v5933, %v5934
        %5936 = vadd.xlane.f32.xlu0 %v5935
        %v5937 = vpop.xlane.xlu0 %5936
        %v5938 = vadd.f32 %v5904, %v5905
        %v5939 = vadd.f32 %v5938, %v5906
        %v5940 = vsel %vm5428, %v5907, 0.0
        %v5941 = vadd.f32 %v5939, %v5940
        %5942 = vadd.xlane.f32.xlu0 %v5941
        %v5943 = vpop.xlane.xlu0 %5942
        %v5944 = vadd.f32 %v5908, %v5909
        %v5945 = vadd.f32 %v5944, %v5910
        %v5946 = vsel %vm5428, %v5911, 0.0
        %v5947 = vadd.f32 %v5945, %v5946
        %5948 = vadd.xlane.f32.xlu0 %v5947
        %v5949 = vpop.xlane.xlu0 %5948
        %v5950 = vadd.f32 %v5912, %v5913
        %v5951 = vadd.f32 %v5950, %v5914
        %v5952 = vsel %vm5428, %v5915, 0.0
        %v5953 = vadd.f32 %v5951, %v5952
        %5954 = vadd.xlane.f32.xlu0 %v5953
        %v5955 = vpop.xlane.xlu0 %5954
        %v5956 = vadd.f32 %v5916, %v5917
        %v5957 = vadd.f32 %v5956, %v5918
        %v5958 = vsel %vm5428, %v5919, 0.0
        %v5959 = vadd.f32 %v5957, %v5958
        %5960 = vadd.xlane.f32.xlu0 %v5959
        %v5961 = vpop.xlane.xlu0 %5960
        %v5962 = vadd.f32 %v5920, %v5921
        %v5963 = vadd.f32 %v5962, %v5922
        %v5964 = vsel %vm5428, %v5923, 0.0
        %v5965 = vadd.f32 %v5963, %v5964
        %5966 = vadd.xlane.f32.xlu0 %v5965
        %v5967 = vpop.xlane.xlu0 %5966
        %v5968 = vadd.f32 %v5924, %v5925
        %v5969 = vadd.f32 %v5968, %v5926
        %v5970 = vsel %vm5428, %v5927, 0.0
        %v5971 = vadd.f32 %v5969, %v5970
        %5972 = vadd.xlane.f32.xlu0 %v5971
        %v5973 = vpop.xlane.xlu0 %5972
        %v5974 = vadd.f32 %v5928, %v5929
        %v5975 = vadd.f32 %v5974, %v5930
        %v5976 = vsel %vm5428, %v5931, 0.0
        %v5977 = vadd.f32 %v5975, %v5976
        %5978 = vadd.xlane.f32.xlu0 %v5977
        %v5979 = vpop.xlane.xlu0 %5978
        %v5980 = vadd.f32 %v5937, %v5943
        %v5981 = vadd.f32 %v5980, %v5949
        %v5982 = vadd.f32 %v5981, %v5955
        %v5983 = vadd.f32 %v5982, %v5961
        %v5984 = vadd.f32 %v5983, %v5967
        %v5985 = vadd.f32 %v5984, %v5973
        %v5986 = vadd.f32 %v5985, %v5979
        %v5987 = vrot.slane %v5986, 4
        %v5988 = vadd.f32 %v5986, %v5987
        %v5989 = vrot.slane %v5988, 2
        %v5990 = vadd.f32 %v5988, %v5989
        %v5991 = vrot.slane %v5990, 1
        %v5992 = vadd.f32 %v5990, %v5991
        %vm5993 = vcmask 7168
        %v5994 = vsel %vm5993, %v5614, %v5740
        %vm5995 = vcmask 15360
        %v5996 = vsel %vm5995, %v5994, %v5866
        %vm5997 = vcmask 23552
        %v5998 = vsel %vm5997, %v5996, %v5992
        %v5999 = vld [vmem:[%s8] sm:$0x1]
        %v6000 = vadd.f32 %v5998, %v5999
        %vm6001 = vcmask 24576
        %6002 = vst.msk [vmem:[%s339] sm:$0x1] %vm6001, %v6000
        %s6003 = sand.u32 %s226, 1
        %s6004 = scalar_lea.sflag [#allocation11], %s6003
        %s6005 = sand.u32 %s226, 1
        %s6006 = scalar_lea.vmem [#allocation12], %s6005
        // Predicated region
        $region61: #{my_cnn_forward.1} parent=55 // pred_check
          %p6007 = pneg %p236
        $region62: #{my_cnn_forward.1} parent=55 // pred_check_branch
          %6009 = sbr.rel (%p6007) target = $region64
        $region63: #{my_cnn_forward.1} parent=55 // pred_region
          %s6011 = ssub.s32 16, 16
          %6012 = vsyncadd %s6004, %s6011
          %s6013 = smul.addr %s24, 16
          %s6014 = scalar_lea.hbm %s9, %s6013
          %s6016 = sshll.u32 %s6006, 4
          %s6017 = int_to_ptr.vmem [resolvable:$true] %s6016
          %6019 = dma.vmem_to_hbm [thread:$0]  %s6017, 16, %s6014, %s6004
        $region64: #{my_cnn_forward.1} parent=55 // pred_fallthru
          _
      $region56: #{my_cnn_forward.1} parent=5 // pred_fallthru
        _
      %p6020 = scmp.le.s32.totalorder 2, %s19
      // Predicated region
      $region65: #{my_cnn_forward.1} parent=5 // pred_check
        %p6021 = pneg %p6020
      $region66: #{my_cnn_forward.1} parent=5 // pred_check_branch
        %6023 = sbr.rel (%p6021) target = $region68
      $region67: #{my_cnn_forward.1} parent=5 // pred_region
        %s6024 = ssub.s32 %s19, 2
        // Predicated region
        $region69: #{my_cnn_forward.1} parent=67 // pred_check
          %p6025 = pneg %p242
        $region70: #{my_cnn_forward.1} parent=67 // pred_check_branch
          %6027 = sbr.rel (%p6025) target = $region72
        $region71: #{my_cnn_forward.1} parent=67 // pred_region
          %s6028 = sand.u32 %s227, 1
          %s6029 = scalar_lea.sflag [#allocation11], %s6028
          %s6030 = sand.u32 %s227, 1
          %s6031 = scalar_lea.vmem [#allocation12], %s6030
          %6032 = dma.done %s6029, 16
        $region72: #{my_cnn_forward.1} parent=67 // pred_fallthru
          _
      $region68: #{my_cnn_forward.1} parent=5 // pred_fallthru
        _
    $region6: #{my_cnn_forward.1} parent=1 // loop_footer
      %s23 = sadd.s32 1, %s19
    $region7: #{my_cnn_forward.1} parent=1 // loop_footer_branch
      %18 = sbr.rel target = $region3
    $region8: #{my_cnn_forward.1} parent=1 // loop_exit
      _
    %6033 = vsyncpa [#allocation10], 1
    %s6034 = scalar_lea.sflag [#allocation10], 1
    %6035 = vsyncpa %s6034, 1
    %6036 = vsyncpa [#allocation11], 1
    %s6037 = scalar_lea.sflag [#allocation11], 1
    %6038 = vsyncpa %s6037, 1

</llo_original>
